<compile_context>
chip_gen: v5e
topology: v5e:2x2
jax: 0.10.0
libtpu: 0.0.40
codegen_flags: <defaults>
</compile_context>

<pallas_src>
import jax
import jax.numpy as jnp
from jax.experimental import pallas as pl
from jax.experimental.pallas import tpu as pltpu

# ----------------------------- static problem geometry -----------------------------
LANE = 128                       # lane width / channel padding
C_IN, C1, C2 = 3, 8, 16          # input / conv1 / conv2 channels
NUM_CLASSES = 100

H0 = W0 = 16                     # input spatial size
HP1 = WP1 = H0 + 2               # 18 : zero-padded conv1 input spatial
S1P = HP1 * WP1                  # 324: padded conv1 input pixels per image
R1 = 368                         # conv1 input rows per image (>= S1P + 2*WP1 + 2, mult of 8)
M1 = 328                         # conv1 output rows computed  (>= S1P, mult of 8)

H1 = W1 = H0 // 2                # 8  : pool1 output spatial
HP2 = WP2 = H1 + 2               # 10 : zero-padded conv2 input spatial
R2 = 128                         # conv2 input scratch rows (>= M2 + 2*WP2 + 2)
M2 = 104                         # conv2 output rows computed (>= HP2*WP2, mult of 8)

H2 = W2 = H1 // 2                # 4  : pool2 output spatial
S2 = H2 * W2                     # 16 : flattened spatial positions feeding the classifier
FC_K = S2 * LANE                 # 2048: padded classifier contraction dim


# --------------------------------- fused kernel ------------------------------------
def _cifar_fused_kernel(x1_ref, w1_ref, b1_ref, w2_ref, b2_ref, wfc_ref, bfc_ref,
                        out_ref, y1_ref, x2_ref, y2_ref, fcin_ref):
    # ---- conv1: 3x3 / pad 1 as 9 shifted-slice matmuls, accumulated in f32 ----------
    for k in range(9):
        dh, dw = k // 3, k % 3
        off = dh * WP1 + dw
        lhs = x1_ref[pl.ds(off, M1), :].astype(jnp.bfloat16)          # (M1, 128)
        contrib = jnp.dot(lhs, w1_ref[k], preferred_element_type=jnp.float32)
        if k == 0:
            y1_ref[...] = contrib
        else:
            y1_ref[...] += contrib
    y1_ref[...] = jnp.maximum(y1_ref[...] + b1_ref[...], 0.0)         # bias + ReLU (f32)

    # ---- pool1 (2x2, stride 2) scattered into the zero-padded conv2 input -----------
    x2_ref[...] = jnp.zeros_like(x2_ref)                               # border + tail = 0
    for ho in range(H1):                                               # 8 pooled rows
        r0 = (2 * ho) * WP1
        r1 = (2 * ho + 1) * WP1
        top = jnp.maximum(y1_ref[pl.ds(r0, W1, stride=2), :],
                          y1_ref[pl.ds(r0 + 1, W1, stride=2), :])
        bot = jnp.maximum(y1_ref[pl.ds(r1, W1, stride=2), :],
                          y1_ref[pl.ds(r1 + 1, W1, stride=2), :])
        x2_ref[pl.ds((ho + 1) * WP2 + 1, W1), :] = jnp.maximum(top, bot)

    # ---- conv2: same shifted-slice scheme ---------------------------------------------
    for k in range(9):
        dh, dw = k // 3, k % 3
        off = dh * WP2 + dw
        lhs = x2_ref[pl.ds(off, M2), :].astype(jnp.bfloat16)           # (M2, 128)
        contrib = jnp.dot(lhs, w2_ref[k], preferred_element_type=jnp.float32)
        if k == 0:
            y2_ref[...] = contrib
        else:
            y2_ref[...] += contrib
    y2_ref[...] = jnp.maximum(y2_ref[...] + b2_ref[...], 0.0)

    # ---- pool2 + flatten (torch NCHW order is folded into the FC weight layout) ------
    for s in range(S2):                                                # 16 pooled pixels
        ho, wo = s // W2, s % W2
        r = (2 * ho) * WP2 + 2 * wo
        p = jnp.maximum(
            jnp.maximum(y2_ref[pl.ds(r, 1), :], y2_ref[pl.ds(r + 1, 1), :]),
            jnp.maximum(y2_ref[pl.ds(r + WP2, 1), :], y2_ref[pl.ds(r + WP2 + 1, 1), :]))
        fcin_ref[:, pl.ds(s * LANE, LANE)] = p                         # (1, 128) lane chunk

    # ---- classifier: single lane-dense matmul + bias ---------------------------------
    feat = fcin_ref[...].astype(jnp.bfloat16)                          # (1, 2048)
    logits = jnp.dot(feat, wfc_ref[...], preferred_element_type=jnp.float32)
    logits = logits + bfc_ref[...]                                     # (1, 128)
    out_ref[...] = jnp.broadcast_to(logits, (8, LANE))                 # full (8,128) tile


# --------------------------------- host wrapper -------------------------------------
@jax.jit
def cifar_forward(x_nchw, params):
    w1, b1, w2, b2, wfc, bfc = params
    n = x_nchw.shape[0]

    # Input layout prep (one tiny fused XLA op on the raw input; intermediates never
    # touch HBM): NCHW -> NHWC, zero-pad the 3x3 halo + channel lanes, flatten spatial.
    x = jnp.transpose(x_nchw, (0, 2, 3, 1)).astype(jnp.float32)        # (N, 16, 16, 3)
    x = jnp.pad(x, ((0, 0), (1, 1), (1, 1), (0, LANE - C_IN)))          # (N, 18, 18, 128)
    x = x.reshape(n, S1P, LANE)
    x = jnp.pad(x, ((0, 0), (0, R1 - S1P), (0, 0)))                     # (N, 368, 128)

    out = pl.pallas_call(
        _cifar_fused_kernel,
        out_shape=jax.ShapeDtypeStruct((n, 8, LANE), jnp.float32),
        grid=(n,),
        in_specs=[
            pl.BlockSpec((None, R1, LANE), lambda i: (i, 0, 0)),   # per-image padded input
            pl.BlockSpec((9, LANE, LANE), lambda i: (0, 0, 0)),    # conv1 weights (bf16)
            pl.BlockSpec((1, LANE), lambda i: (0, 0)),             # conv1 bias   (f32)
            pl.BlockSpec((9, LANE, LANE), lambda i: (0, 0, 0)),    # conv2 weights (bf16)
            pl.BlockSpec((1, LANE), lambda i: (0, 0)),             # conv2 bias   (f32)
            pl.BlockSpec((FC_K, LANE), lambda i: (0, 0)),          # fc weight (bf16)
            pl.BlockSpec((1, LANE), lambda i: (0, 0)),             # fc bias   (f32)
        ],
        out_specs=pl.BlockSpec((None, 8, LANE), lambda i: (i, 0, 0)),
        scratch_shapes=[
            pltpu.VMEM((M1, LANE), jnp.float32),   # conv1 output (post-ReLU)
            pltpu.VMEM((R2, LANE), jnp.float32),   # zero-padded conv2 input
            pltpu.VMEM((M2, LANE), jnp.float32),   # conv2 output (post-ReLU)
            pltpu.VMEM((1, FC_K), jnp.float32),    # flattened classifier input
        ],
        compiler_params=pltpu.CompilerParams(
            dimension_semantics=("parallel",)),
    )(x, w1, b1, w2, b2, wfc, bfc)

    return out[:, 0, :NUM_CLASSES]


# ------------------------------ parameter handling ----------------------------------
def init_raw_params(key):
    """Deterministic PyTorch-shaped parameters."""
    ks = jax.random.split(key, 6)
    w1 = jax.random.normal(ks[0], (C1, C_IN, 3, 3), jnp.float32) * 0.1
    b1 = jax.random.normal(ks[1], (C1,), jnp.float32) * 0.1
    w2 = jax.random.normal(ks[2], (C2, C1, 3, 3), jnp.float32) * 0.1
    b2 = jax.random.normal(ks[3], (C2,), jnp.float32) * 0.1
    wfc = jax.random.normal(ks[4], (NUM_CLASSES, C2 * S2), jnp.float32) * 0.05
    bfc = jax.random.normal(ks[5], (NUM_CLASSES,), jnp.float32) * 0.05
    return w1, b1, w2, b2, wfc, bfc


def pack_params(w1_t, b1_t, w2_t, b2_t, wfc_t, bfc_t):
    """One-time conversion of PyTorch-shaped weights into kernel-friendly, lane-padded
    bf16 layouts (conv: (9, 128, 128); fc: (2048, 128) with NCHW flatten order folded in)."""
    def pack_conv(w):
        cout, cin = w.shape[0], w.shape[1]
        wk = jnp.transpose(w, (2, 3, 1, 0)).reshape(9, cin, cout)   # (kh*kw, cin, cout)
        return (jnp.zeros((9, LANE, LANE), jnp.float32)
                .at[:, :cin, :cout].set(wk).astype(jnp.bfloat16))

    def pack_bias(b):
        return jnp.zeros((1, LANE), jnp.float32).at[0, :b.shape[0]].set(b)

    # torch flat feature index = c*S2 + s ; kernel flat feature index = s*LANE + c
    wfc_r = jnp.transpose(wfc_t.reshape(NUM_CLASSES, C2, S2), (2, 1, 0))   # (s, c, j)
    wfc = (jnp.zeros((S2, LANE, LANE), jnp.float32)
           .at[:, :C2, :NUM_CLASSES].set(wfc_r)
           .reshape(FC_K, LANE).astype(jnp.bfloat16))

    return (pack_conv(w1_t), pack_bias(b1_t),
            pack_conv(w2_t), pack_bias(b2_t),
            wfc, pack_bias(bfc_t))


# ------------------------------ pure-JAX reference ----------------------------------
def reference_forward(x_nchw, w1, b1, w2, b2, wfc, bfc):
    def conv(x, w, b):
        y = jax.lax.conv_general_dilated(x, w, (1, 1), ((1, 1), (1, 1)),
                                         dimension_numbers=("NCHW", "OIHW", "NCHW"))
        return jax.nn.relu(y + b[None, :, None, None])

    def pool(x):
        n, c, h, w = x.shape
        return jnp.max(x.reshape(n, c, h // 2, 2, w // 2, 2), axis=(3, 5))

    x = pool(conv(x_nchw, w1, b1))
    x = pool(conv(x, w2, b2))
    x = x.reshape(x.shape[0], -1)          # torch's x.view(N, -1) (NCHW order)
    return x @ wfc.T + bfc


# --------------------------------------- main ---------------------------------------
if __name__ == "__main__":
    key = jax.random.PRNGKey(0)
    kx, kp = jax.random.split(key)

    # Small synthetic NCHW input consistent with the module: batch=2, 3 channels, 16x16.
    x = jax.random.normal(kx, (2, C_IN, H0, W0), jnp.float32)

    raw = init_raw_params(kp)
    params = pack_params(*raw)

    logits = jax.block_until_ready(cifar_forward(x, params))

    assert logits.shape == (2, NUM_CLASSES), logits.shape
    assert logits.dtype == jnp.float32
    assert bool(jnp.all(jnp.isfinite(logits)))

    # Numerical check vs. a pure-JAX f32 reference (loose tolerance for bf16 matmuls).
    ref = jax.block_until_ready(reference_forward(x, *raw))
    max_err = float(jnp.max(jnp.abs(logits - ref)))
    assert max_err < 1e-1, f"max |err| = {max_err}"

    print("KERNEL_OK")
</pallas_src>

<mosaic_0001>
module attributes {stable_mosaic.version = 11 : i64} {
  func.func @_cifar_fused_kernel(%arg0: i32, %arg1: memref<1x368x128xf32, #tpu.memory_space<vmem>>, %arg2: memref<9x128x128xbf16, #tpu.memory_space<vmem>>, %arg3: memref<1x128xf32, #tpu.memory_space<vmem>>, %arg4: memref<9x128x128xbf16, #tpu.memory_space<vmem>>, %arg5: memref<1x128xf32, #tpu.memory_space<vmem>>, %arg6: memref<2048x128xbf16, #tpu.memory_space<vmem>>, %arg7: memref<1x128xf32, #tpu.memory_space<vmem>>, %arg8: memref<1x8x128xf32, #tpu.memory_space<vmem>>, %arg9: memref<328x128xf32, #tpu.memory_space<vmem>>, %arg10: memref<128x128xf32, #tpu.memory_space<vmem>>, %arg11: memref<104x128xf32, #tpu.memory_space<vmem>>, %arg12: memref<1x2048xf32, #tpu.memory_space<vmem>>) attributes {dimension_semantics = [#tpu.dimension_semantics<parallel>], iteration_bounds = array<i64: 2>, scalar_prefetch = 0 : i64, scratch_operands = 4 : i64, tpu.core_type = #tpu.core_type<tc>, window_params = [{transform_indices = @transform_0, window_bounds = array<i64: 1, 368, 128>}, {pipeline_mode = #tpu.pipeline_mode<synchronous>, transform_indices = @transform_1, window_bounds = array<i64: 9, 128, 128>}, {pipeline_mode = #tpu.pipeline_mode<synchronous>, transform_indices = @transform_2, window_bounds = array<i64: 1, 128>}, {pipeline_mode = #tpu.pipeline_mode<synchronous>, transform_indices = @transform_3, window_bounds = array<i64: 9, 128, 128>}, {pipeline_mode = #tpu.pipeline_mode<synchronous>, transform_indices = @transform_4, window_bounds = array<i64: 1, 128>}, {pipeline_mode = #tpu.pipeline_mode<synchronous>, transform_indices = @transform_5, window_bounds = array<i64: 2048, 128>}, {pipeline_mode = #tpu.pipeline_mode<synchronous>, transform_indices = @transform_6, window_bounds = array<i64: 1, 128>}, {transform_indices = @transform_7, window_bounds = array<i64: 1, 8, 128>}]} {
    %c0 = arith.constant 0 : index
    %c0_0 = arith.constant 0 : index
    %c0_1 = arith.constant 0 : index
    %0 = vector.load %arg1[%c0, %c0_0, %c0_1] : memref<1x368x128xf32, #tpu.memory_space<vmem>>, vector<1x328x128xf32>
    %1 = vector.shape_cast %0 : vector<1x328x128xf32> to vector<328x128xf32>
    %2 = arith.truncf %1 : vector<328x128xf32> to vector<328x128xbf16>
    %c0_2 = arith.constant 0 : index
    %c0_3 = arith.constant 0 : index
    %c0_4 = arith.constant 0 : index
    %3 = vector.load %arg2[%c0_2, %c0_3, %c0_4] : memref<9x128x128xbf16, #tpu.memory_space<vmem>>, vector<1x128x128xbf16>
    %4 = vector.shape_cast %3 : vector<1x128x128xbf16> to vector<128x128xbf16>
    %cst = arith.constant dense<0.000000e+00> : vector<328x128xf32>
    %5 = tpu.matmul %2, %4, %cst {dimension_numbers = #tpu.dot_dimension_numbers<[1], [0], [0], [1], [0, 0, 1, 1], [], []>} : vector<328x128xbf16>, vector<128x128xbf16>, vector<328x128xf32> -> vector<328x128xf32>
    %c0_5 = arith.constant 0 : index
    %c0_6 = arith.constant 0 : index
    %6 = vector.load %arg9[%c0_5, %c0_6] : memref<328x128xf32, #tpu.memory_space<vmem>>, vector<328x128xf32>
    tpu.vector_store %arg9[%c0_5, %c0_6], %5 {strides = array<i32>} : memref<328x128xf32, #tpu.memory_space<vmem>>, vector<328x128xf32>,
    %c0_7 = arith.constant 0 : index
    %c1 = arith.constant 1 : index
    %c0_8 = arith.constant 0 : index
    %7 = vector.load %arg1[%c0_7, %c1, %c0_8] : memref<1x368x128xf32, #tpu.memory_space<vmem>>, vector<1x328x128xf32>
    %8 = vector.shape_cast %7 : vector<1x328x128xf32> to vector<328x128xf32>
    %9 = arith.truncf %8 : vector<328x128xf32> to vector<328x128xbf16>
    %c1_9 = arith.constant 1 : index
    %c0_10 = arith.constant 0 : index
    %c0_11 = arith.constant 0 : index
    %10 = vector.load %arg2[%c1_9, %c0_10, %c0_11] : memref<9x128x128xbf16, #tpu.memory_space<vmem>>, vector<1x128x128xbf16>
    %11 = vector.shape_cast %10 : vector<1x128x128xbf16> to vector<128x128xbf16>
    %cst_12 = arith.constant dense<0.000000e+00> : vector<328x128xf32>
    %12 = tpu.matmul %9, %11, %cst_12 {dimension_numbers = #tpu.dot_dimension_numbers<[1], [0], [0], [1], [0, 0, 1, 1], [], []>} : vector<328x128xbf16>, vector<128x128xbf16>, vector<328x128xf32> -> vector<328x128xf32>
    %c0_13 = arith.constant 0 : index
    %c0_14 = arith.constant 0 : index
    %13 = vector.load %arg9[%c0_13, %c0_14] : memref<328x128xf32, #tpu.memory_space<vmem>>, vector<328x128xf32>
    %14 = arith.addf %13, %12 : vector<328x128xf32>
    %c0_15 = arith.constant 0 : index
    %c0_16 = arith.constant 0 : index
    %15 = vector.load %arg9[%c0_15, %c0_16] : memref<328x128xf32, #tpu.memory_space<vmem>>, vector<328x128xf32>
    tpu.vector_store %arg9[%c0_15, %c0_16], %14 {strides = array<i32>} : memref<328x128xf32, #tpu.memory_space<vmem>>, vector<328x128xf32>,
    %c0_17 = arith.constant 0 : index
    %c2 = arith.constant 2 : index
    %c0_18 = arith.constant 0 : index
    %16 = vector.load %arg1[%c0_17, %c2, %c0_18] : memref<1x368x128xf32, #tpu.memory_space<vmem>>, vector<1x328x128xf32>
    %17 = vector.shape_cast %16 : vector<1x328x128xf32> to vector<328x128xf32>
    %18 = arith.truncf %17 : vector<328x128xf32> to vector<328x128xbf16>
    %c2_19 = arith.constant 2 : index
    %c0_20 = arith.constant 0 : index
    %c0_21 = arith.constant 0 : index
    %19 = vector.load %arg2[%c2_19, %c0_20, %c0_21] : memref<9x128x128xbf16, #tpu.memory_space<vmem>>, vector<1x128x128xbf16>
    %20 = vector.shape_cast %19 : vector<1x128x128xbf16> to vector<128x128xbf16>
    %cst_22 = arith.constant dense<0.000000e+00> : vector<328x128xf32>
    %21 = tpu.matmul %18, %20, %cst_22 {dimension_numbers = #tpu.dot_dimension_numbers<[1], [0], [0], [1], [0, 0, 1, 1], [], []>} : vector<328x128xbf16>, vector<128x128xbf16>, vector<328x128xf32> -> vector<328x128xf32>
    %c0_23 = arith.constant 0 : index
    %c0_24 = arith.constant 0 : index
    %22 = vector.load %arg9[%c0_23, %c0_24] : memref<328x128xf32, #tpu.memory_space<vmem>>, vector<328x128xf32>
    %23 = arith.addf %22, %21 : vector<328x128xf32>
    %c0_25 = arith.constant 0 : index
    %c0_26 = arith.constant 0 : index
    %24 = vector.load %arg9[%c0_25, %c0_26] : memref<328x128xf32, #tpu.memory_space<vmem>>, vector<328x128xf32>
    tpu.vector_store %arg9[%c0_25, %c0_26], %23 {strides = array<i32>} : memref<328x128xf32, #tpu.memory_space<vmem>>, vector<328x128xf32>,
    %c0_27 = arith.constant 0 : index
    %c18 = arith.constant 18 : index
    %c0_28 = arith.constant 0 : index
    %25 = vector.load %arg1[%c0_27, %c18, %c0_28] : memref<1x368x128xf32, #tpu.memory_space<vmem>>, vector<1x328x128xf32>
    %26 = vector.shape_cast %25 : vector<1x328x128xf32> to vector<328x128xf32>
    %27 = arith.truncf %26 : vector<328x128xf32> to vector<328x128xbf16>
    %c3 = arith.constant 3 : index
    %c0_29 = arith.constant 0 : index
    %c0_30 = arith.constant 0 : index
    %28 = vector.load %arg2[%c3, %c0_29, %c0_30] : memref<9x128x128xbf16, #tpu.memory_space<vmem>>, vector<1x128x128xbf16>
    %29 = vector.shape_cast %28 : vector<1x128x128xbf16> to vector<128x128xbf16>
    %cst_31 = arith.constant dense<0.000000e+00> : vector<328x128xf32>
    %30 = tpu.matmul %27, %29, %cst_31 {dimension_numbers = #tpu.dot_dimension_numbers<[1], [0], [0], [1], [0, 0, 1, 1], [], []>} : vector<328x128xbf16>, vector<128x128xbf16>, vector<328x128xf32> -> vector<328x128xf32>
    %c0_32 = arith.constant 0 : index
    %c0_33 = arith.constant 0 : index
    %31 = vector.load %arg9[%c0_32, %c0_33] : memref<328x128xf32, #tpu.memory_space<vmem>>, vector<328x128xf32>
    %32 = arith.addf %31, %30 : vector<328x128xf32>
    %c0_34 = arith.constant 0 : index
    %c0_35 = arith.constant 0 : index
    %33 = vector.load %arg9[%c0_34, %c0_35] : memref<328x128xf32, #tpu.memory_space<vmem>>, vector<328x128xf32>
    tpu.vector_store %arg9[%c0_34, %c0_35], %32 {strides = array<i32>} : memref<328x128xf32, #tpu.memory_space<vmem>>, vector<328x128xf32>,
    %c0_36 = arith.constant 0 : index
    %c19 = arith.constant 19 : index
    %c0_37 = arith.constant 0 : index
    %34 = vector.load %arg1[%c0_36, %c19, %c0_37] : memref<1x368x128xf32, #tpu.memory_space<vmem>>, vector<1x328x128xf32>
    %35 = vector.shape_cast %34 : vector<1x328x128xf32> to vector<328x128xf32>
    %36 = arith.truncf %35 : vector<328x128xf32> to vector<328x128xbf16>
    %c4 = arith.constant 4 : index
    %c0_38 = arith.constant 0 : index
    %c0_39 = arith.constant 0 : index
    %37 = vector.load %arg2[%c4, %c0_38, %c0_39] : memref<9x128x128xbf16, #tpu.memory_space<vmem>>, vector<1x128x128xbf16>
    %38 = vector.shape_cast %37 : vector<1x128x128xbf16> to vector<128x128xbf16>
    %cst_40 = arith.constant dense<0.000000e+00> : vector<328x128xf32>
    %39 = tpu.matmul %36, %38, %cst_40 {dimension_numbers = #tpu.dot_dimension_numbers<[1], [0], [0], [1], [0, 0, 1, 1], [], []>} : vector<328x128xbf16>, vector<128x128xbf16>, vector<328x128xf32> -> vector<328x128xf32>
    %c0_41 = arith.constant 0 : index
    %c0_42 = arith.constant 0 : index
    %40 = vector.load %arg9[%c0_41, %c0_42] : memref<328x128xf32, #tpu.memory_space<vmem>>, vector<328x128xf32>
    %41 = arith.addf %40, %39 : vector<328x128xf32>
    %c0_43 = arith.constant 0 : index
    %c0_44 = arith.constant 0 : index
    %42 = vector.load %arg9[%c0_43, %c0_44] : memref<328x128xf32, #tpu.memory_space<vmem>>, vector<328x128xf32>
    tpu.vector_store %arg9[%c0_43, %c0_44], %41 {strides = array<i32>} : memref<328x128xf32, #tpu.memory_space<vmem>>, vector<328x128xf32>,
    %c0_45 = arith.constant 0 : index
    %c20 = arith.constant 20 : index
    %c0_46 = arith.constant 0 : index
    %43 = vector.load %arg1[%c0_45, %c20, %c0_46] : memref<1x368x128xf32, #tpu.memory_space<vmem>>, vector<1x328x128xf32>
    %44 = vector.shape_cast %43 : vector<1x328x128xf32> to vector<328x128xf32>
    %45 = arith.truncf %44 : vector<328x128xf32> to vector<328x128xbf16>
    %c5 = arith.constant 5 : index
    %c0_47 = arith.constant 0 : index
    %c0_48 = arith.constant 0 : index
    %46 = vector.load %arg2[%c5, %c0_47, %c0_48] : memref<9x128x128xbf16, #tpu.memory_space<vmem>>, vector<1x128x128xbf16>
    %47 = vector.shape_cast %46 : vector<1x128x128xbf16> to vector<128x128xbf16>
    %cst_49 = arith.constant dense<0.000000e+00> : vector<328x128xf32>
    %48 = tpu.matmul %45, %47, %cst_49 {dimension_numbers = #tpu.dot_dimension_numbers<[1], [0], [0], [1], [0, 0, 1, 1], [], []>} : vector<328x128xbf16>, vector<128x128xbf16>, vector<328x128xf32> -> vector<328x128xf32>
    %c0_50 = arith.constant 0 : index
    %c0_51 = arith.constant 0 : index
    %49 = vector.load %arg9[%c0_50, %c0_51] : memref<328x128xf32, #tpu.memory_space<vmem>>, vector<328x128xf32>
    %50 = arith.addf %49, %48 : vector<328x128xf32>
    %c0_52 = arith.constant 0 : index
    %c0_53 = arith.constant 0 : index
    %51 = vector.load %arg9[%c0_52, %c0_53] : memref<328x128xf32, #tpu.memory_space<vmem>>, vector<328x128xf32>
    tpu.vector_store %arg9[%c0_52, %c0_53], %50 {strides = array<i32>} : memref<328x128xf32, #tpu.memory_space<vmem>>, vector<328x128xf32>,
    %c0_54 = arith.constant 0 : index
    %c36 = arith.constant 36 : index
    %c0_55 = arith.constant 0 : index
    %52 = vector.load %arg1[%c0_54, %c36, %c0_55] : memref<1x368x128xf32, #tpu.memory_space<vmem>>, vector<1x328x128xf32>
    %53 = vector.shape_cast %52 : vector<1x328x128xf32> to vector<328x128xf32>
    %54 = arith.truncf %53 : vector<328x128xf32> to vector<328x128xbf16>
    %c6 = arith.constant 6 : index
    %c0_56 = arith.constant 0 : index
    %c0_57 = arith.constant 0 : index
    %55 = vector.load %arg2[%c6, %c0_56, %c0_57] : memref<9x128x128xbf16, #tpu.memory_space<vmem>>, vector<1x128x128xbf16>
    %56 = vector.shape_cast %55 : vector<1x128x128xbf16> to vector<128x128xbf16>
    %cst_58 = arith.constant dense<0.000000e+00> : vector<328x128xf32>
    %57 = tpu.matmul %54, %56, %cst_58 {dimension_numbers = #tpu.dot_dimension_numbers<[1], [0], [0], [1], [0, 0, 1, 1], [], []>} : vector<328x128xbf16>, vector<128x128xbf16>, vector<328x128xf32> -> vector<328x128xf32>
    %c0_59 = arith.constant 0 : index
    %c0_60 = arith.constant 0 : index
    %58 = vector.load %arg9[%c0_59, %c0_60] : memref<328x128xf32, #tpu.memory_space<vmem>>, vector<328x128xf32>
    %59 = arith.addf %58, %57 : vector<328x128xf32>
    %c0_61 = arith.constant 0 : index
    %c0_62 = arith.constant 0 : index
    %60 = vector.load %arg9[%c0_61, %c0_62] : memref<328x128xf32, #tpu.memory_space<vmem>>, vector<328x128xf32>
    tpu.vector_store %arg9[%c0_61, %c0_62], %59 {strides = array<i32>} : memref<328x128xf32, #tpu.memory_space<vmem>>, vector<328x128xf32>,
    %c0_63 = arith.constant 0 : index
    %c37 = arith.constant 37 : index
    %c0_64 = arith.constant 0 : index
    %61 = vector.load %arg1[%c0_63, %c37, %c0_64] : memref<1x368x128xf32, #tpu.memory_space<vmem>>, vector<1x328x128xf32>
    %62 = vector.shape_cast %61 : vector<1x328x128xf32> to vector<328x128xf32>
    %63 = arith.truncf %62 : vector<328x128xf32> to vector<328x128xbf16>
    %c7 = arith.constant 7 : index
    %c0_65 = arith.constant 0 : index
    %c0_66 = arith.constant 0 : index
    %64 = vector.load %arg2[%c7, %c0_65, %c0_66] : memref<9x128x128xbf16, #tpu.memory_space<vmem>>, vector<1x128x128xbf16>
    %65 = vector.shape_cast %64 : vector<1x128x128xbf16> to vector<128x128xbf16>
    %cst_67 = arith.constant dense<0.000000e+00> : vector<328x128xf32>
    %66 = tpu.matmul %63, %65, %cst_67 {dimension_numbers = #tpu.dot_dimension_numbers<[1], [0], [0], [1], [0, 0, 1, 1], [], []>} : vector<328x128xbf16>, vector<128x128xbf16>, vector<328x128xf32> -> vector<328x128xf32>
    %c0_68 = arith.constant 0 : index
    %c0_69 = arith.constant 0 : index
    %67 = vector.load %arg9[%c0_68, %c0_69] : memref<328x128xf32, #tpu.memory_space<vmem>>, vector<328x128xf32>
    %68 = arith.addf %67, %66 : vector<328x128xf32>
    %c0_70 = arith.constant 0 : index
    %c0_71 = arith.constant 0 : index
    %69 = vector.load %arg9[%c0_70, %c0_71] : memref<328x128xf32, #tpu.memory_space<vmem>>, vector<328x128xf32>
    tpu.vector_store %arg9[%c0_70, %c0_71], %68 {strides = array<i32>} : memref<328x128xf32, #tpu.memory_space<vmem>>, vector<328x128xf32>,
    %c0_72 = arith.constant 0 : index
    %c38 = arith.constant 38 : index
    %c0_73 = arith.constant 0 : index
    %70 = vector.load %arg1[%c0_72, %c38, %c0_73] : memref<1x368x128xf32, #tpu.memory_space<vmem>>, vector<1x328x128xf32>
    %71 = vector.shape_cast %70 : vector<1x328x128xf32> to vector<328x128xf32>
    %72 = arith.truncf %71 : vector<328x128xf32> to vector<328x128xbf16>
    %c8 = arith.constant 8 : index
    %c0_74 = arith.constant 0 : index
    %c0_75 = arith.constant 0 : index
    %73 = vector.load %arg2[%c8, %c0_74, %c0_75] : memref<9x128x128xbf16, #tpu.memory_space<vmem>>, vector<1x128x128xbf16>
    %74 = vector.shape_cast %73 : vector<1x128x128xbf16> to vector<128x128xbf16>
    %cst_76 = arith.constant dense<0.000000e+00> : vector<328x128xf32>
    %75 = tpu.matmul %72, %74, %cst_76 {dimension_numbers = #tpu.dot_dimension_numbers<[1], [0], [0], [1], [0, 0, 1, 1], [], []>} : vector<328x128xbf16>, vector<128x128xbf16>, vector<328x128xf32> -> vector<328x128xf32>
    %c0_77 = arith.constant 0 : index
    %c0_78 = arith.constant 0 : index
    %76 = vector.load %arg9[%c0_77, %c0_78] : memref<328x128xf32, #tpu.memory_space<vmem>>, vector<328x128xf32>
    %77 = arith.addf %76, %75 : vector<328x128xf32>
    %c0_79 = arith.constant 0 : index
    %c0_80 = arith.constant 0 : index
    %78 = vector.load %arg9[%c0_79, %c0_80] : memref<328x128xf32, #tpu.memory_space<vmem>>, vector<328x128xf32>
    tpu.vector_store %arg9[%c0_79, %c0_80], %77 {strides = array<i32>} : memref<328x128xf32, #tpu.memory_space<vmem>>, vector<328x128xf32>,
    %c0_81 = arith.constant 0 : index
    %c0_82 = arith.constant 0 : index
    %79 = vector.load %arg9[%c0_81, %c0_82] : memref<328x128xf32, #tpu.memory_space<vmem>>, vector<328x128xf32>
    %c0_83 = arith.constant 0 : index
    %c0_84 = arith.constant 0 : index
    %80 = vector.load %arg3[%c0_83, %c0_84] : memref<1x128xf32, #tpu.memory_space<vmem>>, vector<1x128xf32>
    %81 = vector.broadcast %80 : vector<1x128xf32> to vector<328x128xf32>
    %82 = arith.addf %79, %81 : vector<328x128xf32>
    %cst_85 = arith.constant 0.000000e+00 : f32
    %83 = vector.broadcast %cst_85 : f32 to vector<328x128xf32>
    %84 = arith.maximumf %82, %83 : vector<328x128xf32>
    %c0_86 = arith.constant 0 : index
    %c0_87 = arith.constant 0 : index
    %85 = vector.load %arg9[%c0_86, %c0_87] : memref<328x128xf32, #tpu.memory_space<vmem>>, vector<328x128xf32>
    tpu.vector_store %arg9[%c0_86, %c0_87], %84 {strides = array<i32>} : memref<328x128xf32, #tpu.memory_space<vmem>>, vector<328x128xf32>,
    %cst_88 = arith.constant 0.000000e+00 : f32
    %86 = vector.broadcast %cst_88 : f32 to vector<128x128xf32>
    %c0_89 = arith.constant 0 : index
    %c0_90 = arith.constant 0 : index
    %87 = vector.load %arg10[%c0_89, %c0_90] : memref<128x128xf32, #tpu.memory_space<vmem>>, vector<128x128xf32>
    tpu.vector_store %arg10[%c0_89, %c0_90], %86 {strides = array<i32>} : memref<128x128xf32, #tpu.memory_space<vmem>>, vector<128x128xf32>,
    %c0_91 = arith.constant 0 : index
    %c0_92 = arith.constant 0 : index
    %88 = tpu.strided_load %arg9[%c0_91, %c0_92] {strides = array<i32: 2, 1>} : memref<328x128xf32, #tpu.memory_space<vmem>>, vector<8x128xf32>
    %c1_93 = arith.constant 1 : index
    %c0_94 = arith.constant 0 : index
    %89 = tpu.strided_load %arg9[%c1_93, %c0_94] {strides = array<i32: 2, 1>} : memref<328x128xf32, #tpu.memory_space<vmem>>, vector<8x128xf32>
    %90 = arith.maximumf %88, %89 : vector<8x128xf32>
    %c18_95 = arith.constant 18 : index
    %c0_96 = arith.constant 0 : index
    %91 = tpu.strided_load %arg9[%c18_95, %c0_96] {strides = array<i32: 2, 1>} : memref<328x128xf32, #tpu.memory_space<vmem>>, vector<8x128xf32>
    %c19_97 = arith.constant 19 : index
    %c0_98 = arith.constant 0 : index
    %92 = tpu.strided_load %arg9[%c19_97, %c0_98] {strides = array<i32: 2, 1>} : memref<328x128xf32, #tpu.memory_space<vmem>>, vector<8x128xf32>
    %93 = arith.maximumf %91, %92 : vector<8x128xf32>
    %94 = arith.maximumf %90, %93 : vector<8x128xf32>
    %c11 = arith.constant 11 : index
    %c0_99 = arith.constant 0 : index
    %95 = vector.load %arg10[%c11, %c0_99] : memref<128x128xf32, #tpu.memory_space<vmem>>, vector<8x128xf32>
    tpu.vector_store %arg10[%c11, %c0_99], %94 {strides = array<i32>} : memref<128x128xf32, #tpu.memory_space<vmem>>, vector<8x128xf32>,
    %c36_100 = arith.constant 36 : index
    %c0_101 = arith.constant 0 : index
    %96 = tpu.strided_load %arg9[%c36_100, %c0_101] {strides = array<i32: 2, 1>} : memref<328x128xf32, #tpu.memory_space<vmem>>, vector<8x128xf32>
    %c37_102 = arith.constant 37 : index
    %c0_103 = arith.constant 0 : index
    %97 = tpu.strided_load %arg9[%c37_102, %c0_103] {strides = array<i32: 2, 1>} : memref<328x128xf32, #tpu.memory_space<vmem>>, vector<8x128xf32>
    %98 = arith.maximumf %96, %97 : vector<8x128xf32>
    %c54 = arith.constant 54 : index
    %c0_104 = arith.constant 0 : index
    %99 = tpu.strided_load %arg9[%c54, %c0_104] {strides = array<i32: 2, 1>} : memref<328x128xf32, #tpu.memory_space<vmem>>, vector<8x128xf32>
    %c55 = arith.constant 55 : index
    %c0_105 = arith.constant 0 : index
    %100 = tpu.strided_load %arg9[%c55, %c0_105] {strides = array<i32: 2, 1>} : memref<328x128xf32, #tpu.memory_space<vmem>>, vector<8x128xf32>
    %101 = arith.maximumf %99, %100 : vector<8x128xf32>
    %102 = arith.maximumf %98, %101 : vector<8x128xf32>
    %c21 = arith.constant 21 : index
    %c0_106 = arith.constant 0 : index
    %103 = vector.load %arg10[%c21, %c0_106] : memref<128x128xf32, #tpu.memory_space<vmem>>, vector<8x128xf32>
    tpu.vector_store %arg10[%c21, %c0_106], %102 {strides = array<i32>} : memref<128x128xf32, #tpu.memory_space<vmem>>, vector<8x128xf32>,
    %c72 = arith.constant 72 : index
    %c0_107 = arith.constant 0 : index
    %104 = tpu.strided_load %arg9[%c72, %c0_107] {strides = array<i32: 2, 1>} : memref<328x128xf32, #tpu.memory_space<vmem>>, vector<8x128xf32>
    %c73 = arith.constant 73 : index
    %c0_108 = arith.constant 0 : index
    %105 = tpu.strided_load %arg9[%c73, %c0_108] {strides = array<i32: 2, 1>} : memref<328x128xf32, #tpu.memory_space<vmem>>, vector<8x128xf32>
    %106 = arith.maximumf %104, %105 : vector<8x128xf32>
    %c90 = arith.constant 90 : index
    %c0_109 = arith.constant 0 : index
    %107 = tpu.strided_load %arg9[%c90, %c0_109] {strides = array<i32: 2, 1>} : memref<328x128xf32, #tpu.memory_space<vmem>>, vector<8x128xf32>
    %c91 = arith.constant 91 : index
    %c0_110 = arith.constant 0 : index
    %108 = tpu.strided_load %arg9[%c91, %c0_110] {strides = array<i32: 2, 1>} : memref<328x128xf32, #tpu.memory_space<vmem>>, vector<8x128xf32>
    %109 = arith.maximumf %107, %108 : vector<8x128xf32>
    %110 = arith.maximumf %106, %109 : vector<8x128xf32>
    %c31 = arith.constant 31 : index
    %c0_111 = arith.constant 0 : index
    %111 = vector.load %arg10[%c31, %c0_111] : memref<128x128xf32, #tpu.memory_space<vmem>>, vector<8x128xf32>
    tpu.vector_store %arg10[%c31, %c0_111], %110 {strides = array<i32>} : memref<128x128xf32, #tpu.memory_space<vmem>>, vector<8x128xf32>,
    %c108 = arith.constant 108 : index
    %c0_112 = arith.constant 0 : index
    %112 = tpu.strided_load %arg9[%c108, %c0_112] {strides = array<i32: 2, 1>} : memref<328x128xf32, #tpu.memory_space<vmem>>, vector<8x128xf32>
    %c109 = arith.constant 109 : index
    %c0_113 = arith.constant 0 : index
    %113 = tpu.strided_load %arg9[%c109, %c0_113] {strides = array<i32: 2, 1>} : memref<328x128xf32, #tpu.memory_space<vmem>>, vector<8x128xf32>
    %114 = arith.maximumf %112, %113 : vector<8x128xf32>
    %c126 = arith.constant 126 : index
    %c0_114 = arith.constant 0 : index
    %115 = tpu.strided_load %arg9[%c126, %c0_114] {strides = array<i32: 2, 1>} : memref<328x128xf32, #tpu.memory_space<vmem>>, vector<8x128xf32>
    %c127 = arith.constant 127 : index
    %c0_115 = arith.constant 0 : index
    %116 = tpu.strided_load %arg9[%c127, %c0_115] {strides = array<i32: 2, 1>} : memref<328x128xf32, #tpu.memory_space<vmem>>, vector<8x128xf32>
    %117 = arith.maximumf %115, %116 : vector<8x128xf32>
    %118 = arith.maximumf %114, %117 : vector<8x128xf32>
    %c41 = arith.constant 41 : index
    %c0_116 = arith.constant 0 : index
    %119 = vector.load %arg10[%c41, %c0_116] : memref<128x128xf32, #tpu.memory_space<vmem>>, vector<8x128xf32>
    tpu.vector_store %arg10[%c41, %c0_116], %118 {strides = array<i32>} : memref<128x128xf32, #tpu.memory_space<vmem>>, vector<8x128xf32>,
    %c144 = arith.constant 144 : index
    %c0_117 = arith.constant 0 : index
    %120 = tpu.strided_load %arg9[%c144, %c0_117] {strides = array<i32: 2, 1>} : memref<328x128xf32, #tpu.memory_space<vmem>>, vector<8x128xf32>
    %c145 = arith.constant 145 : index
    %c0_118 = arith.constant 0 : index
    %121 = tpu.strided_load %arg9[%c145, %c0_118] {strides = array<i32: 2, 1>} : memref<328x128xf32, #tpu.memory_space<vmem>>, vector<8x128xf32>
    %122 = arith.maximumf %120, %121 : vector<8x128xf32>
    %c162 = arith.constant 162 : index
    %c0_119 = arith.constant 0 : index
    %123 = tpu.strided_load %arg9[%c162, %c0_119] {strides = array<i32: 2, 1>} : memref<328x128xf32, #tpu.memory_space<vmem>>, vector<8x128xf32>
    %c163 = arith.constant 163 : index
    %c0_120 = arith.constant 0 : index
    %124 = tpu.strided_load %arg9[%c163, %c0_120] {strides = array<i32: 2, 1>} : memref<328x128xf32, #tpu.memory_space<vmem>>, vector<8x128xf32>
    %125 = arith.maximumf %123, %124 : vector<8x128xf32>
    %126 = arith.maximumf %122, %125 : vector<8x128xf32>
    %c51 = arith.constant 51 : index
    %c0_121 = arith.constant 0 : index
    %127 = vector.load %arg10[%c51, %c0_121] : memref<128x128xf32, #tpu.memory_space<vmem>>, vector<8x128xf32>
    tpu.vector_store %arg10[%c51, %c0_121], %126 {strides = array<i32>} : memref<128x128xf32, #tpu.memory_space<vmem>>, vector<8x128xf32>,
    %c180 = arith.constant 180 : index
    %c0_122 = arith.constant 0 : index
    %128 = tpu.strided_load %arg9[%c180, %c0_122] {strides = array<i32: 2, 1>} : memref<328x128xf32, #tpu.memory_space<vmem>>, vector<8x128xf32>
    %c181 = arith.constant 181 : index
    %c0_123 = arith.constant 0 : index
    %129 = tpu.strided_load %arg9[%c181, %c0_123] {strides = array<i32: 2, 1>} : memref<328x128xf32, #tpu.memory_space<vmem>>, vector<8x128xf32>
    %130 = arith.maximumf %128, %129 : vector<8x128xf32>
    %c198 = arith.constant 198 : index
    %c0_124 = arith.constant 0 : index
    %131 = tpu.strided_load %arg9[%c198, %c0_124] {strides = array<i32: 2, 1>} : memref<328x128xf32, #tpu.memory_space<vmem>>, vector<8x128xf32>
    %c199 = arith.constant 199 : index
    %c0_125 = arith.constant 0 : index
    %132 = tpu.strided_load %arg9[%c199, %c0_125] {strides = array<i32: 2, 1>} : memref<328x128xf32, #tpu.memory_space<vmem>>, vector<8x128xf32>
    %133 = arith.maximumf %131, %132 : vector<8x128xf32>
    %134 = arith.maximumf %130, %133 : vector<8x128xf32>
    %c61 = arith.constant 61 : index
    %c0_126 = arith.constant 0 : index
    %135 = vector.load %arg10[%c61, %c0_126] : memref<128x128xf32, #tpu.memory_space<vmem>>, vector<8x128xf32>
    tpu.vector_store %arg10[%c61, %c0_126], %134 {strides = array<i32>} : memref<128x128xf32, #tpu.memory_space<vmem>>, vector<8x128xf32>,
    %c216 = arith.constant 216 : index
    %c0_127 = arith.constant 0 : index
    %136 = tpu.strided_load %arg9[%c216, %c0_127] {strides = array<i32: 2, 1>} : memref<328x128xf32, #tpu.memory_space<vmem>>, vector<8x128xf32>
    %c217 = arith.constant 217 : index
    %c0_128 = arith.constant 0 : index
    %137 = tpu.strided_load %arg9[%c217, %c0_128] {strides = array<i32: 2, 1>} : memref<328x128xf32, #tpu.memory_space<vmem>>, vector<8x128xf32>
    %138 = arith.maximumf %136, %137 : vector<8x128xf32>
    %c234 = arith.constant 234 : index
    %c0_129 = arith.constant 0 : index
    %139 = tpu.strided_load %arg9[%c234, %c0_129] {strides = array<i32: 2, 1>} : memref<328x128xf32, #tpu.memory_space<vmem>>, vector<8x128xf32>
    %c235 = arith.constant 235 : index
    %c0_130 = arith.constant 0 : index
    %140 = tpu.strided_load %arg9[%c235, %c0_130] {strides = array<i32: 2, 1>} : memref<328x128xf32, #tpu.memory_space<vmem>>, vector<8x128xf32>
    %141 = arith.maximumf %139, %140 : vector<8x128xf32>
    %142 = arith.maximumf %138, %141 : vector<8x128xf32>
    %c71 = arith.constant 71 : index
    %c0_131 = arith.constant 0 : index
    %143 = vector.load %arg10[%c71, %c0_131] : memref<128x128xf32, #tpu.memory_space<vmem>>, vector<8x128xf32>
    tpu.vector_store %arg10[%c71, %c0_131], %142 {strides = array<i32>} : memref<128x128xf32, #tpu.memory_space<vmem>>, vector<8x128xf32>,
    %c252 = arith.constant 252 : index
    %c0_132 = arith.constant 0 : index
    %144 = tpu.strided_load %arg9[%c252, %c0_132] {strides = array<i32: 2, 1>} : memref<328x128xf32, #tpu.memory_space<vmem>>, vector<8x128xf32>
    %c253 = arith.constant 253 : index
    %c0_133 = arith.constant 0 : index
    %145 = tpu.strided_load %arg9[%c253, %c0_133] {strides = array<i32: 2, 1>} : memref<328x128xf32, #tpu.memory_space<vmem>>, vector<8x128xf32>
    %146 = arith.maximumf %144, %145 : vector<8x128xf32>
    %c270 = arith.constant 270 : index
    %c0_134 = arith.constant 0 : index
    %147 = tpu.strided_load %arg9[%c270, %c0_134] {strides = array<i32: 2, 1>} : memref<328x128xf32, #tpu.memory_space<vmem>>, vector<8x128xf32>
    %c271 = arith.constant 271 : index
    %c0_135 = arith.constant 0 : index
    %148 = tpu.strided_load %arg9[%c271, %c0_135] {strides = array<i32: 2, 1>} : memref<328x128xf32, #tpu.memory_space<vmem>>, vector<8x128xf32>
    %149 = arith.maximumf %147, %148 : vector<8x128xf32>
    %150 = arith.maximumf %146, %149 : vector<8x128xf32>
    %c81 = arith.constant 81 : index
    %c0_136 = arith.constant 0 : index
    %151 = vector.load %arg10[%c81, %c0_136] : memref<128x128xf32, #tpu.memory_space<vmem>>, vector<8x128xf32>
    tpu.vector_store %arg10[%c81, %c0_136], %150 {strides = array<i32>} : memref<128x128xf32, #tpu.memory_space<vmem>>, vector<8x128xf32>,
    %c0_137 = arith.constant 0 : index
    %c0_138 = arith.constant 0 : index
    %152 = vector.load %arg10[%c0_137, %c0_138] : memref<128x128xf32, #tpu.memory_space<vmem>>, vector<104x128xf32>
    %153 = arith.truncf %152 : vector<104x128xf32> to vector<104x128xbf16>
    %c0_139 = arith.constant 0 : index
    %c0_140 = arith.constant 0 : index
    %c0_141 = arith.constant 0 : index
    %154 = vector.load %arg4[%c0_139, %c0_140, %c0_141] : memref<9x128x128xbf16, #tpu.memory_space<vmem>>, vector<1x128x128xbf16>
    %155 = vector.shape_cast %154 : vector<1x128x128xbf16> to vector<128x128xbf16>
    %cst_142 = arith.constant dense<0.000000e+00> : vector<104x128xf32>
    %156 = tpu.matmul %153, %155, %cst_142 {dimension_numbers = #tpu.dot_dimension_numbers<[1], [0], [0], [1], [0, 0, 1, 1], [], []>} : vector<104x128xbf16>, vector<128x128xbf16>, vector<104x128xf32> -> vector<104x128xf32>
    %c0_143 = arith.constant 0 : index
    %c0_144 = arith.constant 0 : index
    %157 = vector.load %arg11[%c0_143, %c0_144] : memref<104x128xf32, #tpu.memory_space<vmem>>, vector<104x128xf32>
    tpu.vector_store %arg11[%c0_143, %c0_144], %156 {strides = array<i32>} : memref<104x128xf32, #tpu.memory_space<vmem>>, vector<104x128xf32>,
    %c1_145 = arith.constant 1 : index
    %c0_146 = arith.constant 0 : index
    %158 = vector.load %arg10[%c1_145, %c0_146] : memref<128x128xf32, #tpu.memory_space<vmem>>, vector<104x128xf32>
    %159 = arith.truncf %158 : vector<104x128xf32> to vector<104x128xbf16>
    %c1_147 = arith.constant 1 : index
    %c0_148 = arith.constant 0 : index
    %c0_149 = arith.constant 0 : index
    %160 = vector.load %arg4[%c1_147, %c0_148, %c0_149] : memref<9x128x128xbf16, #tpu.memory_space<vmem>>, vector<1x128x128xbf16>
    %161 = vector.shape_cast %160 : vector<1x128x128xbf16> to vector<128x128xbf16>
    %cst_150 = arith.constant dense<0.000000e+00> : vector<104x128xf32>
    %162 = tpu.matmul %159, %161, %cst_150 {dimension_numbers = #tpu.dot_dimension_numbers<[1], [0], [0], [1], [0, 0, 1, 1], [], []>} : vector<104x128xbf16>, vector<128x128xbf16>, vector<104x128xf32> -> vector<104x128xf32>
    %c0_151 = arith.constant 0 : index
    %c0_152 = arith.constant 0 : index
    %163 = vector.load %arg11[%c0_151, %c0_152] : memref<104x128xf32, #tpu.memory_space<vmem>>, vector<104x128xf32>
    %164 = arith.addf %163, %162 : vector<104x128xf32>
    %c0_153 = arith.constant 0 : index
    %c0_154 = arith.constant 0 : index
    %165 = vector.load %arg11[%c0_153, %c0_154] : memref<104x128xf32, #tpu.memory_space<vmem>>, vector<104x128xf32>
    tpu.vector_store %arg11[%c0_153, %c0_154], %164 {strides = array<i32>} : memref<104x128xf32, #tpu.memory_space<vmem>>, vector<104x128xf32>,
    %c2_155 = arith.constant 2 : index
    %c0_156 = arith.constant 0 : index
    %166 = vector.load %arg10[%c2_155, %c0_156] : memref<128x128xf32, #tpu.memory_space<vmem>>, vector<104x128xf32>
    %167 = arith.truncf %166 : vector<104x128xf32> to vector<104x128xbf16>
    %c2_157 = arith.constant 2 : index
    %c0_158 = arith.constant 0 : index
    %c0_159 = arith.constant 0 : index
    %168 = vector.load %arg4[%c2_157, %c0_158, %c0_159] : memref<9x128x128xbf16, #tpu.memory_space<vmem>>, vector<1x128x128xbf16>
    %169 = vector.shape_cast %168 : vector<1x128x128xbf16> to vector<128x128xbf16>
    %cst_160 = arith.constant dense<0.000000e+00> : vector<104x128xf32>
    %170 = tpu.matmul %167, %169, %cst_160 {dimension_numbers = #tpu.dot_dimension_numbers<[1], [0], [0], [1], [0, 0, 1, 1], [], []>} : vector<104x128xbf16>, vector<128x128xbf16>, vector<104x128xf32> -> vector<104x128xf32>
    %c0_161 = arith.constant 0 : index
    %c0_162 = arith.constant 0 : index
    %171 = vector.load %arg11[%c0_161, %c0_162] : memref<104x128xf32, #tpu.memory_space<vmem>>, vector<104x128xf32>
    %172 = arith.addf %171, %170 : vector<104x128xf32>
    %c0_163 = arith.constant 0 : index
    %c0_164 = arith.constant 0 : index
    %173 = vector.load %arg11[%c0_163, %c0_164] : memref<104x128xf32, #tpu.memory_space<vmem>>, vector<104x128xf32>
    tpu.vector_store %arg11[%c0_163, %c0_164], %172 {strides = array<i32>} : memref<104x128xf32, #tpu.memory_space<vmem>>, vector<104x128xf32>,
    %c10 = arith.constant 10 : index
    %c0_165 = arith.constant 0 : index
    %174 = vector.load %arg10[%c10, %c0_165] : memref<128x128xf32, #tpu.memory_space<vmem>>, vector<104x128xf32>
    %175 = arith.truncf %174 : vector<104x128xf32> to vector<104x128xbf16>
    %c3_166 = arith.constant 3 : index
    %c0_167 = arith.constant 0 : index
    %c0_168 = arith.constant 0 : index
    %176 = vector.load %arg4[%c3_166, %c0_167, %c0_168] : memref<9x128x128xbf16, #tpu.memory_space<vmem>>, vector<1x128x128xbf16>
    %177 = vector.shape_cast %176 : vector<1x128x128xbf16> to vector<128x128xbf16>
    %cst_169 = arith.constant dense<0.000000e+00> : vector<104x128xf32>
    %178 = tpu.matmul %175, %177, %cst_169 {dimension_numbers = #tpu.dot_dimension_numbers<[1], [0], [0], [1], [0, 0, 1, 1], [], []>} : vector<104x128xbf16>, vector<128x128xbf16>, vector<104x128xf32> -> vector<104x128xf32>
    %c0_170 = arith.constant 0 : index
    %c0_171 = arith.constant 0 : index
    %179 = vector.load %arg11[%c0_170, %c0_171] : memref<104x128xf32, #tpu.memory_space<vmem>>, vector<104x128xf32>
    %180 = arith.addf %179, %178 : vector<104x128xf32>
    %c0_172 = arith.constant 0 : index
    %c0_173 = arith.constant 0 : index
    %181 = vector.load %arg11[%c0_172, %c0_173] : memref<104x128xf32, #tpu.memory_space<vmem>>, vector<104x128xf32>
    tpu.vector_store %arg11[%c0_172, %c0_173], %180 {strides = array<i32>} : memref<104x128xf32, #tpu.memory_space<vmem>>, vector<104x128xf32>,
    %c11_174 = arith.constant 11 : index
    %c0_175 = arith.constant 0 : index
    %182 = vector.load %arg10[%c11_174, %c0_175] : memref<128x128xf32, #tpu.memory_space<vmem>>, vector<104x128xf32>
    %183 = arith.truncf %182 : vector<104x128xf32> to vector<104x128xbf16>
    %c4_176 = arith.constant 4 : index
    %c0_177 = arith.constant 0 : index
    %c0_178 = arith.constant 0 : index
    %184 = vector.load %arg4[%c4_176, %c0_177, %c0_178] : memref<9x128x128xbf16, #tpu.memory_space<vmem>>, vector<1x128x128xbf16>
    %185 = vector.shape_cast %184 : vector<1x128x128xbf16> to vector<128x128xbf16>
    %cst_179 = arith.constant dense<0.000000e+00> : vector<104x128xf32>
    %186 = tpu.matmul %183, %185, %cst_179 {dimension_numbers = #tpu.dot_dimension_numbers<[1], [0], [0], [1], [0, 0, 1, 1], [], []>} : vector<104x128xbf16>, vector<128x128xbf16>, vector<104x128xf32> -> vector<104x128xf32>
    %c0_180 = arith.constant 0 : index
    %c0_181 = arith.constant 0 : index
    %187 = vector.load %arg11[%c0_180, %c0_181] : memref<104x128xf32, #tpu.memory_space<vmem>>, vector<104x128xf32>
    %188 = arith.addf %187, %186 : vector<104x128xf32>
    %c0_182 = arith.constant 0 : index
    %c0_183 = arith.constant 0 : index
    %189 = vector.load %arg11[%c0_182, %c0_183] : memref<104x128xf32, #tpu.memory_space<vmem>>, vector<104x128xf32>
    tpu.vector_store %arg11[%c0_182, %c0_183], %188 {strides = array<i32>} : memref<104x128xf32, #tpu.memory_space<vmem>>, vector<104x128xf32>,
    %c12 = arith.constant 12 : index
    %c0_184 = arith.constant 0 : index
    %190 = vector.load %arg10[%c12, %c0_184] : memref<128x128xf32, #tpu.memory_space<vmem>>, vector<104x128xf32>
    %191 = arith.truncf %190 : vector<104x128xf32> to vector<104x128xbf16>
    %c5_185 = arith.constant 5 : index
    %c0_186 = arith.constant 0 : index
    %c0_187 = arith.constant 0 : index
    %192 = vector.load %arg4[%c5_185, %c0_186, %c0_187] : memref<9x128x128xbf16, #tpu.memory_space<vmem>>, vector<1x128x128xbf16>
    %193 = vector.shape_cast %192 : vector<1x128x128xbf16> to vector<128x128xbf16>
    %cst_188 = arith.constant dense<0.000000e+00> : vector<104x128xf32>
    %194 = tpu.matmul %191, %193, %cst_188 {dimension_numbers = #tpu.dot_dimension_numbers<[1], [0], [0], [1], [0, 0, 1, 1], [], []>} : vector<104x128xbf16>, vector<128x128xbf16>, vector<104x128xf32> -> vector<104x128xf32>
    %c0_189 = arith.constant 0 : index
    %c0_190 = arith.constant 0 : index
    %195 = vector.load %arg11[%c0_189, %c0_190] : memref<104x128xf32, #tpu.memory_space<vmem>>, vector<104x128xf32>
    %196 = arith.addf %195, %194 : vector<104x128xf32>
    %c0_191 = arith.constant 0 : index
    %c0_192 = arith.constant 0 : index
    %197 = vector.load %arg11[%c0_191, %c0_192] : memref<104x128xf32, #tpu.memory_space<vmem>>, vector<104x128xf32>
    tpu.vector_store %arg11[%c0_191, %c0_192], %196 {strides = array<i32>} : memref<104x128xf32, #tpu.memory_space<vmem>>, vector<104x128xf32>,
    %c20_193 = arith.constant 20 : index
    %c0_194 = arith.constant 0 : index
    %198 = vector.load %arg10[%c20_193, %c0_194] : memref<128x128xf32, #tpu.memory_space<vmem>>, vector<104x128xf32>
    %199 = arith.truncf %198 : vector<104x128xf32> to vector<104x128xbf16>
    %c6_195 = arith.constant 6 : index
    %c0_196 = arith.constant 0 : index
    %c0_197 = arith.constant 0 : index
    %200 = vector.load %arg4[%c6_195, %c0_196, %c0_197] : memref<9x128x128xbf16, #tpu.memory_space<vmem>>, vector<1x128x128xbf16>
    %201 = vector.shape_cast %200 : vector<1x128x128xbf16> to vector<128x128xbf16>
    %cst_198 = arith.constant dense<0.000000e+00> : vector<104x128xf32>
    %202 = tpu.matmul %199, %201, %cst_198 {dimension_numbers = #tpu.dot_dimension_numbers<[1], [0], [0], [1], [0, 0, 1, 1], [], []>} : vector<104x128xbf16>, vector<128x128xbf16>, vector<104x128xf32> -> vector<104x128xf32>
    %c0_199 = arith.constant 0 : index
    %c0_200 = arith.constant 0 : index
    %203 = vector.load %arg11[%c0_199, %c0_200] : memref<104x128xf32, #tpu.memory_space<vmem>>, vector<104x128xf32>
    %204 = arith.addf %203, %202 : vector<104x128xf32>
    %c0_201 = arith.constant 0 : index
    %c0_202 = arith.constant 0 : index
    %205 = vector.load %arg11[%c0_201, %c0_202] : memref<104x128xf32, #tpu.memory_space<vmem>>, vector<104x128xf32>
    tpu.vector_store %arg11[%c0_201, %c0_202], %204 {strides = array<i32>} : memref<104x128xf32, #tpu.memory_space<vmem>>, vector<104x128xf32>,
    %c21_203 = arith.constant 21 : index
    %c0_204 = arith.constant 0 : index
    %206 = vector.load %arg10[%c21_203, %c0_204] : memref<128x128xf32, #tpu.memory_space<vmem>>, vector<104x128xf32>
    %207 = arith.truncf %206 : vector<104x128xf32> to vector<104x128xbf16>
    %c7_205 = arith.constant 7 : index
    %c0_206 = arith.constant 0 : index
    %c0_207 = arith.constant 0 : index
    %208 = vector.load %arg4[%c7_205, %c0_206, %c0_207] : memref<9x128x128xbf16, #tpu.memory_space<vmem>>, vector<1x128x128xbf16>
    %209 = vector.shape_cast %208 : vector<1x128x128xbf16> to vector<128x128xbf16>
    %cst_208 = arith.constant dense<0.000000e+00> : vector<104x128xf32>
    %210 = tpu.matmul %207, %209, %cst_208 {dimension_numbers = #tpu.dot_dimension_numbers<[1], [0], [0], [1], [0, 0, 1, 1], [], []>} : vector<104x128xbf16>, vector<128x128xbf16>, vector<104x128xf32> -> vector<104x128xf32>
    %c0_209 = arith.constant 0 : index
    %c0_210 = arith.constant 0 : index
    %211 = vector.load %arg11[%c0_209, %c0_210] : memref<104x128xf32, #tpu.memory_space<vmem>>, vector<104x128xf32>
    %212 = arith.addf %211, %210 : vector<104x128xf32>
    %c0_211 = arith.constant 0 : index
    %c0_212 = arith.constant 0 : index
    %213 = vector.load %arg11[%c0_211, %c0_212] : memref<104x128xf32, #tpu.memory_space<vmem>>, vector<104x128xf32>
    tpu.vector_store %arg11[%c0_211, %c0_212], %212 {strides = array<i32>} : memref<104x128xf32, #tpu.memory_space<vmem>>, vector<104x128xf32>,
    %c22 = arith.constant 22 : index
    %c0_213 = arith.constant 0 : index
    %214 = vector.load %arg10[%c22, %c0_213] : memref<128x128xf32, #tpu.memory_space<vmem>>, vector<104x128xf32>
    %215 = arith.truncf %214 : vector<104x128xf32> to vector<104x128xbf16>
    %c8_214 = arith.constant 8 : index
    %c0_215 = arith.constant 0 : index
    %c0_216 = arith.constant 0 : index
    %216 = vector.load %arg4[%c8_214, %c0_215, %c0_216] : memref<9x128x128xbf16, #tpu.memory_space<vmem>>, vector<1x128x128xbf16>
    %217 = vector.shape_cast %216 : vector<1x128x128xbf16> to vector<128x128xbf16>
    %cst_217 = arith.constant dense<0.000000e+00> : vector<104x128xf32>
    %218 = tpu.matmul %215, %217, %cst_217 {dimension_numbers = #tpu.dot_dimension_numbers<[1], [0], [0], [1], [0, 0, 1, 1], [], []>} : vector<104x128xbf16>, vector<128x128xbf16>, vector<104x128xf32> -> vector<104x128xf32>
    %c0_218 = arith.constant 0 : index
    %c0_219 = arith.constant 0 : index
    %219 = vector.load %arg11[%c0_218, %c0_219] : memref<104x128xf32, #tpu.memory_space<vmem>>, vector<104x128xf32>
    %220 = arith.addf %219, %218 : vector<104x128xf32>
    %c0_220 = arith.constant 0 : index
    %c0_221 = arith.constant 0 : index
    %221 = vector.load %arg11[%c0_220, %c0_221] : memref<104x128xf32, #tpu.memory_space<vmem>>, vector<104x128xf32>
    tpu.vector_store %arg11[%c0_220, %c0_221], %220 {strides = array<i32>} : memref<104x128xf32, #tpu.memory_space<vmem>>, vector<104x128xf32>,
    %c0_222 = arith.constant 0 : index
    %c0_223 = arith.constant 0 : index
    %222 = vector.load %arg11[%c0_222, %c0_223] : memref<104x128xf32, #tpu.memory_space<vmem>>, vector<104x128xf32>
    %c0_224 = arith.constant 0 : index
    %c0_225 = arith.constant 0 : index
    %223 = vector.load %arg5[%c0_224, %c0_225] : memref<1x128xf32, #tpu.memory_space<vmem>>, vector<1x128xf32>
    %224 = vector.broadcast %223 : vector<1x128xf32> to vector<104x128xf32>
    %225 = arith.addf %222, %224 : vector<104x128xf32>
    %cst_226 = arith.constant 0.000000e+00 : f32
    %226 = vector.broadcast %cst_226 : f32 to vector<104x128xf32>
    %227 = arith.maximumf %225, %226 : vector<104x128xf32>
    %c0_227 = arith.constant 0 : index
    %c0_228 = arith.constant 0 : index
    %228 = vector.load %arg11[%c0_227, %c0_228] : memref<104x128xf32, #tpu.memory_space<vmem>>, vector<104x128xf32>
    tpu.vector_store %arg11[%c0_227, %c0_228], %227 {strides = array<i32>} : memref<104x128xf32, #tpu.memory_space<vmem>>, vector<104x128xf32>,
    %c0_229 = arith.constant 0 : index
    %c0_230 = arith.constant 0 : index
    %229 = vector.load %arg11[%c0_229, %c0_230] : memref<104x128xf32, #tpu.memory_space<vmem>>, vector<1x128xf32>
    %c1_231 = arith.constant 1 : index
    %c0_232 = arith.constant 0 : index
    %230 = vector.load %arg11[%c1_231, %c0_232] : memref<104x128xf32, #tpu.memory_space<vmem>>, vector<1x128xf32>
    %231 = arith.maximumf %229, %230 : vector<1x128xf32>
    %c10_233 = arith.constant 10 : index
    %c0_234 = arith.constant 0 : index
    %232 = vector.load %arg11[%c10_233, %c0_234] : memref<104x128xf32, #tpu.memory_space<vmem>>, vector<1x128xf32>
    %c11_235 = arith.constant 11 : index
    %c0_236 = arith.constant 0 : index
    %233 = vector.load %arg11[%c11_235, %c0_236] : memref<104x128xf32, #tpu.memory_space<vmem>>, vector<1x128xf32>
    %234 = arith.maximumf %232, %233 : vector<1x128xf32>
    %235 = arith.maximumf %231, %234 : vector<1x128xf32>
    %c0_237 = arith.constant 0 : index
    %c0_238 = arith.constant 0 : index
    %236 = vector.load %arg12[%c0_237, %c0_238] : memref<1x2048xf32, #tpu.memory_space<vmem>>, vector<1x128xf32>
    tpu.vector_store %arg12[%c0_237, %c0_238], %235 {strides = array<i32>} : memref<1x2048xf32, #tpu.memory_space<vmem>>, vector<1x128xf32>,
    %c2_239 = arith.constant 2 : index
    %c0_240 = arith.constant 0 : index
    %237 = vector.load %arg11[%c2_239, %c0_240] : memref<104x128xf32, #tpu.memory_space<vmem>>, vector<1x128xf32>
    %c3_241 = arith.constant 3 : index
    %c0_242 = arith.constant 0 : index
    %238 = vector.load %arg11[%c3_241, %c0_242] : memref<104x128xf32, #tpu.memory_space<vmem>>, vector<1x128xf32>
    %239 = arith.maximumf %237, %238 : vector<1x128xf32>
    %c12_243 = arith.constant 12 : index
    %c0_244 = arith.constant 0 : index
    %240 = vector.load %arg11[%c12_243, %c0_244] : memref<104x128xf32, #tpu.memory_space<vmem>>, vector<1x128xf32>
    %c13 = arith.constant 13 : index
    %c0_245 = arith.constant 0 : index
    %241 = vector.load %arg11[%c13, %c0_245] : memref<104x128xf32, #tpu.memory_space<vmem>>, vector<1x128xf32>
    %242 = arith.maximumf %240, %241 : vector<1x128xf32>
    %243 = arith.maximumf %239, %242 : vector<1x128xf32>
    %c0_246 = arith.constant 0 : index
    %c128 = arith.constant 128 : index
    %244 = vector.load %arg12[%c0_246, %c128] : memref<1x2048xf32, #tpu.memory_space<vmem>>, vector<1x128xf32>
    tpu.vector_store %arg12[%c0_246, %c128], %243 {strides = array<i32>} : memref<1x2048xf32, #tpu.memory_space<vmem>>, vector<1x128xf32>,
    %c4_247 = arith.constant 4 : index
    %c0_248 = arith.constant 0 : index
    %245 = vector.load %arg11[%c4_247, %c0_248] : memref<104x128xf32, #tpu.memory_space<vmem>>, vector<1x128xf32>
    %c5_249 = arith.constant 5 : index
    %c0_250 = arith.constant 0 : index
    %246 = vector.load %arg11[%c5_249, %c0_250] : memref<104x128xf32, #tpu.memory_space<vmem>>, vector<1x128xf32>
    %247 = arith.maximumf %245, %246 : vector<1x128xf32>
    %c14 = arith.constant 14 : index
    %c0_251 = arith.constant 0 : index
    %248 = vector.load %arg11[%c14, %c0_251] : memref<104x128xf32, #tpu.memory_space<vmem>>, vector<1x128xf32>
    %c15 = arith.constant 15 : index
    %c0_252 = arith.constant 0 : index
    %249 = vector.load %arg11[%c15, %c0_252] : memref<104x128xf32, #tpu.memory_space<vmem>>, vector<1x128xf32>
    %250 = arith.maximumf %248, %249 : vector<1x128xf32>
    %251 = arith.maximumf %247, %250 : vector<1x128xf32>
    %c0_253 = arith.constant 0 : index
    %c256 = arith.constant 256 : index
    %252 = vector.load %arg12[%c0_253, %c256] : memref<1x2048xf32, #tpu.memory_space<vmem>>, vector<1x128xf32>
    tpu.vector_store %arg12[%c0_253, %c256], %251 {strides = array<i32>} : memref<1x2048xf32, #tpu.memory_space<vmem>>, vector<1x128xf32>,
    %c6_254 = arith.constant 6 : index
    %c0_255 = arith.constant 0 : index
    %253 = vector.load %arg11[%c6_254, %c0_255] : memref<104x128xf32, #tpu.memory_space<vmem>>, vector<1x128xf32>
    %c7_256 = arith.constant 7 : index
    %c0_257 = arith.constant 0 : index
    %254 = vector.load %arg11[%c7_256, %c0_257] : memref<104x128xf32, #tpu.memory_space<vmem>>, vector<1x128xf32>
    %255 = arith.maximumf %253, %254 : vector<1x128xf32>
    %c16 = arith.constant 16 : index
    %c0_258 = arith.constant 0 : index
    %256 = vector.load %arg11[%c16, %c0_258] : memref<104x128xf32, #tpu.memory_space<vmem>>, vector<1x128xf32>
    %c17 = arith.constant 17 : index
    %c0_259 = arith.constant 0 : index
    %257 = vector.load %arg11[%c17, %c0_259] : memref<104x128xf32, #tpu.memory_space<vmem>>, vector<1x128xf32>
    %258 = arith.maximumf %256, %257 : vector<1x128xf32>
    %259 = arith.maximumf %255, %258 : vector<1x128xf32>
    %c0_260 = arith.constant 0 : index
    %c384 = arith.constant 384 : index
    %260 = vector.load %arg12[%c0_260, %c384] : memref<1x2048xf32, #tpu.memory_space<vmem>>, vector<1x128xf32>
    tpu.vector_store %arg12[%c0_260, %c384], %259 {strides = array<i32>} : memref<1x2048xf32, #tpu.memory_space<vmem>>, vector<1x128xf32>,
    %c20_261 = arith.constant 20 : index
    %c0_262 = arith.constant 0 : index
    %261 = vector.load %arg11[%c20_261, %c0_262] : memref<104x128xf32, #tpu.memory_space<vmem>>, vector<1x128xf32>
    %c21_263 = arith.constant 21 : index
    %c0_264 = arith.constant 0 : index
    %262 = vector.load %arg11[%c21_263, %c0_264] : memref<104x128xf32, #tpu.memory_space<vmem>>, vector<1x128xf32>
    %263 = arith.maximumf %261, %262 : vector<1x128xf32>
    %c30 = arith.constant 30 : index
    %c0_265 = arith.constant 0 : index
    %264 = vector.load %arg11[%c30, %c0_265] : memref<104x128xf32, #tpu.memory_space<vmem>>, vector<1x128xf32>
    %c31_266 = arith.constant 31 : index
    %c0_267 = arith.constant 0 : index
    %265 = vector.load %arg11[%c31_266, %c0_267] : memref<104x128xf32, #tpu.memory_space<vmem>>, vector<1x128xf32>
    %266 = arith.maximumf %264, %265 : vector<1x128xf32>
    %267 = arith.maximumf %263, %266 : vector<1x128xf32>
    %c0_268 = arith.constant 0 : index
    %c512 = arith.constant 512 : index
    %268 = vector.load %arg12[%c0_268, %c512] : memref<1x2048xf32, #tpu.memory_space<vmem>>, vector<1x128xf32>
    tpu.vector_store %arg12[%c0_268, %c512], %267 {strides = array<i32>} : memref<1x2048xf32, #tpu.memory_space<vmem>>, vector<1x128xf32>,
    %c22_269 = arith.constant 22 : index
    %c0_270 = arith.constant 0 : index
    %269 = vector.load %arg11[%c22_269, %c0_270] : memref<104x128xf32, #tpu.memory_space<vmem>>, vector<1x128xf32>
    %c23 = arith.constant 23 : index
    %c0_271 = arith.constant 0 : index
    %270 = vector.load %arg11[%c23, %c0_271] : memref<104x128xf32, #tpu.memory_space<vmem>>, vector<1x128xf32>
    %271 = arith.maximumf %269, %270 : vector<1x128xf32>
    %c32 = arith.constant 32 : index
    %c0_272 = arith.constant 0 : index
    %272 = vector.load %arg11[%c32, %c0_272] : memref<104x128xf32, #tpu.memory_space<vmem>>, vector<1x128xf32>
    %c33 = arith.constant 33 : index
    %c0_273 = arith.constant 0 : index
    %273 = vector.load %arg11[%c33, %c0_273] : memref<104x128xf32, #tpu.memory_space<vmem>>, vector<1x128xf32>
    %274 = arith.maximumf %272, %273 : vector<1x128xf32>
    %275 = arith.maximumf %271, %274 : vector<1x128xf32>
    %c0_274 = arith.constant 0 : index
    %c640 = arith.constant 640 : index
    %276 = vector.load %arg12[%c0_274, %c640] : memref<1x2048xf32, #tpu.memory_space<vmem>>, vector<1x128xf32>
    tpu.vector_store %arg12[%c0_274, %c640], %275 {strides = array<i32>} : memref<1x2048xf32, #tpu.memory_space<vmem>>, vector<1x128xf32>,
    %c24 = arith.constant 24 : index
    %c0_275 = arith.constant 0 : index
    %277 = vector.load %arg11[%c24, %c0_275] : memref<104x128xf32, #tpu.memory_space<vmem>>, vector<1x128xf32>
    %c25 = arith.constant 25 : index
    %c0_276 = arith.constant 0 : index
    %278 = vector.load %arg11[%c25, %c0_276] : memref<104x128xf32, #tpu.memory_space<vmem>>, vector<1x128xf32>
    %279 = arith.maximumf %277, %278 : vector<1x128xf32>
    %c34 = arith.constant 34 : index
    %c0_277 = arith.constant 0 : index
    %280 = vector.load %arg11[%c34, %c0_277] : memref<104x128xf32, #tpu.memory_space<vmem>>, vector<1x128xf32>
    %c35 = arith.constant 35 : index
    %c0_278 = arith.constant 0 : index
    %281 = vector.load %arg11[%c35, %c0_278] : memref<104x128xf32, #tpu.memory_space<vmem>>, vector<1x128xf32>
    %282 = arith.maximumf %280, %281 : vector<1x128xf32>
    %283 = arith.maximumf %279, %282 : vector<1x128xf32>
    %c0_279 = arith.constant 0 : index
    %c768 = arith.constant 768 : index
    %284 = vector.load %arg12[%c0_279, %c768] : memref<1x2048xf32, #tpu.memory_space<vmem>>, vector<1x128xf32>
    tpu.vector_store %arg12[%c0_279, %c768], %283 {strides = array<i32>} : memref<1x2048xf32, #tpu.memory_space<vmem>>, vector<1x128xf32>,
    %c26 = arith.constant 26 : index
    %c0_280 = arith.constant 0 : index
    %285 = vector.load %arg11[%c26, %c0_280] : memref<104x128xf32, #tpu.memory_space<vmem>>, vector<1x128xf32>
    %c27 = arith.constant 27 : index
    %c0_281 = arith.constant 0 : index
    %286 = vector.load %arg11[%c27, %c0_281] : memref<104x128xf32, #tpu.memory_space<vmem>>, vector<1x128xf32>
    %287 = arith.maximumf %285, %286 : vector<1x128xf32>
    %c36_282 = arith.constant 36 : index
    %c0_283 = arith.constant 0 : index
    %288 = vector.load %arg11[%c36_282, %c0_283] : memref<104x128xf32, #tpu.memory_space<vmem>>, vector<1x128xf32>
    %c37_284 = arith.constant 37 : index
    %c0_285 = arith.constant 0 : index
    %289 = vector.load %arg11[%c37_284, %c0_285] : memref<104x128xf32, #tpu.memory_space<vmem>>, vector<1x128xf32>
    %290 = arith.maximumf %288, %289 : vector<1x128xf32>
    %291 = arith.maximumf %287, %290 : vector<1x128xf32>
    %c0_286 = arith.constant 0 : index
    %c896 = arith.constant 896 : index
    %292 = vector.load %arg12[%c0_286, %c896] : memref<1x2048xf32, #tpu.memory_space<vmem>>, vector<1x128xf32>
    tpu.vector_store %arg12[%c0_286, %c896], %291 {strides = array<i32>} : memref<1x2048xf32, #tpu.memory_space<vmem>>, vector<1x128xf32>,
    %c40 = arith.constant 40 : index
    %c0_287 = arith.constant 0 : index
    %293 = vector.load %arg11[%c40, %c0_287] : memref<104x128xf32, #tpu.memory_space<vmem>>, vector<1x128xf32>
    %c41_288 = arith.constant 41 : index
    %c0_289 = arith.constant 0 : index
    %294 = vector.load %arg11[%c41_288, %c0_289] : memref<104x128xf32, #tpu.memory_space<vmem>>, vector<1x128xf32>
    %295 = arith.maximumf %293, %294 : vector<1x128xf32>
    %c50 = arith.constant 50 : index
    %c0_290 = arith.constant 0 : index
    %296 = vector.load %arg11[%c50, %c0_290] : memref<104x128xf32, #tpu.memory_space<vmem>>, vector<1x128xf32>
    %c51_291 = arith.constant 51 : index
    %c0_292 = arith.constant 0 : index
    %297 = vector.load %arg11[%c51_291, %c0_292] : memref<104x128xf32, #tpu.memory_space<vmem>>, vector<1x128xf32>
    %298 = arith.maximumf %296, %297 : vector<1x128xf32>
    %299 = arith.maximumf %295, %298 : vector<1x128xf32>
    %c0_293 = arith.constant 0 : index
    %c1024 = arith.constant 1024 : index
    %300 = vector.load %arg12[%c0_293, %c1024] : memref<1x2048xf32, #tpu.memory_space<vmem>>, vector<1x128xf32>
    tpu.vector_store %arg12[%c0_293, %c1024], %299 {strides = array<i32>} : memref<1x2048xf32, #tpu.memory_space<vmem>>, vector<1x128xf32>,
    %c42 = arith.constant 42 : index
    %c0_294 = arith.constant 0 : index
    %301 = vector.load %arg11[%c42, %c0_294] : memref<104x128xf32, #tpu.memory_space<vmem>>, vector<1x128xf32>
    %c43 = arith.constant 43 : index
    %c0_295 = arith.constant 0 : index
    %302 = vector.load %arg11[%c43, %c0_295] : memref<104x128xf32, #tpu.memory_space<vmem>>, vector<1x128xf32>
    %303 = arith.maximumf %301, %302 : vector<1x128xf32>
    %c52 = arith.constant 52 : index
    %c0_296 = arith.constant 0 : index
    %304 = vector.load %arg11[%c52, %c0_296] : memref<104x128xf32, #tpu.memory_space<vmem>>, vector<1x128xf32>
    %c53 = arith.constant 53 : index
    %c0_297 = arith.constant 0 : index
    %305 = vector.load %arg11[%c53, %c0_297] : memref<104x128xf32, #tpu.memory_space<vmem>>, vector<1x128xf32>
    %306 = arith.maximumf %304, %305 : vector<1x128xf32>
    %307 = arith.maximumf %303, %306 : vector<1x128xf32>
    %c0_298 = arith.constant 0 : index
    %c1152 = arith.constant 1152 : index
    %308 = vector.load %arg12[%c0_298, %c1152] : memref<1x2048xf32, #tpu.memory_space<vmem>>, vector<1x128xf32>
    tpu.vector_store %arg12[%c0_298, %c1152], %307 {strides = array<i32>} : memref<1x2048xf32, #tpu.memory_space<vmem>>, vector<1x128xf32>,
    %c44 = arith.constant 44 : index
    %c0_299 = arith.constant 0 : index
    %309 = vector.load %arg11[%c44, %c0_299] : memref<104x128xf32, #tpu.memory_space<vmem>>, vector<1x128xf32>
    %c45 = arith.constant 45 : index
    %c0_300 = arith.constant 0 : index
    %310 = vector.load %arg11[%c45, %c0_300] : memref<104x128xf32, #tpu.memory_space<vmem>>, vector<1x128xf32>
    %311 = arith.maximumf %309, %310 : vector<1x128xf32>
    %c54_301 = arith.constant 54 : index
    %c0_302 = arith.constant 0 : index
    %312 = vector.load %arg11[%c54_301, %c0_302] : memref<104x128xf32, #tpu.memory_space<vmem>>, vector<1x128xf32>
    %c55_303 = arith.constant 55 : index
    %c0_304 = arith.constant 0 : index
    %313 = vector.load %arg11[%c55_303, %c0_304] : memref<104x128xf32, #tpu.memory_space<vmem>>, vector<1x128xf32>
    %314 = arith.maximumf %312, %313 : vector<1x128xf32>
    %315 = arith.maximumf %311, %314 : vector<1x128xf32>
    %c0_305 = arith.constant 0 : index
    %c1280 = arith.constant 1280 : index
    %316 = vector.load %arg12[%c0_305, %c1280] : memref<1x2048xf32, #tpu.memory_space<vmem>>, vector<1x128xf32>
    tpu.vector_store %arg12[%c0_305, %c1280], %315 {strides = array<i32>} : memref<1x2048xf32, #tpu.memory_space<vmem>>, vector<1x128xf32>,
    %c46 = arith.constant 46 : index
    %c0_306 = arith.constant 0 : index
    %317 = vector.load %arg11[%c46, %c0_306] : memref<104x128xf32, #tpu.memory_space<vmem>>, vector<1x128xf32>
    %c47 = arith.constant 47 : index
    %c0_307 = arith.constant 0 : index
    %318 = vector.load %arg11[%c47, %c0_307] : memref<104x128xf32, #tpu.memory_space<vmem>>, vector<1x128xf32>
    %319 = arith.maximumf %317, %318 : vector<1x128xf32>
    %c56 = arith.constant 56 : index
    %c0_308 = arith.constant 0 : index
    %320 = vector.load %arg11[%c56, %c0_308] : memref<104x128xf32, #tpu.memory_space<vmem>>, vector<1x128xf32>
    %c57 = arith.constant 57 : index
    %c0_309 = arith.constant 0 : index
    %321 = vector.load %arg11[%c57, %c0_309] : memref<104x128xf32, #tpu.memory_space<vmem>>, vector<1x128xf32>
    %322 = arith.maximumf %320, %321 : vector<1x128xf32>
    %323 = arith.maximumf %319, %322 : vector<1x128xf32>
    %c0_310 = arith.constant 0 : index
    %c1408 = arith.constant 1408 : index
    %324 = vector.load %arg12[%c0_310, %c1408] : memref<1x2048xf32, #tpu.memory_space<vmem>>, vector<1x128xf32>
    tpu.vector_store %arg12[%c0_310, %c1408], %323 {strides = array<i32>} : memref<1x2048xf32, #tpu.memory_space<vmem>>, vector<1x128xf32>,
    %c60 = arith.constant 60 : index
    %c0_311 = arith.constant 0 : index
    %325 = vector.load %arg11[%c60, %c0_311] : memref<104x128xf32, #tpu.memory_space<vmem>>, vector<1x128xf32>
    %c61_312 = arith.constant 61 : index
    %c0_313 = arith.constant 0 : index
    %326 = vector.load %arg11[%c61_312, %c0_313] : memref<104x128xf32, #tpu.memory_space<vmem>>, vector<1x128xf32>
    %327 = arith.maximumf %325, %326 : vector<1x128xf32>
    %c70 = arith.constant 70 : index
    %c0_314 = arith.constant 0 : index
    %328 = vector.load %arg11[%c70, %c0_314] : memref<104x128xf32, #tpu.memory_space<vmem>>, vector<1x128xf32>
    %c71_315 = arith.constant 71 : index
    %c0_316 = arith.constant 0 : index
    %329 = vector.load %arg11[%c71_315, %c0_316] : memref<104x128xf32, #tpu.memory_space<vmem>>, vector<1x128xf32>
    %330 = arith.maximumf %328, %329 : vector<1x128xf32>
    %331 = arith.maximumf %327, %330 : vector<1x128xf32>
    %c0_317 = arith.constant 0 : index
    %c1536 = arith.constant 1536 : index
    %332 = vector.load %arg12[%c0_317, %c1536] : memref<1x2048xf32, #tpu.memory_space<vmem>>, vector<1x128xf32>
    tpu.vector_store %arg12[%c0_317, %c1536], %331 {strides = array<i32>} : memref<1x2048xf32, #tpu.memory_space<vmem>>, vector<1x128xf32>,
    %c62 = arith.constant 62 : index
    %c0_318 = arith.constant 0 : index
    %333 = vector.load %arg11[%c62, %c0_318] : memref<104x128xf32, #tpu.memory_space<vmem>>, vector<1x128xf32>
    %c63 = arith.constant 63 : index
    %c0_319 = arith.constant 0 : index
    %334 = vector.load %arg11[%c63, %c0_319] : memref<104x128xf32, #tpu.memory_space<vmem>>, vector<1x128xf32>
    %335 = arith.maximumf %333, %334 : vector<1x128xf32>
    %c72_320 = arith.constant 72 : index
    %c0_321 = arith.constant 0 : index
    %336 = vector.load %arg11[%c72_320, %c0_321] : memref<104x128xf32, #tpu.memory_space<vmem>>, vector<1x128xf32>
    %c73_322 = arith.constant 73 : index
    %c0_323 = arith.constant 0 : index
    %337 = vector.load %arg11[%c73_322, %c0_323] : memref<104x128xf32, #tpu.memory_space<vmem>>, vector<1x128xf32>
    %338 = arith.maximumf %336, %337 : vector<1x128xf32>
    %339 = arith.maximumf %335, %338 : vector<1x128xf32>
    %c0_324 = arith.constant 0 : index
    %c1664 = arith.constant 1664 : index
    %340 = vector.load %arg12[%c0_324, %c1664] : memref<1x2048xf32, #tpu.memory_space<vmem>>, vector<1x128xf32>
    tpu.vector_store %arg12[%c0_324, %c1664], %339 {strides = array<i32>} : memref<1x2048xf32, #tpu.memory_space<vmem>>, vector<1x128xf32>,
    %c64 = arith.constant 64 : index
    %c0_325 = arith.constant 0 : index
    %341 = vector.load %arg11[%c64, %c0_325] : memref<104x128xf32, #tpu.memory_space<vmem>>, vector<1x128xf32>
    %c65 = arith.constant 65 : index
    %c0_326 = arith.constant 0 : index
    %342 = vector.load %arg11[%c65, %c0_326] : memref<104x128xf32, #tpu.memory_space<vmem>>, vector<1x128xf32>
    %343 = arith.maximumf %341, %342 : vector<1x128xf32>
    %c74 = arith.constant 74 : index
    %c0_327 = arith.constant 0 : index
    %344 = vector.load %arg11[%c74, %c0_327] : memref<104x128xf32, #tpu.memory_space<vmem>>, vector<1x128xf32>
    %c75 = arith.constant 75 : index
    %c0_328 = arith.constant 0 : index
    %345 = vector.load %arg11[%c75, %c0_328] : memref<104x128xf32, #tpu.memory_space<vmem>>, vector<1x128xf32>
    %346 = arith.maximumf %344, %345 : vector<1x128xf32>
    %347 = arith.maximumf %343, %346 : vector<1x128xf32>
    %c0_329 = arith.constant 0 : index
    %c1792 = arith.constant 1792 : index
    %348 = vector.load %arg12[%c0_329, %c1792] : memref<1x2048xf32, #tpu.memory_space<vmem>>, vector<1x128xf32>
    tpu.vector_store %arg12[%c0_329, %c1792], %347 {strides = array<i32>} : memref<1x2048xf32, #tpu.memory_space<vmem>>, vector<1x128xf32>,
    %c66 = arith.constant 66 : index
    %c0_330 = arith.constant 0 : index
    %349 = vector.load %arg11[%c66, %c0_330] : memref<104x128xf32, #tpu.memory_space<vmem>>, vector<1x128xf32>
    %c67 = arith.constant 67 : index
    %c0_331 = arith.constant 0 : index
    %350 = vector.load %arg11[%c67, %c0_331] : memref<104x128xf32, #tpu.memory_space<vmem>>, vector<1x128xf32>
    %351 = arith.maximumf %349, %350 : vector<1x128xf32>
    %c76 = arith.constant 76 : index
    %c0_332 = arith.constant 0 : index
    %352 = vector.load %arg11[%c76, %c0_332] : memref<104x128xf32, #tpu.memory_space<vmem>>, vector<1x128xf32>
    %c77 = arith.constant 77 : index
    %c0_333 = arith.constant 0 : index
    %353 = vector.load %arg11[%c77, %c0_333] : memref<104x128xf32, #tpu.memory_space<vmem>>, vector<1x128xf32>
    %354 = arith.maximumf %352, %353 : vector<1x128xf32>
    %355 = arith.maximumf %351, %354 : vector<1x128xf32>
    %c0_334 = arith.constant 0 : index
    %c1920 = arith.constant 1920 : index
    %356 = vector.load %arg12[%c0_334, %c1920] : memref<1x2048xf32, #tpu.memory_space<vmem>>, vector<1x128xf32>
    tpu.vector_store %arg12[%c0_334, %c1920], %355 {strides = array<i32>} : memref<1x2048xf32, #tpu.memory_space<vmem>>, vector<1x128xf32>,
    %c0_335 = arith.constant 0 : index
    %c0_336 = arith.constant 0 : index
    %357 = vector.load %arg12[%c0_335, %c0_336] : memref<1x2048xf32, #tpu.memory_space<vmem>>, vector<1x2048xf32>
    %358 = arith.truncf %357 : vector<1x2048xf32> to vector<1x2048xbf16>
    %c0_337 = arith.constant 0 : index
    %c0_338 = arith.constant 0 : index
    %359 = vector.load %arg6[%c0_337, %c0_338] : memref<2048x128xbf16, #tpu.memory_space<vmem>>, vector<2048x128xbf16>
    %cst_339 = arith.constant dense<0.000000e+00> : vector<1x128xf32>
    %360 = tpu.matmul %358, %359, %cst_339 {dimension_numbers = #tpu.dot_dimension_numbers<[1], [0], [0], [1], [0, 0, 1, 1], [], []>} : vector<1x2048xbf16>, vector<2048x128xbf16>, vector<1x128xf32> -> vector<1x128xf32>
    %c0_340 = arith.constant 0 : index
    %c0_341 = arith.constant 0 : index
    %361 = vector.load %arg7[%c0_340, %c0_341] : memref<1x128xf32, #tpu.memory_space<vmem>>, vector<1x128xf32>
    %362 = arith.addf %360, %361 : vector<1x128xf32>
    %363 = vector.shape_cast %362 : vector<1x128xf32> to vector<1x128xf32>
    %364 = vector.broadcast %363 : vector<1x128xf32> to vector<8x128xf32>
    %c0_342 = arith.constant 0 : index
    %c0_343 = arith.constant 0 : index
    %c0_344 = arith.constant 0 : index
    %365 = vector.load %arg8[%c0_342, %c0_343, %c0_344] : memref<1x8x128xf32, #tpu.memory_space<vmem>>, vector<1x8x128xf32>
    %366 = vector.shape_cast %365 : vector<1x8x128xf32> to vector<8x128xf32>
    %367 = vector.shape_cast %364 : vector<8x128xf32> to vector<1x8x128xf32>
    tpu.vector_store %arg8[%c0_342, %c0_343, %c0_344], %367 {strides = array<i32>} : memref<1x8x128xf32, #tpu.memory_space<vmem>>, vector<1x8x128xf32>,
    return
  }
  func.func @transform_0(%arg0: i32) -> (i32, i32, i32) {
    %c0_i32 = arith.constant 0 : i32
    %c0_i32_0 = arith.constant 0 : i32
    %c0_i32_1 = arith.constant 0 : i32
    return %arg0, %c0_i32, %c0_i32_0 : i32, i32, i32
  }
  func.func @transform_1(%arg0: i32) -> (i32, i32, i32) {
    %c0_i32 = arith.constant 0 : i32
    %c0_i32_0 = arith.constant 0 : i32
    %c0_i32_1 = arith.constant 0 : i32
    %c0_i32_2 = arith.constant 0 : i32
    return %c0_i32, %c0_i32_0, %c0_i32_1 : i32, i32, i32
  }
  func.func @transform_2(%arg0: i32) -> (i32, i32) {
    %c0_i32 = arith.constant 0 : i32
    %c0_i32_0 = arith.constant 0 : i32
    %c0_i32_1 = arith.constant 0 : i32
    return %c0_i32, %c0_i32_0 : i32, i32
  }
  func.func @transform_3(%arg0: i32) -> (i32, i32, i32) {
    %c0_i32 = arith.constant 0 : i32
    %c0_i32_0 = arith.constant 0 : i32
    %c0_i32_1 = arith.constant 0 : i32
    %c0_i32_2 = arith.constant 0 : i32
    return %c0_i32, %c0_i32_0, %c0_i32_1 : i32, i32, i32
  }
  func.func @transform_4(%arg0: i32) -> (i32, i32) {
    %c0_i32 = arith.constant 0 : i32
    %c0_i32_0 = arith.constant 0 : i32
    %c0_i32_1 = arith.constant 0 : i32
    return %c0_i32, %c0_i32_0 : i32, i32
  }
  func.func @transform_5(%arg0: i32) -> (i32, i32) {
    %c0_i32 = arith.constant 0 : i32
    %c0_i32_0 = arith.constant 0 : i32
    %c0_i32_1 = arith.constant 0 : i32
    return %c0_i32, %c0_i32_0 : i32, i32
  }
  func.func @transform_6(%arg0: i32) -> (i32, i32) {
    %c0_i32 = arith.constant 0 : i32
    %c0_i32_0 = arith.constant 0 : i32
    %c0_i32_1 = arith.constant 0 : i32
    return %c0_i32, %c0_i32_0 : i32, i32
  }
  func.func @transform_7(%arg0: i32) -> (i32, i32, i32) {
    %c0_i32 = arith.constant 0 : i32
    %c0_i32_0 = arith.constant 0 : i32
    %c0_i32_1 = arith.constant 0 : i32
    return %arg0, %c0_i32, %c0_i32_0 : i32, i32, i32
  }
}

</mosaic_0001>

<llo_original>
// kernel: cifar_forward.1
$region0: #{cifar_forward.1}
  #allocation0 [shape = 'u32[]', space=smem, size = 0x4, offset = 0x4, fixed_abs, tag = 'smem constant byte address 0x4 - core index']
  #allocation1 [shape = 'u32[72,128]{1,0:T(1,128)}', space=vmem, size = 0x9000, scoped, tag = 'internal scratch']
  #allocation2 [shape = 'f32[328,128]{1,0:T(8,128)}', space=vmem, size = 0x29000, scoped, tag = 'scratch operand']
  #allocation3 [shape = 'f32[128,128]{1,0:T(8,128)}', space=vmem, size = 0x10000, scoped, tag = 'scratch operand']
  #allocation4 [shape = 'f32[104,128]{1,0:T(8,128)}', space=vmem, size = 0xd000, scoped, tag = 'scratch operand']
  #allocation5 [shape = 'f32[1,2048]{1,0:T(1,128)}', space=vmem, size = 0x2000, scoped, tag = 'scratch operand']
  %s0 = inlined_call_operand.vmem [shape: f32[2,368,128], index: 0, kind: input, shape index: {}]
  %s1 = inlined_call_operand.vmem [shape: bf16[9,128,128], index: 1, kind: input, shape index: {}]
  %s2 = inlined_call_operand.vmem [shape: f32[1,128], index: 2, kind: input, shape index: {}]
  %s3 = inlined_call_operand.vmem [shape: bf16[9,128,128], index: 3, kind: input, shape index: {}]
  %s4 = inlined_call_operand.vmem [shape: f32[1,128], index: 4, kind: input, shape index: {}]
  %s5 = inlined_call_operand.vmem [shape: bf16[2048,128], index: 5, kind: input, shape index: {}]
  %s6 = inlined_call_operand.vmem [shape: f32[1,128], index: 6, kind: input, shape index: {}]
  %s7 = inlined_call_operand.vmem [shape: f32[2,8,128], index: 7, kind: output, shape index: {}]
  %s8 = sld [smem:[#allocation0]]
  $region61: #{cifar_forward.1} parent=0
    _
  %s10 = ssub.s32 1, %s8
  %s11 = scalar_select 0, %s10, %s8
  loop: start=0, step=1, limit=4
  $region2: #{cifar_forward.1} parent=0 // loop_pre_header
    _
  $region3: #{cifar_forward.1} parent=0 // loop_header
    %s13 = sphi 0, %s17
    %p14 = scmp.ge.s32.totalorder %s13, 4
    %s23 = sphi 0, %s25
    %s26 = sphi 0, %s23
    %s27 = sphi 0, %s26
    %s43 = sphi 0, %s27
    %s47 = sphi 0, %s47
    %s49 = sphi 0, %s47
    %s50 = sphi 0, %s49
    %s64 = sphi 0, %s50
    %s68 = sphi 0, %s68
    %s70 = sphi 0, %s68
    %s71 = sphi 0, %s70
    %s85 = sphi 0, %s71
    %s89 = sphi 0, %s89
    %s91 = sphi 0, %s89
    %s92 = sphi 0, %s91
    %s106 = sphi 0, %s92
    %s110 = sphi 0, %s110
    %s112 = sphi 0, %s110
    %s113 = sphi 0, %s112
    %s127 = sphi 0, %s113
    %s131 = sphi 0, %s131
    %s133 = sphi 0, %s131
    %s134 = sphi 0, %s133
    %s148 = sphi 0, %s134
    %s152 = sphi 0, %s152
    %s154 = sphi 0, %s152
    %s155 = sphi 0, %s154
    %s169 = sphi 0, %s155
    %s175 = sphi 0, %s177
    %s178 = sphi 0, %s175
    %s179 = sphi 0, %s178
    %s195 = sphi 0, %s179
  $region4: #{cifar_forward.1} parent=0 // loop_header_branch
    %16 = sbr.rel (%p14) target = $region8
  $region5: #{cifar_forward.1} parent=0 // loop_body
    %s18 = ssub.s32 %s13, 1
    %s19 = ssub.s32 %s13, 2
    %s20 = sadd.s32 %s13, 1
    %s21 = ssub.s32 %s13, %s20
    %p22 = scmp.eq.s32.totalorder %s21, 0
    %s24 = sadd.s32 %s23, 1
    %s25 = scalar_select %p22, %s23, %s24
    %p28 = pneg %p22
    %p29 = scmp.eq.s32.totalorder %s13, 1
    %p30 = por %p28, %p29
    %p31 = scmp.ne.s32.totalorder %s23, %s26
    %p32 = scmp.eq.s32.totalorder %s13, 0
    %p33 = por %p31, %p32
    %p34 = scmp.ne.s32.totalorder %s23, %s26
    %p35 = scmp.eq.s32.totalorder %s18, 1
    %p36 = por %p34, %p35
    %p37 = scmp.ne.s32.totalorder %s26, %s27
    %p38 = scmp.eq.s32.totalorder %s18, 0
    %p39 = por %p37, %p38
    %p40 = scmp.ne.s32.totalorder %s26, %s27
    %p41 = scmp.eq.s32.totalorder %s19, 1
    %p42 = por %p40, %p41
    %p44 = scmp.ne.s32.totalorder %s27, %s43
    %p45 = scmp.eq.s32.totalorder %s19, 0
    %p46 = por %p44, %p45
    %s48 = sadd.s32 %s47, 1
    %p51 = scmp.eq.s32.totalorder %s13, 1
    %p52 = scmp.ne.s32.totalorder %s47, %s49
    %p53 = scmp.eq.s32.totalorder %s13, 0
    %p54 = por %p52, %p53
    %p55 = scmp.ne.s32.totalorder %s47, %s49
    %p56 = scmp.eq.s32.totalorder %s18, 1
    %p57 = por %p55, %p56
    %p58 = scmp.ne.s32.totalorder %s49, %s50
    %p59 = scmp.eq.s32.totalorder %s18, 0
    %p60 = por %p58, %p59
    %p61 = scmp.ne.s32.totalorder %s49, %s50
    %p62 = scmp.eq.s32.totalorder %s19, 1
    %p63 = por %p61, %p62
    %p65 = scmp.ne.s32.totalorder %s50, %s64
    %p66 = scmp.eq.s32.totalorder %s19, 0
    %p67 = por %p65, %p66
    %s69 = sadd.s32 %s68, 1
    %p72 = scmp.eq.s32.totalorder %s13, 1
    %p73 = scmp.ne.s32.totalorder %s68, %s70
    %p74 = scmp.eq.s32.totalorder %s13, 0
    %p75 = por %p73, %p74
    %p76 = scmp.ne.s32.totalorder %s68, %s70
    %p77 = scmp.eq.s32.totalorder %s18, 1
    %p78 = por %p76, %p77
    %p79 = scmp.ne.s32.totalorder %s70, %s71
    %p80 = scmp.eq.s32.totalorder %s18, 0
    %p81 = por %p79, %p80
    %p82 = scmp.ne.s32.totalorder %s70, %s71
    %p83 = scmp.eq.s32.totalorder %s19, 1
    %p84 = por %p82, %p83
    %p86 = scmp.ne.s32.totalorder %s71, %s85
    %p87 = scmp.eq.s32.totalorder %s19, 0
    %p88 = por %p86, %p87
    %s90 = sadd.s32 %s89, 1
    %p93 = scmp.eq.s32.totalorder %s13, 1
    %p94 = scmp.ne.s32.totalorder %s89, %s91
    %p95 = scmp.eq.s32.totalorder %s13, 0
    %p96 = por %p94, %p95
    %p97 = scmp.ne.s32.totalorder %s89, %s91
    %p98 = scmp.eq.s32.totalorder %s18, 1
    %p99 = por %p97, %p98
    %p100 = scmp.ne.s32.totalorder %s91, %s92
    %p101 = scmp.eq.s32.totalorder %s18, 0
    %p102 = por %p100, %p101
    %p103 = scmp.ne.s32.totalorder %s91, %s92
    %p104 = scmp.eq.s32.totalorder %s19, 1
    %p105 = por %p103, %p104
    %p107 = scmp.ne.s32.totalorder %s92, %s106
    %p108 = scmp.eq.s32.totalorder %s19, 0
    %p109 = por %p107, %p108
    %s111 = sadd.s32 %s110, 1
    %p114 = scmp.eq.s32.totalorder %s13, 1
    %p115 = scmp.ne.s32.totalorder %s110, %s112
    %p116 = scmp.eq.s32.totalorder %s13, 0
    %p117 = por %p115, %p116
    %p118 = scmp.ne.s32.totalorder %s110, %s112
    %p119 = scmp.eq.s32.totalorder %s18, 1
    %p120 = por %p118, %p119
    %p121 = scmp.ne.s32.totalorder %s112, %s113
    %p122 = scmp.eq.s32.totalorder %s18, 0
    %p123 = por %p121, %p122
    %p124 = scmp.ne.s32.totalorder %s112, %s113
    %p125 = scmp.eq.s32.totalorder %s19, 1
    %p126 = por %p124, %p125
    %p128 = scmp.ne.s32.totalorder %s113, %s127
    %p129 = scmp.eq.s32.totalorder %s19, 0
    %p130 = por %p128, %p129
    %s132 = sadd.s32 %s131, 1
    %p135 = scmp.eq.s32.totalorder %s13, 1
    %p136 = scmp.ne.s32.totalorder %s131, %s133
    %p137 = scmp.eq.s32.totalorder %s13, 0
    %p138 = por %p136, %p137
    %p139 = scmp.ne.s32.totalorder %s131, %s133
    %p140 = scmp.eq.s32.totalorder %s18, 1
    %p141 = por %p139, %p140
    %p142 = scmp.ne.s32.totalorder %s133, %s134
    %p143 = scmp.eq.s32.totalorder %s18, 0
    %p144 = por %p142, %p143
    %p145 = scmp.ne.s32.totalorder %s133, %s134
    %p146 = scmp.eq.s32.totalorder %s19, 1
    %p147 = por %p145, %p146
    %p149 = scmp.ne.s32.totalorder %s134, %s148
    %p150 = scmp.eq.s32.totalorder %s19, 0
    %p151 = por %p149, %p150
    %s153 = sadd.s32 %s152, 1
    %p156 = scmp.eq.s32.totalorder %s13, 1
    %p157 = scmp.ne.s32.totalorder %s152, %s154
    %p158 = scmp.eq.s32.totalorder %s13, 0
    %p159 = por %p157, %p158
    %p160 = scmp.ne.s32.totalorder %s152, %s154
    %p161 = scmp.eq.s32.totalorder %s18, 1
    %p162 = por %p160, %p161
    %p163 = scmp.ne.s32.totalorder %s154, %s155
    %p164 = scmp.eq.s32.totalorder %s18, 0
    %p165 = por %p163, %p164
    %p166 = scmp.ne.s32.totalorder %s154, %s155
    %p167 = scmp.eq.s32.totalorder %s19, 1
    %p168 = por %p166, %p167
    %p170 = scmp.ne.s32.totalorder %s155, %s169
    %p171 = scmp.eq.s32.totalorder %s19, 0
    %p172 = por %p170, %p171
    %s173 = ssub.s32 %s13, %s20
    %p174 = scmp.eq.s32.totalorder %s173, 0
    %s176 = sadd.s32 %s175, 1
    %s177 = scalar_select %p174, %s175, %s176
    %p180 = pneg %p174
    %p181 = scmp.eq.s32.totalorder %s13, 1
    %p182 = por %p180, %p181
    %p183 = scmp.ne.s32.totalorder %s175, %s178
    %p184 = scmp.eq.s32.totalorder %s13, 0
    %p185 = por %p183, %p184
    %p186 = scmp.ne.s32.totalorder %s175, %s178
    %p187 = scmp.eq.s32.totalorder %s18, 1
    %p188 = por %p186, %p187
    %p189 = scmp.ne.s32.totalorder %s178, %s179
    %p190 = scmp.eq.s32.totalorder %s18, 0
    %p191 = por %p189, %p190
    %p192 = scmp.ne.s32.totalorder %s178, %s179
    %p193 = scmp.eq.s32.totalorder %s19, 1
    %p194 = por %p192, %p193
    %p196 = scmp.ne.s32.totalorder %s179, %s195
    %p197 = scmp.eq.s32.totalorder %s19, 0
    %p198 = por %p196, %p197
    %p199 = scmp.le.s32.totalorder 1, %s13
    %p200 = scmp.lt.s32.totalorder %s13, 3
    %p201 = pnand %p199, %p200
    %p202 = pneg %p201
    // Predicated region
    $region9: #{cifar_forward.1} parent=5 // pred_check
      _
    $region10: #{cifar_forward.1} parent=5 // pred_check_branch
      %204 = sbr.rel (%p201) target = $region12
    $region11: #{cifar_forward.1} parent=5 // pred_region
      %s205 = ssub.s32 %s13, 1
      // Predicated region
      $region13: #{cifar_forward.1} parent=11 // pred_check
        %p206 = pneg %p60
      $region14: #{cifar_forward.1} parent=11 // pred_check_branch
        %208 = sbr.rel (%p206) target = $region16
      $region15: #{cifar_forward.1} parent=11 // pred_region
        _
      $region16: #{cifar_forward.1} parent=11 // pred_fallthru
        _
      // Predicated region
      $region17: #{cifar_forward.1} parent=11 // pred_check
        %p209 = pneg %p81
      $region18: #{cifar_forward.1} parent=11 // pred_check_branch
        %211 = sbr.rel (%p209) target = $region20
      $region19: #{cifar_forward.1} parent=11 // pred_region
        _
      $region20: #{cifar_forward.1} parent=11 // pred_fallthru
        _
      // Predicated region
      $region21: #{cifar_forward.1} parent=11 // pred_check
        %p212 = pneg %p102
      $region22: #{cifar_forward.1} parent=11 // pred_check_branch
        %214 = sbr.rel (%p212) target = $region24
      $region23: #{cifar_forward.1} parent=11 // pred_region
        _
      $region24: #{cifar_forward.1} parent=11 // pred_fallthru
        _
      // Predicated region
      $region25: #{cifar_forward.1} parent=11 // pred_check
        %p215 = pneg %p123
      $region26: #{cifar_forward.1} parent=11 // pred_check_branch
        %217 = sbr.rel (%p215) target = $region28
      $region27: #{cifar_forward.1} parent=11 // pred_region
        _
      $region28: #{cifar_forward.1} parent=11 // pred_fallthru
        _
      // Predicated region
      $region29: #{cifar_forward.1} parent=11 // pred_check
        %p218 = pneg %p144
      $region30: #{cifar_forward.1} parent=11 // pred_check_branch
        %220 = sbr.rel (%p218) target = $region32
      $region31: #{cifar_forward.1} parent=11 // pred_region
        _
      $region32: #{cifar_forward.1} parent=11 // pred_fallthru
        _
      // Predicated region
      $region33: #{cifar_forward.1} parent=11 // pred_check
        %p221 = pneg %p165
      $region34: #{cifar_forward.1} parent=11 // pred_check_branch
        %223 = sbr.rel (%p221) target = $region36
      $region35: #{cifar_forward.1} parent=11 // pred_region
        _
      $region36: #{cifar_forward.1} parent=11 // pred_fallthru
        _
    $region12: #{cifar_forward.1} parent=5 // pred_fallthru
      _
    %p224 = scmp.lt.s32.totalorder %s13, 2
    // Predicated region
    $region37: #{cifar_forward.1} parent=5 // pred_check
      %p225 = pneg %p224
    $region38: #{cifar_forward.1} parent=5 // pred_check_branch
      %227 = sbr.rel (%p225) target = $region40
    $region39: #{cifar_forward.1} parent=5 // pred_region
      // Predicated region
      $region41: #{cifar_forward.1} parent=39 // pred_check
        %p228 = pneg %p33
      $region42: #{cifar_forward.1} parent=39 // pred_check_branch
        %230 = sbr.rel (%p228) target = $region44
      $region43: #{cifar_forward.1} parent=39 // pred_region
        %p231 = scmp.lt.s32.totalorder %s13, 1
        %s232 = scalar_select %p231, %s13, 1
        %s233 = smul.addr %s232, 46
        %s234 = smul.addr %s233, 8
        %s235 = scalar_lea.vmem %s0, %s234
      $region44: #{cifar_forward.1} parent=39 // pred_fallthru
        _
    $region40: #{cifar_forward.1} parent=5 // pred_fallthru
      _
    %p236 = scmp.le.s32.totalorder 1, %s13
    %p237 = scmp.lt.s32.totalorder %s13, 3
    %p238 = pnand %p236, %p237
    %p239 = pneg %p238
    // Predicated region
    $region45: #{cifar_forward.1} parent=5 // pred_check
      _
    $region46: #{cifar_forward.1} parent=5 // pred_check_branch
      %241 = sbr.rel (%p238) target = $region48
    $region47: #{cifar_forward.1} parent=5 // pred_region
      %s242 = ssub.s32 %s13, 1
      %p243 = scmp.lt.s32.totalorder %s18, 1
      %s244 = scalar_select %p243, %s18, 1
      %s245 = smul.addr %s244, 46
      %s246 = smul.addr %s245, 8
      %s247 = scalar_lea.vmem %s0, %s246
      %p248 = pneg %p39
      %p249 = pneg %p36
      %p250 = pneg %p60
      %p251 = pneg %p57
      %p252 = pneg %p81
      %p253 = pneg %p78
      %p254 = pneg %p102
      %p255 = pneg %p99
      %p256 = pneg %p123
      %p257 = pneg %p120
      %p258 = pneg %p144
      %p259 = pneg %p141
      %p260 = pneg %p165
      %p261 = pneg %p162
      %p262 = pneg %p191
      %p263 = pneg %p188
      %p264 = scmp.lt.s32.totalorder %s18, 1
      %s265 = scalar_select %p264, %s18, 1
      %s266 = smul.addr %s265, 8
      %s267 = scalar_lea.vmem %s7, %s266
      %p268 = scmp.lt.s32.totalorder %s18, 1
      %s269 = scalar_select %p268, %s18, 1
      %s270 = smul.addr %s269, 46
      %s271 = smul.addr %s270, 8
      %s272 = scalar_lea.vmem %s0, %s271
      %p273 = scmp.lt.s32.totalorder %s18, 1
      %s274 = scalar_select %p273, %s18, 1
      %s275 = smul.addr %s274, 8
      %s276 = scalar_lea.vmem %s7, %s275
      %v277 = vld [vmem:[%s272] sm:$0xff]
      %v278 = vld [vmem:[%s272 + $0x8] sm:$0xff]
      %v279 = vld [vmem:[%s272 + $0x10] sm:$0xff]
      %v280 = vld [vmem:[%s272 + $0x18] sm:$0xff]
      %v281 = vld [vmem:[%s272 + $0x20] sm:$0xff]
      %v282 = vld [vmem:[%s272 + $0x28] sm:$0xff]
      %v283 = vld [vmem:[%s272 + $0x30] sm:$0xff]
      %v284 = vld [vmem:[%s272 + $0x38] sm:$0xff]
      %v285 = vld [vmem:[%s272 + $0x40] sm:$0xff]
      %v286 = vld [vmem:[%s272 + $0x48] sm:$0xff]
      %v287 = vld [vmem:[%s272 + $0x50] sm:$0xff]
      %v288 = vld [vmem:[%s272 + $0x58] sm:$0xff]
      %v289 = vld [vmem:[%s272 + $0x60] sm:$0xff]
      %v290 = vld [vmem:[%s272 + $0x68] sm:$0xff]
      %v291 = vld [vmem:[%s272 + $0x70] sm:$0xff]
      %v292 = vld [vmem:[%s272 + $0x78] sm:$0xff]
      %v293 = vld [vmem:[%s272 + $0x80] sm:$0xff]
      %v294 = vld [vmem:[%s272 + $0x88] sm:$0xff]
      %v295 = vld [vmem:[%s272 + $0x90] sm:$0xff]
      %v296 = vld [vmem:[%s272 + $0x98] sm:$0xff]
      %v297 = vld [vmem:[%s272 + $0xa0] sm:$0xff]
      %v298 = vld [vmem:[%s272 + $0xa8] sm:$0xff]
      %v299 = vld [vmem:[%s272 + $0xb0] sm:$0xff]
      %v300 = vld [vmem:[%s272 + $0xb8] sm:$0xff]
      %v301 = vld [vmem:[%s272 + $0xc0] sm:$0xff]
      %v302 = vld [vmem:[%s272 + $0xc8] sm:$0xff]
      %v303 = vld [vmem:[%s272 + $0xd0] sm:$0xff]
      %v304 = vld [vmem:[%s272 + $0xd8] sm:$0xff]
      %v305 = vld [vmem:[%s272 + $0xe0] sm:$0xff]
      %v306 = vld [vmem:[%s272 + $0xe8] sm:$0xff]
      %v307 = vld [vmem:[%s272 + $0xf0] sm:$0xff]
      %v308 = vld [vmem:[%s272 + $0xf8] sm:$0xff]
      %v309 = vld [vmem:[%s272 + $0x100] sm:$0xff]
      %v310 = vld [vmem:[%s272 + $0x108] sm:$0xff]
      %v311 = vld [vmem:[%s272 + $0x110] sm:$0xff]
      %v312 = vld [vmem:[%s272 + $0x118] sm:$0xff]
      %v313 = vld [vmem:[%s272 + $0x120] sm:$0xff]
      %v314 = vld [vmem:[%s272 + $0x128] sm:$0xff]
      %v315 = vld [vmem:[%s272 + $0x130] sm:$0xff]
      %v316 = vld [vmem:[%s272 + $0x138] sm:$0xff]
      %v317 = vld [vmem:[%s272 + $0x140] sm:$0xff]
      %v318 = vpack.c.bf16 %v278, %v277
      %v319 = vpack.c.bf16 %v280, %v279
      %v320 = vpack.c.bf16 %v282, %v281
      %v321 = vpack.c.bf16 %v284, %v283
      %v322 = vpack.c.bf16 %v286, %v285
      %v323 = vpack.c.bf16 %v288, %v287
      %v324 = vpack.c.bf16 %v290, %v289
      %v325 = vpack.c.bf16 %v292, %v291
      %v326 = vpack.c.bf16 %v294, %v293
      %v327 = vpack.c.bf16 %v296, %v295
      %v328 = vpack.c.bf16 %v298, %v297
      %v329 = vpack.c.bf16 %v300, %v299
      %v330 = vpack.c.bf16 %v302, %v301
      %v331 = vpack.c.bf16 %v304, %v303
      %v332 = vpack.c.bf16 %v306, %v305
      %v333 = vpack.c.bf16 %v308, %v307
      %v334 = vpack.c.bf16 %v310, %v309
      %v335 = vpack.c.bf16 %v312, %v311
      %v336 = vpack.c.bf16 %v314, %v313
      %v337 = vpack.c.bf16 %v316, %v315
      %v338 = vpack.c.bf16 %v317, %v317
      %v339 = vld [vmem:[%s1] sm:$0xf]
      %v340 = vld [vmem:[%s1 + $0x4] sm:$0xf]
      %v341 = vld [vmem:[%s1 + $0x8] sm:$0xf]
      %v342 = vld [vmem:[%s1 + $0xc] sm:$0xf]
      %v343 = vld [vmem:[%s1 + $0x10] sm:$0xf]
      %v344 = vld [vmem:[%s1 + $0x14] sm:$0xf]
      %v345 = vld [vmem:[%s1 + $0x18] sm:$0xf]
      %v346 = vld [vmem:[%s1 + $0x1c] sm:$0xf]
      %v347 = vld [vmem:[%s1 + $0x20] sm:$0xf]
      %v348 = vld [vmem:[%s1 + $0x24] sm:$0xf]
      %v349 = vld [vmem:[%s1 + $0x28] sm:$0xf]
      %v350 = vld [vmem:[%s1 + $0x2c] sm:$0xf]
      %v351 = vld [vmem:[%s1 + $0x30] sm:$0xf]
      %v352 = vld [vmem:[%s1 + $0x34] sm:$0xf]
      %v353 = vld [vmem:[%s1 + $0x38] sm:$0xf]
      %v354 = vld [vmem:[%s1 + $0x3c] sm:$0xf]
      %v371 = vunpack.c.l.b16 %v339
      %v372 = vunpack.c.l.b16 %v340
      %v373 = vunpack.c.l.b16 %v341
      %v374 = vunpack.c.l.b16 %v342
      %v375 = vunpack.c.l.b16 %v343
      %v376 = vunpack.c.l.b16 %v344
      %v377 = vunpack.c.l.b16 %v345
      %v378 = vunpack.c.l.b16 %v346
      %v379 = vunpack.c.l.b16 %v347
      %v380 = vunpack.c.l.b16 %v348
      %v381 = vunpack.c.l.b16 %v349
      %v382 = vunpack.c.l.b16 %v350
      %v383 = vunpack.c.l.b16 %v351
      %v384 = vunpack.c.l.b16 %v352
      %v385 = vunpack.c.l.b16 %v353
      %v386 = vunpack.c.l.b16 %v354
      %v387 = vpack.c.b16 %v372, %v371
      %v388 = vpack.c.b16 %v374, %v373
      %v389 = vpack.c.b16 %v376, %v375
      %v390 = vpack.c.b16 %v378, %v377
      %v391 = vpack.c.b16 %v380, %v379
      %v392 = vpack.c.b16 %v382, %v381
      %v393 = vpack.c.b16 %v384, %v383
      %v394 = vpack.c.b16 %v386, %v385
      %403 = vmatpush.bf16.msra.mxu0 %v394
      %404 = vmatpush.bf16.msra.mxu0 %v393
      %405 = vmatpush.bf16.msra.mxu0 %v392
      %406 = vmatpush.bf16.msra.mxu0 %v391
      %407 = vmatpush.bf16.msra.mxu0 %v390
      %408 = vmatpush.bf16.msra.mxu0 %v389
      %409 = vmatpush.bf16.msra.mxu0 %v388
      %410 = vmatpush.bf16.msra.mxu0 %v387
      %411 = vmatmul.bf16.gmra.mxu0 %v318
      %v412 = vpop.f32.mrf.mxu0
      %v413 = vadd.f32 0.0, %v412
      %v414 = vpop.f32.mrf.mxu0
      %v415 = vadd.f32 0.0, %v414
      %416 = vmatmul.bf16.gmra.mxu0 %v319
      %v417 = vpop.f32.mrf.mxu0
      %v418 = vadd.f32 0.0, %v417
      %v419 = vpop.f32.mrf.mxu0
      %v420 = vadd.f32 0.0, %v419
      %421 = vmatmul.bf16.gmra.mxu0 %v320
      %v422 = vpop.f32.mrf.mxu0
      %v423 = vadd.f32 0.0, %v422
      %v424 = vpop.f32.mrf.mxu0
      %v425 = vadd.f32 0.0, %v424
      %426 = vmatmul.bf16.gmra.mxu0 %v321
      %v427 = vpop.f32.mrf.mxu0
      %v428 = vadd.f32 0.0, %v427
      %v429 = vpop.f32.mrf.mxu0
      %v430 = vadd.f32 0.0, %v429
      %431 = vmatmul.bf16.gmra.mxu0 %v322
      %v432 = vpop.f32.mrf.mxu0
      %v433 = vadd.f32 0.0, %v432
      %v434 = vpop.f32.mrf.mxu0
      %v435 = vadd.f32 0.0, %v434
      %436 = vmatmul.bf16.gmra.mxu0 %v323
      %v437 = vpop.f32.mrf.mxu0
      %v438 = vadd.f32 0.0, %v437
      %v439 = vpop.f32.mrf.mxu0
      %v440 = vadd.f32 0.0, %v439
      %441 = vmatmul.bf16.gmra.mxu0 %v324
      %v442 = vpop.f32.mrf.mxu0
      %v443 = vadd.f32 0.0, %v442
      %v444 = vpop.f32.mrf.mxu0
      %v445 = vadd.f32 0.0, %v444
      %446 = vmatmul.bf16.gmra.mxu0 %v325
      %v447 = vpop.f32.mrf.mxu0
      %v448 = vadd.f32 0.0, %v447
      %v449 = vpop.f32.mrf.mxu0
      %v450 = vadd.f32 0.0, %v449
      %451 = vmatmul.bf16.gmra.mxu0 %v326
      %v452 = vpop.f32.mrf.mxu0
      %v453 = vadd.f32 0.0, %v452
      %v454 = vpop.f32.mrf.mxu0
      %v455 = vadd.f32 0.0, %v454
      %456 = vmatmul.bf16.gmra.mxu0 %v327
      %v457 = vpop.f32.mrf.mxu0
      %v458 = vadd.f32 0.0, %v457
      %v459 = vpop.f32.mrf.mxu0
      %v460 = vadd.f32 0.0, %v459
      %461 = vmatmul.bf16.gmra.mxu0 %v328
      %v462 = vpop.f32.mrf.mxu0
      %v463 = vadd.f32 0.0, %v462
      %v464 = vpop.f32.mrf.mxu0
      %v465 = vadd.f32 0.0, %v464
      %466 = vmatmul.bf16.gmra.mxu0 %v329
      %v467 = vpop.f32.mrf.mxu0
      %v468 = vadd.f32 0.0, %v467
      %v469 = vpop.f32.mrf.mxu0
      %v470 = vadd.f32 0.0, %v469
      %471 = vmatmul.bf16.gmra.mxu0 %v330
      %v472 = vpop.f32.mrf.mxu0
      %v473 = vadd.f32 0.0, %v472
      %v474 = vpop.f32.mrf.mxu0
      %v475 = vadd.f32 0.0, %v474
      %476 = vmatmul.bf16.gmra.mxu0 %v331
      %v477 = vpop.f32.mrf.mxu0
      %v478 = vadd.f32 0.0, %v477
      %v479 = vpop.f32.mrf.mxu0
      %v480 = vadd.f32 0.0, %v479
      %481 = vmatmul.bf16.gmra.mxu0 %v332
      %v482 = vpop.f32.mrf.mxu0
      %v483 = vadd.f32 0.0, %v482
      %v484 = vpop.f32.mrf.mxu0
      %v485 = vadd.f32 0.0, %v484
      %486 = vmatmul.bf16.gmra.mxu0 %v333
      %v487 = vpop.f32.mrf.mxu0
      %v488 = vadd.f32 0.0, %v487
      %v489 = vpop.f32.mrf.mxu0
      %v490 = vadd.f32 0.0, %v489
      %491 = vmatmul.bf16.gmra.mxu0 %v334
      %v492 = vpop.f32.mrf.mxu0
      %v493 = vadd.f32 0.0, %v492
      %v494 = vpop.f32.mrf.mxu0
      %v495 = vadd.f32 0.0, %v494
      %496 = vmatmul.bf16.gmra.mxu0 %v335
      %v497 = vpop.f32.mrf.mxu0
      %v498 = vadd.f32 0.0, %v497
      %v499 = vpop.f32.mrf.mxu0
      %v500 = vadd.f32 0.0, %v499
      %501 = vmatmul.bf16.gmra.mxu0 %v336
      %v502 = vpop.f32.mrf.mxu0
      %v503 = vadd.f32 0.0, %v502
      %v504 = vpop.f32.mrf.mxu0
      %v505 = vadd.f32 0.0, %v504
      %506 = vmatmul.bf16.gmra.mxu0 %v337
      %v507 = vpop.f32.mrf.mxu0
      %v508 = vadd.f32 0.0, %v507
      %v509 = vpop.f32.mrf.mxu0
      %v510 = vadd.f32 0.0, %v509
      %511 = vmatmul.bf16.gmra.mxu0 %v338
      %v512 = vpop.f32.mrf.mxu0
      %v513 = vadd.f32 0.0, %v512
      %v514 = vpop.f32.mrf.mxu0
      %515 = vdwg.mxu0
      %516 = vst [vmem:[#allocation2] sm:$0xff] %v413
      %517 = vst [vmem:[#allocation2 + $0x8] sm:$0xff] %v415
      %518 = vst [vmem:[#allocation2 + $0x10] sm:$0xff] %v418
      %519 = vst [vmem:[#allocation2 + $0x18] sm:$0xff] %v420
      %520 = vst [vmem:[#allocation2 + $0x20] sm:$0xff] %v423
      %521 = vst [vmem:[#allocation2 + $0x28] sm:$0xff] %v425
      %522 = vst [vmem:[#allocation2 + $0x30] sm:$0xff] %v428
      %523 = vst [vmem:[#allocation2 + $0x38] sm:$0xff] %v430
      %524 = vst [vmem:[#allocation2 + $0x40] sm:$0xff] %v433
      %525 = vst [vmem:[#allocation2 + $0x48] sm:$0xff] %v435
      %526 = vst [vmem:[#allocation2 + $0x50] sm:$0xff] %v438
      %527 = vst [vmem:[#allocation2 + $0x58] sm:$0xff] %v440
      %528 = vst [vmem:[#allocation2 + $0x60] sm:$0xff] %v443
      %529 = vst [vmem:[#allocation2 + $0x68] sm:$0xff] %v445
      %530 = vst [vmem:[#allocation2 + $0x70] sm:$0xff] %v448
      %531 = vst [vmem:[#allocation2 + $0x78] sm:$0xff] %v450
      %532 = vst [vmem:[#allocation2 + $0x80] sm:$0xff] %v453
      %533 = vst [vmem:[#allocation2 + $0x88] sm:$0xff] %v455
      %534 = vst [vmem:[#allocation2 + $0x90] sm:$0xff] %v458
      %535 = vst [vmem:[#allocation2 + $0x98] sm:$0xff] %v460
      %536 = vst [vmem:[#allocation2 + $0xa0] sm:$0xff] %v463
      %537 = vst [vmem:[#allocation2 + $0xa8] sm:$0xff] %v465
      %538 = vst [vmem:[#allocation2 + $0xb0] sm:$0xff] %v468
      %539 = vst [vmem:[#allocation2 + $0xb8] sm:$0xff] %v470
      %540 = vst [vmem:[#allocation2 + $0xc0] sm:$0xff] %v473
      %541 = vst [vmem:[#allocation2 + $0xc8] sm:$0xff] %v475
      %542 = vst [vmem:[#allocation2 + $0xd0] sm:$0xff] %v478
      %543 = vst [vmem:[#allocation2 + $0xd8] sm:$0xff] %v480
      %544 = vst [vmem:[#allocation2 + $0xe0] sm:$0xff] %v483
      %545 = vst [vmem:[#allocation2 + $0xe8] sm:$0xff] %v485
      %546 = vst [vmem:[#allocation2 + $0xf0] sm:$0xff] %v488
      %547 = vst [vmem:[#allocation2 + $0xf8] sm:$0xff] %v490
      %548 = vst [vmem:[#allocation2 + $0x100] sm:$0xff] %v493
      %549 = vst [vmem:[#allocation2 + $0x108] sm:$0xff] %v495
      %550 = vst [vmem:[#allocation2 + $0x110] sm:$0xff] %v498
      %551 = vst [vmem:[#allocation2 + $0x118] sm:$0xff] %v500
      %552 = vst [vmem:[#allocation2 + $0x120] sm:$0xff] %v503
      %553 = vst [vmem:[#allocation2 + $0x128] sm:$0xff] %v505
      %554 = vst [vmem:[#allocation2 + $0x130] sm:$0xff] %v508
      %555 = vst [vmem:[#allocation2 + $0x138] sm:$0xff] %v510
      %556 = vst [vmem:[#allocation2 + $0x140] sm:$0xff] %v513
      %v557 = vld [vmem:[%s272 + $0x1] sm:$0xff]
      %v558 = vld [vmem:[%s272 + $0x9] sm:$0xff]
      %v559 = vld [vmem:[%s272 + $0x11] sm:$0xff]
      %v560 = vld [vmem:[%s272 + $0x19] sm:$0xff]
      %v561 = vld [vmem:[%s272 + $0x21] sm:$0xff]
      %v562 = vld [vmem:[%s272 + $0x29] sm:$0xff]
      %v563 = vld [vmem:[%s272 + $0x31] sm:$0xff]
      %v564 = vld [vmem:[%s272 + $0x39] sm:$0xff]
      %v565 = vld [vmem:[%s272 + $0x41] sm:$0xff]
      %v566 = vld [vmem:[%s272 + $0x49] sm:$0xff]
      %v567 = vld [vmem:[%s272 + $0x51] sm:$0xff]
      %v568 = vld [vmem:[%s272 + $0x59] sm:$0xff]
      %v569 = vld [vmem:[%s272 + $0x61] sm:$0xff]
      %v570 = vld [vmem:[%s272 + $0x69] sm:$0xff]
      %v571 = vld [vmem:[%s272 + $0x71] sm:$0xff]
      %v572 = vld [vmem:[%s272 + $0x79] sm:$0xff]
      %v573 = vld [vmem:[%s272 + $0x81] sm:$0xff]
      %v574 = vld [vmem:[%s272 + $0x89] sm:$0xff]
      %v575 = vld [vmem:[%s272 + $0x91] sm:$0xff]
      %v576 = vld [vmem:[%s272 + $0x99] sm:$0xff]
      %v577 = vld [vmem:[%s272 + $0xa1] sm:$0xff]
      %v578 = vld [vmem:[%s272 + $0xa9] sm:$0xff]
      %v579 = vld [vmem:[%s272 + $0xb1] sm:$0xff]
      %v580 = vld [vmem:[%s272 + $0xb9] sm:$0xff]
      %v581 = vld [vmem:[%s272 + $0xc1] sm:$0xff]
      %v582 = vld [vmem:[%s272 + $0xc9] sm:$0xff]
      %v583 = vld [vmem:[%s272 + $0xd1] sm:$0xff]
      %v584 = vld [vmem:[%s272 + $0xd9] sm:$0xff]
      %v585 = vld [vmem:[%s272 + $0xe1] sm:$0xff]
      %v586 = vld [vmem:[%s272 + $0xe9] sm:$0xff]
      %v587 = vld [vmem:[%s272 + $0xf1] sm:$0xff]
      %v588 = vld [vmem:[%s272 + $0xf9] sm:$0xff]
      %v589 = vld [vmem:[%s272 + $0x101] sm:$0xff]
      %v590 = vld [vmem:[%s272 + $0x109] sm:$0xff]
      %v591 = vld [vmem:[%s272 + $0x111] sm:$0xff]
      %v592 = vld [vmem:[%s272 + $0x119] sm:$0xff]
      %v593 = vld [vmem:[%s272 + $0x121] sm:$0xff]
      %v594 = vld [vmem:[%s272 + $0x129] sm:$0xff]
      %v595 = vld [vmem:[%s272 + $0x131] sm:$0xff]
      %v596 = vld [vmem:[%s272 + $0x139] sm:$0xff]
      %v597 = vld [vmem:[%s272 + $0x141] sm:$0xff]
      %v598 = vpack.c.bf16 %v558, %v557
      %v599 = vpack.c.bf16 %v560, %v559
      %v600 = vpack.c.bf16 %v562, %v561
      %v601 = vpack.c.bf16 %v564, %v563
      %v602 = vpack.c.bf16 %v566, %v565
      %v603 = vpack.c.bf16 %v568, %v567
      %v604 = vpack.c.bf16 %v570, %v569
      %v605 = vpack.c.bf16 %v572, %v571
      %v606 = vpack.c.bf16 %v574, %v573
      %v607 = vpack.c.bf16 %v576, %v575
      %v608 = vpack.c.bf16 %v578, %v577
      %v609 = vpack.c.bf16 %v580, %v579
      %v610 = vpack.c.bf16 %v582, %v581
      %v611 = vpack.c.bf16 %v584, %v583
      %v612 = vpack.c.bf16 %v586, %v585
      %v613 = vpack.c.bf16 %v588, %v587
      %v614 = vpack.c.bf16 %v590, %v589
      %v615 = vpack.c.bf16 %v592, %v591
      %v616 = vpack.c.bf16 %v594, %v593
      %v617 = vpack.c.bf16 %v596, %v595
      %v618 = vpack.c.bf16 %v597, %v597
      %s619 = scalar_lea.vmem %s1, 64
      %v620 = vld [vmem:[%s619] sm:$0xf]
      %v621 = vld [vmem:[%s619 + $0x4] sm:$0xf]
      %v622 = vld [vmem:[%s619 + $0x8] sm:$0xf]
      %v623 = vld [vmem:[%s619 + $0xc] sm:$0xf]
      %v624 = vld [vmem:[%s619 + $0x10] sm:$0xf]
      %v625 = vld [vmem:[%s619 + $0x14] sm:$0xf]
      %v626 = vld [vmem:[%s619 + $0x18] sm:$0xf]
      %v627 = vld [vmem:[%s619 + $0x1c] sm:$0xf]
      %v628 = vld [vmem:[%s619 + $0x20] sm:$0xf]
      %v629 = vld [vmem:[%s619 + $0x24] sm:$0xf]
      %v630 = vld [vmem:[%s619 + $0x28] sm:$0xf]
      %v631 = vld [vmem:[%s619 + $0x2c] sm:$0xf]
      %v632 = vld [vmem:[%s619 + $0x30] sm:$0xf]
      %v633 = vld [vmem:[%s619 + $0x34] sm:$0xf]
      %v634 = vld [vmem:[%s619 + $0x38] sm:$0xf]
      %v635 = vld [vmem:[%s619 + $0x3c] sm:$0xf]
      %v652 = vunpack.c.l.b16 %v620
      %v653 = vunpack.c.l.b16 %v621
      %v654 = vunpack.c.l.b16 %v622
      %v655 = vunpack.c.l.b16 %v623
      %v656 = vunpack.c.l.b16 %v624
      %v657 = vunpack.c.l.b16 %v625
      %v658 = vunpack.c.l.b16 %v626
      %v659 = vunpack.c.l.b16 %v627
      %v660 = vunpack.c.l.b16 %v628
      %v661 = vunpack.c.l.b16 %v629
      %v662 = vunpack.c.l.b16 %v630
      %v663 = vunpack.c.l.b16 %v631
      %v664 = vunpack.c.l.b16 %v632
      %v665 = vunpack.c.l.b16 %v633
      %v666 = vunpack.c.l.b16 %v634
      %v667 = vunpack.c.l.b16 %v635
      %v668 = vpack.c.b16 %v653, %v652
      %v669 = vpack.c.b16 %v655, %v654
      %v670 = vpack.c.b16 %v657, %v656
      %v671 = vpack.c.b16 %v659, %v658
      %v672 = vpack.c.b16 %v661, %v660
      %v673 = vpack.c.b16 %v663, %v662
      %v674 = vpack.c.b16 %v665, %v664
      %v675 = vpack.c.b16 %v667, %v666
      %684 = vmatpush.bf16.msra.mxu0 %v675
      %685 = vmatpush.bf16.msra.mxu0 %v674
      %686 = vmatpush.bf16.msra.mxu0 %v673
      %687 = vmatpush.bf16.msra.mxu0 %v672
      %688 = vmatpush.bf16.msra.mxu0 %v671
      %689 = vmatpush.bf16.msra.mxu0 %v670
      %690 = vmatpush.bf16.msra.mxu0 %v669
      %691 = vmatpush.bf16.msra.mxu0 %v668
      %692 = vmatmul.bf16.gmra.mxu0 %v598
      %v693 = vpop.f32.mrf.mxu0
      %v694 = vadd.f32 0.0, %v693
      %v695 = vpop.f32.mrf.mxu0
      %v696 = vadd.f32 0.0, %v695
      %697 = vmatmul.bf16.gmra.mxu0 %v599
      %v698 = vpop.f32.mrf.mxu0
      %v699 = vadd.f32 0.0, %v698
      %v700 = vpop.f32.mrf.mxu0
      %v701 = vadd.f32 0.0, %v700
      %702 = vmatmul.bf16.gmra.mxu0 %v600
      %v703 = vpop.f32.mrf.mxu0
      %v704 = vadd.f32 0.0, %v703
      %v705 = vpop.f32.mrf.mxu0
      %v706 = vadd.f32 0.0, %v705
      %707 = vmatmul.bf16.gmra.mxu0 %v601
      %v708 = vpop.f32.mrf.mxu0
      %v709 = vadd.f32 0.0, %v708
      %v710 = vpop.f32.mrf.mxu0
      %v711 = vadd.f32 0.0, %v710
      %712 = vmatmul.bf16.gmra.mxu0 %v602
      %v713 = vpop.f32.mrf.mxu0
      %v714 = vadd.f32 0.0, %v713
      %v715 = vpop.f32.mrf.mxu0
      %v716 = vadd.f32 0.0, %v715
      %717 = vmatmul.bf16.gmra.mxu0 %v603
      %v718 = vpop.f32.mrf.mxu0
      %v719 = vadd.f32 0.0, %v718
      %v720 = vpop.f32.mrf.mxu0
      %v721 = vadd.f32 0.0, %v720
      %722 = vmatmul.bf16.gmra.mxu0 %v604
      %v723 = vpop.f32.mrf.mxu0
      %v724 = vadd.f32 0.0, %v723
      %v725 = vpop.f32.mrf.mxu0
      %v726 = vadd.f32 0.0, %v725
      %727 = vmatmul.bf16.gmra.mxu0 %v605
      %v728 = vpop.f32.mrf.mxu0
      %v729 = vadd.f32 0.0, %v728
      %v730 = vpop.f32.mrf.mxu0
      %v731 = vadd.f32 0.0, %v730
      %732 = vmatmul.bf16.gmra.mxu0 %v606
      %v733 = vpop.f32.mrf.mxu0
      %v734 = vadd.f32 0.0, %v733
      %v735 = vpop.f32.mrf.mxu0
      %v736 = vadd.f32 0.0, %v735
      %737 = vmatmul.bf16.gmra.mxu0 %v607
      %v738 = vpop.f32.mrf.mxu0
      %v739 = vadd.f32 0.0, %v738
      %v740 = vpop.f32.mrf.mxu0
      %v741 = vadd.f32 0.0, %v740
      %742 = vmatmul.bf16.gmra.mxu0 %v608
      %v743 = vpop.f32.mrf.mxu0
      %v744 = vadd.f32 0.0, %v743
      %v745 = vpop.f32.mrf.mxu0
      %v746 = vadd.f32 0.0, %v745
      %747 = vmatmul.bf16.gmra.mxu0 %v609
      %v748 = vpop.f32.mrf.mxu0
      %v749 = vadd.f32 0.0, %v748
      %v750 = vpop.f32.mrf.mxu0
      %v751 = vadd.f32 0.0, %v750
      %752 = vmatmul.bf16.gmra.mxu0 %v610
      %v753 = vpop.f32.mrf.mxu0
      %v754 = vadd.f32 0.0, %v753
      %v755 = vpop.f32.mrf.mxu0
      %v756 = vadd.f32 0.0, %v755
      %757 = vmatmul.bf16.gmra.mxu0 %v611
      %v758 = vpop.f32.mrf.mxu0
      %v759 = vadd.f32 0.0, %v758
      %v760 = vpop.f32.mrf.mxu0
      %v761 = vadd.f32 0.0, %v760
      %762 = vmatmul.bf16.gmra.mxu0 %v612
      %v763 = vpop.f32.mrf.mxu0
      %v764 = vadd.f32 0.0, %v763
      %v765 = vpop.f32.mrf.mxu0
      %v766 = vadd.f32 0.0, %v765
      %767 = vmatmul.bf16.gmra.mxu0 %v613
      %v768 = vpop.f32.mrf.mxu0
      %v769 = vadd.f32 0.0, %v768
      %v770 = vpop.f32.mrf.mxu0
      %v771 = vadd.f32 0.0, %v770
      %772 = vmatmul.bf16.gmra.mxu0 %v614
      %v773 = vpop.f32.mrf.mxu0
      %v774 = vadd.f32 0.0, %v773
      %v775 = vpop.f32.mrf.mxu0
      %v776 = vadd.f32 0.0, %v775
      %777 = vmatmul.bf16.gmra.mxu0 %v615
      %v778 = vpop.f32.mrf.mxu0
      %v779 = vadd.f32 0.0, %v778
      %v780 = vpop.f32.mrf.mxu0
      %v781 = vadd.f32 0.0, %v780
      %782 = vmatmul.bf16.gmra.mxu0 %v616
      %v783 = vpop.f32.mrf.mxu0
      %v784 = vadd.f32 0.0, %v783
      %v785 = vpop.f32.mrf.mxu0
      %v786 = vadd.f32 0.0, %v785
      %787 = vmatmul.bf16.gmra.mxu0 %v617
      %v788 = vpop.f32.mrf.mxu0
      %v789 = vadd.f32 0.0, %v788
      %v790 = vpop.f32.mrf.mxu0
      %v791 = vadd.f32 0.0, %v790
      %792 = vmatmul.bf16.gmra.mxu0 %v618
      %v793 = vpop.f32.mrf.mxu0
      %v794 = vadd.f32 0.0, %v793
      %v795 = vpop.f32.mrf.mxu0
      %796 = vdwg.mxu0
      %v797 = vld [vmem:[#allocation2] sm:$0xff]
      %v798 = vld [vmem:[#allocation2 + $0x8] sm:$0xff]
      %v799 = vld [vmem:[#allocation2 + $0x10] sm:$0xff]
      %v800 = vld [vmem:[#allocation2 + $0x18] sm:$0xff]
      %v801 = vld [vmem:[#allocation2 + $0x20] sm:$0xff]
      %v802 = vld [vmem:[#allocation2 + $0x28] sm:$0xff]
      %v803 = vld [vmem:[#allocation2 + $0x30] sm:$0xff]
      %v804 = vld [vmem:[#allocation2 + $0x38] sm:$0xff]
      %v805 = vld [vmem:[#allocation2 + $0x40] sm:$0xff]
      %v806 = vld [vmem:[#allocation2 + $0x48] sm:$0xff]
      %v807 = vld [vmem:[#allocation2 + $0x50] sm:$0xff]
      %v808 = vld [vmem:[#allocation2 + $0x58] sm:$0xff]
      %v809 = vld [vmem:[#allocation2 + $0x60] sm:$0xff]
      %v810 = vld [vmem:[#allocation2 + $0x68] sm:$0xff]
      %v811 = vld [vmem:[#allocation2 + $0x70] sm:$0xff]
      %v812 = vld [vmem:[#allocation2 + $0x78] sm:$0xff]
      %v813 = vld [vmem:[#allocation2 + $0x80] sm:$0xff]
      %v814 = vld [vmem:[#allocation2 + $0x88] sm:$0xff]
      %v815 = vld [vmem:[#allocation2 + $0x90] sm:$0xff]
      %v816 = vld [vmem:[#allocation2 + $0x98] sm:$0xff]
      %v817 = vld [vmem:[#allocation2 + $0xa0] sm:$0xff]
      %v818 = vld [vmem:[#allocation2 + $0xa8] sm:$0xff]
      %v819 = vld [vmem:[#allocation2 + $0xb0] sm:$0xff]
      %v820 = vld [vmem:[#allocation2 + $0xb8] sm:$0xff]
      %v821 = vld [vmem:[#allocation2 + $0xc0] sm:$0xff]
      %v822 = vld [vmem:[#allocation2 + $0xc8] sm:$0xff]
      %v823 = vld [vmem:[#allocation2 + $0xd0] sm:$0xff]
      %v824 = vld [vmem:[#allocation2 + $0xd8] sm:$0xff]
      %v825 = vld [vmem:[#allocation2 + $0xe0] sm:$0xff]
      %v826 = vld [vmem:[#allocation2 + $0xe8] sm:$0xff]
      %v827 = vld [vmem:[#allocation2 + $0xf0] sm:$0xff]
      %v828 = vld [vmem:[#allocation2 + $0xf8] sm:$0xff]
      %v829 = vld [vmem:[#allocation2 + $0x100] sm:$0xff]
      %v830 = vld [vmem:[#allocation2 + $0x108] sm:$0xff]
      %v831 = vld [vmem:[#allocation2 + $0x110] sm:$0xff]
      %v832 = vld [vmem:[#allocation2 + $0x118] sm:$0xff]
      %v833 = vld [vmem:[#allocation2 + $0x120] sm:$0xff]
      %v834 = vld [vmem:[#allocation2 + $0x128] sm:$0xff]
      %v835 = vld [vmem:[#allocation2 + $0x130] sm:$0xff]
      %v836 = vld [vmem:[#allocation2 + $0x138] sm:$0xff]
      %v837 = vld [vmem:[#allocation2 + $0x140] sm:$0xff]
      %v838 = vadd.f32 %v797, %v694
      %v839 = vadd.f32 %v798, %v696
      %v840 = vadd.f32 %v799, %v699
      %v841 = vadd.f32 %v800, %v701
      %v842 = vadd.f32 %v801, %v704
      %v843 = vadd.f32 %v802, %v706
      %v844 = vadd.f32 %v803, %v709
      %v845 = vadd.f32 %v804, %v711
      %v846 = vadd.f32 %v805, %v714
      %v847 = vadd.f32 %v806, %v716
      %v848 = vadd.f32 %v807, %v719
      %v849 = vadd.f32 %v808, %v721
      %v850 = vadd.f32 %v809, %v724
      %v851 = vadd.f32 %v810, %v726
      %v852 = vadd.f32 %v811, %v729
      %v853 = vadd.f32 %v812, %v731
      %v854 = vadd.f32 %v813, %v734
      %v855 = vadd.f32 %v814, %v736
      %v856 = vadd.f32 %v815, %v739
      %v857 = vadd.f32 %v816, %v741
      %v858 = vadd.f32 %v817, %v744
      %v859 = vadd.f32 %v818, %v746
      %v860 = vadd.f32 %v819, %v749
      %v861 = vadd.f32 %v820, %v751
      %v862 = vadd.f32 %v821, %v754
      %v863 = vadd.f32 %v822, %v756
      %v864 = vadd.f32 %v823, %v759
      %v865 = vadd.f32 %v824, %v761
      %v866 = vadd.f32 %v825, %v764
      %v867 = vadd.f32 %v826, %v766
      %v868 = vadd.f32 %v827, %v769
      %v869 = vadd.f32 %v828, %v771
      %v870 = vadd.f32 %v829, %v774
      %v871 = vadd.f32 %v830, %v776
      %v872 = vadd.f32 %v831, %v779
      %v873 = vadd.f32 %v832, %v781
      %v874 = vadd.f32 %v833, %v784
      %v875 = vadd.f32 %v834, %v786
      %v876 = vadd.f32 %v835, %v789
      %v877 = vadd.f32 %v836, %v791
      %v878 = vadd.f32 %v837, %v794
      %879 = vst [vmem:[#allocation2] sm:$0xff] %v838
      %880 = vst [vmem:[#allocation2 + $0x8] sm:$0xff] %v839
      %881 = vst [vmem:[#allocation2 + $0x10] sm:$0xff] %v840
      %882 = vst [vmem:[#allocation2 + $0x18] sm:$0xff] %v841
      %883 = vst [vmem:[#allocation2 + $0x20] sm:$0xff] %v842
      %884 = vst [vmem:[#allocation2 + $0x28] sm:$0xff] %v843
      %885 = vst [vmem:[#allocation2 + $0x30] sm:$0xff] %v844
      %886 = vst [vmem:[#allocation2 + $0x38] sm:$0xff] %v845
      %887 = vst [vmem:[#allocation2 + $0x40] sm:$0xff] %v846
      %888 = vst [vmem:[#allocation2 + $0x48] sm:$0xff] %v847
      %889 = vst [vmem:[#allocation2 + $0x50] sm:$0xff] %v848
      %890 = vst [vmem:[#allocation2 + $0x58] sm:$0xff] %v849
      %891 = vst [vmem:[#allocation2 + $0x60] sm:$0xff] %v850
      %892 = vst [vmem:[#allocation2 + $0x68] sm:$0xff] %v851
      %893 = vst [vmem:[#allocation2 + $0x70] sm:$0xff] %v852
      %894 = vst [vmem:[#allocation2 + $0x78] sm:$0xff] %v853
      %895 = vst [vmem:[#allocation2 + $0x80] sm:$0xff] %v854
      %896 = vst [vmem:[#allocation2 + $0x88] sm:$0xff] %v855
      %897 = vst [vmem:[#allocation2 + $0x90] sm:$0xff] %v856
      %898 = vst [vmem:[#allocation2 + $0x98] sm:$0xff] %v857
      %899 = vst [vmem:[#allocation2 + $0xa0] sm:$0xff] %v858
      %900 = vst [vmem:[#allocation2 + $0xa8] sm:$0xff] %v859
      %901 = vst [vmem:[#allocation2 + $0xb0] sm:$0xff] %v860
      %902 = vst [vmem:[#allocation2 + $0xb8] sm:$0xff] %v861
      %903 = vst [vmem:[#allocation2 + $0xc0] sm:$0xff] %v862
      %904 = vst [vmem:[#allocation2 + $0xc8] sm:$0xff] %v863
      %905 = vst [vmem:[#allocation2 + $0xd0] sm:$0xff] %v864
      %906 = vst [vmem:[#allocation2 + $0xd8] sm:$0xff] %v865
      %907 = vst [vmem:[#allocation2 + $0xe0] sm:$0xff] %v866
      %908 = vst [vmem:[#allocation2 + $0xe8] sm:$0xff] %v867
      %909 = vst [vmem:[#allocation2 + $0xf0] sm:$0xff] %v868
      %910 = vst [vmem:[#allocation2 + $0xf8] sm:$0xff] %v869
      %911 = vst [vmem:[#allocation2 + $0x100] sm:$0xff] %v870
      %912 = vst [vmem:[#allocation2 + $0x108] sm:$0xff] %v871
      %913 = vst [vmem:[#allocation2 + $0x110] sm:$0xff] %v872
      %914 = vst [vmem:[#allocation2 + $0x118] sm:$0xff] %v873
      %915 = vst [vmem:[#allocation2 + $0x120] sm:$0xff] %v874
      %916 = vst [vmem:[#allocation2 + $0x128] sm:$0xff] %v875
      %917 = vst [vmem:[#allocation2 + $0x130] sm:$0xff] %v876
      %918 = vst [vmem:[#allocation2 + $0x138] sm:$0xff] %v877
      %919 = vst [vmem:[#allocation2 + $0x140] sm:$0xff] %v878
      %v920 = vld [vmem:[%s272 + $0x2] sm:$0xff]
      %v921 = vld [vmem:[%s272 + $0xa] sm:$0xff]
      %v922 = vld [vmem:[%s272 + $0x12] sm:$0xff]
      %v923 = vld [vmem:[%s272 + $0x1a] sm:$0xff]
      %v924 = vld [vmem:[%s272 + $0x22] sm:$0xff]
      %v925 = vld [vmem:[%s272 + $0x2a] sm:$0xff]
      %v926 = vld [vmem:[%s272 + $0x32] sm:$0xff]
      %v927 = vld [vmem:[%s272 + $0x3a] sm:$0xff]
      %v928 = vld [vmem:[%s272 + $0x42] sm:$0xff]
      %v929 = vld [vmem:[%s272 + $0x4a] sm:$0xff]
      %v930 = vld [vmem:[%s272 + $0x52] sm:$0xff]
      %v931 = vld [vmem:[%s272 + $0x5a] sm:$0xff]
      %v932 = vld [vmem:[%s272 + $0x62] sm:$0xff]
      %v933 = vld [vmem:[%s272 + $0x6a] sm:$0xff]
      %v934 = vld [vmem:[%s272 + $0x72] sm:$0xff]
      %v935 = vld [vmem:[%s272 + $0x7a] sm:$0xff]
      %v936 = vld [vmem:[%s272 + $0x82] sm:$0xff]
      %v937 = vld [vmem:[%s272 + $0x8a] sm:$0xff]
      %v938 = vld [vmem:[%s272 + $0x92] sm:$0xff]
      %v939 = vld [vmem:[%s272 + $0x9a] sm:$0xff]
      %v940 = vld [vmem:[%s272 + $0xa2] sm:$0xff]
      %v941 = vld [vmem:[%s272 + $0xaa] sm:$0xff]
      %v942 = vld [vmem:[%s272 + $0xb2] sm:$0xff]
      %v943 = vld [vmem:[%s272 + $0xba] sm:$0xff]
      %v944 = vld [vmem:[%s272 + $0xc2] sm:$0xff]
      %v945 = vld [vmem:[%s272 + $0xca] sm:$0xff]
      %v946 = vld [vmem:[%s272 + $0xd2] sm:$0xff]
      %v947 = vld [vmem:[%s272 + $0xda] sm:$0xff]
      %v948 = vld [vmem:[%s272 + $0xe2] sm:$0xff]
      %v949 = vld [vmem:[%s272 + $0xea] sm:$0xff]
      %v950 = vld [vmem:[%s272 + $0xf2] sm:$0xff]
      %v951 = vld [vmem:[%s272 + $0xfa] sm:$0xff]
      %v952 = vld [vmem:[%s272 + $0x102] sm:$0xff]
      %v953 = vld [vmem:[%s272 + $0x10a] sm:$0xff]
      %v954 = vld [vmem:[%s272 + $0x112] sm:$0xff]
      %v955 = vld [vmem:[%s272 + $0x11a] sm:$0xff]
      %v956 = vld [vmem:[%s272 + $0x122] sm:$0xff]
      %v957 = vld [vmem:[%s272 + $0x12a] sm:$0xff]
      %v958 = vld [vmem:[%s272 + $0x132] sm:$0xff]
      %v959 = vld [vmem:[%s272 + $0x13a] sm:$0xff]
      %v960 = vld [vmem:[%s272 + $0x142] sm:$0xff]
      %v961 = vpack.c.bf16 %v921, %v920
      %v962 = vpack.c.bf16 %v923, %v922
      %v963 = vpack.c.bf16 %v925, %v924
      %v964 = vpack.c.bf16 %v927, %v926
      %v965 = vpack.c.bf16 %v929, %v928
      %v966 = vpack.c.bf16 %v931, %v930
      %v967 = vpack.c.bf16 %v933, %v932
      %v968 = vpack.c.bf16 %v935, %v934
      %v969 = vpack.c.bf16 %v937, %v936
      %v970 = vpack.c.bf16 %v939, %v938
      %v971 = vpack.c.bf16 %v941, %v940
      %v972 = vpack.c.bf16 %v943, %v942
      %v973 = vpack.c.bf16 %v945, %v944
      %v974 = vpack.c.bf16 %v947, %v946
      %v975 = vpack.c.bf16 %v949, %v948
      %v976 = vpack.c.bf16 %v951, %v950
      %v977 = vpack.c.bf16 %v953, %v952
      %v978 = vpack.c.bf16 %v955, %v954
      %v979 = vpack.c.bf16 %v957, %v956
      %v980 = vpack.c.bf16 %v959, %v958
      %v981 = vpack.c.bf16 %v960, %v960
      %s982 = scalar_lea.vmem %s1, 128
      %v983 = vld [vmem:[%s982] sm:$0xf]
      %v984 = vld [vmem:[%s982 + $0x4] sm:$0xf]
      %v985 = vld [vmem:[%s982 + $0x8] sm:$0xf]
      %v986 = vld [vmem:[%s982 + $0xc] sm:$0xf]
      %v987 = vld [vmem:[%s982 + $0x10] sm:$0xf]
      %v988 = vld [vmem:[%s982 + $0x14] sm:$0xf]
      %v989 = vld [vmem:[%s982 + $0x18] sm:$0xf]
      %v990 = vld [vmem:[%s982 + $0x1c] sm:$0xf]
      %v991 = vld [vmem:[%s982 + $0x20] sm:$0xf]
      %v992 = vld [vmem:[%s982 + $0x24] sm:$0xf]
      %v993 = vld [vmem:[%s982 + $0x28] sm:$0xf]
      %v994 = vld [vmem:[%s982 + $0x2c] sm:$0xf]
      %v995 = vld [vmem:[%s982 + $0x30] sm:$0xf]
      %v996 = vld [vmem:[%s982 + $0x34] sm:$0xf]
      %v997 = vld [vmem:[%s982 + $0x38] sm:$0xf]
      %v998 = vld [vmem:[%s982 + $0x3c] sm:$0xf]
      %v1015 = vunpack.c.l.b16 %v983
      %v1016 = vunpack.c.l.b16 %v984
      %v1017 = vunpack.c.l.b16 %v985
      %v1018 = vunpack.c.l.b16 %v986
      %v1019 = vunpack.c.l.b16 %v987
      %v1020 = vunpack.c.l.b16 %v988
      %v1021 = vunpack.c.l.b16 %v989
      %v1022 = vunpack.c.l.b16 %v990
      %v1023 = vunpack.c.l.b16 %v991
      %v1024 = vunpack.c.l.b16 %v992
      %v1025 = vunpack.c.l.b16 %v993
      %v1026 = vunpack.c.l.b16 %v994
      %v1027 = vunpack.c.l.b16 %v995
      %v1028 = vunpack.c.l.b16 %v996
      %v1029 = vunpack.c.l.b16 %v997
      %v1030 = vunpack.c.l.b16 %v998
      %v1031 = vpack.c.b16 %v1016, %v1015
      %v1032 = vpack.c.b16 %v1018, %v1017
      %v1033 = vpack.c.b16 %v1020, %v1019
      %v1034 = vpack.c.b16 %v1022, %v1021
      %v1035 = vpack.c.b16 %v1024, %v1023
      %v1036 = vpack.c.b16 %v1026, %v1025
      %v1037 = vpack.c.b16 %v1028, %v1027
      %v1038 = vpack.c.b16 %v1030, %v1029
      %1047 = vmatpush.bf16.msra.mxu0 %v1038
      %1048 = vmatpush.bf16.msra.mxu0 %v1037
      %1049 = vmatpush.bf16.msra.mxu0 %v1036
      %1050 = vmatpush.bf16.msra.mxu0 %v1035
      %1051 = vmatpush.bf16.msra.mxu0 %v1034
      %1052 = vmatpush.bf16.msra.mxu0 %v1033
      %1053 = vmatpush.bf16.msra.mxu0 %v1032
      %1054 = vmatpush.bf16.msra.mxu0 %v1031
      %1055 = vmatmul.bf16.gmra.mxu0 %v961
      %v1056 = vpop.f32.mrf.mxu0
      %v1057 = vadd.f32 0.0, %v1056
      %v1058 = vpop.f32.mrf.mxu0
      %v1059 = vadd.f32 0.0, %v1058
      %1060 = vmatmul.bf16.gmra.mxu0 %v962
      %v1061 = vpop.f32.mrf.mxu0
      %v1062 = vadd.f32 0.0, %v1061
      %v1063 = vpop.f32.mrf.mxu0
      %v1064 = vadd.f32 0.0, %v1063
      %1065 = vmatmul.bf16.gmra.mxu0 %v963
      %v1066 = vpop.f32.mrf.mxu0
      %v1067 = vadd.f32 0.0, %v1066
      %v1068 = vpop.f32.mrf.mxu0
      %v1069 = vadd.f32 0.0, %v1068
      %1070 = vmatmul.bf16.gmra.mxu0 %v964
      %v1071 = vpop.f32.mrf.mxu0
      %v1072 = vadd.f32 0.0, %v1071
      %v1073 = vpop.f32.mrf.mxu0
      %v1074 = vadd.f32 0.0, %v1073
      %1075 = vmatmul.bf16.gmra.mxu0 %v965
      %v1076 = vpop.f32.mrf.mxu0
      %v1077 = vadd.f32 0.0, %v1076
      %v1078 = vpop.f32.mrf.mxu0
      %v1079 = vadd.f32 0.0, %v1078
      %1080 = vmatmul.bf16.gmra.mxu0 %v966
      %v1081 = vpop.f32.mrf.mxu0
      %v1082 = vadd.f32 0.0, %v1081
      %v1083 = vpop.f32.mrf.mxu0
      %v1084 = vadd.f32 0.0, %v1083
      %1085 = vmatmul.bf16.gmra.mxu0 %v967
      %v1086 = vpop.f32.mrf.mxu0
      %v1087 = vadd.f32 0.0, %v1086
      %v1088 = vpop.f32.mrf.mxu0
      %v1089 = vadd.f32 0.0, %v1088
      %1090 = vmatmul.bf16.gmra.mxu0 %v968
      %v1091 = vpop.f32.mrf.mxu0
      %v1092 = vadd.f32 0.0, %v1091
      %v1093 = vpop.f32.mrf.mxu0
      %v1094 = vadd.f32 0.0, %v1093
      %1095 = vmatmul.bf16.gmra.mxu0 %v969
      %v1096 = vpop.f32.mrf.mxu0
      %v1097 = vadd.f32 0.0, %v1096
      %v1098 = vpop.f32.mrf.mxu0
      %v1099 = vadd.f32 0.0, %v1098
      %1100 = vmatmul.bf16.gmra.mxu0 %v970
      %v1101 = vpop.f32.mrf.mxu0
      %v1102 = vadd.f32 0.0, %v1101
      %v1103 = vpop.f32.mrf.mxu0
      %v1104 = vadd.f32 0.0, %v1103
      %1105 = vmatmul.bf16.gmra.mxu0 %v971
      %v1106 = vpop.f32.mrf.mxu0
      %v1107 = vadd.f32 0.0, %v1106
      %v1108 = vpop.f32.mrf.mxu0
      %v1109 = vadd.f32 0.0, %v1108
      %1110 = vmatmul.bf16.gmra.mxu0 %v972
      %v1111 = vpop.f32.mrf.mxu0
      %v1112 = vadd.f32 0.0, %v1111
      %v1113 = vpop.f32.mrf.mxu0
      %v1114 = vadd.f32 0.0, %v1113
      %1115 = vmatmul.bf16.gmra.mxu0 %v973
      %v1116 = vpop.f32.mrf.mxu0
      %v1117 = vadd.f32 0.0, %v1116
      %v1118 = vpop.f32.mrf.mxu0
      %v1119 = vadd.f32 0.0, %v1118
      %1120 = vmatmul.bf16.gmra.mxu0 %v974
      %v1121 = vpop.f32.mrf.mxu0
      %v1122 = vadd.f32 0.0, %v1121
      %v1123 = vpop.f32.mrf.mxu0
      %v1124 = vadd.f32 0.0, %v1123
      %1125 = vmatmul.bf16.gmra.mxu0 %v975
      %v1126 = vpop.f32.mrf.mxu0
      %v1127 = vadd.f32 0.0, %v1126
      %v1128 = vpop.f32.mrf.mxu0
      %v1129 = vadd.f32 0.0, %v1128
      %1130 = vmatmul.bf16.gmra.mxu0 %v976
      %v1131 = vpop.f32.mrf.mxu0
      %v1132 = vadd.f32 0.0, %v1131
      %v1133 = vpop.f32.mrf.mxu0
      %v1134 = vadd.f32 0.0, %v1133
      %1135 = vmatmul.bf16.gmra.mxu0 %v977
      %v1136 = vpop.f32.mrf.mxu0
      %v1137 = vadd.f32 0.0, %v1136
      %v1138 = vpop.f32.mrf.mxu0
      %v1139 = vadd.f32 0.0, %v1138
      %1140 = vmatmul.bf16.gmra.mxu0 %v978
      %v1141 = vpop.f32.mrf.mxu0
      %v1142 = vadd.f32 0.0, %v1141
      %v1143 = vpop.f32.mrf.mxu0
      %v1144 = vadd.f32 0.0, %v1143
      %1145 = vmatmul.bf16.gmra.mxu0 %v979
      %v1146 = vpop.f32.mrf.mxu0
      %v1147 = vadd.f32 0.0, %v1146
      %v1148 = vpop.f32.mrf.mxu0
      %v1149 = vadd.f32 0.0, %v1148
      %1150 = vmatmul.bf16.gmra.mxu0 %v980
      %v1151 = vpop.f32.mrf.mxu0
      %v1152 = vadd.f32 0.0, %v1151
      %v1153 = vpop.f32.mrf.mxu0
      %v1154 = vadd.f32 0.0, %v1153
      %1155 = vmatmul.bf16.gmra.mxu0 %v981
      %v1156 = vpop.f32.mrf.mxu0
      %v1157 = vadd.f32 0.0, %v1156
      %v1158 = vpop.f32.mrf.mxu0
      %1159 = vdwg.mxu0
      %v1160 = vld [vmem:[#allocation2] sm:$0xff]
      %v1161 = vld [vmem:[#allocation2 + $0x8] sm:$0xff]
      %v1162 = vld [vmem:[#allocation2 + $0x10] sm:$0xff]
      %v1163 = vld [vmem:[#allocation2 + $0x18] sm:$0xff]
      %v1164 = vld [vmem:[#allocation2 + $0x20] sm:$0xff]
      %v1165 = vld [vmem:[#allocation2 + $0x28] sm:$0xff]
      %v1166 = vld [vmem:[#allocation2 + $0x30] sm:$0xff]
      %v1167 = vld [vmem:[#allocation2 + $0x38] sm:$0xff]
      %v1168 = vld [vmem:[#allocation2 + $0x40] sm:$0xff]
      %v1169 = vld [vmem:[#allocation2 + $0x48] sm:$0xff]
      %v1170 = vld [vmem:[#allocation2 + $0x50] sm:$0xff]
      %v1171 = vld [vmem:[#allocation2 + $0x58] sm:$0xff]
      %v1172 = vld [vmem:[#allocation2 + $0x60] sm:$0xff]
      %v1173 = vld [vmem:[#allocation2 + $0x68] sm:$0xff]
      %v1174 = vld [vmem:[#allocation2 + $0x70] sm:$0xff]
      %v1175 = vld [vmem:[#allocation2 + $0x78] sm:$0xff]
      %v1176 = vld [vmem:[#allocation2 + $0x80] sm:$0xff]
      %v1177 = vld [vmem:[#allocation2 + $0x88] sm:$0xff]
      %v1178 = vld [vmem:[#allocation2 + $0x90] sm:$0xff]
      %v1179 = vld [vmem:[#allocation2 + $0x98] sm:$0xff]
      %v1180 = vld [vmem:[#allocation2 + $0xa0] sm:$0xff]
      %v1181 = vld [vmem:[#allocation2 + $0xa8] sm:$0xff]
      %v1182 = vld [vmem:[#allocation2 + $0xb0] sm:$0xff]
      %v1183 = vld [vmem:[#allocation2 + $0xb8] sm:$0xff]
      %v1184 = vld [vmem:[#allocation2 + $0xc0] sm:$0xff]
      %v1185 = vld [vmem:[#allocation2 + $0xc8] sm:$0xff]
      %v1186 = vld [vmem:[#allocation2 + $0xd0] sm:$0xff]
      %v1187 = vld [vmem:[#allocation2 + $0xd8] sm:$0xff]
      %v1188 = vld [vmem:[#allocation2 + $0xe0] sm:$0xff]
      %v1189 = vld [vmem:[#allocation2 + $0xe8] sm:$0xff]
      %v1190 = vld [vmem:[#allocation2 + $0xf0] sm:$0xff]
      %v1191 = vld [vmem:[#allocation2 + $0xf8] sm:$0xff]
      %v1192 = vld [vmem:[#allocation2 + $0x100] sm:$0xff]
      %v1193 = vld [vmem:[#allocation2 + $0x108] sm:$0xff]
      %v1194 = vld [vmem:[#allocation2 + $0x110] sm:$0xff]
      %v1195 = vld [vmem:[#allocation2 + $0x118] sm:$0xff]
      %v1196 = vld [vmem:[#allocation2 + $0x120] sm:$0xff]
      %v1197 = vld [vmem:[#allocation2 + $0x128] sm:$0xff]
      %v1198 = vld [vmem:[#allocation2 + $0x130] sm:$0xff]
      %v1199 = vld [vmem:[#allocation2 + $0x138] sm:$0xff]
      %v1200 = vld [vmem:[#allocation2 + $0x140] sm:$0xff]
      %v1201 = vadd.f32 %v1160, %v1057
      %v1202 = vadd.f32 %v1161, %v1059
      %v1203 = vadd.f32 %v1162, %v1062
      %v1204 = vadd.f32 %v1163, %v1064
      %v1205 = vadd.f32 %v1164, %v1067
      %v1206 = vadd.f32 %v1165, %v1069
      %v1207 = vadd.f32 %v1166, %v1072
      %v1208 = vadd.f32 %v1167, %v1074
      %v1209 = vadd.f32 %v1168, %v1077
      %v1210 = vadd.f32 %v1169, %v1079
      %v1211 = vadd.f32 %v1170, %v1082
      %v1212 = vadd.f32 %v1171, %v1084
      %v1213 = vadd.f32 %v1172, %v1087
      %v1214 = vadd.f32 %v1173, %v1089
      %v1215 = vadd.f32 %v1174, %v1092
      %v1216 = vadd.f32 %v1175, %v1094
      %v1217 = vadd.f32 %v1176, %v1097
      %v1218 = vadd.f32 %v1177, %v1099
      %v1219 = vadd.f32 %v1178, %v1102
      %v1220 = vadd.f32 %v1179, %v1104
      %v1221 = vadd.f32 %v1180, %v1107
      %v1222 = vadd.f32 %v1181, %v1109
      %v1223 = vadd.f32 %v1182, %v1112
      %v1224 = vadd.f32 %v1183, %v1114
      %v1225 = vadd.f32 %v1184, %v1117
      %v1226 = vadd.f32 %v1185, %v1119
      %v1227 = vadd.f32 %v1186, %v1122
      %v1228 = vadd.f32 %v1187, %v1124
      %v1229 = vadd.f32 %v1188, %v1127
      %v1230 = vadd.f32 %v1189, %v1129
      %v1231 = vadd.f32 %v1190, %v1132
      %v1232 = vadd.f32 %v1191, %v1134
      %v1233 = vadd.f32 %v1192, %v1137
      %v1234 = vadd.f32 %v1193, %v1139
      %v1235 = vadd.f32 %v1194, %v1142
      %v1236 = vadd.f32 %v1195, %v1144
      %v1237 = vadd.f32 %v1196, %v1147
      %v1238 = vadd.f32 %v1197, %v1149
      %v1239 = vadd.f32 %v1198, %v1152
      %v1240 = vadd.f32 %v1199, %v1154
      %v1241 = vadd.f32 %v1200, %v1157
      %1242 = vst [vmem:[#allocation2] sm:$0xff] %v1201
      %1243 = vst [vmem:[#allocation2 + $0x8] sm:$0xff] %v1202
      %1244 = vst [vmem:[#allocation2 + $0x10] sm:$0xff] %v1203
      %1245 = vst [vmem:[#allocation2 + $0x18] sm:$0xff] %v1204
      %1246 = vst [vmem:[#allocation2 + $0x20] sm:$0xff] %v1205
      %1247 = vst [vmem:[#allocation2 + $0x28] sm:$0xff] %v1206
      %1248 = vst [vmem:[#allocation2 + $0x30] sm:$0xff] %v1207
      %1249 = vst [vmem:[#allocation2 + $0x38] sm:$0xff] %v1208
      %1250 = vst [vmem:[#allocation2 + $0x40] sm:$0xff] %v1209
      %1251 = vst [vmem:[#allocation2 + $0x48] sm:$0xff] %v1210
      %1252 = vst [vmem:[#allocation2 + $0x50] sm:$0xff] %v1211
      %1253 = vst [vmem:[#allocation2 + $0x58] sm:$0xff] %v1212
      %1254 = vst [vmem:[#allocation2 + $0x60] sm:$0xff] %v1213
      %1255 = vst [vmem:[#allocation2 + $0x68] sm:$0xff] %v1214
      %1256 = vst [vmem:[#allocation2 + $0x70] sm:$0xff] %v1215
      %1257 = vst [vmem:[#allocation2 + $0x78] sm:$0xff] %v1216
      %1258 = vst [vmem:[#allocation2 + $0x80] sm:$0xff] %v1217
      %1259 = vst [vmem:[#allocation2 + $0x88] sm:$0xff] %v1218
      %1260 = vst [vmem:[#allocation2 + $0x90] sm:$0xff] %v1219
      %1261 = vst [vmem:[#allocation2 + $0x98] sm:$0xff] %v1220
      %1262 = vst [vmem:[#allocation2 + $0xa0] sm:$0xff] %v1221
      %1263 = vst [vmem:[#allocation2 + $0xa8] sm:$0xff] %v1222
      %1264 = vst [vmem:[#allocation2 + $0xb0] sm:$0xff] %v1223
      %1265 = vst [vmem:[#allocation2 + $0xb8] sm:$0xff] %v1224
      %1266 = vst [vmem:[#allocation2 + $0xc0] sm:$0xff] %v1225
      %1267 = vst [vmem:[#allocation2 + $0xc8] sm:$0xff] %v1226
      %1268 = vst [vmem:[#allocation2 + $0xd0] sm:$0xff] %v1227
      %1269 = vst [vmem:[#allocation2 + $0xd8] sm:$0xff] %v1228
      %1270 = vst [vmem:[#allocation2 + $0xe0] sm:$0xff] %v1229
      %1271 = vst [vmem:[#allocation2 + $0xe8] sm:$0xff] %v1230
      %1272 = vst [vmem:[#allocation2 + $0xf0] sm:$0xff] %v1231
      %1273 = vst [vmem:[#allocation2 + $0xf8] sm:$0xff] %v1232
      %1274 = vst [vmem:[#allocation2 + $0x100] sm:$0xff] %v1233
      %1275 = vst [vmem:[#allocation2 + $0x108] sm:$0xff] %v1234
      %1276 = vst [vmem:[#allocation2 + $0x110] sm:$0xff] %v1235
      %1277 = vst [vmem:[#allocation2 + $0x118] sm:$0xff] %v1236
      %1278 = vst [vmem:[#allocation2 + $0x120] sm:$0xff] %v1237
      %1279 = vst [vmem:[#allocation2 + $0x128] sm:$0xff] %v1238
      %1280 = vst [vmem:[#allocation2 + $0x130] sm:$0xff] %v1239
      %1281 = vst [vmem:[#allocation2 + $0x138] sm:$0xff] %v1240
      %1282 = vst [vmem:[#allocation2 + $0x140] sm:$0xff] %v1241
      %v1283 = vld [vmem:[%s272 + $0x12] sm:$0xff]
      %v1284 = vld [vmem:[%s272 + $0x1a] sm:$0xff]
      %v1285 = vld [vmem:[%s272 + $0x22] sm:$0xff]
      %v1286 = vld [vmem:[%s272 + $0x2a] sm:$0xff]
      %v1287 = vld [vmem:[%s272 + $0x32] sm:$0xff]
      %v1288 = vld [vmem:[%s272 + $0x3a] sm:$0xff]
      %v1289 = vld [vmem:[%s272 + $0x42] sm:$0xff]
      %v1290 = vld [vmem:[%s272 + $0x4a] sm:$0xff]
      %v1291 = vld [vmem:[%s272 + $0x52] sm:$0xff]
      %v1292 = vld [vmem:[%s272 + $0x5a] sm:$0xff]
      %v1293 = vld [vmem:[%s272 + $0x62] sm:$0xff]
      %v1294 = vld [vmem:[%s272 + $0x6a] sm:$0xff]
      %v1295 = vld [vmem:[%s272 + $0x72] sm:$0xff]
      %v1296 = vld [vmem:[%s272 + $0x7a] sm:$0xff]
      %v1297 = vld [vmem:[%s272 + $0x82] sm:$0xff]
      %v1298 = vld [vmem:[%s272 + $0x8a] sm:$0xff]
      %v1299 = vld [vmem:[%s272 + $0x92] sm:$0xff]
      %v1300 = vld [vmem:[%s272 + $0x9a] sm:$0xff]
      %v1301 = vld [vmem:[%s272 + $0xa2] sm:$0xff]
      %v1302 = vld [vmem:[%s272 + $0xaa] sm:$0xff]
      %v1303 = vld [vmem:[%s272 + $0xb2] sm:$0xff]
      %v1304 = vld [vmem:[%s272 + $0xba] sm:$0xff]
      %v1305 = vld [vmem:[%s272 + $0xc2] sm:$0xff]
      %v1306 = vld [vmem:[%s272 + $0xca] sm:$0xff]
      %v1307 = vld [vmem:[%s272 + $0xd2] sm:$0xff]
      %v1308 = vld [vmem:[%s272 + $0xda] sm:$0xff]
      %v1309 = vld [vmem:[%s272 + $0xe2] sm:$0xff]
      %v1310 = vld [vmem:[%s272 + $0xea] sm:$0xff]
      %v1311 = vld [vmem:[%s272 + $0xf2] sm:$0xff]
      %v1312 = vld [vmem:[%s272 + $0xfa] sm:$0xff]
      %v1313 = vld [vmem:[%s272 + $0x102] sm:$0xff]
      %v1314 = vld [vmem:[%s272 + $0x10a] sm:$0xff]
      %v1315 = vld [vmem:[%s272 + $0x112] sm:$0xff]
      %v1316 = vld [vmem:[%s272 + $0x11a] sm:$0xff]
      %v1317 = vld [vmem:[%s272 + $0x122] sm:$0xff]
      %v1318 = vld [vmem:[%s272 + $0x12a] sm:$0xff]
      %v1319 = vld [vmem:[%s272 + $0x132] sm:$0xff]
      %v1320 = vld [vmem:[%s272 + $0x13a] sm:$0xff]
      %v1321 = vld [vmem:[%s272 + $0x142] sm:$0xff]
      %v1322 = vld [vmem:[%s272 + $0x14a] sm:$0xff]
      %v1323 = vld [vmem:[%s272 + $0x152] sm:$0xff]
      %v1324 = vpack.c.bf16 %v1284, %v1283
      %v1325 = vpack.c.bf16 %v1286, %v1285
      %v1326 = vpack.c.bf16 %v1288, %v1287
      %v1327 = vpack.c.bf16 %v1290, %v1289
      %v1328 = vpack.c.bf16 %v1292, %v1291
      %v1329 = vpack.c.bf16 %v1294, %v1293
      %v1330 = vpack.c.bf16 %v1296, %v1295
      %v1331 = vpack.c.bf16 %v1298, %v1297
      %v1332 = vpack.c.bf16 %v1300, %v1299
      %v1333 = vpack.c.bf16 %v1302, %v1301
      %v1334 = vpack.c.bf16 %v1304, %v1303
      %v1335 = vpack.c.bf16 %v1306, %v1305
      %v1336 = vpack.c.bf16 %v1308, %v1307
      %v1337 = vpack.c.bf16 %v1310, %v1309
      %v1338 = vpack.c.bf16 %v1312, %v1311
      %v1339 = vpack.c.bf16 %v1314, %v1313
      %v1340 = vpack.c.bf16 %v1316, %v1315
      %v1341 = vpack.c.bf16 %v1318, %v1317
      %v1342 = vpack.c.bf16 %v1320, %v1319
      %v1343 = vpack.c.bf16 %v1322, %v1321
      %v1344 = vpack.c.bf16 %v1323, %v1323
      %s1345 = scalar_lea.vmem %s1, 192
      %v1346 = vld [vmem:[%s1345] sm:$0xf]
      %v1347 = vld [vmem:[%s1345 + $0x4] sm:$0xf]
      %v1348 = vld [vmem:[%s1345 + $0x8] sm:$0xf]
      %v1349 = vld [vmem:[%s1345 + $0xc] sm:$0xf]
      %v1350 = vld [vmem:[%s1345 + $0x10] sm:$0xf]
      %v1351 = vld [vmem:[%s1345 + $0x14] sm:$0xf]
      %v1352 = vld [vmem:[%s1345 + $0x18] sm:$0xf]
      %v1353 = vld [vmem:[%s1345 + $0x1c] sm:$0xf]
      %v1354 = vld [vmem:[%s1345 + $0x20] sm:$0xf]
      %v1355 = vld [vmem:[%s1345 + $0x24] sm:$0xf]
      %v1356 = vld [vmem:[%s1345 + $0x28] sm:$0xf]
      %v1357 = vld [vmem:[%s1345 + $0x2c] sm:$0xf]
      %v1358 = vld [vmem:[%s1345 + $0x30] sm:$0xf]
      %v1359 = vld [vmem:[%s1345 + $0x34] sm:$0xf]
      %v1360 = vld [vmem:[%s1345 + $0x38] sm:$0xf]
      %v1361 = vld [vmem:[%s1345 + $0x3c] sm:$0xf]
      %v1378 = vunpack.c.l.b16 %v1346
      %v1379 = vunpack.c.l.b16 %v1347
      %v1380 = vunpack.c.l.b16 %v1348
      %v1381 = vunpack.c.l.b16 %v1349
      %v1382 = vunpack.c.l.b16 %v1350
      %v1383 = vunpack.c.l.b16 %v1351
      %v1384 = vunpack.c.l.b16 %v1352
      %v1385 = vunpack.c.l.b16 %v1353
      %v1386 = vunpack.c.l.b16 %v1354
      %v1387 = vunpack.c.l.b16 %v1355
      %v1388 = vunpack.c.l.b16 %v1356
      %v1389 = vunpack.c.l.b16 %v1357
      %v1390 = vunpack.c.l.b16 %v1358
      %v1391 = vunpack.c.l.b16 %v1359
      %v1392 = vunpack.c.l.b16 %v1360
      %v1393 = vunpack.c.l.b16 %v1361
      %v1394 = vpack.c.b16 %v1379, %v1378
      %v1395 = vpack.c.b16 %v1381, %v1380
      %v1396 = vpack.c.b16 %v1383, %v1382
      %v1397 = vpack.c.b16 %v1385, %v1384
      %v1398 = vpack.c.b16 %v1387, %v1386
      %v1399 = vpack.c.b16 %v1389, %v1388
      %v1400 = vpack.c.b16 %v1391, %v1390
      %v1401 = vpack.c.b16 %v1393, %v1392
      %1410 = vmatpush.bf16.msra.mxu0 %v1401
      %1411 = vmatpush.bf16.msra.mxu0 %v1400
      %1412 = vmatpush.bf16.msra.mxu0 %v1399
      %1413 = vmatpush.bf16.msra.mxu0 %v1398
      %1414 = vmatpush.bf16.msra.mxu0 %v1397
      %1415 = vmatpush.bf16.msra.mxu0 %v1396
      %1416 = vmatpush.bf16.msra.mxu0 %v1395
      %1417 = vmatpush.bf16.msra.mxu0 %v1394
      %1418 = vmatmul.bf16.gmra.mxu0 %v1324
      %v1419 = vpop.f32.mrf.mxu0
      %v1420 = vadd.f32 0.0, %v1419
      %v1421 = vpop.f32.mrf.mxu0
      %v1422 = vadd.f32 0.0, %v1421
      %1423 = vmatmul.bf16.gmra.mxu0 %v1325
      %v1424 = vpop.f32.mrf.mxu0
      %v1425 = vadd.f32 0.0, %v1424
      %v1426 = vpop.f32.mrf.mxu0
      %v1427 = vadd.f32 0.0, %v1426
      %1428 = vmatmul.bf16.gmra.mxu0 %v1326
      %v1429 = vpop.f32.mrf.mxu0
      %v1430 = vadd.f32 0.0, %v1429
      %v1431 = vpop.f32.mrf.mxu0
      %v1432 = vadd.f32 0.0, %v1431
      %1433 = vmatmul.bf16.gmra.mxu0 %v1327
      %v1434 = vpop.f32.mrf.mxu0
      %v1435 = vadd.f32 0.0, %v1434
      %v1436 = vpop.f32.mrf.mxu0
      %v1437 = vadd.f32 0.0, %v1436
      %1438 = vmatmul.bf16.gmra.mxu0 %v1328
      %v1439 = vpop.f32.mrf.mxu0
      %v1440 = vadd.f32 0.0, %v1439
      %v1441 = vpop.f32.mrf.mxu0
      %v1442 = vadd.f32 0.0, %v1441
      %1443 = vmatmul.bf16.gmra.mxu0 %v1329
      %v1444 = vpop.f32.mrf.mxu0
      %v1445 = vadd.f32 0.0, %v1444
      %v1446 = vpop.f32.mrf.mxu0
      %v1447 = vadd.f32 0.0, %v1446
      %1448 = vmatmul.bf16.gmra.mxu0 %v1330
      %v1449 = vpop.f32.mrf.mxu0
      %v1450 = vadd.f32 0.0, %v1449
      %v1451 = vpop.f32.mrf.mxu0
      %v1452 = vadd.f32 0.0, %v1451
      %1453 = vmatmul.bf16.gmra.mxu0 %v1331
      %v1454 = vpop.f32.mrf.mxu0
      %v1455 = vadd.f32 0.0, %v1454
      %v1456 = vpop.f32.mrf.mxu0
      %v1457 = vadd.f32 0.0, %v1456
      %1458 = vmatmul.bf16.gmra.mxu0 %v1332
      %v1459 = vpop.f32.mrf.mxu0
      %v1460 = vadd.f32 0.0, %v1459
      %v1461 = vpop.f32.mrf.mxu0
      %v1462 = vadd.f32 0.0, %v1461
      %1463 = vmatmul.bf16.gmra.mxu0 %v1333
      %v1464 = vpop.f32.mrf.mxu0
      %v1465 = vadd.f32 0.0, %v1464
      %v1466 = vpop.f32.mrf.mxu0
      %v1467 = vadd.f32 0.0, %v1466
      %1468 = vmatmul.bf16.gmra.mxu0 %v1334
      %v1469 = vpop.f32.mrf.mxu0
      %v1470 = vadd.f32 0.0, %v1469
      %v1471 = vpop.f32.mrf.mxu0
      %v1472 = vadd.f32 0.0, %v1471
      %1473 = vmatmul.bf16.gmra.mxu0 %v1335
      %v1474 = vpop.f32.mrf.mxu0
      %v1475 = vadd.f32 0.0, %v1474
      %v1476 = vpop.f32.mrf.mxu0
      %v1477 = vadd.f32 0.0, %v1476
      %1478 = vmatmul.bf16.gmra.mxu0 %v1336
      %v1479 = vpop.f32.mrf.mxu0
      %v1480 = vadd.f32 0.0, %v1479
      %v1481 = vpop.f32.mrf.mxu0
      %v1482 = vadd.f32 0.0, %v1481
      %1483 = vmatmul.bf16.gmra.mxu0 %v1337
      %v1484 = vpop.f32.mrf.mxu0
      %v1485 = vadd.f32 0.0, %v1484
      %v1486 = vpop.f32.mrf.mxu0
      %v1487 = vadd.f32 0.0, %v1486
      %1488 = vmatmul.bf16.gmra.mxu0 %v1338
      %v1489 = vpop.f32.mrf.mxu0
      %v1490 = vadd.f32 0.0, %v1489
      %v1491 = vpop.f32.mrf.mxu0
      %v1492 = vadd.f32 0.0, %v1491
      %1493 = vmatmul.bf16.gmra.mxu0 %v1339
      %v1494 = vpop.f32.mrf.mxu0
      %v1495 = vadd.f32 0.0, %v1494
      %v1496 = vpop.f32.mrf.mxu0
      %v1497 = vadd.f32 0.0, %v1496
      %1498 = vmatmul.bf16.gmra.mxu0 %v1340
      %v1499 = vpop.f32.mrf.mxu0
      %v1500 = vadd.f32 0.0, %v1499
      %v1501 = vpop.f32.mrf.mxu0
      %v1502 = vadd.f32 0.0, %v1501
      %1503 = vmatmul.bf16.gmra.mxu0 %v1341
      %v1504 = vpop.f32.mrf.mxu0
      %v1505 = vadd.f32 0.0, %v1504
      %v1506 = vpop.f32.mrf.mxu0
      %v1507 = vadd.f32 0.0, %v1506
      %1508 = vmatmul.bf16.gmra.mxu0 %v1342
      %v1509 = vpop.f32.mrf.mxu0
      %v1510 = vadd.f32 0.0, %v1509
      %v1511 = vpop.f32.mrf.mxu0
      %v1512 = vadd.f32 0.0, %v1511
      %1513 = vmatmul.bf16.gmra.mxu0 %v1343
      %v1514 = vpop.f32.mrf.mxu0
      %v1515 = vadd.f32 0.0, %v1514
      %v1516 = vpop.f32.mrf.mxu0
      %v1517 = vadd.f32 0.0, %v1516
      %1518 = vmatmul.bf16.gmra.mxu0 %v1344
      %v1519 = vpop.f32.mrf.mxu0
      %v1520 = vadd.f32 0.0, %v1519
      %v1521 = vpop.f32.mrf.mxu0
      %1522 = vdwg.mxu0
      %v1523 = vld [vmem:[#allocation2] sm:$0xff]
      %v1524 = vld [vmem:[#allocation2 + $0x8] sm:$0xff]
      %v1525 = vld [vmem:[#allocation2 + $0x10] sm:$0xff]
      %v1526 = vld [vmem:[#allocation2 + $0x18] sm:$0xff]
      %v1527 = vld [vmem:[#allocation2 + $0x20] sm:$0xff]
      %v1528 = vld [vmem:[#allocation2 + $0x28] sm:$0xff]
      %v1529 = vld [vmem:[#allocation2 + $0x30] sm:$0xff]
      %v1530 = vld [vmem:[#allocation2 + $0x38] sm:$0xff]
      %v1531 = vld [vmem:[#allocation2 + $0x40] sm:$0xff]
      %v1532 = vld [vmem:[#allocation2 + $0x48] sm:$0xff]
      %v1533 = vld [vmem:[#allocation2 + $0x50] sm:$0xff]
      %v1534 = vld [vmem:[#allocation2 + $0x58] sm:$0xff]
      %v1535 = vld [vmem:[#allocation2 + $0x60] sm:$0xff]
      %v1536 = vld [vmem:[#allocation2 + $0x68] sm:$0xff]
      %v1537 = vld [vmem:[#allocation2 + $0x70] sm:$0xff]
      %v1538 = vld [vmem:[#allocation2 + $0x78] sm:$0xff]
      %v1539 = vld [vmem:[#allocation2 + $0x80] sm:$0xff]
      %v1540 = vld [vmem:[#allocation2 + $0x88] sm:$0xff]
      %v1541 = vld [vmem:[#allocation2 + $0x90] sm:$0xff]
      %v1542 = vld [vmem:[#allocation2 + $0x98] sm:$0xff]
      %v1543 = vld [vmem:[#allocation2 + $0xa0] sm:$0xff]
      %v1544 = vld [vmem:[#allocation2 + $0xa8] sm:$0xff]
      %v1545 = vld [vmem:[#allocation2 + $0xb0] sm:$0xff]
      %v1546 = vld [vmem:[#allocation2 + $0xb8] sm:$0xff]
      %v1547 = vld [vmem:[#allocation2 + $0xc0] sm:$0xff]
      %v1548 = vld [vmem:[#allocation2 + $0xc8] sm:$0xff]
      %v1549 = vld [vmem:[#allocation2 + $0xd0] sm:$0xff]
      %v1550 = vld [vmem:[#allocation2 + $0xd8] sm:$0xff]
      %v1551 = vld [vmem:[#allocation2 + $0xe0] sm:$0xff]
      %v1552 = vld [vmem:[#allocation2 + $0xe8] sm:$0xff]
      %v1553 = vld [vmem:[#allocation2 + $0xf0] sm:$0xff]
      %v1554 = vld [vmem:[#allocation2 + $0xf8] sm:$0xff]
      %v1555 = vld [vmem:[#allocation2 + $0x100] sm:$0xff]
      %v1556 = vld [vmem:[#allocation2 + $0x108] sm:$0xff]
      %v1557 = vld [vmem:[#allocation2 + $0x110] sm:$0xff]
      %v1558 = vld [vmem:[#allocation2 + $0x118] sm:$0xff]
      %v1559 = vld [vmem:[#allocation2 + $0x120] sm:$0xff]
      %v1560 = vld [vmem:[#allocation2 + $0x128] sm:$0xff]
      %v1561 = vld [vmem:[#allocation2 + $0x130] sm:$0xff]
      %v1562 = vld [vmem:[#allocation2 + $0x138] sm:$0xff]
      %v1563 = vld [vmem:[#allocation2 + $0x140] sm:$0xff]
      %v1564 = vadd.f32 %v1523, %v1420
      %v1565 = vadd.f32 %v1524, %v1422
      %v1566 = vadd.f32 %v1525, %v1425
      %v1567 = vadd.f32 %v1526, %v1427
      %v1568 = vadd.f32 %v1527, %v1430
      %v1569 = vadd.f32 %v1528, %v1432
      %v1570 = vadd.f32 %v1529, %v1435
      %v1571 = vadd.f32 %v1530, %v1437
      %v1572 = vadd.f32 %v1531, %v1440
      %v1573 = vadd.f32 %v1532, %v1442
      %v1574 = vadd.f32 %v1533, %v1445
      %v1575 = vadd.f32 %v1534, %v1447
      %v1576 = vadd.f32 %v1535, %v1450
      %v1577 = vadd.f32 %v1536, %v1452
      %v1578 = vadd.f32 %v1537, %v1455
      %v1579 = vadd.f32 %v1538, %v1457
      %v1580 = vadd.f32 %v1539, %v1460
      %v1581 = vadd.f32 %v1540, %v1462
      %v1582 = vadd.f32 %v1541, %v1465
      %v1583 = vadd.f32 %v1542, %v1467
      %v1584 = vadd.f32 %v1543, %v1470
      %v1585 = vadd.f32 %v1544, %v1472
      %v1586 = vadd.f32 %v1545, %v1475
      %v1587 = vadd.f32 %v1546, %v1477
      %v1588 = vadd.f32 %v1547, %v1480
      %v1589 = vadd.f32 %v1548, %v1482
      %v1590 = vadd.f32 %v1549, %v1485
      %v1591 = vadd.f32 %v1550, %v1487
      %v1592 = vadd.f32 %v1551, %v1490
      %v1593 = vadd.f32 %v1552, %v1492
      %v1594 = vadd.f32 %v1553, %v1495
      %v1595 = vadd.f32 %v1554, %v1497
      %v1596 = vadd.f32 %v1555, %v1500
      %v1597 = vadd.f32 %v1556, %v1502
      %v1598 = vadd.f32 %v1557, %v1505
      %v1599 = vadd.f32 %v1558, %v1507
      %v1600 = vadd.f32 %v1559, %v1510
      %v1601 = vadd.f32 %v1560, %v1512
      %v1602 = vadd.f32 %v1561, %v1515
      %v1603 = vadd.f32 %v1562, %v1517
      %v1604 = vadd.f32 %v1563, %v1520
      %1605 = vst [vmem:[#allocation2] sm:$0xff] %v1564
      %1606 = vst [vmem:[#allocation2 + $0x8] sm:$0xff] %v1565
      %1607 = vst [vmem:[#allocation2 + $0x10] sm:$0xff] %v1566
      %1608 = vst [vmem:[#allocation2 + $0x18] sm:$0xff] %v1567
      %1609 = vst [vmem:[#allocation2 + $0x20] sm:$0xff] %v1568
      %1610 = vst [vmem:[#allocation2 + $0x28] sm:$0xff] %v1569
      %1611 = vst [vmem:[#allocation2 + $0x30] sm:$0xff] %v1570
      %1612 = vst [vmem:[#allocation2 + $0x38] sm:$0xff] %v1571
      %1613 = vst [vmem:[#allocation2 + $0x40] sm:$0xff] %v1572
      %1614 = vst [vmem:[#allocation2 + $0x48] sm:$0xff] %v1573
      %1615 = vst [vmem:[#allocation2 + $0x50] sm:$0xff] %v1574
      %1616 = vst [vmem:[#allocation2 + $0x58] sm:$0xff] %v1575
      %1617 = vst [vmem:[#allocation2 + $0x60] sm:$0xff] %v1576
      %1618 = vst [vmem:[#allocation2 + $0x68] sm:$0xff] %v1577
      %1619 = vst [vmem:[#allocation2 + $0x70] sm:$0xff] %v1578
      %1620 = vst [vmem:[#allocation2 + $0x78] sm:$0xff] %v1579
      %1621 = vst [vmem:[#allocation2 + $0x80] sm:$0xff] %v1580
      %1622 = vst [vmem:[#allocation2 + $0x88] sm:$0xff] %v1581
      %1623 = vst [vmem:[#allocation2 + $0x90] sm:$0xff] %v1582
      %1624 = vst [vmem:[#allocation2 + $0x98] sm:$0xff] %v1583
      %1625 = vst [vmem:[#allocation2 + $0xa0] sm:$0xff] %v1584
      %1626 = vst [vmem:[#allocation2 + $0xa8] sm:$0xff] %v1585
      %1627 = vst [vmem:[#allocation2 + $0xb0] sm:$0xff] %v1586
      %1628 = vst [vmem:[#allocation2 + $0xb8] sm:$0xff] %v1587
      %1629 = vst [vmem:[#allocation2 + $0xc0] sm:$0xff] %v1588
      %1630 = vst [vmem:[#allocation2 + $0xc8] sm:$0xff] %v1589
      %1631 = vst [vmem:[#allocation2 + $0xd0] sm:$0xff] %v1590
      %1632 = vst [vmem:[#allocation2 + $0xd8] sm:$0xff] %v1591
      %1633 = vst [vmem:[#allocation2 + $0xe0] sm:$0xff] %v1592
      %1634 = vst [vmem:[#allocation2 + $0xe8] sm:$0xff] %v1593
      %1635 = vst [vmem:[#allocation2 + $0xf0] sm:$0xff] %v1594
      %1636 = vst [vmem:[#allocation2 + $0xf8] sm:$0xff] %v1595
      %1637 = vst [vmem:[#allocation2 + $0x100] sm:$0xff] %v1596
      %1638 = vst [vmem:[#allocation2 + $0x108] sm:$0xff] %v1597
      %1639 = vst [vmem:[#allocation2 + $0x110] sm:$0xff] %v1598
      %1640 = vst [vmem:[#allocation2 + $0x118] sm:$0xff] %v1599
      %1641 = vst [vmem:[#allocation2 + $0x120] sm:$0xff] %v1600
      %1642 = vst [vmem:[#allocation2 + $0x128] sm:$0xff] %v1601
      %1643 = vst [vmem:[#allocation2 + $0x130] sm:$0xff] %v1602
      %1644 = vst [vmem:[#allocation2 + $0x138] sm:$0xff] %v1603
      %1645 = vst [vmem:[#allocation2 + $0x140] sm:$0xff] %v1604
      %v1646 = vld [vmem:[%s272 + $0x13] sm:$0xff]
      %v1647 = vld [vmem:[%s272 + $0x1b] sm:$0xff]
      %v1648 = vld [vmem:[%s272 + $0x23] sm:$0xff]
      %v1649 = vld [vmem:[%s272 + $0x2b] sm:$0xff]
      %v1650 = vld [vmem:[%s272 + $0x33] sm:$0xff]
      %v1651 = vld [vmem:[%s272 + $0x3b] sm:$0xff]
      %v1652 = vld [vmem:[%s272 + $0x43] sm:$0xff]
      %v1653 = vld [vmem:[%s272 + $0x4b] sm:$0xff]
      %v1654 = vld [vmem:[%s272 + $0x53] sm:$0xff]
      %v1655 = vld [vmem:[%s272 + $0x5b] sm:$0xff]
      %v1656 = vld [vmem:[%s272 + $0x63] sm:$0xff]
      %v1657 = vld [vmem:[%s272 + $0x6b] sm:$0xff]
      %v1658 = vld [vmem:[%s272 + $0x73] sm:$0xff]
      %v1659 = vld [vmem:[%s272 + $0x7b] sm:$0xff]
      %v1660 = vld [vmem:[%s272 + $0x83] sm:$0xff]
      %v1661 = vld [vmem:[%s272 + $0x8b] sm:$0xff]
      %v1662 = vld [vmem:[%s272 + $0x93] sm:$0xff]
      %v1663 = vld [vmem:[%s272 + $0x9b] sm:$0xff]
      %v1664 = vld [vmem:[%s272 + $0xa3] sm:$0xff]
      %v1665 = vld [vmem:[%s272 + $0xab] sm:$0xff]
      %v1666 = vld [vmem:[%s272 + $0xb3] sm:$0xff]
      %v1667 = vld [vmem:[%s272 + $0xbb] sm:$0xff]
      %v1668 = vld [vmem:[%s272 + $0xc3] sm:$0xff]
      %v1669 = vld [vmem:[%s272 + $0xcb] sm:$0xff]
      %v1670 = vld [vmem:[%s272 + $0xd3] sm:$0xff]
      %v1671 = vld [vmem:[%s272 + $0xdb] sm:$0xff]
      %v1672 = vld [vmem:[%s272 + $0xe3] sm:$0xff]
      %v1673 = vld [vmem:[%s272 + $0xeb] sm:$0xff]
      %v1674 = vld [vmem:[%s272 + $0xf3] sm:$0xff]
      %v1675 = vld [vmem:[%s272 + $0xfb] sm:$0xff]
      %v1676 = vld [vmem:[%s272 + $0x103] sm:$0xff]
      %v1677 = vld [vmem:[%s272 + $0x10b] sm:$0xff]
      %v1678 = vld [vmem:[%s272 + $0x113] sm:$0xff]
      %v1679 = vld [vmem:[%s272 + $0x11b] sm:$0xff]
      %v1680 = vld [vmem:[%s272 + $0x123] sm:$0xff]
      %v1681 = vld [vmem:[%s272 + $0x12b] sm:$0xff]
      %v1682 = vld [vmem:[%s272 + $0x133] sm:$0xff]
      %v1683 = vld [vmem:[%s272 + $0x13b] sm:$0xff]
      %v1684 = vld [vmem:[%s272 + $0x143] sm:$0xff]
      %v1685 = vld [vmem:[%s272 + $0x14b] sm:$0xff]
      %v1686 = vld [vmem:[%s272 + $0x153] sm:$0xff]
      %v1687 = vpack.c.bf16 %v1647, %v1646
      %v1688 = vpack.c.bf16 %v1649, %v1648
      %v1689 = vpack.c.bf16 %v1651, %v1650
      %v1690 = vpack.c.bf16 %v1653, %v1652
      %v1691 = vpack.c.bf16 %v1655, %v1654
      %v1692 = vpack.c.bf16 %v1657, %v1656
      %v1693 = vpack.c.bf16 %v1659, %v1658
      %v1694 = vpack.c.bf16 %v1661, %v1660
      %v1695 = vpack.c.bf16 %v1663, %v1662
      %v1696 = vpack.c.bf16 %v1665, %v1664
      %v1697 = vpack.c.bf16 %v1667, %v1666
      %v1698 = vpack.c.bf16 %v1669, %v1668
      %v1699 = vpack.c.bf16 %v1671, %v1670
      %v1700 = vpack.c.bf16 %v1673, %v1672
      %v1701 = vpack.c.bf16 %v1675, %v1674
      %v1702 = vpack.c.bf16 %v1677, %v1676
      %v1703 = vpack.c.bf16 %v1679, %v1678
      %v1704 = vpack.c.bf16 %v1681, %v1680
      %v1705 = vpack.c.bf16 %v1683, %v1682
      %v1706 = vpack.c.bf16 %v1685, %v1684
      %v1707 = vpack.c.bf16 %v1686, %v1686
      %s1708 = scalar_lea.vmem %s1, 256
      %v1709 = vld [vmem:[%s1708] sm:$0xf]
      %v1710 = vld [vmem:[%s1708 + $0x4] sm:$0xf]
      %v1711 = vld [vmem:[%s1708 + $0x8] sm:$0xf]
      %v1712 = vld [vmem:[%s1708 + $0xc] sm:$0xf]
      %v1713 = vld [vmem:[%s1708 + $0x10] sm:$0xf]
      %v1714 = vld [vmem:[%s1708 + $0x14] sm:$0xf]
      %v1715 = vld [vmem:[%s1708 + $0x18] sm:$0xf]
      %v1716 = vld [vmem:[%s1708 + $0x1c] sm:$0xf]
      %v1717 = vld [vmem:[%s1708 + $0x20] sm:$0xf]
      %v1718 = vld [vmem:[%s1708 + $0x24] sm:$0xf]
      %v1719 = vld [vmem:[%s1708 + $0x28] sm:$0xf]
      %v1720 = vld [vmem:[%s1708 + $0x2c] sm:$0xf]
      %v1721 = vld [vmem:[%s1708 + $0x30] sm:$0xf]
      %v1722 = vld [vmem:[%s1708 + $0x34] sm:$0xf]
      %v1723 = vld [vmem:[%s1708 + $0x38] sm:$0xf]
      %v1724 = vld [vmem:[%s1708 + $0x3c] sm:$0xf]
      %v1741 = vunpack.c.l.b16 %v1709
      %v1742 = vunpack.c.l.b16 %v1710
      %v1743 = vunpack.c.l.b16 %v1711
      %v1744 = vunpack.c.l.b16 %v1712
      %v1745 = vunpack.c.l.b16 %v1713
      %v1746 = vunpack.c.l.b16 %v1714
      %v1747 = vunpack.c.l.b16 %v1715
      %v1748 = vunpack.c.l.b16 %v1716
      %v1749 = vunpack.c.l.b16 %v1717
      %v1750 = vunpack.c.l.b16 %v1718
      %v1751 = vunpack.c.l.b16 %v1719
      %v1752 = vunpack.c.l.b16 %v1720
      %v1753 = vunpack.c.l.b16 %v1721
      %v1754 = vunpack.c.l.b16 %v1722
      %v1755 = vunpack.c.l.b16 %v1723
      %v1756 = vunpack.c.l.b16 %v1724
      %v1757 = vpack.c.b16 %v1742, %v1741
      %v1758 = vpack.c.b16 %v1744, %v1743
      %v1759 = vpack.c.b16 %v1746, %v1745
      %v1760 = vpack.c.b16 %v1748, %v1747
      %v1761 = vpack.c.b16 %v1750, %v1749
      %v1762 = vpack.c.b16 %v1752, %v1751
      %v1763 = vpack.c.b16 %v1754, %v1753
      %v1764 = vpack.c.b16 %v1756, %v1755
      %1773 = vmatpush.bf16.msra.mxu0 %v1764
      %1774 = vmatpush.bf16.msra.mxu0 %v1763
      %1775 = vmatpush.bf16.msra.mxu0 %v1762
      %1776 = vmatpush.bf16.msra.mxu0 %v1761
      %1777 = vmatpush.bf16.msra.mxu0 %v1760
      %1778 = vmatpush.bf16.msra.mxu0 %v1759
      %1779 = vmatpush.bf16.msra.mxu0 %v1758
      %1780 = vmatpush.bf16.msra.mxu0 %v1757
      %1781 = vmatmul.bf16.gmra.mxu0 %v1687
      %v1782 = vpop.f32.mrf.mxu0
      %v1783 = vadd.f32 0.0, %v1782
      %v1784 = vpop.f32.mrf.mxu0
      %v1785 = vadd.f32 0.0, %v1784
      %1786 = vmatmul.bf16.gmra.mxu0 %v1688
      %v1787 = vpop.f32.mrf.mxu0
      %v1788 = vadd.f32 0.0, %v1787
      %v1789 = vpop.f32.mrf.mxu0
      %v1790 = vadd.f32 0.0, %v1789
      %1791 = vmatmul.bf16.gmra.mxu0 %v1689
      %v1792 = vpop.f32.mrf.mxu0
      %v1793 = vadd.f32 0.0, %v1792
      %v1794 = vpop.f32.mrf.mxu0
      %v1795 = vadd.f32 0.0, %v1794
      %1796 = vmatmul.bf16.gmra.mxu0 %v1690
      %v1797 = vpop.f32.mrf.mxu0
      %v1798 = vadd.f32 0.0, %v1797
      %v1799 = vpop.f32.mrf.mxu0
      %v1800 = vadd.f32 0.0, %v1799
      %1801 = vmatmul.bf16.gmra.mxu0 %v1691
      %v1802 = vpop.f32.mrf.mxu0
      %v1803 = vadd.f32 0.0, %v1802
      %v1804 = vpop.f32.mrf.mxu0
      %v1805 = vadd.f32 0.0, %v1804
      %1806 = vmatmul.bf16.gmra.mxu0 %v1692
      %v1807 = vpop.f32.mrf.mxu0
      %v1808 = vadd.f32 0.0, %v1807
      %v1809 = vpop.f32.mrf.mxu0
      %v1810 = vadd.f32 0.0, %v1809
      %1811 = vmatmul.bf16.gmra.mxu0 %v1693
      %v1812 = vpop.f32.mrf.mxu0
      %v1813 = vadd.f32 0.0, %v1812
      %v1814 = vpop.f32.mrf.mxu0
      %v1815 = vadd.f32 0.0, %v1814
      %1816 = vmatmul.bf16.gmra.mxu0 %v1694
      %v1817 = vpop.f32.mrf.mxu0
      %v1818 = vadd.f32 0.0, %v1817
      %v1819 = vpop.f32.mrf.mxu0
      %v1820 = vadd.f32 0.0, %v1819
      %1821 = vmatmul.bf16.gmra.mxu0 %v1695
      %v1822 = vpop.f32.mrf.mxu0
      %v1823 = vadd.f32 0.0, %v1822
      %v1824 = vpop.f32.mrf.mxu0
      %v1825 = vadd.f32 0.0, %v1824
      %1826 = vmatmul.bf16.gmra.mxu0 %v1696
      %v1827 = vpop.f32.mrf.mxu0
      %v1828 = vadd.f32 0.0, %v1827
      %v1829 = vpop.f32.mrf.mxu0
      %v1830 = vadd.f32 0.0, %v1829
      %1831 = vmatmul.bf16.gmra.mxu0 %v1697
      %v1832 = vpop.f32.mrf.mxu0
      %v1833 = vadd.f32 0.0, %v1832
      %v1834 = vpop.f32.mrf.mxu0
      %v1835 = vadd.f32 0.0, %v1834
      %1836 = vmatmul.bf16.gmra.mxu0 %v1698
      %v1837 = vpop.f32.mrf.mxu0
      %v1838 = vadd.f32 0.0, %v1837
      %v1839 = vpop.f32.mrf.mxu0
      %v1840 = vadd.f32 0.0, %v1839
      %1841 = vmatmul.bf16.gmra.mxu0 %v1699
      %v1842 = vpop.f32.mrf.mxu0
      %v1843 = vadd.f32 0.0, %v1842
      %v1844 = vpop.f32.mrf.mxu0
      %v1845 = vadd.f32 0.0, %v1844
      %1846 = vmatmul.bf16.gmra.mxu0 %v1700
      %v1847 = vpop.f32.mrf.mxu0
      %v1848 = vadd.f32 0.0, %v1847
      %v1849 = vpop.f32.mrf.mxu0
      %v1850 = vadd.f32 0.0, %v1849
      %1851 = vmatmul.bf16.gmra.mxu0 %v1701
      %v1852 = vpop.f32.mrf.mxu0
      %v1853 = vadd.f32 0.0, %v1852
      %v1854 = vpop.f32.mrf.mxu0
      %v1855 = vadd.f32 0.0, %v1854
      %1856 = vmatmul.bf16.gmra.mxu0 %v1702
      %v1857 = vpop.f32.mrf.mxu0
      %v1858 = vadd.f32 0.0, %v1857
      %v1859 = vpop.f32.mrf.mxu0
      %v1860 = vadd.f32 0.0, %v1859
      %1861 = vmatmul.bf16.gmra.mxu0 %v1703
      %v1862 = vpop.f32.mrf.mxu0
      %v1863 = vadd.f32 0.0, %v1862
      %v1864 = vpop.f32.mrf.mxu0
      %v1865 = vadd.f32 0.0, %v1864
      %1866 = vmatmul.bf16.gmra.mxu0 %v1704
      %v1867 = vpop.f32.mrf.mxu0
      %v1868 = vadd.f32 0.0, %v1867
      %v1869 = vpop.f32.mrf.mxu0
      %v1870 = vadd.f32 0.0, %v1869
      %1871 = vmatmul.bf16.gmra.mxu0 %v1705
      %v1872 = vpop.f32.mrf.mxu0
      %v1873 = vadd.f32 0.0, %v1872
      %v1874 = vpop.f32.mrf.mxu0
      %v1875 = vadd.f32 0.0, %v1874
      %1876 = vmatmul.bf16.gmra.mxu0 %v1706
      %v1877 = vpop.f32.mrf.mxu0
      %v1878 = vadd.f32 0.0, %v1877
      %v1879 = vpop.f32.mrf.mxu0
      %v1880 = vadd.f32 0.0, %v1879
      %1881 = vmatmul.bf16.gmra.mxu0 %v1707
      %v1882 = vpop.f32.mrf.mxu0
      %v1883 = vadd.f32 0.0, %v1882
      %v1884 = vpop.f32.mrf.mxu0
      %1885 = vdwg.mxu0
      %v1886 = vld [vmem:[#allocation2] sm:$0xff]
      %v1887 = vld [vmem:[#allocation2 + $0x8] sm:$0xff]
      %v1888 = vld [vmem:[#allocation2 + $0x10] sm:$0xff]
      %v1889 = vld [vmem:[#allocation2 + $0x18] sm:$0xff]
      %v1890 = vld [vmem:[#allocation2 + $0x20] sm:$0xff]
      %v1891 = vld [vmem:[#allocation2 + $0x28] sm:$0xff]
      %v1892 = vld [vmem:[#allocation2 + $0x30] sm:$0xff]
      %v1893 = vld [vmem:[#allocation2 + $0x38] sm:$0xff]
      %v1894 = vld [vmem:[#allocation2 + $0x40] sm:$0xff]
      %v1895 = vld [vmem:[#allocation2 + $0x48] sm:$0xff]
      %v1896 = vld [vmem:[#allocation2 + $0x50] sm:$0xff]
      %v1897 = vld [vmem:[#allocation2 + $0x58] sm:$0xff]
      %v1898 = vld [vmem:[#allocation2 + $0x60] sm:$0xff]
      %v1899 = vld [vmem:[#allocation2 + $0x68] sm:$0xff]
      %v1900 = vld [vmem:[#allocation2 + $0x70] sm:$0xff]
      %v1901 = vld [vmem:[#allocation2 + $0x78] sm:$0xff]
      %v1902 = vld [vmem:[#allocation2 + $0x80] sm:$0xff]
      %v1903 = vld [vmem:[#allocation2 + $0x88] sm:$0xff]
      %v1904 = vld [vmem:[#allocation2 + $0x90] sm:$0xff]
      %v1905 = vld [vmem:[#allocation2 + $0x98] sm:$0xff]
      %v1906 = vld [vmem:[#allocation2 + $0xa0] sm:$0xff]
      %v1907 = vld [vmem:[#allocation2 + $0xa8] sm:$0xff]
      %v1908 = vld [vmem:[#allocation2 + $0xb0] sm:$0xff]
      %v1909 = vld [vmem:[#allocation2 + $0xb8] sm:$0xff]
      %v1910 = vld [vmem:[#allocation2 + $0xc0] sm:$0xff]
      %v1911 = vld [vmem:[#allocation2 + $0xc8] sm:$0xff]
      %v1912 = vld [vmem:[#allocation2 + $0xd0] sm:$0xff]
      %v1913 = vld [vmem:[#allocation2 + $0xd8] sm:$0xff]
      %v1914 = vld [vmem:[#allocation2 + $0xe0] sm:$0xff]
      %v1915 = vld [vmem:[#allocation2 + $0xe8] sm:$0xff]
      %v1916 = vld [vmem:[#allocation2 + $0xf0] sm:$0xff]
      %v1917 = vld [vmem:[#allocation2 + $0xf8] sm:$0xff]
      %v1918 = vld [vmem:[#allocation2 + $0x100] sm:$0xff]
      %v1919 = vld [vmem:[#allocation2 + $0x108] sm:$0xff]
      %v1920 = vld [vmem:[#allocation2 + $0x110] sm:$0xff]
      %v1921 = vld [vmem:[#allocation2 + $0x118] sm:$0xff]
      %v1922 = vld [vmem:[#allocation2 + $0x120] sm:$0xff]
      %v1923 = vld [vmem:[#allocation2 + $0x128] sm:$0xff]
      %v1924 = vld [vmem:[#allocation2 + $0x130] sm:$0xff]
      %v1925 = vld [vmem:[#allocation2 + $0x138] sm:$0xff]
      %v1926 = vld [vmem:[#allocation2 + $0x140] sm:$0xff]
      %v1927 = vadd.f32 %v1886, %v1783
      %v1928 = vadd.f32 %v1887, %v1785
      %v1929 = vadd.f32 %v1888, %v1788
      %v1930 = vadd.f32 %v1889, %v1790
      %v1931 = vadd.f32 %v1890, %v1793
      %v1932 = vadd.f32 %v1891, %v1795
      %v1933 = vadd.f32 %v1892, %v1798
      %v1934 = vadd.f32 %v1893, %v1800
      %v1935 = vadd.f32 %v1894, %v1803
      %v1936 = vadd.f32 %v1895, %v1805
      %v1937 = vadd.f32 %v1896, %v1808
      %v1938 = vadd.f32 %v1897, %v1810
      %v1939 = vadd.f32 %v1898, %v1813
      %v1940 = vadd.f32 %v1899, %v1815
      %v1941 = vadd.f32 %v1900, %v1818
      %v1942 = vadd.f32 %v1901, %v1820
      %v1943 = vadd.f32 %v1902, %v1823
      %v1944 = vadd.f32 %v1903, %v1825
      %v1945 = vadd.f32 %v1904, %v1828
      %v1946 = vadd.f32 %v1905, %v1830
      %v1947 = vadd.f32 %v1906, %v1833
      %v1948 = vadd.f32 %v1907, %v1835
      %v1949 = vadd.f32 %v1908, %v1838
      %v1950 = vadd.f32 %v1909, %v1840
      %v1951 = vadd.f32 %v1910, %v1843
      %v1952 = vadd.f32 %v1911, %v1845
      %v1953 = vadd.f32 %v1912, %v1848
      %v1954 = vadd.f32 %v1913, %v1850
      %v1955 = vadd.f32 %v1914, %v1853
      %v1956 = vadd.f32 %v1915, %v1855
      %v1957 = vadd.f32 %v1916, %v1858
      %v1958 = vadd.f32 %v1917, %v1860
      %v1959 = vadd.f32 %v1918, %v1863
      %v1960 = vadd.f32 %v1919, %v1865
      %v1961 = vadd.f32 %v1920, %v1868
      %v1962 = vadd.f32 %v1921, %v1870
      %v1963 = vadd.f32 %v1922, %v1873
      %v1964 = vadd.f32 %v1923, %v1875
      %v1965 = vadd.f32 %v1924, %v1878
      %v1966 = vadd.f32 %v1925, %v1880
      %v1967 = vadd.f32 %v1926, %v1883
      %1968 = vst [vmem:[#allocation2] sm:$0xff] %v1927
      %1969 = vst [vmem:[#allocation2 + $0x8] sm:$0xff] %v1928
      %1970 = vst [vmem:[#allocation2 + $0x10] sm:$0xff] %v1929
      %1971 = vst [vmem:[#allocation2 + $0x18] sm:$0xff] %v1930
      %1972 = vst [vmem:[#allocation2 + $0x20] sm:$0xff] %v1931
      %1973 = vst [vmem:[#allocation2 + $0x28] sm:$0xff] %v1932
      %1974 = vst [vmem:[#allocation2 + $0x30] sm:$0xff] %v1933
      %1975 = vst [vmem:[#allocation2 + $0x38] sm:$0xff] %v1934
      %1976 = vst [vmem:[#allocation2 + $0x40] sm:$0xff] %v1935
      %1977 = vst [vmem:[#allocation2 + $0x48] sm:$0xff] %v1936
      %1978 = vst [vmem:[#allocation2 + $0x50] sm:$0xff] %v1937
      %1979 = vst [vmem:[#allocation2 + $0x58] sm:$0xff] %v1938
      %1980 = vst [vmem:[#allocation2 + $0x60] sm:$0xff] %v1939
      %1981 = vst [vmem:[#allocation2 + $0x68] sm:$0xff] %v1940
      %1982 = vst [vmem:[#allocation2 + $0x70] sm:$0xff] %v1941
      %1983 = vst [vmem:[#allocation2 + $0x78] sm:$0xff] %v1942
      %1984 = vst [vmem:[#allocation2 + $0x80] sm:$0xff] %v1943
      %1985 = vst [vmem:[#allocation2 + $0x88] sm:$0xff] %v1944
      %1986 = vst [vmem:[#allocation2 + $0x90] sm:$0xff] %v1945
      %1987 = vst [vmem:[#allocation2 + $0x98] sm:$0xff] %v1946
      %1988 = vst [vmem:[#allocation2 + $0xa0] sm:$0xff] %v1947
      %1989 = vst [vmem:[#allocation2 + $0xa8] sm:$0xff] %v1948
      %1990 = vst [vmem:[#allocation2 + $0xb0] sm:$0xff] %v1949
      %1991 = vst [vmem:[#allocation2 + $0xb8] sm:$0xff] %v1950
      %1992 = vst [vmem:[#allocation2 + $0xc0] sm:$0xff] %v1951
      %1993 = vst [vmem:[#allocation2 + $0xc8] sm:$0xff] %v1952
      %1994 = vst [vmem:[#allocation2 + $0xd0] sm:$0xff] %v1953
      %1995 = vst [vmem:[#allocation2 + $0xd8] sm:$0xff] %v1954
      %1996 = vst [vmem:[#allocation2 + $0xe0] sm:$0xff] %v1955
      %1997 = vst [vmem:[#allocation2 + $0xe8] sm:$0xff] %v1956
      %1998 = vst [vmem:[#allocation2 + $0xf0] sm:$0xff] %v1957
      %1999 = vst [vmem:[#allocation2 + $0xf8] sm:$0xff] %v1958
      %2000 = vst [vmem:[#allocation2 + $0x100] sm:$0xff] %v1959
      %2001 = vst [vmem:[#allocation2 + $0x108] sm:$0xff] %v1960
      %2002 = vst [vmem:[#allocation2 + $0x110] sm:$0xff] %v1961
      %2003 = vst [vmem:[#allocation2 + $0x118] sm:$0xff] %v1962
      %2004 = vst [vmem:[#allocation2 + $0x120] sm:$0xff] %v1963
      %2005 = vst [vmem:[#allocation2 + $0x128] sm:$0xff] %v1964
      %2006 = vst [vmem:[#allocation2 + $0x130] sm:$0xff] %v1965
      %2007 = vst [vmem:[#allocation2 + $0x138] sm:$0xff] %v1966
      %2008 = vst [vmem:[#allocation2 + $0x140] sm:$0xff] %v1967
      %v2009 = vld [vmem:[%s272 + $0x14] sm:$0xff]
      %v2010 = vld [vmem:[%s272 + $0x1c] sm:$0xff]
      %v2011 = vld [vmem:[%s272 + $0x24] sm:$0xff]
      %v2012 = vld [vmem:[%s272 + $0x2c] sm:$0xff]
      %v2013 = vld [vmem:[%s272 + $0x34] sm:$0xff]
      %v2014 = vld [vmem:[%s272 + $0x3c] sm:$0xff]
      %v2015 = vld [vmem:[%s272 + $0x44] sm:$0xff]
      %v2016 = vld [vmem:[%s272 + $0x4c] sm:$0xff]
      %v2017 = vld [vmem:[%s272 + $0x54] sm:$0xff]
      %v2018 = vld [vmem:[%s272 + $0x5c] sm:$0xff]
      %v2019 = vld [vmem:[%s272 + $0x64] sm:$0xff]
      %v2020 = vld [vmem:[%s272 + $0x6c] sm:$0xff]
      %v2021 = vld [vmem:[%s272 + $0x74] sm:$0xff]
      %v2022 = vld [vmem:[%s272 + $0x7c] sm:$0xff]
      %v2023 = vld [vmem:[%s272 + $0x84] sm:$0xff]
      %v2024 = vld [vmem:[%s272 + $0x8c] sm:$0xff]
      %v2025 = vld [vmem:[%s272 + $0x94] sm:$0xff]
      %v2026 = vld [vmem:[%s272 + $0x9c] sm:$0xff]
      %v2027 = vld [vmem:[%s272 + $0xa4] sm:$0xff]
      %v2028 = vld [vmem:[%s272 + $0xac] sm:$0xff]
      %v2029 = vld [vmem:[%s272 + $0xb4] sm:$0xff]
      %v2030 = vld [vmem:[%s272 + $0xbc] sm:$0xff]
      %v2031 = vld [vmem:[%s272 + $0xc4] sm:$0xff]
      %v2032 = vld [vmem:[%s272 + $0xcc] sm:$0xff]
      %v2033 = vld [vmem:[%s272 + $0xd4] sm:$0xff]
      %v2034 = vld [vmem:[%s272 + $0xdc] sm:$0xff]
      %v2035 = vld [vmem:[%s272 + $0xe4] sm:$0xff]
      %v2036 = vld [vmem:[%s272 + $0xec] sm:$0xff]
      %v2037 = vld [vmem:[%s272 + $0xf4] sm:$0xff]
      %v2038 = vld [vmem:[%s272 + $0xfc] sm:$0xff]
      %v2039 = vld [vmem:[%s272 + $0x104] sm:$0xff]
      %v2040 = vld [vmem:[%s272 + $0x10c] sm:$0xff]
      %v2041 = vld [vmem:[%s272 + $0x114] sm:$0xff]
      %v2042 = vld [vmem:[%s272 + $0x11c] sm:$0xff]
      %v2043 = vld [vmem:[%s272 + $0x124] sm:$0xff]
      %v2044 = vld [vmem:[%s272 + $0x12c] sm:$0xff]
      %v2045 = vld [vmem:[%s272 + $0x134] sm:$0xff]
      %v2046 = vld [vmem:[%s272 + $0x13c] sm:$0xff]
      %v2047 = vld [vmem:[%s272 + $0x144] sm:$0xff]
      %v2048 = vld [vmem:[%s272 + $0x14c] sm:$0xff]
      %v2049 = vld [vmem:[%s272 + $0x154] sm:$0xff]
      %v2050 = vpack.c.bf16 %v2010, %v2009
      %v2051 = vpack.c.bf16 %v2012, %v2011
      %v2052 = vpack.c.bf16 %v2014, %v2013
      %v2053 = vpack.c.bf16 %v2016, %v2015
      %v2054 = vpack.c.bf16 %v2018, %v2017
      %v2055 = vpack.c.bf16 %v2020, %v2019
      %v2056 = vpack.c.bf16 %v2022, %v2021
      %v2057 = vpack.c.bf16 %v2024, %v2023
      %v2058 = vpack.c.bf16 %v2026, %v2025
      %v2059 = vpack.c.bf16 %v2028, %v2027
      %v2060 = vpack.c.bf16 %v2030, %v2029
      %v2061 = vpack.c.bf16 %v2032, %v2031
      %v2062 = vpack.c.bf16 %v2034, %v2033
      %v2063 = vpack.c.bf16 %v2036, %v2035
      %v2064 = vpack.c.bf16 %v2038, %v2037
      %v2065 = vpack.c.bf16 %v2040, %v2039
      %v2066 = vpack.c.bf16 %v2042, %v2041
      %v2067 = vpack.c.bf16 %v2044, %v2043
      %v2068 = vpack.c.bf16 %v2046, %v2045
      %v2069 = vpack.c.bf16 %v2048, %v2047
      %v2070 = vpack.c.bf16 %v2049, %v2049
      %s2071 = scalar_lea.vmem %s1, 320
      %v2072 = vld [vmem:[%s2071] sm:$0xf]
      %v2073 = vld [vmem:[%s2071 + $0x4] sm:$0xf]
      %v2074 = vld [vmem:[%s2071 + $0x8] sm:$0xf]
      %v2075 = vld [vmem:[%s2071 + $0xc] sm:$0xf]
      %v2076 = vld [vmem:[%s2071 + $0x10] sm:$0xf]
      %v2077 = vld [vmem:[%s2071 + $0x14] sm:$0xf]
      %v2078 = vld [vmem:[%s2071 + $0x18] sm:$0xf]
      %v2079 = vld [vmem:[%s2071 + $0x1c] sm:$0xf]
      %v2080 = vld [vmem:[%s2071 + $0x20] sm:$0xf]
      %v2081 = vld [vmem:[%s2071 + $0x24] sm:$0xf]
      %v2082 = vld [vmem:[%s2071 + $0x28] sm:$0xf]
      %v2083 = vld [vmem:[%s2071 + $0x2c] sm:$0xf]
      %v2084 = vld [vmem:[%s2071 + $0x30] sm:$0xf]
      %v2085 = vld [vmem:[%s2071 + $0x34] sm:$0xf]
      %v2086 = vld [vmem:[%s2071 + $0x38] sm:$0xf]
      %v2087 = vld [vmem:[%s2071 + $0x3c] sm:$0xf]
      %v2104 = vunpack.c.l.b16 %v2072
      %v2105 = vunpack.c.l.b16 %v2073
      %v2106 = vunpack.c.l.b16 %v2074
      %v2107 = vunpack.c.l.b16 %v2075
      %v2108 = vunpack.c.l.b16 %v2076
      %v2109 = vunpack.c.l.b16 %v2077
      %v2110 = vunpack.c.l.b16 %v2078
      %v2111 = vunpack.c.l.b16 %v2079
      %v2112 = vunpack.c.l.b16 %v2080
      %v2113 = vunpack.c.l.b16 %v2081
      %v2114 = vunpack.c.l.b16 %v2082
      %v2115 = vunpack.c.l.b16 %v2083
      %v2116 = vunpack.c.l.b16 %v2084
      %v2117 = vunpack.c.l.b16 %v2085
      %v2118 = vunpack.c.l.b16 %v2086
      %v2119 = vunpack.c.l.b16 %v2087
      %v2120 = vpack.c.b16 %v2105, %v2104
      %v2121 = vpack.c.b16 %v2107, %v2106
      %v2122 = vpack.c.b16 %v2109, %v2108
      %v2123 = vpack.c.b16 %v2111, %v2110
      %v2124 = vpack.c.b16 %v2113, %v2112
      %v2125 = vpack.c.b16 %v2115, %v2114
      %v2126 = vpack.c.b16 %v2117, %v2116
      %v2127 = vpack.c.b16 %v2119, %v2118
      %2136 = vmatpush.bf16.msra.mxu0 %v2127
      %2137 = vmatpush.bf16.msra.mxu0 %v2126
      %2138 = vmatpush.bf16.msra.mxu0 %v2125
      %2139 = vmatpush.bf16.msra.mxu0 %v2124
      %2140 = vmatpush.bf16.msra.mxu0 %v2123
      %2141 = vmatpush.bf16.msra.mxu0 %v2122
      %2142 = vmatpush.bf16.msra.mxu0 %v2121
      %2143 = vmatpush.bf16.msra.mxu0 %v2120
      %2144 = vmatmul.bf16.gmra.mxu0 %v2050
      %v2145 = vpop.f32.mrf.mxu0
      %v2146 = vadd.f32 0.0, %v2145
      %v2147 = vpop.f32.mrf.mxu0
      %v2148 = vadd.f32 0.0, %v2147
      %2149 = vmatmul.bf16.gmra.mxu0 %v2051
      %v2150 = vpop.f32.mrf.mxu0
      %v2151 = vadd.f32 0.0, %v2150
      %v2152 = vpop.f32.mrf.mxu0
      %v2153 = vadd.f32 0.0, %v2152
      %2154 = vmatmul.bf16.gmra.mxu0 %v2052
      %v2155 = vpop.f32.mrf.mxu0
      %v2156 = vadd.f32 0.0, %v2155
      %v2157 = vpop.f32.mrf.mxu0
      %v2158 = vadd.f32 0.0, %v2157
      %2159 = vmatmul.bf16.gmra.mxu0 %v2053
      %v2160 = vpop.f32.mrf.mxu0
      %v2161 = vadd.f32 0.0, %v2160
      %v2162 = vpop.f32.mrf.mxu0
      %v2163 = vadd.f32 0.0, %v2162
      %2164 = vmatmul.bf16.gmra.mxu0 %v2054
      %v2165 = vpop.f32.mrf.mxu0
      %v2166 = vadd.f32 0.0, %v2165
      %v2167 = vpop.f32.mrf.mxu0
      %v2168 = vadd.f32 0.0, %v2167
      %2169 = vmatmul.bf16.gmra.mxu0 %v2055
      %v2170 = vpop.f32.mrf.mxu0
      %v2171 = vadd.f32 0.0, %v2170
      %v2172 = vpop.f32.mrf.mxu0
      %v2173 = vadd.f32 0.0, %v2172
      %2174 = vmatmul.bf16.gmra.mxu0 %v2056
      %v2175 = vpop.f32.mrf.mxu0
      %v2176 = vadd.f32 0.0, %v2175
      %v2177 = vpop.f32.mrf.mxu0
      %v2178 = vadd.f32 0.0, %v2177
      %2179 = vmatmul.bf16.gmra.mxu0 %v2057
      %v2180 = vpop.f32.mrf.mxu0
      %v2181 = vadd.f32 0.0, %v2180
      %v2182 = vpop.f32.mrf.mxu0
      %v2183 = vadd.f32 0.0, %v2182
      %2184 = vmatmul.bf16.gmra.mxu0 %v2058
      %v2185 = vpop.f32.mrf.mxu0
      %v2186 = vadd.f32 0.0, %v2185
      %v2187 = vpop.f32.mrf.mxu0
      %v2188 = vadd.f32 0.0, %v2187
      %2189 = vmatmul.bf16.gmra.mxu0 %v2059
      %v2190 = vpop.f32.mrf.mxu0
      %v2191 = vadd.f32 0.0, %v2190
      %v2192 = vpop.f32.mrf.mxu0
      %v2193 = vadd.f32 0.0, %v2192
      %2194 = vmatmul.bf16.gmra.mxu0 %v2060
      %v2195 = vpop.f32.mrf.mxu0
      %v2196 = vadd.f32 0.0, %v2195
      %v2197 = vpop.f32.mrf.mxu0
      %v2198 = vadd.f32 0.0, %v2197
      %2199 = vmatmul.bf16.gmra.mxu0 %v2061
      %v2200 = vpop.f32.mrf.mxu0
      %v2201 = vadd.f32 0.0, %v2200
      %v2202 = vpop.f32.mrf.mxu0
      %v2203 = vadd.f32 0.0, %v2202
      %2204 = vmatmul.bf16.gmra.mxu0 %v2062
      %v2205 = vpop.f32.mrf.mxu0
      %v2206 = vadd.f32 0.0, %v2205
      %v2207 = vpop.f32.mrf.mxu0
      %v2208 = vadd.f32 0.0, %v2207
      %2209 = vmatmul.bf16.gmra.mxu0 %v2063
      %v2210 = vpop.f32.mrf.mxu0
      %v2211 = vadd.f32 0.0, %v2210
      %v2212 = vpop.f32.mrf.mxu0
      %v2213 = vadd.f32 0.0, %v2212
      %2214 = vmatmul.bf16.gmra.mxu0 %v2064
      %v2215 = vpop.f32.mrf.mxu0
      %v2216 = vadd.f32 0.0, %v2215
      %v2217 = vpop.f32.mrf.mxu0
      %v2218 = vadd.f32 0.0, %v2217
      %2219 = vmatmul.bf16.gmra.mxu0 %v2065
      %v2220 = vpop.f32.mrf.mxu0
      %v2221 = vadd.f32 0.0, %v2220
      %v2222 = vpop.f32.mrf.mxu0
      %v2223 = vadd.f32 0.0, %v2222
      %2224 = vmatmul.bf16.gmra.mxu0 %v2066
      %v2225 = vpop.f32.mrf.mxu0
      %v2226 = vadd.f32 0.0, %v2225
      %v2227 = vpop.f32.mrf.mxu0
      %v2228 = vadd.f32 0.0, %v2227
      %2229 = vmatmul.bf16.gmra.mxu0 %v2067
      %v2230 = vpop.f32.mrf.mxu0
      %v2231 = vadd.f32 0.0, %v2230
      %v2232 = vpop.f32.mrf.mxu0
      %v2233 = vadd.f32 0.0, %v2232
      %2234 = vmatmul.bf16.gmra.mxu0 %v2068
      %v2235 = vpop.f32.mrf.mxu0
      %v2236 = vadd.f32 0.0, %v2235
      %v2237 = vpop.f32.mrf.mxu0
      %v2238 = vadd.f32 0.0, %v2237
      %2239 = vmatmul.bf16.gmra.mxu0 %v2069
      %v2240 = vpop.f32.mrf.mxu0
      %v2241 = vadd.f32 0.0, %v2240
      %v2242 = vpop.f32.mrf.mxu0
      %v2243 = vadd.f32 0.0, %v2242
      %2244 = vmatmul.bf16.gmra.mxu0 %v2070
      %v2245 = vpop.f32.mrf.mxu0
      %v2246 = vadd.f32 0.0, %v2245
      %v2247 = vpop.f32.mrf.mxu0
      %2248 = vdwg.mxu0
      %v2249 = vld [vmem:[#allocation2] sm:$0xff]
      %v2250 = vld [vmem:[#allocation2 + $0x8] sm:$0xff]
      %v2251 = vld [vmem:[#allocation2 + $0x10] sm:$0xff]
      %v2252 = vld [vmem:[#allocation2 + $0x18] sm:$0xff]
      %v2253 = vld [vmem:[#allocation2 + $0x20] sm:$0xff]
      %v2254 = vld [vmem:[#allocation2 + $0x28] sm:$0xff]
      %v2255 = vld [vmem:[#allocation2 + $0x30] sm:$0xff]
      %v2256 = vld [vmem:[#allocation2 + $0x38] sm:$0xff]
      %v2257 = vld [vmem:[#allocation2 + $0x40] sm:$0xff]
      %v2258 = vld [vmem:[#allocation2 + $0x48] sm:$0xff]
      %v2259 = vld [vmem:[#allocation2 + $0x50] sm:$0xff]
      %v2260 = vld [vmem:[#allocation2 + $0x58] sm:$0xff]
      %v2261 = vld [vmem:[#allocation2 + $0x60] sm:$0xff]
      %v2262 = vld [vmem:[#allocation2 + $0x68] sm:$0xff]
      %v2263 = vld [vmem:[#allocation2 + $0x70] sm:$0xff]
      %v2264 = vld [vmem:[#allocation2 + $0x78] sm:$0xff]
      %v2265 = vld [vmem:[#allocation2 + $0x80] sm:$0xff]
      %v2266 = vld [vmem:[#allocation2 + $0x88] sm:$0xff]
      %v2267 = vld [vmem:[#allocation2 + $0x90] sm:$0xff]
      %v2268 = vld [vmem:[#allocation2 + $0x98] sm:$0xff]
      %v2269 = vld [vmem:[#allocation2 + $0xa0] sm:$0xff]
      %v2270 = vld [vmem:[#allocation2 + $0xa8] sm:$0xff]
      %v2271 = vld [vmem:[#allocation2 + $0xb0] sm:$0xff]
      %v2272 = vld [vmem:[#allocation2 + $0xb8] sm:$0xff]
      %v2273 = vld [vmem:[#allocation2 + $0xc0] sm:$0xff]
      %v2274 = vld [vmem:[#allocation2 + $0xc8] sm:$0xff]
      %v2275 = vld [vmem:[#allocation2 + $0xd0] sm:$0xff]
      %v2276 = vld [vmem:[#allocation2 + $0xd8] sm:$0xff]
      %v2277 = vld [vmem:[#allocation2 + $0xe0] sm:$0xff]
      %v2278 = vld [vmem:[#allocation2 + $0xe8] sm:$0xff]
      %v2279 = vld [vmem:[#allocation2 + $0xf0] sm:$0xff]
      %v2280 = vld [vmem:[#allocation2 + $0xf8] sm:$0xff]
      %v2281 = vld [vmem:[#allocation2 + $0x100] sm:$0xff]
      %v2282 = vld [vmem:[#allocation2 + $0x108] sm:$0xff]
      %v2283 = vld [vmem:[#allocation2 + $0x110] sm:$0xff]
      %v2284 = vld [vmem:[#allocation2 + $0x118] sm:$0xff]
      %v2285 = vld [vmem:[#allocation2 + $0x120] sm:$0xff]
      %v2286 = vld [vmem:[#allocation2 + $0x128] sm:$0xff]
      %v2287 = vld [vmem:[#allocation2 + $0x130] sm:$0xff]
      %v2288 = vld [vmem:[#allocation2 + $0x138] sm:$0xff]
      %v2289 = vld [vmem:[#allocation2 + $0x140] sm:$0xff]
      %v2290 = vadd.f32 %v2249, %v2146
      %v2291 = vadd.f32 %v2250, %v2148
      %v2292 = vadd.f32 %v2251, %v2151
      %v2293 = vadd.f32 %v2252, %v2153
      %v2294 = vadd.f32 %v2253, %v2156
      %v2295 = vadd.f32 %v2254, %v2158
      %v2296 = vadd.f32 %v2255, %v2161
      %v2297 = vadd.f32 %v2256, %v2163
      %v2298 = vadd.f32 %v2257, %v2166
      %v2299 = vadd.f32 %v2258, %v2168
      %v2300 = vadd.f32 %v2259, %v2171
      %v2301 = vadd.f32 %v2260, %v2173
      %v2302 = vadd.f32 %v2261, %v2176
      %v2303 = vadd.f32 %v2262, %v2178
      %v2304 = vadd.f32 %v2263, %v2181
      %v2305 = vadd.f32 %v2264, %v2183
      %v2306 = vadd.f32 %v2265, %v2186
      %v2307 = vadd.f32 %v2266, %v2188
      %v2308 = vadd.f32 %v2267, %v2191
      %v2309 = vadd.f32 %v2268, %v2193
      %v2310 = vadd.f32 %v2269, %v2196
      %v2311 = vadd.f32 %v2270, %v2198
      %v2312 = vadd.f32 %v2271, %v2201
      %v2313 = vadd.f32 %v2272, %v2203
      %v2314 = vadd.f32 %v2273, %v2206
      %v2315 = vadd.f32 %v2274, %v2208
      %v2316 = vadd.f32 %v2275, %v2211
      %v2317 = vadd.f32 %v2276, %v2213
      %v2318 = vadd.f32 %v2277, %v2216
      %v2319 = vadd.f32 %v2278, %v2218
      %v2320 = vadd.f32 %v2279, %v2221
      %v2321 = vadd.f32 %v2280, %v2223
      %v2322 = vadd.f32 %v2281, %v2226
      %v2323 = vadd.f32 %v2282, %v2228
      %v2324 = vadd.f32 %v2283, %v2231
      %v2325 = vadd.f32 %v2284, %v2233
      %v2326 = vadd.f32 %v2285, %v2236
      %v2327 = vadd.f32 %v2286, %v2238
      %v2328 = vadd.f32 %v2287, %v2241
      %v2329 = vadd.f32 %v2288, %v2243
      %v2330 = vadd.f32 %v2289, %v2246
      %2331 = vst [vmem:[#allocation2] sm:$0xff] %v2290
      %2332 = vst [vmem:[#allocation2 + $0x8] sm:$0xff] %v2291
      %2333 = vst [vmem:[#allocation2 + $0x10] sm:$0xff] %v2292
      %2334 = vst [vmem:[#allocation2 + $0x18] sm:$0xff] %v2293
      %2335 = vst [vmem:[#allocation2 + $0x20] sm:$0xff] %v2294
      %2336 = vst [vmem:[#allocation2 + $0x28] sm:$0xff] %v2295
      %2337 = vst [vmem:[#allocation2 + $0x30] sm:$0xff] %v2296
      %2338 = vst [vmem:[#allocation2 + $0x38] sm:$0xff] %v2297
      %2339 = vst [vmem:[#allocation2 + $0x40] sm:$0xff] %v2298
      %2340 = vst [vmem:[#allocation2 + $0x48] sm:$0xff] %v2299
      %2341 = vst [vmem:[#allocation2 + $0x50] sm:$0xff] %v2300
      %2342 = vst [vmem:[#allocation2 + $0x58] sm:$0xff] %v2301
      %2343 = vst [vmem:[#allocation2 + $0x60] sm:$0xff] %v2302
      %2344 = vst [vmem:[#allocation2 + $0x68] sm:$0xff] %v2303
      %2345 = vst [vmem:[#allocation2 + $0x70] sm:$0xff] %v2304
      %2346 = vst [vmem:[#allocation2 + $0x78] sm:$0xff] %v2305
      %2347 = vst [vmem:[#allocation2 + $0x80] sm:$0xff] %v2306
      %2348 = vst [vmem:[#allocation2 + $0x88] sm:$0xff] %v2307
      %2349 = vst [vmem:[#allocation2 + $0x90] sm:$0xff] %v2308
      %2350 = vst [vmem:[#allocation2 + $0x98] sm:$0xff] %v2309
      %2351 = vst [vmem:[#allocation2 + $0xa0] sm:$0xff] %v2310
      %2352 = vst [vmem:[#allocation2 + $0xa8] sm:$0xff] %v2311
      %2353 = vst [vmem:[#allocation2 + $0xb0] sm:$0xff] %v2312
      %2354 = vst [vmem:[#allocation2 + $0xb8] sm:$0xff] %v2313
      %2355 = vst [vmem:[#allocation2 + $0xc0] sm:$0xff] %v2314
      %2356 = vst [vmem:[#allocation2 + $0xc8] sm:$0xff] %v2315
      %2357 = vst [vmem:[#allocation2 + $0xd0] sm:$0xff] %v2316
      %2358 = vst [vmem:[#allocation2 + $0xd8] sm:$0xff] %v2317
      %2359 = vst [vmem:[#allocation2 + $0xe0] sm:$0xff] %v2318
      %2360 = vst [vmem:[#allocation2 + $0xe8] sm:$0xff] %v2319
      %2361 = vst [vmem:[#allocation2 + $0xf0] sm:$0xff] %v2320
      %2362 = vst [vmem:[#allocation2 + $0xf8] sm:$0xff] %v2321
      %2363 = vst [vmem:[#allocation2 + $0x100] sm:$0xff] %v2322
      %2364 = vst [vmem:[#allocation2 + $0x108] sm:$0xff] %v2323
      %2365 = vst [vmem:[#allocation2 + $0x110] sm:$0xff] %v2324
      %2366 = vst [vmem:[#allocation2 + $0x118] sm:$0xff] %v2325
      %2367 = vst [vmem:[#allocation2 + $0x120] sm:$0xff] %v2326
      %2368 = vst [vmem:[#allocation2 + $0x128] sm:$0xff] %v2327
      %2369 = vst [vmem:[#allocation2 + $0x130] sm:$0xff] %v2328
      %2370 = vst [vmem:[#allocation2 + $0x138] sm:$0xff] %v2329
      %2371 = vst [vmem:[#allocation2 + $0x140] sm:$0xff] %v2330
      %v2372 = vld [vmem:[%s272 + $0x24] sm:$0xff]
      %v2373 = vld [vmem:[%s272 + $0x2c] sm:$0xff]
      %v2374 = vld [vmem:[%s272 + $0x34] sm:$0xff]
      %v2375 = vld [vmem:[%s272 + $0x3c] sm:$0xff]
      %v2376 = vld [vmem:[%s272 + $0x44] sm:$0xff]
      %v2377 = vld [vmem:[%s272 + $0x4c] sm:$0xff]
      %v2378 = vld [vmem:[%s272 + $0x54] sm:$0xff]
      %v2379 = vld [vmem:[%s272 + $0x5c] sm:$0xff]
      %v2380 = vld [vmem:[%s272 + $0x64] sm:$0xff]
      %v2381 = vld [vmem:[%s272 + $0x6c] sm:$0xff]
      %v2382 = vld [vmem:[%s272 + $0x74] sm:$0xff]
      %v2383 = vld [vmem:[%s272 + $0x7c] sm:$0xff]
      %v2384 = vld [vmem:[%s272 + $0x84] sm:$0xff]
      %v2385 = vld [vmem:[%s272 + $0x8c] sm:$0xff]
      %v2386 = vld [vmem:[%s272 + $0x94] sm:$0xff]
      %v2387 = vld [vmem:[%s272 + $0x9c] sm:$0xff]
      %v2388 = vld [vmem:[%s272 + $0xa4] sm:$0xff]
      %v2389 = vld [vmem:[%s272 + $0xac] sm:$0xff]
      %v2390 = vld [vmem:[%s272 + $0xb4] sm:$0xff]
      %v2391 = vld [vmem:[%s272 + $0xbc] sm:$0xff]
      %v2392 = vld [vmem:[%s272 + $0xc4] sm:$0xff]
      %v2393 = vld [vmem:[%s272 + $0xcc] sm:$0xff]
      %v2394 = vld [vmem:[%s272 + $0xd4] sm:$0xff]
      %v2395 = vld [vmem:[%s272 + $0xdc] sm:$0xff]
      %v2396 = vld [vmem:[%s272 + $0xe4] sm:$0xff]
      %v2397 = vld [vmem:[%s272 + $0xec] sm:$0xff]
      %v2398 = vld [vmem:[%s272 + $0xf4] sm:$0xff]
      %v2399 = vld [vmem:[%s272 + $0xfc] sm:$0xff]
      %v2400 = vld [vmem:[%s272 + $0x104] sm:$0xff]
      %v2401 = vld [vmem:[%s272 + $0x10c] sm:$0xff]
      %v2402 = vld [vmem:[%s272 + $0x114] sm:$0xff]
      %v2403 = vld [vmem:[%s272 + $0x11c] sm:$0xff]
      %v2404 = vld [vmem:[%s272 + $0x124] sm:$0xff]
      %v2405 = vld [vmem:[%s272 + $0x12c] sm:$0xff]
      %v2406 = vld [vmem:[%s272 + $0x134] sm:$0xff]
      %v2407 = vld [vmem:[%s272 + $0x13c] sm:$0xff]
      %v2408 = vld [vmem:[%s272 + $0x144] sm:$0xff]
      %v2409 = vld [vmem:[%s272 + $0x14c] sm:$0xff]
      %v2410 = vld [vmem:[%s272 + $0x154] sm:$0xff]
      %v2411 = vld [vmem:[%s272 + $0x15c] sm:$0xff]
      %v2412 = vld [vmem:[%s272 + $0x164] sm:$0xff]
      %v2413 = vpack.c.bf16 %v2373, %v2372
      %v2414 = vpack.c.bf16 %v2375, %v2374
      %v2415 = vpack.c.bf16 %v2377, %v2376
      %v2416 = vpack.c.bf16 %v2379, %v2378
      %v2417 = vpack.c.bf16 %v2381, %v2380
      %v2418 = vpack.c.bf16 %v2383, %v2382
      %v2419 = vpack.c.bf16 %v2385, %v2384
      %v2420 = vpack.c.bf16 %v2387, %v2386
      %v2421 = vpack.c.bf16 %v2389, %v2388
      %v2422 = vpack.c.bf16 %v2391, %v2390
      %v2423 = vpack.c.bf16 %v2393, %v2392
      %v2424 = vpack.c.bf16 %v2395, %v2394
      %v2425 = vpack.c.bf16 %v2397, %v2396
      %v2426 = vpack.c.bf16 %v2399, %v2398
      %v2427 = vpack.c.bf16 %v2401, %v2400
      %v2428 = vpack.c.bf16 %v2403, %v2402
      %v2429 = vpack.c.bf16 %v2405, %v2404
      %v2430 = vpack.c.bf16 %v2407, %v2406
      %v2431 = vpack.c.bf16 %v2409, %v2408
      %v2432 = vpack.c.bf16 %v2411, %v2410
      %v2433 = vpack.c.bf16 %v2412, %v2412
      %s2434 = scalar_lea.vmem %s1, 384
      %v2435 = vld [vmem:[%s2434] sm:$0xf]
      %v2436 = vld [vmem:[%s2434 + $0x4] sm:$0xf]
      %v2437 = vld [vmem:[%s2434 + $0x8] sm:$0xf]
      %v2438 = vld [vmem:[%s2434 + $0xc] sm:$0xf]
      %v2439 = vld [vmem:[%s2434 + $0x10] sm:$0xf]
      %v2440 = vld [vmem:[%s2434 + $0x14] sm:$0xf]
      %v2441 = vld [vmem:[%s2434 + $0x18] sm:$0xf]
      %v2442 = vld [vmem:[%s2434 + $0x1c] sm:$0xf]
      %v2443 = vld [vmem:[%s2434 + $0x20] sm:$0xf]
      %v2444 = vld [vmem:[%s2434 + $0x24] sm:$0xf]
      %v2445 = vld [vmem:[%s2434 + $0x28] sm:$0xf]
      %v2446 = vld [vmem:[%s2434 + $0x2c] sm:$0xf]
      %v2447 = vld [vmem:[%s2434 + $0x30] sm:$0xf]
      %v2448 = vld [vmem:[%s2434 + $0x34] sm:$0xf]
      %v2449 = vld [vmem:[%s2434 + $0x38] sm:$0xf]
      %v2450 = vld [vmem:[%s2434 + $0x3c] sm:$0xf]
      %v2467 = vunpack.c.l.b16 %v2435
      %v2468 = vunpack.c.l.b16 %v2436
      %v2469 = vunpack.c.l.b16 %v2437
      %v2470 = vunpack.c.l.b16 %v2438
      %v2471 = vunpack.c.l.b16 %v2439
      %v2472 = vunpack.c.l.b16 %v2440
      %v2473 = vunpack.c.l.b16 %v2441
      %v2474 = vunpack.c.l.b16 %v2442
      %v2475 = vunpack.c.l.b16 %v2443
      %v2476 = vunpack.c.l.b16 %v2444
      %v2477 = vunpack.c.l.b16 %v2445
      %v2478 = vunpack.c.l.b16 %v2446
      %v2479 = vunpack.c.l.b16 %v2447
      %v2480 = vunpack.c.l.b16 %v2448
      %v2481 = vunpack.c.l.b16 %v2449
      %v2482 = vunpack.c.l.b16 %v2450
      %v2483 = vpack.c.b16 %v2468, %v2467
      %v2484 = vpack.c.b16 %v2470, %v2469
      %v2485 = vpack.c.b16 %v2472, %v2471
      %v2486 = vpack.c.b16 %v2474, %v2473
      %v2487 = vpack.c.b16 %v2476, %v2475
      %v2488 = vpack.c.b16 %v2478, %v2477
      %v2489 = vpack.c.b16 %v2480, %v2479
      %v2490 = vpack.c.b16 %v2482, %v2481
      %2499 = vmatpush.bf16.msra.mxu0 %v2490
      %2500 = vmatpush.bf16.msra.mxu0 %v2489
      %2501 = vmatpush.bf16.msra.mxu0 %v2488
      %2502 = vmatpush.bf16.msra.mxu0 %v2487
      %2503 = vmatpush.bf16.msra.mxu0 %v2486
      %2504 = vmatpush.bf16.msra.mxu0 %v2485
      %2505 = vmatpush.bf16.msra.mxu0 %v2484
      %2506 = vmatpush.bf16.msra.mxu0 %v2483
      %2507 = vmatmul.bf16.gmra.mxu0 %v2413
      %v2508 = vpop.f32.mrf.mxu0
      %v2509 = vadd.f32 0.0, %v2508
      %v2510 = vpop.f32.mrf.mxu0
      %v2511 = vadd.f32 0.0, %v2510
      %2512 = vmatmul.bf16.gmra.mxu0 %v2414
      %v2513 = vpop.f32.mrf.mxu0
      %v2514 = vadd.f32 0.0, %v2513
      %v2515 = vpop.f32.mrf.mxu0
      %v2516 = vadd.f32 0.0, %v2515
      %2517 = vmatmul.bf16.gmra.mxu0 %v2415
      %v2518 = vpop.f32.mrf.mxu0
      %v2519 = vadd.f32 0.0, %v2518
      %v2520 = vpop.f32.mrf.mxu0
      %v2521 = vadd.f32 0.0, %v2520
      %2522 = vmatmul.bf16.gmra.mxu0 %v2416
      %v2523 = vpop.f32.mrf.mxu0
      %v2524 = vadd.f32 0.0, %v2523
      %v2525 = vpop.f32.mrf.mxu0
      %v2526 = vadd.f32 0.0, %v2525
      %2527 = vmatmul.bf16.gmra.mxu0 %v2417
      %v2528 = vpop.f32.mrf.mxu0
      %v2529 = vadd.f32 0.0, %v2528
      %v2530 = vpop.f32.mrf.mxu0
      %v2531 = vadd.f32 0.0, %v2530
      %2532 = vmatmul.bf16.gmra.mxu0 %v2418
      %v2533 = vpop.f32.mrf.mxu0
      %v2534 = vadd.f32 0.0, %v2533
      %v2535 = vpop.f32.mrf.mxu0
      %v2536 = vadd.f32 0.0, %v2535
      %2537 = vmatmul.bf16.gmra.mxu0 %v2419
      %v2538 = vpop.f32.mrf.mxu0
      %v2539 = vadd.f32 0.0, %v2538
      %v2540 = vpop.f32.mrf.mxu0
      %v2541 = vadd.f32 0.0, %v2540
      %2542 = vmatmul.bf16.gmra.mxu0 %v2420
      %v2543 = vpop.f32.mrf.mxu0
      %v2544 = vadd.f32 0.0, %v2543
      %v2545 = vpop.f32.mrf.mxu0
      %v2546 = vadd.f32 0.0, %v2545
      %2547 = vmatmul.bf16.gmra.mxu0 %v2421
      %v2548 = vpop.f32.mrf.mxu0
      %v2549 = vadd.f32 0.0, %v2548
      %v2550 = vpop.f32.mrf.mxu0
      %v2551 = vadd.f32 0.0, %v2550
      %2552 = vmatmul.bf16.gmra.mxu0 %v2422
      %v2553 = vpop.f32.mrf.mxu0
      %v2554 = vadd.f32 0.0, %v2553
      %v2555 = vpop.f32.mrf.mxu0
      %v2556 = vadd.f32 0.0, %v2555
      %2557 = vmatmul.bf16.gmra.mxu0 %v2423
      %v2558 = vpop.f32.mrf.mxu0
      %v2559 = vadd.f32 0.0, %v2558
      %v2560 = vpop.f32.mrf.mxu0
      %v2561 = vadd.f32 0.0, %v2560
      %2562 = vmatmul.bf16.gmra.mxu0 %v2424
      %v2563 = vpop.f32.mrf.mxu0
      %v2564 = vadd.f32 0.0, %v2563
      %v2565 = vpop.f32.mrf.mxu0
      %v2566 = vadd.f32 0.0, %v2565
      %2567 = vmatmul.bf16.gmra.mxu0 %v2425
      %v2568 = vpop.f32.mrf.mxu0
      %v2569 = vadd.f32 0.0, %v2568
      %v2570 = vpop.f32.mrf.mxu0
      %v2571 = vadd.f32 0.0, %v2570
      %2572 = vmatmul.bf16.gmra.mxu0 %v2426
      %v2573 = vpop.f32.mrf.mxu0
      %v2574 = vadd.f32 0.0, %v2573
      %v2575 = vpop.f32.mrf.mxu0
      %v2576 = vadd.f32 0.0, %v2575
      %2577 = vmatmul.bf16.gmra.mxu0 %v2427
      %v2578 = vpop.f32.mrf.mxu0
      %v2579 = vadd.f32 0.0, %v2578
      %v2580 = vpop.f32.mrf.mxu0
      %v2581 = vadd.f32 0.0, %v2580
      %2582 = vmatmul.bf16.gmra.mxu0 %v2428
      %v2583 = vpop.f32.mrf.mxu0
      %v2584 = vadd.f32 0.0, %v2583
      %v2585 = vpop.f32.mrf.mxu0
      %v2586 = vadd.f32 0.0, %v2585
      %2587 = vmatmul.bf16.gmra.mxu0 %v2429
      %v2588 = vpop.f32.mrf.mxu0
      %v2589 = vadd.f32 0.0, %v2588
      %v2590 = vpop.f32.mrf.mxu0
      %v2591 = vadd.f32 0.0, %v2590
      %2592 = vmatmul.bf16.gmra.mxu0 %v2430
      %v2593 = vpop.f32.mrf.mxu0
      %v2594 = vadd.f32 0.0, %v2593
      %v2595 = vpop.f32.mrf.mxu0
      %v2596 = vadd.f32 0.0, %v2595
      %2597 = vmatmul.bf16.gmra.mxu0 %v2431
      %v2598 = vpop.f32.mrf.mxu0
      %v2599 = vadd.f32 0.0, %v2598
      %v2600 = vpop.f32.mrf.mxu0
      %v2601 = vadd.f32 0.0, %v2600
      %2602 = vmatmul.bf16.gmra.mxu0 %v2432
      %v2603 = vpop.f32.mrf.mxu0
      %v2604 = vadd.f32 0.0, %v2603
      %v2605 = vpop.f32.mrf.mxu0
      %v2606 = vadd.f32 0.0, %v2605
      %2607 = vmatmul.bf16.gmra.mxu0 %v2433
      %v2608 = vpop.f32.mrf.mxu0
      %v2609 = vadd.f32 0.0, %v2608
      %v2610 = vpop.f32.mrf.mxu0
      %2611 = vdwg.mxu0
      %v2612 = vld [vmem:[#allocation2] sm:$0xff]
      %v2613 = vld [vmem:[#allocation2 + $0x8] sm:$0xff]
      %v2614 = vld [vmem:[#allocation2 + $0x10] sm:$0xff]
      %v2615 = vld [vmem:[#allocation2 + $0x18] sm:$0xff]
      %v2616 = vld [vmem:[#allocation2 + $0x20] sm:$0xff]
      %v2617 = vld [vmem:[#allocation2 + $0x28] sm:$0xff]
      %v2618 = vld [vmem:[#allocation2 + $0x30] sm:$0xff]
      %v2619 = vld [vmem:[#allocation2 + $0x38] sm:$0xff]
      %v2620 = vld [vmem:[#allocation2 + $0x40] sm:$0xff]
      %v2621 = vld [vmem:[#allocation2 + $0x48] sm:$0xff]
      %v2622 = vld [vmem:[#allocation2 + $0x50] sm:$0xff]
      %v2623 = vld [vmem:[#allocation2 + $0x58] sm:$0xff]
      %v2624 = vld [vmem:[#allocation2 + $0x60] sm:$0xff]
      %v2625 = vld [vmem:[#allocation2 + $0x68] sm:$0xff]
      %v2626 = vld [vmem:[#allocation2 + $0x70] sm:$0xff]
      %v2627 = vld [vmem:[#allocation2 + $0x78] sm:$0xff]
      %v2628 = vld [vmem:[#allocation2 + $0x80] sm:$0xff]
      %v2629 = vld [vmem:[#allocation2 + $0x88] sm:$0xff]
      %v2630 = vld [vmem:[#allocation2 + $0x90] sm:$0xff]
      %v2631 = vld [vmem:[#allocation2 + $0x98] sm:$0xff]
      %v2632 = vld [vmem:[#allocation2 + $0xa0] sm:$0xff]
      %v2633 = vld [vmem:[#allocation2 + $0xa8] sm:$0xff]
      %v2634 = vld [vmem:[#allocation2 + $0xb0] sm:$0xff]
      %v2635 = vld [vmem:[#allocation2 + $0xb8] sm:$0xff]
      %v2636 = vld [vmem:[#allocation2 + $0xc0] sm:$0xff]
      %v2637 = vld [vmem:[#allocation2 + $0xc8] sm:$0xff]
      %v2638 = vld [vmem:[#allocation2 + $0xd0] sm:$0xff]
      %v2639 = vld [vmem:[#allocation2 + $0xd8] sm:$0xff]
      %v2640 = vld [vmem:[#allocation2 + $0xe0] sm:$0xff]
      %v2641 = vld [vmem:[#allocation2 + $0xe8] sm:$0xff]
      %v2642 = vld [vmem:[#allocation2 + $0xf0] sm:$0xff]
      %v2643 = vld [vmem:[#allocation2 + $0xf8] sm:$0xff]
      %v2644 = vld [vmem:[#allocation2 + $0x100] sm:$0xff]
      %v2645 = vld [vmem:[#allocation2 + $0x108] sm:$0xff]
      %v2646 = vld [vmem:[#allocation2 + $0x110] sm:$0xff]
      %v2647 = vld [vmem:[#allocation2 + $0x118] sm:$0xff]
      %v2648 = vld [vmem:[#allocation2 + $0x120] sm:$0xff]
      %v2649 = vld [vmem:[#allocation2 + $0x128] sm:$0xff]
      %v2650 = vld [vmem:[#allocation2 + $0x130] sm:$0xff]
      %v2651 = vld [vmem:[#allocation2 + $0x138] sm:$0xff]
      %v2652 = vld [vmem:[#allocation2 + $0x140] sm:$0xff]
      %v2653 = vadd.f32 %v2612, %v2509
      %v2654 = vadd.f32 %v2613, %v2511
      %v2655 = vadd.f32 %v2614, %v2514
      %v2656 = vadd.f32 %v2615, %v2516
      %v2657 = vadd.f32 %v2616, %v2519
      %v2658 = vadd.f32 %v2617, %v2521
      %v2659 = vadd.f32 %v2618, %v2524
      %v2660 = vadd.f32 %v2619, %v2526
      %v2661 = vadd.f32 %v2620, %v2529
      %v2662 = vadd.f32 %v2621, %v2531
      %v2663 = vadd.f32 %v2622, %v2534
      %v2664 = vadd.f32 %v2623, %v2536
      %v2665 = vadd.f32 %v2624, %v2539
      %v2666 = vadd.f32 %v2625, %v2541
      %v2667 = vadd.f32 %v2626, %v2544
      %v2668 = vadd.f32 %v2627, %v2546
      %v2669 = vadd.f32 %v2628, %v2549
      %v2670 = vadd.f32 %v2629, %v2551
      %v2671 = vadd.f32 %v2630, %v2554
      %v2672 = vadd.f32 %v2631, %v2556
      %v2673 = vadd.f32 %v2632, %v2559
      %v2674 = vadd.f32 %v2633, %v2561
      %v2675 = vadd.f32 %v2634, %v2564
      %v2676 = vadd.f32 %v2635, %v2566
      %v2677 = vadd.f32 %v2636, %v2569
      %v2678 = vadd.f32 %v2637, %v2571
      %v2679 = vadd.f32 %v2638, %v2574
      %v2680 = vadd.f32 %v2639, %v2576
      %v2681 = vadd.f32 %v2640, %v2579
      %v2682 = vadd.f32 %v2641, %v2581
      %v2683 = vadd.f32 %v2642, %v2584
      %v2684 = vadd.f32 %v2643, %v2586
      %v2685 = vadd.f32 %v2644, %v2589
      %v2686 = vadd.f32 %v2645, %v2591
      %v2687 = vadd.f32 %v2646, %v2594
      %v2688 = vadd.f32 %v2647, %v2596
      %v2689 = vadd.f32 %v2648, %v2599
      %v2690 = vadd.f32 %v2649, %v2601
      %v2691 = vadd.f32 %v2650, %v2604
      %v2692 = vadd.f32 %v2651, %v2606
      %v2693 = vadd.f32 %v2652, %v2609
      %2694 = vst [vmem:[#allocation2] sm:$0xff] %v2653
      %2695 = vst [vmem:[#allocation2 + $0x8] sm:$0xff] %v2654
      %2696 = vst [vmem:[#allocation2 + $0x10] sm:$0xff] %v2655
      %2697 = vst [vmem:[#allocation2 + $0x18] sm:$0xff] %v2656
      %2698 = vst [vmem:[#allocation2 + $0x20] sm:$0xff] %v2657
      %2699 = vst [vmem:[#allocation2 + $0x28] sm:$0xff] %v2658
      %2700 = vst [vmem:[#allocation2 + $0x30] sm:$0xff] %v2659
      %2701 = vst [vmem:[#allocation2 + $0x38] sm:$0xff] %v2660
      %2702 = vst [vmem:[#allocation2 + $0x40] sm:$0xff] %v2661
      %2703 = vst [vmem:[#allocation2 + $0x48] sm:$0xff] %v2662
      %2704 = vst [vmem:[#allocation2 + $0x50] sm:$0xff] %v2663
      %2705 = vst [vmem:[#allocation2 + $0x58] sm:$0xff] %v2664
      %2706 = vst [vmem:[#allocation2 + $0x60] sm:$0xff] %v2665
      %2707 = vst [vmem:[#allocation2 + $0x68] sm:$0xff] %v2666
      %2708 = vst [vmem:[#allocation2 + $0x70] sm:$0xff] %v2667
      %2709 = vst [vmem:[#allocation2 + $0x78] sm:$0xff] %v2668
      %2710 = vst [vmem:[#allocation2 + $0x80] sm:$0xff] %v2669
      %2711 = vst [vmem:[#allocation2 + $0x88] sm:$0xff] %v2670
      %2712 = vst [vmem:[#allocation2 + $0x90] sm:$0xff] %v2671
      %2713 = vst [vmem:[#allocation2 + $0x98] sm:$0xff] %v2672
      %2714 = vst [vmem:[#allocation2 + $0xa0] sm:$0xff] %v2673
      %2715 = vst [vmem:[#allocation2 + $0xa8] sm:$0xff] %v2674
      %2716 = vst [vmem:[#allocation2 + $0xb0] sm:$0xff] %v2675
      %2717 = vst [vmem:[#allocation2 + $0xb8] sm:$0xff] %v2676
      %2718 = vst [vmem:[#allocation2 + $0xc0] sm:$0xff] %v2677
      %2719 = vst [vmem:[#allocation2 + $0xc8] sm:$0xff] %v2678
      %2720 = vst [vmem:[#allocation2 + $0xd0] sm:$0xff] %v2679
      %2721 = vst [vmem:[#allocation2 + $0xd8] sm:$0xff] %v2680
      %2722 = vst [vmem:[#allocation2 + $0xe0] sm:$0xff] %v2681
      %2723 = vst [vmem:[#allocation2 + $0xe8] sm:$0xff] %v2682
      %2724 = vst [vmem:[#allocation2 + $0xf0] sm:$0xff] %v2683
      %2725 = vst [vmem:[#allocation2 + $0xf8] sm:$0xff] %v2684
      %2726 = vst [vmem:[#allocation2 + $0x100] sm:$0xff] %v2685
      %2727 = vst [vmem:[#allocation2 + $0x108] sm:$0xff] %v2686
      %2728 = vst [vmem:[#allocation2 + $0x110] sm:$0xff] %v2687
      %2729 = vst [vmem:[#allocation2 + $0x118] sm:$0xff] %v2688
      %2730 = vst [vmem:[#allocation2 + $0x120] sm:$0xff] %v2689
      %2731 = vst [vmem:[#allocation2 + $0x128] sm:$0xff] %v2690
      %2732 = vst [vmem:[#allocation2 + $0x130] sm:$0xff] %v2691
      %2733 = vst [vmem:[#allocation2 + $0x138] sm:$0xff] %v2692
      %2734 = vst [vmem:[#allocation2 + $0x140] sm:$0xff] %v2693
      %v2735 = vld [vmem:[%s272 + $0x25] sm:$0xff]
      %v2736 = vld [vmem:[%s272 + $0x2d] sm:$0xff]
      %v2737 = vld [vmem:[%s272 + $0x35] sm:$0xff]
      %v2738 = vld [vmem:[%s272 + $0x3d] sm:$0xff]
      %v2739 = vld [vmem:[%s272 + $0x45] sm:$0xff]
      %v2740 = vld [vmem:[%s272 + $0x4d] sm:$0xff]
      %v2741 = vld [vmem:[%s272 + $0x55] sm:$0xff]
      %v2742 = vld [vmem:[%s272 + $0x5d] sm:$0xff]
      %v2743 = vld [vmem:[%s272 + $0x65] sm:$0xff]
      %v2744 = vld [vmem:[%s272 + $0x6d] sm:$0xff]
      %v2745 = vld [vmem:[%s272 + $0x75] sm:$0xff]
      %v2746 = vld [vmem:[%s272 + $0x7d] sm:$0xff]
      %v2747 = vld [vmem:[%s272 + $0x85] sm:$0xff]
      %v2748 = vld [vmem:[%s272 + $0x8d] sm:$0xff]
      %v2749 = vld [vmem:[%s272 + $0x95] sm:$0xff]
      %v2750 = vld [vmem:[%s272 + $0x9d] sm:$0xff]
      %v2751 = vld [vmem:[%s272 + $0xa5] sm:$0xff]
      %v2752 = vld [vmem:[%s272 + $0xad] sm:$0xff]
      %v2753 = vld [vmem:[%s272 + $0xb5] sm:$0xff]
      %v2754 = vld [vmem:[%s272 + $0xbd] sm:$0xff]
      %v2755 = vld [vmem:[%s272 + $0xc5] sm:$0xff]
      %v2756 = vld [vmem:[%s272 + $0xcd] sm:$0xff]
      %v2757 = vld [vmem:[%s272 + $0xd5] sm:$0xff]
      %v2758 = vld [vmem:[%s272 + $0xdd] sm:$0xff]
      %v2759 = vld [vmem:[%s272 + $0xe5] sm:$0xff]
      %v2760 = vld [vmem:[%s272 + $0xed] sm:$0xff]
      %v2761 = vld [vmem:[%s272 + $0xf5] sm:$0xff]
      %v2762 = vld [vmem:[%s272 + $0xfd] sm:$0xff]
      %v2763 = vld [vmem:[%s272 + $0x105] sm:$0xff]
      %v2764 = vld [vmem:[%s272 + $0x10d] sm:$0xff]
      %v2765 = vld [vmem:[%s272 + $0x115] sm:$0xff]
      %v2766 = vld [vmem:[%s272 + $0x11d] sm:$0xff]
      %v2767 = vld [vmem:[%s272 + $0x125] sm:$0xff]
      %v2768 = vld [vmem:[%s272 + $0x12d] sm:$0xff]
      %v2769 = vld [vmem:[%s272 + $0x135] sm:$0xff]
      %v2770 = vld [vmem:[%s272 + $0x13d] sm:$0xff]
      %v2771 = vld [vmem:[%s272 + $0x145] sm:$0xff]
      %v2772 = vld [vmem:[%s272 + $0x14d] sm:$0xff]
      %v2773 = vld [vmem:[%s272 + $0x155] sm:$0xff]
      %v2774 = vld [vmem:[%s272 + $0x15d] sm:$0xff]
      %v2775 = vld [vmem:[%s272 + $0x165] sm:$0xff]
      %v2776 = vpack.c.bf16 %v2736, %v2735
      %v2777 = vpack.c.bf16 %v2738, %v2737
      %v2778 = vpack.c.bf16 %v2740, %v2739
      %v2779 = vpack.c.bf16 %v2742, %v2741
      %v2780 = vpack.c.bf16 %v2744, %v2743
      %v2781 = vpack.c.bf16 %v2746, %v2745
      %v2782 = vpack.c.bf16 %v2748, %v2747
      %v2783 = vpack.c.bf16 %v2750, %v2749
      %v2784 = vpack.c.bf16 %v2752, %v2751
      %v2785 = vpack.c.bf16 %v2754, %v2753
      %v2786 = vpack.c.bf16 %v2756, %v2755
      %v2787 = vpack.c.bf16 %v2758, %v2757
      %v2788 = vpack.c.bf16 %v2760, %v2759
      %v2789 = vpack.c.bf16 %v2762, %v2761
      %v2790 = vpack.c.bf16 %v2764, %v2763
      %v2791 = vpack.c.bf16 %v2766, %v2765
      %v2792 = vpack.c.bf16 %v2768, %v2767
      %v2793 = vpack.c.bf16 %v2770, %v2769
      %v2794 = vpack.c.bf16 %v2772, %v2771
      %v2795 = vpack.c.bf16 %v2774, %v2773
      %v2796 = vpack.c.bf16 %v2775, %v2775
      %s2797 = scalar_lea.vmem %s1, 448
      %v2798 = vld [vmem:[%s2797] sm:$0xf]
      %v2799 = vld [vmem:[%s2797 + $0x4] sm:$0xf]
      %v2800 = vld [vmem:[%s2797 + $0x8] sm:$0xf]
      %v2801 = vld [vmem:[%s2797 + $0xc] sm:$0xf]
      %v2802 = vld [vmem:[%s2797 + $0x10] sm:$0xf]
      %v2803 = vld [vmem:[%s2797 + $0x14] sm:$0xf]
      %v2804 = vld [vmem:[%s2797 + $0x18] sm:$0xf]
      %v2805 = vld [vmem:[%s2797 + $0x1c] sm:$0xf]
      %v2806 = vld [vmem:[%s2797 + $0x20] sm:$0xf]
      %v2807 = vld [vmem:[%s2797 + $0x24] sm:$0xf]
      %v2808 = vld [vmem:[%s2797 + $0x28] sm:$0xf]
      %v2809 = vld [vmem:[%s2797 + $0x2c] sm:$0xf]
      %v2810 = vld [vmem:[%s2797 + $0x30] sm:$0xf]
      %v2811 = vld [vmem:[%s2797 + $0x34] sm:$0xf]
      %v2812 = vld [vmem:[%s2797 + $0x38] sm:$0xf]
      %v2813 = vld [vmem:[%s2797 + $0x3c] sm:$0xf]
      %v2830 = vunpack.c.l.b16 %v2798
      %v2831 = vunpack.c.l.b16 %v2799
      %v2832 = vunpack.c.l.b16 %v2800
      %v2833 = vunpack.c.l.b16 %v2801
      %v2834 = vunpack.c.l.b16 %v2802
      %v2835 = vunpack.c.l.b16 %v2803
      %v2836 = vunpack.c.l.b16 %v2804
      %v2837 = vunpack.c.l.b16 %v2805
      %v2838 = vunpack.c.l.b16 %v2806
      %v2839 = vunpack.c.l.b16 %v2807
      %v2840 = vunpack.c.l.b16 %v2808
      %v2841 = vunpack.c.l.b16 %v2809
      %v2842 = vunpack.c.l.b16 %v2810
      %v2843 = vunpack.c.l.b16 %v2811
      %v2844 = vunpack.c.l.b16 %v2812
      %v2845 = vunpack.c.l.b16 %v2813
      %v2846 = vpack.c.b16 %v2831, %v2830
      %v2847 = vpack.c.b16 %v2833, %v2832
      %v2848 = vpack.c.b16 %v2835, %v2834
      %v2849 = vpack.c.b16 %v2837, %v2836
      %v2850 = vpack.c.b16 %v2839, %v2838
      %v2851 = vpack.c.b16 %v2841, %v2840
      %v2852 = vpack.c.b16 %v2843, %v2842
      %v2853 = vpack.c.b16 %v2845, %v2844
      %2862 = vmatpush.bf16.msra.mxu0 %v2853
      %2863 = vmatpush.bf16.msra.mxu0 %v2852
      %2864 = vmatpush.bf16.msra.mxu0 %v2851
      %2865 = vmatpush.bf16.msra.mxu0 %v2850
      %2866 = vmatpush.bf16.msra.mxu0 %v2849
      %2867 = vmatpush.bf16.msra.mxu0 %v2848
      %2868 = vmatpush.bf16.msra.mxu0 %v2847
      %2869 = vmatpush.bf16.msra.mxu0 %v2846
      %2870 = vmatmul.bf16.gmra.mxu0 %v2776
      %v2871 = vpop.f32.mrf.mxu0
      %v2872 = vadd.f32 0.0, %v2871
      %v2873 = vpop.f32.mrf.mxu0
      %v2874 = vadd.f32 0.0, %v2873
      %2875 = vmatmul.bf16.gmra.mxu0 %v2777
      %v2876 = vpop.f32.mrf.mxu0
      %v2877 = vadd.f32 0.0, %v2876
      %v2878 = vpop.f32.mrf.mxu0
      %v2879 = vadd.f32 0.0, %v2878
      %2880 = vmatmul.bf16.gmra.mxu0 %v2778
      %v2881 = vpop.f32.mrf.mxu0
      %v2882 = vadd.f32 0.0, %v2881
      %v2883 = vpop.f32.mrf.mxu0
      %v2884 = vadd.f32 0.0, %v2883
      %2885 = vmatmul.bf16.gmra.mxu0 %v2779
      %v2886 = vpop.f32.mrf.mxu0
      %v2887 = vadd.f32 0.0, %v2886
      %v2888 = vpop.f32.mrf.mxu0
      %v2889 = vadd.f32 0.0, %v2888
      %2890 = vmatmul.bf16.gmra.mxu0 %v2780
      %v2891 = vpop.f32.mrf.mxu0
      %v2892 = vadd.f32 0.0, %v2891
      %v2893 = vpop.f32.mrf.mxu0
      %v2894 = vadd.f32 0.0, %v2893
      %2895 = vmatmul.bf16.gmra.mxu0 %v2781
      %v2896 = vpop.f32.mrf.mxu0
      %v2897 = vadd.f32 0.0, %v2896
      %v2898 = vpop.f32.mrf.mxu0
      %v2899 = vadd.f32 0.0, %v2898
      %2900 = vmatmul.bf16.gmra.mxu0 %v2782
      %v2901 = vpop.f32.mrf.mxu0
      %v2902 = vadd.f32 0.0, %v2901
      %v2903 = vpop.f32.mrf.mxu0
      %v2904 = vadd.f32 0.0, %v2903
      %2905 = vmatmul.bf16.gmra.mxu0 %v2783
      %v2906 = vpop.f32.mrf.mxu0
      %v2907 = vadd.f32 0.0, %v2906
      %v2908 = vpop.f32.mrf.mxu0
      %v2909 = vadd.f32 0.0, %v2908
      %2910 = vmatmul.bf16.gmra.mxu0 %v2784
      %v2911 = vpop.f32.mrf.mxu0
      %v2912 = vadd.f32 0.0, %v2911
      %v2913 = vpop.f32.mrf.mxu0
      %v2914 = vadd.f32 0.0, %v2913
      %2915 = vmatmul.bf16.gmra.mxu0 %v2785
      %v2916 = vpop.f32.mrf.mxu0
      %v2917 = vadd.f32 0.0, %v2916
      %v2918 = vpop.f32.mrf.mxu0
      %v2919 = vadd.f32 0.0, %v2918
      %2920 = vmatmul.bf16.gmra.mxu0 %v2786
      %v2921 = vpop.f32.mrf.mxu0
      %v2922 = vadd.f32 0.0, %v2921
      %v2923 = vpop.f32.mrf.mxu0
      %v2924 = vadd.f32 0.0, %v2923
      %2925 = vmatmul.bf16.gmra.mxu0 %v2787
      %v2926 = vpop.f32.mrf.mxu0
      %v2927 = vadd.f32 0.0, %v2926
      %v2928 = vpop.f32.mrf.mxu0
      %v2929 = vadd.f32 0.0, %v2928
      %2930 = vmatmul.bf16.gmra.mxu0 %v2788
      %v2931 = vpop.f32.mrf.mxu0
      %v2932 = vadd.f32 0.0, %v2931
      %v2933 = vpop.f32.mrf.mxu0
      %v2934 = vadd.f32 0.0, %v2933
      %2935 = vmatmul.bf16.gmra.mxu0 %v2789
      %v2936 = vpop.f32.mrf.mxu0
      %v2937 = vadd.f32 0.0, %v2936
      %v2938 = vpop.f32.mrf.mxu0
      %v2939 = vadd.f32 0.0, %v2938
      %2940 = vmatmul.bf16.gmra.mxu0 %v2790
      %v2941 = vpop.f32.mrf.mxu0
      %v2942 = vadd.f32 0.0, %v2941
      %v2943 = vpop.f32.mrf.mxu0
      %v2944 = vadd.f32 0.0, %v2943
      %2945 = vmatmul.bf16.gmra.mxu0 %v2791
      %v2946 = vpop.f32.mrf.mxu0
      %v2947 = vadd.f32 0.0, %v2946
      %v2948 = vpop.f32.mrf.mxu0
      %v2949 = vadd.f32 0.0, %v2948
      %2950 = vmatmul.bf16.gmra.mxu0 %v2792
      %v2951 = vpop.f32.mrf.mxu0
      %v2952 = vadd.f32 0.0, %v2951
      %v2953 = vpop.f32.mrf.mxu0
      %v2954 = vadd.f32 0.0, %v2953
      %2955 = vmatmul.bf16.gmra.mxu0 %v2793
      %v2956 = vpop.f32.mrf.mxu0
      %v2957 = vadd.f32 0.0, %v2956
      %v2958 = vpop.f32.mrf.mxu0
      %v2959 = vadd.f32 0.0, %v2958
      %2960 = vmatmul.bf16.gmra.mxu0 %v2794
      %v2961 = vpop.f32.mrf.mxu0
      %v2962 = vadd.f32 0.0, %v2961
      %v2963 = vpop.f32.mrf.mxu0
      %v2964 = vadd.f32 0.0, %v2963
      %2965 = vmatmul.bf16.gmra.mxu0 %v2795
      %v2966 = vpop.f32.mrf.mxu0
      %v2967 = vadd.f32 0.0, %v2966
      %v2968 = vpop.f32.mrf.mxu0
      %v2969 = vadd.f32 0.0, %v2968
      %2970 = vmatmul.bf16.gmra.mxu0 %v2796
      %v2971 = vpop.f32.mrf.mxu0
      %v2972 = vadd.f32 0.0, %v2971
      %v2973 = vpop.f32.mrf.mxu0
      %2974 = vdwg.mxu0
      %v2975 = vld [vmem:[#allocation2] sm:$0xff]
      %v2976 = vld [vmem:[#allocation2 + $0x8] sm:$0xff]
      %v2977 = vld [vmem:[#allocation2 + $0x10] sm:$0xff]
      %v2978 = vld [vmem:[#allocation2 + $0x18] sm:$0xff]
      %v2979 = vld [vmem:[#allocation2 + $0x20] sm:$0xff]
      %v2980 = vld [vmem:[#allocation2 + $0x28] sm:$0xff]
      %v2981 = vld [vmem:[#allocation2 + $0x30] sm:$0xff]
      %v2982 = vld [vmem:[#allocation2 + $0x38] sm:$0xff]
      %v2983 = vld [vmem:[#allocation2 + $0x40] sm:$0xff]
      %v2984 = vld [vmem:[#allocation2 + $0x48] sm:$0xff]
      %v2985 = vld [vmem:[#allocation2 + $0x50] sm:$0xff]
      %v2986 = vld [vmem:[#allocation2 + $0x58] sm:$0xff]
      %v2987 = vld [vmem:[#allocation2 + $0x60] sm:$0xff]
      %v2988 = vld [vmem:[#allocation2 + $0x68] sm:$0xff]
      %v2989 = vld [vmem:[#allocation2 + $0x70] sm:$0xff]
      %v2990 = vld [vmem:[#allocation2 + $0x78] sm:$0xff]
      %v2991 = vld [vmem:[#allocation2 + $0x80] sm:$0xff]
      %v2992 = vld [vmem:[#allocation2 + $0x88] sm:$0xff]
      %v2993 = vld [vmem:[#allocation2 + $0x90] sm:$0xff]
      %v2994 = vld [vmem:[#allocation2 + $0x98] sm:$0xff]
      %v2995 = vld [vmem:[#allocation2 + $0xa0] sm:$0xff]
      %v2996 = vld [vmem:[#allocation2 + $0xa8] sm:$0xff]
      %v2997 = vld [vmem:[#allocation2 + $0xb0] sm:$0xff]
      %v2998 = vld [vmem:[#allocation2 + $0xb8] sm:$0xff]
      %v2999 = vld [vmem:[#allocation2 + $0xc0] sm:$0xff]
      %v3000 = vld [vmem:[#allocation2 + $0xc8] sm:$0xff]
      %v3001 = vld [vmem:[#allocation2 + $0xd0] sm:$0xff]
      %v3002 = vld [vmem:[#allocation2 + $0xd8] sm:$0xff]
      %v3003 = vld [vmem:[#allocation2 + $0xe0] sm:$0xff]
      %v3004 = vld [vmem:[#allocation2 + $0xe8] sm:$0xff]
      %v3005 = vld [vmem:[#allocation2 + $0xf0] sm:$0xff]
      %v3006 = vld [vmem:[#allocation2 + $0xf8] sm:$0xff]
      %v3007 = vld [vmem:[#allocation2 + $0x100] sm:$0xff]
      %v3008 = vld [vmem:[#allocation2 + $0x108] sm:$0xff]
      %v3009 = vld [vmem:[#allocation2 + $0x110] sm:$0xff]
      %v3010 = vld [vmem:[#allocation2 + $0x118] sm:$0xff]
      %v3011 = vld [vmem:[#allocation2 + $0x120] sm:$0xff]
      %v3012 = vld [vmem:[#allocation2 + $0x128] sm:$0xff]
      %v3013 = vld [vmem:[#allocation2 + $0x130] sm:$0xff]
      %v3014 = vld [vmem:[#allocation2 + $0x138] sm:$0xff]
      %v3015 = vld [vmem:[#allocation2 + $0x140] sm:$0xff]
      %v3016 = vadd.f32 %v2975, %v2872
      %v3017 = vadd.f32 %v2976, %v2874
      %v3018 = vadd.f32 %v2977, %v2877
      %v3019 = vadd.f32 %v2978, %v2879
      %v3020 = vadd.f32 %v2979, %v2882
      %v3021 = vadd.f32 %v2980, %v2884
      %v3022 = vadd.f32 %v2981, %v2887
      %v3023 = vadd.f32 %v2982, %v2889
      %v3024 = vadd.f32 %v2983, %v2892
      %v3025 = vadd.f32 %v2984, %v2894
      %v3026 = vadd.f32 %v2985, %v2897
      %v3027 = vadd.f32 %v2986, %v2899
      %v3028 = vadd.f32 %v2987, %v2902
      %v3029 = vadd.f32 %v2988, %v2904
      %v3030 = vadd.f32 %v2989, %v2907
      %v3031 = vadd.f32 %v2990, %v2909
      %v3032 = vadd.f32 %v2991, %v2912
      %v3033 = vadd.f32 %v2992, %v2914
      %v3034 = vadd.f32 %v2993, %v2917
      %v3035 = vadd.f32 %v2994, %v2919
      %v3036 = vadd.f32 %v2995, %v2922
      %v3037 = vadd.f32 %v2996, %v2924
      %v3038 = vadd.f32 %v2997, %v2927
      %v3039 = vadd.f32 %v2998, %v2929
      %v3040 = vadd.f32 %v2999, %v2932
      %v3041 = vadd.f32 %v3000, %v2934
      %v3042 = vadd.f32 %v3001, %v2937
      %v3043 = vadd.f32 %v3002, %v2939
      %v3044 = vadd.f32 %v3003, %v2942
      %v3045 = vadd.f32 %v3004, %v2944
      %v3046 = vadd.f32 %v3005, %v2947
      %v3047 = vadd.f32 %v3006, %v2949
      %v3048 = vadd.f32 %v3007, %v2952
      %v3049 = vadd.f32 %v3008, %v2954
      %v3050 = vadd.f32 %v3009, %v2957
      %v3051 = vadd.f32 %v3010, %v2959
      %v3052 = vadd.f32 %v3011, %v2962
      %v3053 = vadd.f32 %v3012, %v2964
      %v3054 = vadd.f32 %v3013, %v2967
      %v3055 = vadd.f32 %v3014, %v2969
      %v3056 = vadd.f32 %v3015, %v2972
      %3057 = vst [vmem:[#allocation2] sm:$0xff] %v3016
      %3058 = vst [vmem:[#allocation2 + $0x8] sm:$0xff] %v3017
      %3059 = vst [vmem:[#allocation2 + $0x10] sm:$0xff] %v3018
      %3060 = vst [vmem:[#allocation2 + $0x18] sm:$0xff] %v3019
      %3061 = vst [vmem:[#allocation2 + $0x20] sm:$0xff] %v3020
      %3062 = vst [vmem:[#allocation2 + $0x28] sm:$0xff] %v3021
      %3063 = vst [vmem:[#allocation2 + $0x30] sm:$0xff] %v3022
      %3064 = vst [vmem:[#allocation2 + $0x38] sm:$0xff] %v3023
      %3065 = vst [vmem:[#allocation2 + $0x40] sm:$0xff] %v3024
      %3066 = vst [vmem:[#allocation2 + $0x48] sm:$0xff] %v3025
      %3067 = vst [vmem:[#allocation2 + $0x50] sm:$0xff] %v3026
      %3068 = vst [vmem:[#allocation2 + $0x58] sm:$0xff] %v3027
      %3069 = vst [vmem:[#allocation2 + $0x60] sm:$0xff] %v3028
      %3070 = vst [vmem:[#allocation2 + $0x68] sm:$0xff] %v3029
      %3071 = vst [vmem:[#allocation2 + $0x70] sm:$0xff] %v3030
      %3072 = vst [vmem:[#allocation2 + $0x78] sm:$0xff] %v3031
      %3073 = vst [vmem:[#allocation2 + $0x80] sm:$0xff] %v3032
      %3074 = vst [vmem:[#allocation2 + $0x88] sm:$0xff] %v3033
      %3075 = vst [vmem:[#allocation2 + $0x90] sm:$0xff] %v3034
      %3076 = vst [vmem:[#allocation2 + $0x98] sm:$0xff] %v3035
      %3077 = vst [vmem:[#allocation2 + $0xa0] sm:$0xff] %v3036
      %3078 = vst [vmem:[#allocation2 + $0xa8] sm:$0xff] %v3037
      %3079 = vst [vmem:[#allocation2 + $0xb0] sm:$0xff] %v3038
      %3080 = vst [vmem:[#allocation2 + $0xb8] sm:$0xff] %v3039
      %3081 = vst [vmem:[#allocation2 + $0xc0] sm:$0xff] %v3040
      %3082 = vst [vmem:[#allocation2 + $0xc8] sm:$0xff] %v3041
      %3083 = vst [vmem:[#allocation2 + $0xd0] sm:$0xff] %v3042
      %3084 = vst [vmem:[#allocation2 + $0xd8] sm:$0xff] %v3043
      %3085 = vst [vmem:[#allocation2 + $0xe0] sm:$0xff] %v3044
      %3086 = vst [vmem:[#allocation2 + $0xe8] sm:$0xff] %v3045
      %3087 = vst [vmem:[#allocation2 + $0xf0] sm:$0xff] %v3046
      %3088 = vst [vmem:[#allocation2 + $0xf8] sm:$0xff] %v3047
      %3089 = vst [vmem:[#allocation2 + $0x100] sm:$0xff] %v3048
      %3090 = vst [vmem:[#allocation2 + $0x108] sm:$0xff] %v3049
      %3091 = vst [vmem:[#allocation2 + $0x110] sm:$0xff] %v3050
      %3092 = vst [vmem:[#allocation2 + $0x118] sm:$0xff] %v3051
      %3093 = vst [vmem:[#allocation2 + $0x120] sm:$0xff] %v3052
      %3094 = vst [vmem:[#allocation2 + $0x128] sm:$0xff] %v3053
      %3095 = vst [vmem:[#allocation2 + $0x130] sm:$0xff] %v3054
      %3096 = vst [vmem:[#allocation2 + $0x138] sm:$0xff] %v3055
      %3097 = vst [vmem:[#allocation2 + $0x140] sm:$0xff] %v3056
      %v3098 = vld [vmem:[%s272 + $0x26] sm:$0xff]
      %v3099 = vld [vmem:[%s272 + $0x2e] sm:$0xff]
      %v3100 = vld [vmem:[%s272 + $0x36] sm:$0xff]
      %v3101 = vld [vmem:[%s272 + $0x3e] sm:$0xff]
      %v3102 = vld [vmem:[%s272 + $0x46] sm:$0xff]
      %v3103 = vld [vmem:[%s272 + $0x4e] sm:$0xff]
      %v3104 = vld [vmem:[%s272 + $0x56] sm:$0xff]
      %v3105 = vld [vmem:[%s272 + $0x5e] sm:$0xff]
      %v3106 = vld [vmem:[%s272 + $0x66] sm:$0xff]
      %v3107 = vld [vmem:[%s272 + $0x6e] sm:$0xff]
      %v3108 = vld [vmem:[%s272 + $0x76] sm:$0xff]
      %v3109 = vld [vmem:[%s272 + $0x7e] sm:$0xff]
      %v3110 = vld [vmem:[%s272 + $0x86] sm:$0xff]
      %v3111 = vld [vmem:[%s272 + $0x8e] sm:$0xff]
      %v3112 = vld [vmem:[%s272 + $0x96] sm:$0xff]
      %v3113 = vld [vmem:[%s272 + $0x9e] sm:$0xff]
      %v3114 = vld [vmem:[%s272 + $0xa6] sm:$0xff]
      %v3115 = vld [vmem:[%s272 + $0xae] sm:$0xff]
      %v3116 = vld [vmem:[%s272 + $0xb6] sm:$0xff]
      %v3117 = vld [vmem:[%s272 + $0xbe] sm:$0xff]
      %v3118 = vld [vmem:[%s272 + $0xc6] sm:$0xff]
      %v3119 = vld [vmem:[%s272 + $0xce] sm:$0xff]
      %v3120 = vld [vmem:[%s272 + $0xd6] sm:$0xff]
      %v3121 = vld [vmem:[%s272 + $0xde] sm:$0xff]
      %v3122 = vld [vmem:[%s272 + $0xe6] sm:$0xff]
      %v3123 = vld [vmem:[%s272 + $0xee] sm:$0xff]
      %v3124 = vld [vmem:[%s272 + $0xf6] sm:$0xff]
      %v3125 = vld [vmem:[%s272 + $0xfe] sm:$0xff]
      %v3126 = vld [vmem:[%s272 + $0x106] sm:$0xff]
      %v3127 = vld [vmem:[%s272 + $0x10e] sm:$0xff]
      %v3128 = vld [vmem:[%s272 + $0x116] sm:$0xff]
      %v3129 = vld [vmem:[%s272 + $0x11e] sm:$0xff]
      %v3130 = vld [vmem:[%s272 + $0x126] sm:$0xff]
      %v3131 = vld [vmem:[%s272 + $0x12e] sm:$0xff]
      %v3132 = vld [vmem:[%s272 + $0x136] sm:$0xff]
      %v3133 = vld [vmem:[%s272 + $0x13e] sm:$0xff]
      %v3134 = vld [vmem:[%s272 + $0x146] sm:$0xff]
      %v3135 = vld [vmem:[%s272 + $0x14e] sm:$0xff]
      %v3136 = vld [vmem:[%s272 + $0x156] sm:$0xff]
      %v3137 = vld [vmem:[%s272 + $0x15e] sm:$0xff]
      %v3138 = vld [vmem:[%s272 + $0x166] sm:$0xff]
      %v3139 = vpack.c.bf16 %v3099, %v3098
      %v3140 = vpack.c.bf16 %v3101, %v3100
      %v3141 = vpack.c.bf16 %v3103, %v3102
      %v3142 = vpack.c.bf16 %v3105, %v3104
      %v3143 = vpack.c.bf16 %v3107, %v3106
      %v3144 = vpack.c.bf16 %v3109, %v3108
      %v3145 = vpack.c.bf16 %v3111, %v3110
      %v3146 = vpack.c.bf16 %v3113, %v3112
      %v3147 = vpack.c.bf16 %v3115, %v3114
      %v3148 = vpack.c.bf16 %v3117, %v3116
      %v3149 = vpack.c.bf16 %v3119, %v3118
      %v3150 = vpack.c.bf16 %v3121, %v3120
      %v3151 = vpack.c.bf16 %v3123, %v3122
      %v3152 = vpack.c.bf16 %v3125, %v3124
      %v3153 = vpack.c.bf16 %v3127, %v3126
      %v3154 = vpack.c.bf16 %v3129, %v3128
      %v3155 = vpack.c.bf16 %v3131, %v3130
      %v3156 = vpack.c.bf16 %v3133, %v3132
      %v3157 = vpack.c.bf16 %v3135, %v3134
      %v3158 = vpack.c.bf16 %v3137, %v3136
      %v3159 = vpack.c.bf16 %v3138, %v3138
      %s3160 = scalar_lea.vmem %s1, 512
      %v3161 = vld [vmem:[%s3160] sm:$0xf]
      %v3162 = vld [vmem:[%s3160 + $0x4] sm:$0xf]
      %v3163 = vld [vmem:[%s3160 + $0x8] sm:$0xf]
      %v3164 = vld [vmem:[%s3160 + $0xc] sm:$0xf]
      %v3165 = vld [vmem:[%s3160 + $0x10] sm:$0xf]
      %v3166 = vld [vmem:[%s3160 + $0x14] sm:$0xf]
      %v3167 = vld [vmem:[%s3160 + $0x18] sm:$0xf]
      %v3168 = vld [vmem:[%s3160 + $0x1c] sm:$0xf]
      %v3169 = vld [vmem:[%s3160 + $0x20] sm:$0xf]
      %v3170 = vld [vmem:[%s3160 + $0x24] sm:$0xf]
      %v3171 = vld [vmem:[%s3160 + $0x28] sm:$0xf]
      %v3172 = vld [vmem:[%s3160 + $0x2c] sm:$0xf]
      %v3173 = vld [vmem:[%s3160 + $0x30] sm:$0xf]
      %v3174 = vld [vmem:[%s3160 + $0x34] sm:$0xf]
      %v3175 = vld [vmem:[%s3160 + $0x38] sm:$0xf]
      %v3176 = vld [vmem:[%s3160 + $0x3c] sm:$0xf]
      %v3193 = vunpack.c.l.b16 %v3161
      %v3194 = vunpack.c.l.b16 %v3162
      %v3195 = vunpack.c.l.b16 %v3163
      %v3196 = vunpack.c.l.b16 %v3164
      %v3197 = vunpack.c.l.b16 %v3165
      %v3198 = vunpack.c.l.b16 %v3166
      %v3199 = vunpack.c.l.b16 %v3167
      %v3200 = vunpack.c.l.b16 %v3168
      %v3201 = vunpack.c.l.b16 %v3169
      %v3202 = vunpack.c.l.b16 %v3170
      %v3203 = vunpack.c.l.b16 %v3171
      %v3204 = vunpack.c.l.b16 %v3172
      %v3205 = vunpack.c.l.b16 %v3173
      %v3206 = vunpack.c.l.b16 %v3174
      %v3207 = vunpack.c.l.b16 %v3175
      %v3208 = vunpack.c.l.b16 %v3176
      %v3209 = vpack.c.b16 %v3194, %v3193
      %v3210 = vpack.c.b16 %v3196, %v3195
      %v3211 = vpack.c.b16 %v3198, %v3197
      %v3212 = vpack.c.b16 %v3200, %v3199
      %v3213 = vpack.c.b16 %v3202, %v3201
      %v3214 = vpack.c.b16 %v3204, %v3203
      %v3215 = vpack.c.b16 %v3206, %v3205
      %v3216 = vpack.c.b16 %v3208, %v3207
      %3225 = vmatpush.bf16.msra.mxu0 %v3216
      %3226 = vmatpush.bf16.msra.mxu0 %v3215
      %3227 = vmatpush.bf16.msra.mxu0 %v3214
      %3228 = vmatpush.bf16.msra.mxu0 %v3213
      %3229 = vmatpush.bf16.msra.mxu0 %v3212
      %3230 = vmatpush.bf16.msra.mxu0 %v3211
      %3231 = vmatpush.bf16.msra.mxu0 %v3210
      %3232 = vmatpush.bf16.msra.mxu0 %v3209
      %3233 = vmatmul.bf16.gmra.mxu0 %v3139
      %v3234 = vpop.f32.mrf.mxu0
      %v3235 = vadd.f32 0.0, %v3234
      %v3236 = vpop.f32.mrf.mxu0
      %v3237 = vadd.f32 0.0, %v3236
      %3238 = vmatmul.bf16.gmra.mxu0 %v3140
      %v3239 = vpop.f32.mrf.mxu0
      %v3240 = vadd.f32 0.0, %v3239
      %v3241 = vpop.f32.mrf.mxu0
      %v3242 = vadd.f32 0.0, %v3241
      %3243 = vmatmul.bf16.gmra.mxu0 %v3141
      %v3244 = vpop.f32.mrf.mxu0
      %v3245 = vadd.f32 0.0, %v3244
      %v3246 = vpop.f32.mrf.mxu0
      %v3247 = vadd.f32 0.0, %v3246
      %3248 = vmatmul.bf16.gmra.mxu0 %v3142
      %v3249 = vpop.f32.mrf.mxu0
      %v3250 = vadd.f32 0.0, %v3249
      %v3251 = vpop.f32.mrf.mxu0
      %v3252 = vadd.f32 0.0, %v3251
      %3253 = vmatmul.bf16.gmra.mxu0 %v3143
      %v3254 = vpop.f32.mrf.mxu0
      %v3255 = vadd.f32 0.0, %v3254
      %v3256 = vpop.f32.mrf.mxu0
      %v3257 = vadd.f32 0.0, %v3256
      %3258 = vmatmul.bf16.gmra.mxu0 %v3144
      %v3259 = vpop.f32.mrf.mxu0
      %v3260 = vadd.f32 0.0, %v3259
      %v3261 = vpop.f32.mrf.mxu0
      %v3262 = vadd.f32 0.0, %v3261
      %3263 = vmatmul.bf16.gmra.mxu0 %v3145
      %v3264 = vpop.f32.mrf.mxu0
      %v3265 = vadd.f32 0.0, %v3264
      %v3266 = vpop.f32.mrf.mxu0
      %v3267 = vadd.f32 0.0, %v3266
      %3268 = vmatmul.bf16.gmra.mxu0 %v3146
      %v3269 = vpop.f32.mrf.mxu0
      %v3270 = vadd.f32 0.0, %v3269
      %v3271 = vpop.f32.mrf.mxu0
      %v3272 = vadd.f32 0.0, %v3271
      %3273 = vmatmul.bf16.gmra.mxu0 %v3147
      %v3274 = vpop.f32.mrf.mxu0
      %v3275 = vadd.f32 0.0, %v3274
      %v3276 = vpop.f32.mrf.mxu0
      %v3277 = vadd.f32 0.0, %v3276
      %3278 = vmatmul.bf16.gmra.mxu0 %v3148
      %v3279 = vpop.f32.mrf.mxu0
      %v3280 = vadd.f32 0.0, %v3279
      %v3281 = vpop.f32.mrf.mxu0
      %v3282 = vadd.f32 0.0, %v3281
      %3283 = vmatmul.bf16.gmra.mxu0 %v3149
      %v3284 = vpop.f32.mrf.mxu0
      %v3285 = vadd.f32 0.0, %v3284
      %v3286 = vpop.f32.mrf.mxu0
      %v3287 = vadd.f32 0.0, %v3286
      %3288 = vmatmul.bf16.gmra.mxu0 %v3150
      %v3289 = vpop.f32.mrf.mxu0
      %v3290 = vadd.f32 0.0, %v3289
      %v3291 = vpop.f32.mrf.mxu0
      %v3292 = vadd.f32 0.0, %v3291
      %3293 = vmatmul.bf16.gmra.mxu0 %v3151
      %v3294 = vpop.f32.mrf.mxu0
      %v3295 = vadd.f32 0.0, %v3294
      %v3296 = vpop.f32.mrf.mxu0
      %v3297 = vadd.f32 0.0, %v3296
      %3298 = vmatmul.bf16.gmra.mxu0 %v3152
      %v3299 = vpop.f32.mrf.mxu0
      %v3300 = vadd.f32 0.0, %v3299
      %v3301 = vpop.f32.mrf.mxu0
      %v3302 = vadd.f32 0.0, %v3301
      %3303 = vmatmul.bf16.gmra.mxu0 %v3153
      %v3304 = vpop.f32.mrf.mxu0
      %v3305 = vadd.f32 0.0, %v3304
      %v3306 = vpop.f32.mrf.mxu0
      %v3307 = vadd.f32 0.0, %v3306
      %3308 = vmatmul.bf16.gmra.mxu0 %v3154
      %v3309 = vpop.f32.mrf.mxu0
      %v3310 = vadd.f32 0.0, %v3309
      %v3311 = vpop.f32.mrf.mxu0
      %v3312 = vadd.f32 0.0, %v3311
      %3313 = vmatmul.bf16.gmra.mxu0 %v3155
      %v3314 = vpop.f32.mrf.mxu0
      %v3315 = vadd.f32 0.0, %v3314
      %v3316 = vpop.f32.mrf.mxu0
      %v3317 = vadd.f32 0.0, %v3316
      %3318 = vmatmul.bf16.gmra.mxu0 %v3156
      %v3319 = vpop.f32.mrf.mxu0
      %v3320 = vadd.f32 0.0, %v3319
      %v3321 = vpop.f32.mrf.mxu0
      %v3322 = vadd.f32 0.0, %v3321
      %3323 = vmatmul.bf16.gmra.mxu0 %v3157
      %v3324 = vpop.f32.mrf.mxu0
      %v3325 = vadd.f32 0.0, %v3324
      %v3326 = vpop.f32.mrf.mxu0
      %v3327 = vadd.f32 0.0, %v3326
      %3328 = vmatmul.bf16.gmra.mxu0 %v3158
      %v3329 = vpop.f32.mrf.mxu0
      %v3330 = vadd.f32 0.0, %v3329
      %v3331 = vpop.f32.mrf.mxu0
      %v3332 = vadd.f32 0.0, %v3331
      %3333 = vmatmul.bf16.gmra.mxu0 %v3159
      %v3334 = vpop.f32.mrf.mxu0
      %v3335 = vadd.f32 0.0, %v3334
      %v3336 = vpop.f32.mrf.mxu0
      %3337 = vdwg.mxu0
      %v3338 = vld [vmem:[#allocation2] sm:$0xff]
      %v3339 = vld [vmem:[#allocation2 + $0x8] sm:$0xff]
      %v3340 = vld [vmem:[#allocation2 + $0x10] sm:$0xff]
      %v3341 = vld [vmem:[#allocation2 + $0x18] sm:$0xff]
      %v3342 = vld [vmem:[#allocation2 + $0x20] sm:$0xff]
      %v3343 = vld [vmem:[#allocation2 + $0x28] sm:$0xff]
      %v3344 = vld [vmem:[#allocation2 + $0x30] sm:$0xff]
      %v3345 = vld [vmem:[#allocation2 + $0x38] sm:$0xff]
      %v3346 = vld [vmem:[#allocation2 + $0x40] sm:$0xff]
      %v3347 = vld [vmem:[#allocation2 + $0x48] sm:$0xff]
      %v3348 = vld [vmem:[#allocation2 + $0x50] sm:$0xff]
      %v3349 = vld [vmem:[#allocation2 + $0x58] sm:$0xff]
      %v3350 = vld [vmem:[#allocation2 + $0x60] sm:$0xff]
      %v3351 = vld [vmem:[#allocation2 + $0x68] sm:$0xff]
      %v3352 = vld [vmem:[#allocation2 + $0x70] sm:$0xff]
      %v3353 = vld [vmem:[#allocation2 + $0x78] sm:$0xff]
      %v3354 = vld [vmem:[#allocation2 + $0x80] sm:$0xff]
      %v3355 = vld [vmem:[#allocation2 + $0x88] sm:$0xff]
      %v3356 = vld [vmem:[#allocation2 + $0x90] sm:$0xff]
      %v3357 = vld [vmem:[#allocation2 + $0x98] sm:$0xff]
      %v3358 = vld [vmem:[#allocation2 + $0xa0] sm:$0xff]
      %v3359 = vld [vmem:[#allocation2 + $0xa8] sm:$0xff]
      %v3360 = vld [vmem:[#allocation2 + $0xb0] sm:$0xff]
      %v3361 = vld [vmem:[#allocation2 + $0xb8] sm:$0xff]
      %v3362 = vld [vmem:[#allocation2 + $0xc0] sm:$0xff]
      %v3363 = vld [vmem:[#allocation2 + $0xc8] sm:$0xff]
      %v3364 = vld [vmem:[#allocation2 + $0xd0] sm:$0xff]
      %v3365 = vld [vmem:[#allocation2 + $0xd8] sm:$0xff]
      %v3366 = vld [vmem:[#allocation2 + $0xe0] sm:$0xff]
      %v3367 = vld [vmem:[#allocation2 + $0xe8] sm:$0xff]
      %v3368 = vld [vmem:[#allocation2 + $0xf0] sm:$0xff]
      %v3369 = vld [vmem:[#allocation2 + $0xf8] sm:$0xff]
      %v3370 = vld [vmem:[#allocation2 + $0x100] sm:$0xff]
      %v3371 = vld [vmem:[#allocation2 + $0x108] sm:$0xff]
      %v3372 = vld [vmem:[#allocation2 + $0x110] sm:$0xff]
      %v3373 = vld [vmem:[#allocation2 + $0x118] sm:$0xff]
      %v3374 = vld [vmem:[#allocation2 + $0x120] sm:$0xff]
      %v3375 = vld [vmem:[#allocation2 + $0x128] sm:$0xff]
      %v3376 = vld [vmem:[#allocation2 + $0x130] sm:$0xff]
      %v3377 = vld [vmem:[#allocation2 + $0x138] sm:$0xff]
      %v3378 = vld [vmem:[#allocation2 + $0x140] sm:$0xff]
      %v3379 = vadd.f32 %v3338, %v3235
      %v3380 = vadd.f32 %v3339, %v3237
      %v3381 = vadd.f32 %v3340, %v3240
      %v3382 = vadd.f32 %v3341, %v3242
      %v3383 = vadd.f32 %v3342, %v3245
      %v3384 = vadd.f32 %v3343, %v3247
      %v3385 = vadd.f32 %v3344, %v3250
      %v3386 = vadd.f32 %v3345, %v3252
      %v3387 = vadd.f32 %v3346, %v3255
      %v3388 = vadd.f32 %v3347, %v3257
      %v3389 = vadd.f32 %v3348, %v3260
      %v3390 = vadd.f32 %v3349, %v3262
      %v3391 = vadd.f32 %v3350, %v3265
      %v3392 = vadd.f32 %v3351, %v3267
      %v3393 = vadd.f32 %v3352, %v3270
      %v3394 = vadd.f32 %v3353, %v3272
      %v3395 = vadd.f32 %v3354, %v3275
      %v3396 = vadd.f32 %v3355, %v3277
      %v3397 = vadd.f32 %v3356, %v3280
      %v3398 = vadd.f32 %v3357, %v3282
      %v3399 = vadd.f32 %v3358, %v3285
      %v3400 = vadd.f32 %v3359, %v3287
      %v3401 = vadd.f32 %v3360, %v3290
      %v3402 = vadd.f32 %v3361, %v3292
      %v3403 = vadd.f32 %v3362, %v3295
      %v3404 = vadd.f32 %v3363, %v3297
      %v3405 = vadd.f32 %v3364, %v3300
      %v3406 = vadd.f32 %v3365, %v3302
      %v3407 = vadd.f32 %v3366, %v3305
      %v3408 = vadd.f32 %v3367, %v3307
      %v3409 = vadd.f32 %v3368, %v3310
      %v3410 = vadd.f32 %v3369, %v3312
      %v3411 = vadd.f32 %v3370, %v3315
      %v3412 = vadd.f32 %v3371, %v3317
      %v3413 = vadd.f32 %v3372, %v3320
      %v3414 = vadd.f32 %v3373, %v3322
      %v3415 = vadd.f32 %v3374, %v3325
      %v3416 = vadd.f32 %v3375, %v3327
      %v3417 = vadd.f32 %v3376, %v3330
      %v3418 = vadd.f32 %v3377, %v3332
      %v3419 = vadd.f32 %v3378, %v3335
      %3420 = vst [vmem:[#allocation2] sm:$0xff] %v3379
      %3421 = vst [vmem:[#allocation2 + $0x8] sm:$0xff] %v3380
      %3422 = vst [vmem:[#allocation2 + $0x10] sm:$0xff] %v3381
      %3423 = vst [vmem:[#allocation2 + $0x18] sm:$0xff] %v3382
      %3424 = vst [vmem:[#allocation2 + $0x20] sm:$0xff] %v3383
      %3425 = vst [vmem:[#allocation2 + $0x28] sm:$0xff] %v3384
      %3426 = vst [vmem:[#allocation2 + $0x30] sm:$0xff] %v3385
      %3427 = vst [vmem:[#allocation2 + $0x38] sm:$0xff] %v3386
      %3428 = vst [vmem:[#allocation2 + $0x40] sm:$0xff] %v3387
      %3429 = vst [vmem:[#allocation2 + $0x48] sm:$0xff] %v3388
      %3430 = vst [vmem:[#allocation2 + $0x50] sm:$0xff] %v3389
      %3431 = vst [vmem:[#allocation2 + $0x58] sm:$0xff] %v3390
      %3432 = vst [vmem:[#allocation2 + $0x60] sm:$0xff] %v3391
      %3433 = vst [vmem:[#allocation2 + $0x68] sm:$0xff] %v3392
      %3434 = vst [vmem:[#allocation2 + $0x70] sm:$0xff] %v3393
      %3435 = vst [vmem:[#allocation2 + $0x78] sm:$0xff] %v3394
      %3436 = vst [vmem:[#allocation2 + $0x80] sm:$0xff] %v3395
      %3437 = vst [vmem:[#allocation2 + $0x88] sm:$0xff] %v3396
      %3438 = vst [vmem:[#allocation2 + $0x90] sm:$0xff] %v3397
      %3439 = vst [vmem:[#allocation2 + $0x98] sm:$0xff] %v3398
      %3440 = vst [vmem:[#allocation2 + $0xa0] sm:$0xff] %v3399
      %3441 = vst [vmem:[#allocation2 + $0xa8] sm:$0xff] %v3400
      %3442 = vst [vmem:[#allocation2 + $0xb0] sm:$0xff] %v3401
      %3443 = vst [vmem:[#allocation2 + $0xb8] sm:$0xff] %v3402
      %3444 = vst [vmem:[#allocation2 + $0xc0] sm:$0xff] %v3403
      %3445 = vst [vmem:[#allocation2 + $0xc8] sm:$0xff] %v3404
      %3446 = vst [vmem:[#allocation2 + $0xd0] sm:$0xff] %v3405
      %3447 = vst [vmem:[#allocation2 + $0xd8] sm:$0xff] %v3406
      %3448 = vst [vmem:[#allocation2 + $0xe0] sm:$0xff] %v3407
      %3449 = vst [vmem:[#allocation2 + $0xe8] sm:$0xff] %v3408
      %3450 = vst [vmem:[#allocation2 + $0xf0] sm:$0xff] %v3409
      %3451 = vst [vmem:[#allocation2 + $0xf8] sm:$0xff] %v3410
      %3452 = vst [vmem:[#allocation2 + $0x100] sm:$0xff] %v3411
      %3453 = vst [vmem:[#allocation2 + $0x108] sm:$0xff] %v3412
      %3454 = vst [vmem:[#allocation2 + $0x110] sm:$0xff] %v3413
      %3455 = vst [vmem:[#allocation2 + $0x118] sm:$0xff] %v3414
      %3456 = vst [vmem:[#allocation2 + $0x120] sm:$0xff] %v3415
      %3457 = vst [vmem:[#allocation2 + $0x128] sm:$0xff] %v3416
      %3458 = vst [vmem:[#allocation2 + $0x130] sm:$0xff] %v3417
      %3459 = vst [vmem:[#allocation2 + $0x138] sm:$0xff] %v3418
      %3460 = vst [vmem:[#allocation2 + $0x140] sm:$0xff] %v3419
      %v3461 = vld [vmem:[#allocation2] sm:$0xff]
      %v3462 = vld [vmem:[#allocation2 + $0x8] sm:$0xff]
      %v3463 = vld [vmem:[#allocation2 + $0x10] sm:$0xff]
      %v3464 = vld [vmem:[#allocation2 + $0x18] sm:$0xff]
      %v3465 = vld [vmem:[#allocation2 + $0x20] sm:$0xff]
      %v3466 = vld [vmem:[#allocation2 + $0x28] sm:$0xff]
      %v3467 = vld [vmem:[#allocation2 + $0x30] sm:$0xff]
      %v3468 = vld [vmem:[#allocation2 + $0x38] sm:$0xff]
      %v3469 = vld [vmem:[#allocation2 + $0x40] sm:$0xff]
      %v3470 = vld [vmem:[#allocation2 + $0x48] sm:$0xff]
      %v3471 = vld [vmem:[#allocation2 + $0x50] sm:$0xff]
      %v3472 = vld [vmem:[#allocation2 + $0x58] sm:$0xff]
      %v3473 = vld [vmem:[#allocation2 + $0x60] sm:$0xff]
      %v3474 = vld [vmem:[#allocation2 + $0x68] sm:$0xff]
      %v3475 = vld [vmem:[#allocation2 + $0x70] sm:$0xff]
      %v3476 = vld [vmem:[#allocation2 + $0x78] sm:$0xff]
      %v3477 = vld [vmem:[#allocation2 + $0x80] sm:$0xff]
      %v3478 = vld [vmem:[#allocation2 + $0x88] sm:$0xff]
      %v3479 = vld [vmem:[#allocation2 + $0x90] sm:$0xff]
      %v3480 = vld [vmem:[#allocation2 + $0x98] sm:$0xff]
      %v3481 = vld [vmem:[#allocation2 + $0xa0] sm:$0xff]
      %v3482 = vld [vmem:[#allocation2 + $0xa8] sm:$0xff]
      %v3483 = vld [vmem:[#allocation2 + $0xb0] sm:$0xff]
      %v3484 = vld [vmem:[#allocation2 + $0xb8] sm:$0xff]
      %v3485 = vld [vmem:[#allocation2 + $0xc0] sm:$0xff]
      %v3486 = vld [vmem:[#allocation2 + $0xc8] sm:$0xff]
      %v3487 = vld [vmem:[#allocation2 + $0xd0] sm:$0xff]
      %v3488 = vld [vmem:[#allocation2 + $0xd8] sm:$0xff]
      %v3489 = vld [vmem:[#allocation2 + $0xe0] sm:$0xff]
      %v3490 = vld [vmem:[#allocation2 + $0xe8] sm:$0xff]
      %v3491 = vld [vmem:[#allocation2 + $0xf0] sm:$0xff]
      %v3492 = vld [vmem:[#allocation2 + $0xf8] sm:$0xff]
      %v3493 = vld [vmem:[#allocation2 + $0x100] sm:$0xff]
      %v3494 = vld [vmem:[#allocation2 + $0x108] sm:$0xff]
      %v3495 = vld [vmem:[#allocation2 + $0x110] sm:$0xff]
      %v3496 = vld [vmem:[#allocation2 + $0x118] sm:$0xff]
      %v3497 = vld [vmem:[#allocation2 + $0x120] sm:$0xff]
      %v3498 = vld [vmem:[#allocation2 + $0x128] sm:$0xff]
      %v3499 = vld [vmem:[#allocation2 + $0x130] sm:$0xff]
      %v3500 = vld [vmem:[#allocation2 + $0x138] sm:$0xff]
      %v3501 = vld [vmem:[#allocation2 + $0x140] sm:$0xff]
      %v3502 = vld [vmem:[%s2] sm:$0x1]
      %v3504 = vperm.slane %v3502, 0
      %v3506 = vadd.f32 %v3461, %v3504
      %v3507 = vadd.f32 %v3462, %v3504
      %v3508 = vadd.f32 %v3463, %v3504
      %v3509 = vadd.f32 %v3464, %v3504
      %v3510 = vadd.f32 %v3465, %v3504
      %v3511 = vadd.f32 %v3466, %v3504
      %v3512 = vadd.f32 %v3467, %v3504
      %v3513 = vadd.f32 %v3468, %v3504
      %v3514 = vadd.f32 %v3469, %v3504
      %v3515 = vadd.f32 %v3470, %v3504
      %v3516 = vadd.f32 %v3471, %v3504
      %v3517 = vadd.f32 %v3472, %v3504
      %v3518 = vadd.f32 %v3473, %v3504
      %v3519 = vadd.f32 %v3474, %v3504
      %v3520 = vadd.f32 %v3475, %v3504
      %v3521 = vadd.f32 %v3476, %v3504
      %v3522 = vadd.f32 %v3477, %v3504
      %v3523 = vadd.f32 %v3478, %v3504
      %v3524 = vadd.f32 %v3479, %v3504
      %v3525 = vadd.f32 %v3480, %v3504
      %v3526 = vadd.f32 %v3481, %v3504
      %v3527 = vadd.f32 %v3482, %v3504
      %v3528 = vadd.f32 %v3483, %v3504
      %v3529 = vadd.f32 %v3484, %v3504
      %v3530 = vadd.f32 %v3485, %v3504
      %v3531 = vadd.f32 %v3486, %v3504
      %v3532 = vadd.f32 %v3487, %v3504
      %v3533 = vadd.f32 %v3488, %v3504
      %v3534 = vadd.f32 %v3489, %v3504
      %v3535 = vadd.f32 %v3490, %v3504
      %v3536 = vadd.f32 %v3491, %v3504
      %v3537 = vadd.f32 %v3492, %v3504
      %v3538 = vadd.f32 %v3493, %v3504
      %v3539 = vadd.f32 %v3494, %v3504
      %v3540 = vadd.f32 %v3495, %v3504
      %v3541 = vadd.f32 %v3496, %v3504
      %v3542 = vadd.f32 %v3497, %v3504
      %v3543 = vadd.f32 %v3498, %v3504
      %v3544 = vadd.f32 %v3499, %v3504
      %v3545 = vadd.f32 %v3500, %v3504
      %v3546 = vadd.f32 %v3501, %v3504
      %v3547 = vmax.f32 %v3506, 0.0
      %v3548 = vmax.f32 %v3507, 0.0
      %v3549 = vmax.f32 %v3508, 0.0
      %v3550 = vmax.f32 %v3509, 0.0
      %v3551 = vmax.f32 %v3510, 0.0
      %v3552 = vmax.f32 %v3511, 0.0
      %v3553 = vmax.f32 %v3512, 0.0
      %v3554 = vmax.f32 %v3513, 0.0
      %v3555 = vmax.f32 %v3514, 0.0
      %v3556 = vmax.f32 %v3515, 0.0
      %v3557 = vmax.f32 %v3516, 0.0
      %v3558 = vmax.f32 %v3517, 0.0
      %v3559 = vmax.f32 %v3518, 0.0
      %v3560 = vmax.f32 %v3519, 0.0
      %v3561 = vmax.f32 %v3520, 0.0
      %v3562 = vmax.f32 %v3521, 0.0
      %v3563 = vmax.f32 %v3522, 0.0
      %v3564 = vmax.f32 %v3523, 0.0
      %v3565 = vmax.f32 %v3524, 0.0
      %v3566 = vmax.f32 %v3525, 0.0
      %v3567 = vmax.f32 %v3526, 0.0
      %v3568 = vmax.f32 %v3527, 0.0
      %v3569 = vmax.f32 %v3528, 0.0
      %v3570 = vmax.f32 %v3529, 0.0
      %v3571 = vmax.f32 %v3530, 0.0
      %v3572 = vmax.f32 %v3531, 0.0
      %v3573 = vmax.f32 %v3532, 0.0
      %v3574 = vmax.f32 %v3533, 0.0
      %v3575 = vmax.f32 %v3534, 0.0
      %v3576 = vmax.f32 %v3535, 0.0
      %v3577 = vmax.f32 %v3536, 0.0
      %v3578 = vmax.f32 %v3537, 0.0
      %v3579 = vmax.f32 %v3538, 0.0
      %v3580 = vmax.f32 %v3539, 0.0
      %v3581 = vmax.f32 %v3540, 0.0
      %v3582 = vmax.f32 %v3541, 0.0
      %v3583 = vmax.f32 %v3542, 0.0
      %v3584 = vmax.f32 %v3543, 0.0
      %v3585 = vmax.f32 %v3544, 0.0
      %v3586 = vmax.f32 %v3545, 0.0
      %v3587 = vmax.f32 %v3546, 0.0
      %3588 = vst [vmem:[#allocation2] sm:$0xff] %v3547
      %3589 = vst [vmem:[#allocation2 + $0x8] sm:$0xff] %v3548
      %3590 = vst [vmem:[#allocation2 + $0x10] sm:$0xff] %v3549
      %3591 = vst [vmem:[#allocation2 + $0x18] sm:$0xff] %v3550
      %3592 = vst [vmem:[#allocation2 + $0x20] sm:$0xff] %v3551
      %3593 = vst [vmem:[#allocation2 + $0x28] sm:$0xff] %v3552
      %3594 = vst [vmem:[#allocation2 + $0x30] sm:$0xff] %v3553
      %3595 = vst [vmem:[#allocation2 + $0x38] sm:$0xff] %v3554
      %3596 = vst [vmem:[#allocation2 + $0x40] sm:$0xff] %v3555
      %3597 = vst [vmem:[#allocation2 + $0x48] sm:$0xff] %v3556
      %3598 = vst [vmem:[#allocation2 + $0x50] sm:$0xff] %v3557
      %3599 = vst [vmem:[#allocation2 + $0x58] sm:$0xff] %v3558
      %3600 = vst [vmem:[#allocation2 + $0x60] sm:$0xff] %v3559
      %3601 = vst [vmem:[#allocation2 + $0x68] sm:$0xff] %v3560
      %3602 = vst [vmem:[#allocation2 + $0x70] sm:$0xff] %v3561
      %3603 = vst [vmem:[#allocation2 + $0x78] sm:$0xff] %v3562
      %3604 = vst [vmem:[#allocation2 + $0x80] sm:$0xff] %v3563
      %3605 = vst [vmem:[#allocation2 + $0x88] sm:$0xff] %v3564
      %3606 = vst [vmem:[#allocation2 + $0x90] sm:$0xff] %v3565
      %3607 = vst [vmem:[#allocation2 + $0x98] sm:$0xff] %v3566
      %3608 = vst [vmem:[#allocation2 + $0xa0] sm:$0xff] %v3567
      %3609 = vst [vmem:[#allocation2 + $0xa8] sm:$0xff] %v3568
      %3610 = vst [vmem:[#allocation2 + $0xb0] sm:$0xff] %v3569
      %3611 = vst [vmem:[#allocation2 + $0xb8] sm:$0xff] %v3570
      %3612 = vst [vmem:[#allocation2 + $0xc0] sm:$0xff] %v3571
      %3613 = vst [vmem:[#allocation2 + $0xc8] sm:$0xff] %v3572
      %3614 = vst [vmem:[#allocation2 + $0xd0] sm:$0xff] %v3573
      %3615 = vst [vmem:[#allocation2 + $0xd8] sm:$0xff] %v3574
      %3616 = vst [vmem:[#allocation2 + $0xe0] sm:$0xff] %v3575
      %3617 = vst [vmem:[#allocation2 + $0xe8] sm:$0xff] %v3576
      %3618 = vst [vmem:[#allocation2 + $0xf0] sm:$0xff] %v3577
      %3619 = vst [vmem:[#allocation2 + $0xf8] sm:$0xff] %v3578
      %3620 = vst [vmem:[#allocation2 + $0x100] sm:$0xff] %v3579
      %3621 = vst [vmem:[#allocation2 + $0x108] sm:$0xff] %v3580
      %3622 = vst [vmem:[#allocation2 + $0x110] sm:$0xff] %v3581
      %3623 = vst [vmem:[#allocation2 + $0x118] sm:$0xff] %v3582
      %3624 = vst [vmem:[#allocation2 + $0x120] sm:$0xff] %v3583
      %3625 = vst [vmem:[#allocation2 + $0x128] sm:$0xff] %v3584
      %3626 = vst [vmem:[#allocation2 + $0x130] sm:$0xff] %v3585
      %3627 = vst [vmem:[#allocation2 + $0x138] sm:$0xff] %v3586
      %3628 = vst [vmem:[#allocation2 + $0x140] sm:$0xff] %v3587
      %3629 = vst [vmem:[#allocation3] sm:$0xff] 0.0
      %3630 = vst [vmem:[#allocation3 + $0x8] sm:$0xff] 0.0
      %3631 = vst [vmem:[#allocation3 + $0x10] sm:$0xff] 0.0
      %3632 = vst [vmem:[#allocation3 + $0x18] sm:$0xff] 0.0
      %3633 = vst [vmem:[#allocation3 + $0x20] sm:$0xff] 0.0
      %3634 = vst [vmem:[#allocation3 + $0x28] sm:$0xff] 0.0
      %3635 = vst [vmem:[#allocation3 + $0x30] sm:$0xff] 0.0
      %3636 = vst [vmem:[#allocation3 + $0x38] sm:$0xff] 0.0
      %3637 = vst [vmem:[#allocation3 + $0x40] sm:$0xff] 0.0
      %3638 = vst [vmem:[#allocation3 + $0x48] sm:$0xff] 0.0
      %3639 = vst [vmem:[#allocation3 + $0x50] sm:$0xff] 0.0
      %3640 = vst [vmem:[#allocation3 + $0x58] sm:$0xff] 0.0
      %3641 = vst [vmem:[#allocation3 + $0x60] sm:$0xff] 0.0
      %3642 = vst [vmem:[#allocation3 + $0x68] sm:$0xff] 0.0
      %3643 = vst [vmem:[#allocation3 + $0x70] sm:$0xff] 0.0
      %3644 = vst [vmem:[#allocation3 + $0x78] sm:$0xff] 0.0
      %v3645 = vld [vmem:[#allocation2] ss:$2 sm:$0xff]
      %s3646 = scalar_lea.vmem [#allocation2], 1
      %v3647 = vld [vmem:[%s3646] ss:$2 sm:$0xff]
      %v3648 = vmax.f32 %v3645, %v3647
      %s3649 = scalar_lea.vmem [#allocation2], 18
      %v3650 = vld [vmem:[%s3649] ss:$2 sm:$0xff]
      %s3651 = scalar_lea.vmem [#allocation2], 19
      %v3652 = vld [vmem:[%s3651] ss:$2 sm:$0xff]
      %v3653 = vmax.f32 %v3650, %v3652
      %v3654 = vmax.f32 %v3648, %v3653
      %3655 = vst [vmem:[#allocation3 + $0xb] sm:$0xff] %v3654
      %s3656 = scalar_lea.vmem [#allocation2], 36
      %v3657 = vld [vmem:[%s3656] ss:$2 sm:$0xff]
      %s3658 = scalar_lea.vmem [#allocation2], 37
      %v3659 = vld [vmem:[%s3658] ss:$2 sm:$0xff]
      %v3660 = vmax.f32 %v3657, %v3659
      %s3661 = scalar_lea.vmem [#allocation2], 54
      %v3662 = vld [vmem:[%s3661] ss:$2 sm:$0xff]
      %s3663 = scalar_lea.vmem [#allocation2], 55
      %v3664 = vld [vmem:[%s3663] ss:$2 sm:$0xff]
      %v3665 = vmax.f32 %v3662, %v3664
      %v3666 = vmax.f32 %v3660, %v3665
      %3667 = vst [vmem:[#allocation3 + $0x15] sm:$0xff] %v3666
      %s3668 = scalar_lea.vmem [#allocation2], 72
      %v3669 = vld [vmem:[%s3668] ss:$2 sm:$0xff]
      %s3670 = scalar_lea.vmem [#allocation2], 73
      %v3671 = vld [vmem:[%s3670] ss:$2 sm:$0xff]
      %v3672 = vmax.f32 %v3669, %v3671
      %s3673 = scalar_lea.vmem [#allocation2], 90
      %v3674 = vld [vmem:[%s3673] ss:$2 sm:$0xff]
      %s3675 = scalar_lea.vmem [#allocation2], 91
      %v3676 = vld [vmem:[%s3675] ss:$2 sm:$0xff]
      %v3677 = vmax.f32 %v3674, %v3676
      %v3678 = vmax.f32 %v3672, %v3677
      %3679 = vst [vmem:[#allocation3 + $0x1f] sm:$0xff] %v3678
      %s3680 = scalar_lea.vmem [#allocation2], 108
      %v3681 = vld [vmem:[%s3680] ss:$2 sm:$0xff]
      %s3682 = scalar_lea.vmem [#allocation2], 109
      %v3683 = vld [vmem:[%s3682] ss:$2 sm:$0xff]
      %v3684 = vmax.f32 %v3681, %v3683
      %s3685 = scalar_lea.vmem [#allocation2], 126
      %v3686 = vld [vmem:[%s3685] ss:$2 sm:$0xff]
      %s3687 = scalar_lea.vmem [#allocation2], 127
      %v3688 = vld [vmem:[%s3687] ss:$2 sm:$0xff]
      %v3689 = vmax.f32 %v3686, %v3688
      %v3690 = vmax.f32 %v3684, %v3689
      %3691 = vst [vmem:[#allocation3 + $0x29] sm:$0xff] %v3690
      %s3692 = scalar_lea.vmem [#allocation2], 144
      %v3693 = vld [vmem:[%s3692] ss:$2 sm:$0xff]
      %s3694 = scalar_lea.vmem [#allocation2], 145
      %v3695 = vld [vmem:[%s3694] ss:$2 sm:$0xff]
      %v3696 = vmax.f32 %v3693, %v3695
      %s3697 = scalar_lea.vmem [#allocation2], 162
      %v3698 = vld [vmem:[%s3697] ss:$2 sm:$0xff]
      %s3699 = scalar_lea.vmem [#allocation2], 163
      %v3700 = vld [vmem:[%s3699] ss:$2 sm:$0xff]
      %v3701 = vmax.f32 %v3698, %v3700
      %v3702 = vmax.f32 %v3696, %v3701
      %3703 = vst [vmem:[#allocation3 + $0x33] sm:$0xff] %v3702
      %s3704 = scalar_lea.vmem [#allocation2], 180
      %v3705 = vld [vmem:[%s3704] ss:$2 sm:$0xff]
      %s3706 = scalar_lea.vmem [#allocation2], 181
      %v3707 = vld [vmem:[%s3706] ss:$2 sm:$0xff]
      %v3708 = vmax.f32 %v3705, %v3707
      %s3709 = scalar_lea.vmem [#allocation2], 198
      %v3710 = vld [vmem:[%s3709] ss:$2 sm:$0xff]
      %s3711 = scalar_lea.vmem [#allocation2], 199
      %v3712 = vld [vmem:[%s3711] ss:$2 sm:$0xff]
      %v3713 = vmax.f32 %v3710, %v3712
      %v3714 = vmax.f32 %v3708, %v3713
      %3715 = vst [vmem:[#allocation3 + $0x3d] sm:$0xff] %v3714
      %s3716 = scalar_lea.vmem [#allocation2], 216
      %v3717 = vld [vmem:[%s3716] ss:$2 sm:$0xff]
      %s3718 = scalar_lea.vmem [#allocation2], 217
      %v3719 = vld [vmem:[%s3718] ss:$2 sm:$0xff]
      %v3720 = vmax.f32 %v3717, %v3719
      %s3721 = scalar_lea.vmem [#allocation2], 234
      %v3722 = vld [vmem:[%s3721] ss:$2 sm:$0xff]
      %s3723 = scalar_lea.vmem [#allocation2], 235
      %v3724 = vld [vmem:[%s3723] ss:$2 sm:$0xff]
      %v3725 = vmax.f32 %v3722, %v3724
      %v3726 = vmax.f32 %v3720, %v3725
      %3727 = vst [vmem:[#allocation3 + $0x47] sm:$0xff] %v3726
      %s3728 = scalar_lea.vmem [#allocation2], 252
      %v3729 = vld [vmem:[%s3728] ss:$2 sm:$0xff]
      %s3730 = scalar_lea.vmem [#allocation2], 253
      %v3731 = vld [vmem:[%s3730] ss:$2 sm:$0xff]
      %v3732 = vmax.f32 %v3729, %v3731
      %s3733 = scalar_lea.vmem [#allocation2], 270
      %v3734 = vld [vmem:[%s3733] ss:$2 sm:$0xff]
      %s3735 = scalar_lea.vmem [#allocation2], 271
      %v3736 = vld [vmem:[%s3735] ss:$2 sm:$0xff]
      %v3737 = vmax.f32 %v3734, %v3736
      %v3738 = vmax.f32 %v3732, %v3737
      %3739 = vst [vmem:[#allocation3 + $0x51] sm:$0xff] %v3738
      %v3740 = vld [vmem:[#allocation3] sm:$0xff]
      %v3741 = vld [vmem:[#allocation3 + $0x8] sm:$0xff]
      %v3742 = vld [vmem:[#allocation3 + $0x10] sm:$0xff]
      %v3743 = vld [vmem:[#allocation3 + $0x18] sm:$0xff]
      %v3744 = vld [vmem:[#allocation3 + $0x20] sm:$0xff]
      %v3745 = vld [vmem:[#allocation3 + $0x28] sm:$0xff]
      %v3746 = vld [vmem:[#allocation3 + $0x30] sm:$0xff]
      %v3747 = vld [vmem:[#allocation3 + $0x38] sm:$0xff]
      %v3748 = vld [vmem:[#allocation3 + $0x40] sm:$0xff]
      %v3749 = vld [vmem:[#allocation3 + $0x48] sm:$0xff]
      %v3750 = vld [vmem:[#allocation3 + $0x50] sm:$0xff]
      %v3751 = vld [vmem:[#allocation3 + $0x58] sm:$0xff]
      %v3752 = vld [vmem:[#allocation3 + $0x60] sm:$0xff]
      %v3753 = vpack.c.bf16 %v3741, %v3740
      %v3754 = vpack.c.bf16 %v3743, %v3742
      %v3755 = vpack.c.bf16 %v3745, %v3744
      %v3756 = vpack.c.bf16 %v3747, %v3746
      %v3757 = vpack.c.bf16 %v3749, %v3748
      %v3758 = vpack.c.bf16 %v3751, %v3750
      %v3759 = vpack.c.bf16 %v3752, %v3752
      %v3760 = vld [vmem:[%s3] sm:$0xf]
      %v3761 = vld [vmem:[%s3 + $0x4] sm:$0xf]
      %v3762 = vld [vmem:[%s3 + $0x8] sm:$0xf]
      %v3763 = vld [vmem:[%s3 + $0xc] sm:$0xf]
      %v3764 = vld [vmem:[%s3 + $0x10] sm:$0xf]
      %v3765 = vld [vmem:[%s3 + $0x14] sm:$0xf]
      %v3766 = vld [vmem:[%s3 + $0x18] sm:$0xf]
      %v3767 = vld [vmem:[%s3 + $0x1c] sm:$0xf]
      %v3768 = vld [vmem:[%s3 + $0x20] sm:$0xf]
      %v3769 = vld [vmem:[%s3 + $0x24] sm:$0xf]
      %v3770 = vld [vmem:[%s3 + $0x28] sm:$0xf]
      %v3771 = vld [vmem:[%s3 + $0x2c] sm:$0xf]
      %v3772 = vld [vmem:[%s3 + $0x30] sm:$0xf]
      %v3773 = vld [vmem:[%s3 + $0x34] sm:$0xf]
      %v3774 = vld [vmem:[%s3 + $0x38] sm:$0xf]
      %v3775 = vld [vmem:[%s3 + $0x3c] sm:$0xf]
      %v3792 = vunpack.c.l.b16 %v3760
      %v3793 = vunpack.c.l.b16 %v3761
      %v3794 = vunpack.c.l.b16 %v3762
      %v3795 = vunpack.c.l.b16 %v3763
      %v3796 = vunpack.c.l.b16 %v3764
      %v3797 = vunpack.c.l.b16 %v3765
      %v3798 = vunpack.c.l.b16 %v3766
      %v3799 = vunpack.c.l.b16 %v3767
      %v3800 = vunpack.c.l.b16 %v3768
      %v3801 = vunpack.c.l.b16 %v3769
      %v3802 = vunpack.c.l.b16 %v3770
      %v3803 = vunpack.c.l.b16 %v3771
      %v3804 = vunpack.c.l.b16 %v3772
      %v3805 = vunpack.c.l.b16 %v3773
      %v3806 = vunpack.c.l.b16 %v3774
      %v3807 = vunpack.c.l.b16 %v3775
      %v3808 = vpack.c.b16 %v3793, %v3792
      %v3809 = vpack.c.b16 %v3795, %v3794
      %v3810 = vpack.c.b16 %v3797, %v3796
      %v3811 = vpack.c.b16 %v3799, %v3798
      %v3812 = vpack.c.b16 %v3801, %v3800
      %v3813 = vpack.c.b16 %v3803, %v3802
      %v3814 = vpack.c.b16 %v3805, %v3804
      %v3815 = vpack.c.b16 %v3807, %v3806
      %3824 = vmatpush.bf16.msra.mxu0 %v3815
      %3825 = vmatpush.bf16.msra.mxu0 %v3814
      %3826 = vmatpush.bf16.msra.mxu0 %v3813
      %3827 = vmatpush.bf16.msra.mxu0 %v3812
      %3828 = vmatpush.bf16.msra.mxu0 %v3811
      %3829 = vmatpush.bf16.msra.mxu0 %v3810
      %3830 = vmatpush.bf16.msra.mxu0 %v3809
      %3831 = vmatpush.bf16.msra.mxu0 %v3808
      %3832 = vmatmul.bf16.gmra.mxu0 %v3753
      %v3833 = vpop.f32.mrf.mxu0
      %v3834 = vadd.f32 0.0, %v3833
      %v3835 = vpop.f32.mrf.mxu0
      %v3836 = vadd.f32 0.0, %v3835
      %3837 = vmatmul.bf16.gmra.mxu0 %v3754
      %v3838 = vpop.f32.mrf.mxu0
      %v3839 = vadd.f32 0.0, %v3838
      %v3840 = vpop.f32.mrf.mxu0
      %v3841 = vadd.f32 0.0, %v3840
      %3842 = vmatmul.bf16.gmra.mxu0 %v3755
      %v3843 = vpop.f32.mrf.mxu0
      %v3844 = vadd.f32 0.0, %v3843
      %v3845 = vpop.f32.mrf.mxu0
      %v3846 = vadd.f32 0.0, %v3845
      %3847 = vmatmul.bf16.gmra.mxu0 %v3756
      %v3848 = vpop.f32.mrf.mxu0
      %v3849 = vadd.f32 0.0, %v3848
      %v3850 = vpop.f32.mrf.mxu0
      %v3851 = vadd.f32 0.0, %v3850
      %3852 = vmatmul.bf16.gmra.mxu0 %v3757
      %v3853 = vpop.f32.mrf.mxu0
      %v3854 = vadd.f32 0.0, %v3853
      %v3855 = vpop.f32.mrf.mxu0
      %v3856 = vadd.f32 0.0, %v3855
      %3857 = vmatmul.bf16.gmra.mxu0 %v3758
      %v3858 = vpop.f32.mrf.mxu0
      %v3859 = vadd.f32 0.0, %v3858
      %v3860 = vpop.f32.mrf.mxu0
      %v3861 = vadd.f32 0.0, %v3860
      %3862 = vmatmul.bf16.gmra.mxu0 %v3759
      %v3863 = vpop.f32.mrf.mxu0
      %v3864 = vadd.f32 0.0, %v3863
      %v3865 = vpop.f32.mrf.mxu0
      %3866 = vdwg.mxu0
      %3867 = vst [vmem:[#allocation4] sm:$0xff] %v3834
      %3868 = vst [vmem:[#allocation4 + $0x8] sm:$0xff] %v3836
      %3869 = vst [vmem:[#allocation4 + $0x10] sm:$0xff] %v3839
      %3870 = vst [vmem:[#allocation4 + $0x18] sm:$0xff] %v3841
      %3871 = vst [vmem:[#allocation4 + $0x20] sm:$0xff] %v3844
      %3872 = vst [vmem:[#allocation4 + $0x28] sm:$0xff] %v3846
      %3873 = vst [vmem:[#allocation4 + $0x30] sm:$0xff] %v3849
      %3874 = vst [vmem:[#allocation4 + $0x38] sm:$0xff] %v3851
      %3875 = vst [vmem:[#allocation4 + $0x40] sm:$0xff] %v3854
      %3876 = vst [vmem:[#allocation4 + $0x48] sm:$0xff] %v3856
      %3877 = vst [vmem:[#allocation4 + $0x50] sm:$0xff] %v3859
      %3878 = vst [vmem:[#allocation4 + $0x58] sm:$0xff] %v3861
      %3879 = vst [vmem:[#allocation4 + $0x60] sm:$0xff] %v3864
      %v3880 = vld [vmem:[#allocation3 + $0x1] sm:$0xff]
      %v3881 = vld [vmem:[#allocation3 + $0x9] sm:$0xff]
      %v3882 = vld [vmem:[#allocation3 + $0x11] sm:$0xff]
      %v3883 = vld [vmem:[#allocation3 + $0x19] sm:$0xff]
      %v3884 = vld [vmem:[#allocation3 + $0x21] sm:$0xff]
      %v3885 = vld [vmem:[#allocation3 + $0x29] sm:$0xff]
      %v3886 = vld [vmem:[#allocation3 + $0x31] sm:$0xff]
      %v3887 = vld [vmem:[#allocation3 + $0x39] sm:$0xff]
      %v3888 = vld [vmem:[#allocation3 + $0x41] sm:$0xff]
      %v3889 = vld [vmem:[#allocation3 + $0x49] sm:$0xff]
      %v3890 = vld [vmem:[#allocation3 + $0x51] sm:$0xff]
      %v3891 = vld [vmem:[#allocation3 + $0x59] sm:$0xff]
      %v3892 = vld [vmem:[#allocation3 + $0x61] sm:$0xff]
      %v3893 = vpack.c.bf16 %v3881, %v3880
      %v3894 = vpack.c.bf16 %v3883, %v3882
      %v3895 = vpack.c.bf16 %v3885, %v3884
      %v3896 = vpack.c.bf16 %v3887, %v3886
      %v3897 = vpack.c.bf16 %v3889, %v3888
      %v3898 = vpack.c.bf16 %v3891, %v3890
      %v3899 = vpack.c.bf16 %v3892, %v3892
      %s3900 = scalar_lea.vmem %s3, 64
      %v3901 = vld [vmem:[%s3900] sm:$0xf]
      %v3902 = vld [vmem:[%s3900 + $0x4] sm:$0xf]
      %v3903 = vld [vmem:[%s3900 + $0x8] sm:$0xf]
      %v3904 = vld [vmem:[%s3900 + $0xc] sm:$0xf]
      %v3905 = vld [vmem:[%s3900 + $0x10] sm:$0xf]
      %v3906 = vld [vmem:[%s3900 + $0x14] sm:$0xf]
      %v3907 = vld [vmem:[%s3900 + $0x18] sm:$0xf]
      %v3908 = vld [vmem:[%s3900 + $0x1c] sm:$0xf]
      %v3909 = vld [vmem:[%s3900 + $0x20] sm:$0xf]
      %v3910 = vld [vmem:[%s3900 + $0x24] sm:$0xf]
      %v3911 = vld [vmem:[%s3900 + $0x28] sm:$0xf]
      %v3912 = vld [vmem:[%s3900 + $0x2c] sm:$0xf]
      %v3913 = vld [vmem:[%s3900 + $0x30] sm:$0xf]
      %v3914 = vld [vmem:[%s3900 + $0x34] sm:$0xf]
      %v3915 = vld [vmem:[%s3900 + $0x38] sm:$0xf]
      %v3916 = vld [vmem:[%s3900 + $0x3c] sm:$0xf]
      %v3933 = vunpack.c.l.b16 %v3901
      %v3934 = vunpack.c.l.b16 %v3902
      %v3935 = vunpack.c.l.b16 %v3903
      %v3936 = vunpack.c.l.b16 %v3904
      %v3937 = vunpack.c.l.b16 %v3905
      %v3938 = vunpack.c.l.b16 %v3906
      %v3939 = vunpack.c.l.b16 %v3907
      %v3940 = vunpack.c.l.b16 %v3908
      %v3941 = vunpack.c.l.b16 %v3909
      %v3942 = vunpack.c.l.b16 %v3910
      %v3943 = vunpack.c.l.b16 %v3911
      %v3944 = vunpack.c.l.b16 %v3912
      %v3945 = vunpack.c.l.b16 %v3913
      %v3946 = vunpack.c.l.b16 %v3914
      %v3947 = vunpack.c.l.b16 %v3915
      %v3948 = vunpack.c.l.b16 %v3916
      %v3949 = vpack.c.b16 %v3934, %v3933
      %v3950 = vpack.c.b16 %v3936, %v3935
      %v3951 = vpack.c.b16 %v3938, %v3937
      %v3952 = vpack.c.b16 %v3940, %v3939
      %v3953 = vpack.c.b16 %v3942, %v3941
      %v3954 = vpack.c.b16 %v3944, %v3943
      %v3955 = vpack.c.b16 %v3946, %v3945
      %v3956 = vpack.c.b16 %v3948, %v3947
      %3965 = vmatpush.bf16.msra.mxu0 %v3956
      %3966 = vmatpush.bf16.msra.mxu0 %v3955
      %3967 = vmatpush.bf16.msra.mxu0 %v3954
      %3968 = vmatpush.bf16.msra.mxu0 %v3953
      %3969 = vmatpush.bf16.msra.mxu0 %v3952
      %3970 = vmatpush.bf16.msra.mxu0 %v3951
      %3971 = vmatpush.bf16.msra.mxu0 %v3950
      %3972 = vmatpush.bf16.msra.mxu0 %v3949
      %3973 = vmatmul.bf16.gmra.mxu0 %v3893
      %v3974 = vpop.f32.mrf.mxu0
      %v3975 = vadd.f32 0.0, %v3974
      %v3976 = vpop.f32.mrf.mxu0
      %v3977 = vadd.f32 0.0, %v3976
      %3978 = vmatmul.bf16.gmra.mxu0 %v3894
      %v3979 = vpop.f32.mrf.mxu0
      %v3980 = vadd.f32 0.0, %v3979
      %v3981 = vpop.f32.mrf.mxu0
      %v3982 = vadd.f32 0.0, %v3981
      %3983 = vmatmul.bf16.gmra.mxu0 %v3895
      %v3984 = vpop.f32.mrf.mxu0
      %v3985 = vadd.f32 0.0, %v3984
      %v3986 = vpop.f32.mrf.mxu0
      %v3987 = vadd.f32 0.0, %v3986
      %3988 = vmatmul.bf16.gmra.mxu0 %v3896
      %v3989 = vpop.f32.mrf.mxu0
      %v3990 = vadd.f32 0.0, %v3989
      %v3991 = vpop.f32.mrf.mxu0
      %v3992 = vadd.f32 0.0, %v3991
      %3993 = vmatmul.bf16.gmra.mxu0 %v3897
      %v3994 = vpop.f32.mrf.mxu0
      %v3995 = vadd.f32 0.0, %v3994
      %v3996 = vpop.f32.mrf.mxu0
      %v3997 = vadd.f32 0.0, %v3996
      %3998 = vmatmul.bf16.gmra.mxu0 %v3898
      %v3999 = vpop.f32.mrf.mxu0
      %v4000 = vadd.f32 0.0, %v3999
      %v4001 = vpop.f32.mrf.mxu0
      %v4002 = vadd.f32 0.0, %v4001
      %4003 = vmatmul.bf16.gmra.mxu0 %v3899
      %v4004 = vpop.f32.mrf.mxu0
      %v4005 = vadd.f32 0.0, %v4004
      %v4006 = vpop.f32.mrf.mxu0
      %4007 = vdwg.mxu0
      %v4008 = vld [vmem:[#allocation4] sm:$0xff]
      %v4009 = vld [vmem:[#allocation4 + $0x8] sm:$0xff]
      %v4010 = vld [vmem:[#allocation4 + $0x10] sm:$0xff]
      %v4011 = vld [vmem:[#allocation4 + $0x18] sm:$0xff]
      %v4012 = vld [vmem:[#allocation4 + $0x20] sm:$0xff]
      %v4013 = vld [vmem:[#allocation4 + $0x28] sm:$0xff]
      %v4014 = vld [vmem:[#allocation4 + $0x30] sm:$0xff]
      %v4015 = vld [vmem:[#allocation4 + $0x38] sm:$0xff]
      %v4016 = vld [vmem:[#allocation4 + $0x40] sm:$0xff]
      %v4017 = vld [vmem:[#allocation4 + $0x48] sm:$0xff]
      %v4018 = vld [vmem:[#allocation4 + $0x50] sm:$0xff]
      %v4019 = vld [vmem:[#allocation4 + $0x58] sm:$0xff]
      %v4020 = vld [vmem:[#allocation4 + $0x60] sm:$0xff]
      %v4021 = vadd.f32 %v4008, %v3975
      %v4022 = vadd.f32 %v4009, %v3977
      %v4023 = vadd.f32 %v4010, %v3980
      %v4024 = vadd.f32 %v4011, %v3982
      %v4025 = vadd.f32 %v4012, %v3985
      %v4026 = vadd.f32 %v4013, %v3987
      %v4027 = vadd.f32 %v4014, %v3990
      %v4028 = vadd.f32 %v4015, %v3992
      %v4029 = vadd.f32 %v4016, %v3995
      %v4030 = vadd.f32 %v4017, %v3997
      %v4031 = vadd.f32 %v4018, %v4000
      %v4032 = vadd.f32 %v4019, %v4002
      %v4033 = vadd.f32 %v4020, %v4005
      %4034 = vst [vmem:[#allocation4] sm:$0xff] %v4021
      %4035 = vst [vmem:[#allocation4 + $0x8] sm:$0xff] %v4022
      %4036 = vst [vmem:[#allocation4 + $0x10] sm:$0xff] %v4023
      %4037 = vst [vmem:[#allocation4 + $0x18] sm:$0xff] %v4024
      %4038 = vst [vmem:[#allocation4 + $0x20] sm:$0xff] %v4025
      %4039 = vst [vmem:[#allocation4 + $0x28] sm:$0xff] %v4026
      %4040 = vst [vmem:[#allocation4 + $0x30] sm:$0xff] %v4027
      %4041 = vst [vmem:[#allocation4 + $0x38] sm:$0xff] %v4028
      %4042 = vst [vmem:[#allocation4 + $0x40] sm:$0xff] %v4029
      %4043 = vst [vmem:[#allocation4 + $0x48] sm:$0xff] %v4030
      %4044 = vst [vmem:[#allocation4 + $0x50] sm:$0xff] %v4031
      %4045 = vst [vmem:[#allocation4 + $0x58] sm:$0xff] %v4032
      %4046 = vst [vmem:[#allocation4 + $0x60] sm:$0xff] %v4033
      %v4047 = vld [vmem:[#allocation3 + $0x2] sm:$0xff]
      %v4048 = vld [vmem:[#allocation3 + $0xa] sm:$0xff]
      %v4049 = vld [vmem:[#allocation3 + $0x12] sm:$0xff]
      %v4050 = vld [vmem:[#allocation3 + $0x1a] sm:$0xff]
      %v4051 = vld [vmem:[#allocation3 + $0x22] sm:$0xff]
      %v4052 = vld [vmem:[#allocation3 + $0x2a] sm:$0xff]
      %v4053 = vld [vmem:[#allocation3 + $0x32] sm:$0xff]
      %v4054 = vld [vmem:[#allocation3 + $0x3a] sm:$0xff]
      %v4055 = vld [vmem:[#allocation3 + $0x42] sm:$0xff]
      %v4056 = vld [vmem:[#allocation3 + $0x4a] sm:$0xff]
      %v4057 = vld [vmem:[#allocation3 + $0x52] sm:$0xff]
      %v4058 = vld [vmem:[#allocation3 + $0x5a] sm:$0xff]
      %v4059 = vld [vmem:[#allocation3 + $0x62] sm:$0xff]
      %v4060 = vpack.c.bf16 %v4048, %v4047
      %v4061 = vpack.c.bf16 %v4050, %v4049
      %v4062 = vpack.c.bf16 %v4052, %v4051
      %v4063 = vpack.c.bf16 %v4054, %v4053
      %v4064 = vpack.c.bf16 %v4056, %v4055
      %v4065 = vpack.c.bf16 %v4058, %v4057
      %v4066 = vpack.c.bf16 %v4059, %v4059
      %s4067 = scalar_lea.vmem %s3, 128
      %v4068 = vld [vmem:[%s4067] sm:$0xf]
      %v4069 = vld [vmem:[%s4067 + $0x4] sm:$0xf]
      %v4070 = vld [vmem:[%s4067 + $0x8] sm:$0xf]
      %v4071 = vld [vmem:[%s4067 + $0xc] sm:$0xf]
      %v4072 = vld [vmem:[%s4067 + $0x10] sm:$0xf]
      %v4073 = vld [vmem:[%s4067 + $0x14] sm:$0xf]
      %v4074 = vld [vmem:[%s4067 + $0x18] sm:$0xf]
      %v4075 = vld [vmem:[%s4067 + $0x1c] sm:$0xf]
      %v4076 = vld [vmem:[%s4067 + $0x20] sm:$0xf]
      %v4077 = vld [vmem:[%s4067 + $0x24] sm:$0xf]
      %v4078 = vld [vmem:[%s4067 + $0x28] sm:$0xf]
      %v4079 = vld [vmem:[%s4067 + $0x2c] sm:$0xf]
      %v4080 = vld [vmem:[%s4067 + $0x30] sm:$0xf]
      %v4081 = vld [vmem:[%s4067 + $0x34] sm:$0xf]
      %v4082 = vld [vmem:[%s4067 + $0x38] sm:$0xf]
      %v4083 = vld [vmem:[%s4067 + $0x3c] sm:$0xf]
      %v4100 = vunpack.c.l.b16 %v4068
      %v4101 = vunpack.c.l.b16 %v4069
      %v4102 = vunpack.c.l.b16 %v4070
      %v4103 = vunpack.c.l.b16 %v4071
      %v4104 = vunpack.c.l.b16 %v4072
      %v4105 = vunpack.c.l.b16 %v4073
      %v4106 = vunpack.c.l.b16 %v4074
      %v4107 = vunpack.c.l.b16 %v4075
      %v4108 = vunpack.c.l.b16 %v4076
      %v4109 = vunpack.c.l.b16 %v4077
      %v4110 = vunpack.c.l.b16 %v4078
      %v4111 = vunpack.c.l.b16 %v4079
      %v4112 = vunpack.c.l.b16 %v4080
      %v4113 = vunpack.c.l.b16 %v4081
      %v4114 = vunpack.c.l.b16 %v4082
      %v4115 = vunpack.c.l.b16 %v4083
      %v4116 = vpack.c.b16 %v4101, %v4100
      %v4117 = vpack.c.b16 %v4103, %v4102
      %v4118 = vpack.c.b16 %v4105, %v4104
      %v4119 = vpack.c.b16 %v4107, %v4106
      %v4120 = vpack.c.b16 %v4109, %v4108
      %v4121 = vpack.c.b16 %v4111, %v4110
      %v4122 = vpack.c.b16 %v4113, %v4112
      %v4123 = vpack.c.b16 %v4115, %v4114
      %4132 = vmatpush.bf16.msra.mxu0 %v4123
      %4133 = vmatpush.bf16.msra.mxu0 %v4122
      %4134 = vmatpush.bf16.msra.mxu0 %v4121
      %4135 = vmatpush.bf16.msra.mxu0 %v4120
      %4136 = vmatpush.bf16.msra.mxu0 %v4119
      %4137 = vmatpush.bf16.msra.mxu0 %v4118
      %4138 = vmatpush.bf16.msra.mxu0 %v4117
      %4139 = vmatpush.bf16.msra.mxu0 %v4116
      %4140 = vmatmul.bf16.gmra.mxu0 %v4060
      %v4141 = vpop.f32.mrf.mxu0
      %v4142 = vadd.f32 0.0, %v4141
      %v4143 = vpop.f32.mrf.mxu0
      %v4144 = vadd.f32 0.0, %v4143
      %4145 = vmatmul.bf16.gmra.mxu0 %v4061
      %v4146 = vpop.f32.mrf.mxu0
      %v4147 = vadd.f32 0.0, %v4146
      %v4148 = vpop.f32.mrf.mxu0
      %v4149 = vadd.f32 0.0, %v4148
      %4150 = vmatmul.bf16.gmra.mxu0 %v4062
      %v4151 = vpop.f32.mrf.mxu0
      %v4152 = vadd.f32 0.0, %v4151
      %v4153 = vpop.f32.mrf.mxu0
      %v4154 = vadd.f32 0.0, %v4153
      %4155 = vmatmul.bf16.gmra.mxu0 %v4063
      %v4156 = vpop.f32.mrf.mxu0
      %v4157 = vadd.f32 0.0, %v4156
      %v4158 = vpop.f32.mrf.mxu0
      %v4159 = vadd.f32 0.0, %v4158
      %4160 = vmatmul.bf16.gmra.mxu0 %v4064
      %v4161 = vpop.f32.mrf.mxu0
      %v4162 = vadd.f32 0.0, %v4161
      %v4163 = vpop.f32.mrf.mxu0
      %v4164 = vadd.f32 0.0, %v4163
      %4165 = vmatmul.bf16.gmra.mxu0 %v4065
      %v4166 = vpop.f32.mrf.mxu0
      %v4167 = vadd.f32 0.0, %v4166
      %v4168 = vpop.f32.mrf.mxu0
      %v4169 = vadd.f32 0.0, %v4168
      %4170 = vmatmul.bf16.gmra.mxu0 %v4066
      %v4171 = vpop.f32.mrf.mxu0
      %v4172 = vadd.f32 0.0, %v4171
      %v4173 = vpop.f32.mrf.mxu0
      %4174 = vdwg.mxu0
      %v4175 = vld [vmem:[#allocation4] sm:$0xff]
      %v4176 = vld [vmem:[#allocation4 + $0x8] sm:$0xff]
      %v4177 = vld [vmem:[#allocation4 + $0x10] sm:$0xff]
      %v4178 = vld [vmem:[#allocation4 + $0x18] sm:$0xff]
      %v4179 = vld [vmem:[#allocation4 + $0x20] sm:$0xff]
      %v4180 = vld [vmem:[#allocation4 + $0x28] sm:$0xff]
      %v4181 = vld [vmem:[#allocation4 + $0x30] sm:$0xff]
      %v4182 = vld [vmem:[#allocation4 + $0x38] sm:$0xff]
      %v4183 = vld [vmem:[#allocation4 + $0x40] sm:$0xff]
      %v4184 = vld [vmem:[#allocation4 + $0x48] sm:$0xff]
      %v4185 = vld [vmem:[#allocation4 + $0x50] sm:$0xff]
      %v4186 = vld [vmem:[#allocation4 + $0x58] sm:$0xff]
      %v4187 = vld [vmem:[#allocation4 + $0x60] sm:$0xff]
      %v4188 = vadd.f32 %v4175, %v4142
      %v4189 = vadd.f32 %v4176, %v4144
      %v4190 = vadd.f32 %v4177, %v4147
      %v4191 = vadd.f32 %v4178, %v4149
      %v4192 = vadd.f32 %v4179, %v4152
      %v4193 = vadd.f32 %v4180, %v4154
      %v4194 = vadd.f32 %v4181, %v4157
      %v4195 = vadd.f32 %v4182, %v4159
      %v4196 = vadd.f32 %v4183, %v4162
      %v4197 = vadd.f32 %v4184, %v4164
      %v4198 = vadd.f32 %v4185, %v4167
      %v4199 = vadd.f32 %v4186, %v4169
      %v4200 = vadd.f32 %v4187, %v4172
      %4201 = vst [vmem:[#allocation4] sm:$0xff] %v4188
      %4202 = vst [vmem:[#allocation4 + $0x8] sm:$0xff] %v4189
      %4203 = vst [vmem:[#allocation4 + $0x10] sm:$0xff] %v4190
      %4204 = vst [vmem:[#allocation4 + $0x18] sm:$0xff] %v4191
      %4205 = vst [vmem:[#allocation4 + $0x20] sm:$0xff] %v4192
      %4206 = vst [vmem:[#allocation4 + $0x28] sm:$0xff] %v4193
      %4207 = vst [vmem:[#allocation4 + $0x30] sm:$0xff] %v4194
      %4208 = vst [vmem:[#allocation4 + $0x38] sm:$0xff] %v4195
      %4209 = vst [vmem:[#allocation4 + $0x40] sm:$0xff] %v4196
      %4210 = vst [vmem:[#allocation4 + $0x48] sm:$0xff] %v4197
      %4211 = vst [vmem:[#allocation4 + $0x50] sm:$0xff] %v4198
      %4212 = vst [vmem:[#allocation4 + $0x58] sm:$0xff] %v4199
      %4213 = vst [vmem:[#allocation4 + $0x60] sm:$0xff] %v4200
      %v4214 = vld [vmem:[#allocation3 + $0xa] sm:$0xff]
      %v4215 = vld [vmem:[#allocation3 + $0x12] sm:$0xff]
      %v4216 = vld [vmem:[#allocation3 + $0x1a] sm:$0xff]
      %v4217 = vld [vmem:[#allocation3 + $0x22] sm:$0xff]
      %v4218 = vld [vmem:[#allocation3 + $0x2a] sm:$0xff]
      %v4219 = vld [vmem:[#allocation3 + $0x32] sm:$0xff]
      %v4220 = vld [vmem:[#allocation3 + $0x3a] sm:$0xff]
      %v4221 = vld [vmem:[#allocation3 + $0x42] sm:$0xff]
      %v4222 = vld [vmem:[#allocation3 + $0x4a] sm:$0xff]
      %v4223 = vld [vmem:[#allocation3 + $0x52] sm:$0xff]
      %v4224 = vld [vmem:[#allocation3 + $0x5a] sm:$0xff]
      %v4225 = vld [vmem:[#allocation3 + $0x62] sm:$0xff]
      %v4226 = vld [vmem:[#allocation3 + $0x6a] sm:$0xff]
      %v4227 = vpack.c.bf16 %v4215, %v4214
      %v4228 = vpack.c.bf16 %v4217, %v4216
      %v4229 = vpack.c.bf16 %v4219, %v4218
      %v4230 = vpack.c.bf16 %v4221, %v4220
      %v4231 = vpack.c.bf16 %v4223, %v4222
      %v4232 = vpack.c.bf16 %v4225, %v4224
      %v4233 = vpack.c.bf16 %v4226, %v4226
      %s4234 = scalar_lea.vmem %s3, 192
      %v4235 = vld [vmem:[%s4234] sm:$0xf]
      %v4236 = vld [vmem:[%s4234 + $0x4] sm:$0xf]
      %v4237 = vld [vmem:[%s4234 + $0x8] sm:$0xf]
      %v4238 = vld [vmem:[%s4234 + $0xc] sm:$0xf]
      %v4239 = vld [vmem:[%s4234 + $0x10] sm:$0xf]
      %v4240 = vld [vmem:[%s4234 + $0x14] sm:$0xf]
      %v4241 = vld [vmem:[%s4234 + $0x18] sm:$0xf]
      %v4242 = vld [vmem:[%s4234 + $0x1c] sm:$0xf]
      %v4243 = vld [vmem:[%s4234 + $0x20] sm:$0xf]
      %v4244 = vld [vmem:[%s4234 + $0x24] sm:$0xf]
      %v4245 = vld [vmem:[%s4234 + $0x28] sm:$0xf]
      %v4246 = vld [vmem:[%s4234 + $0x2c] sm:$0xf]
      %v4247 = vld [vmem:[%s4234 + $0x30] sm:$0xf]
      %v4248 = vld [vmem:[%s4234 + $0x34] sm:$0xf]
      %v4249 = vld [vmem:[%s4234 + $0x38] sm:$0xf]
      %v4250 = vld [vmem:[%s4234 + $0x3c] sm:$0xf]
      %v4267 = vunpack.c.l.b16 %v4235
      %v4268 = vunpack.c.l.b16 %v4236
      %v4269 = vunpack.c.l.b16 %v4237
      %v4270 = vunpack.c.l.b16 %v4238
      %v4271 = vunpack.c.l.b16 %v4239
      %v4272 = vunpack.c.l.b16 %v4240
      %v4273 = vunpack.c.l.b16 %v4241
      %v4274 = vunpack.c.l.b16 %v4242
      %v4275 = vunpack.c.l.b16 %v4243
      %v4276 = vunpack.c.l.b16 %v4244
      %v4277 = vunpack.c.l.b16 %v4245
      %v4278 = vunpack.c.l.b16 %v4246
      %v4279 = vunpack.c.l.b16 %v4247
      %v4280 = vunpack.c.l.b16 %v4248
      %v4281 = vunpack.c.l.b16 %v4249
      %v4282 = vunpack.c.l.b16 %v4250
      %v4283 = vpack.c.b16 %v4268, %v4267
      %v4284 = vpack.c.b16 %v4270, %v4269
      %v4285 = vpack.c.b16 %v4272, %v4271
      %v4286 = vpack.c.b16 %v4274, %v4273
      %v4287 = vpack.c.b16 %v4276, %v4275
      %v4288 = vpack.c.b16 %v4278, %v4277
      %v4289 = vpack.c.b16 %v4280, %v4279
      %v4290 = vpack.c.b16 %v4282, %v4281
      %4299 = vmatpush.bf16.msra.mxu0 %v4290
      %4300 = vmatpush.bf16.msra.mxu0 %v4289
      %4301 = vmatpush.bf16.msra.mxu0 %v4288
      %4302 = vmatpush.bf16.msra.mxu0 %v4287
      %4303 = vmatpush.bf16.msra.mxu0 %v4286
      %4304 = vmatpush.bf16.msra.mxu0 %v4285
      %4305 = vmatpush.bf16.msra.mxu0 %v4284
      %4306 = vmatpush.bf16.msra.mxu0 %v4283
      %4307 = vmatmul.bf16.gmra.mxu0 %v4227
      %v4308 = vpop.f32.mrf.mxu0
      %v4309 = vadd.f32 0.0, %v4308
      %v4310 = vpop.f32.mrf.mxu0
      %v4311 = vadd.f32 0.0, %v4310
      %4312 = vmatmul.bf16.gmra.mxu0 %v4228
      %v4313 = vpop.f32.mrf.mxu0
      %v4314 = vadd.f32 0.0, %v4313
      %v4315 = vpop.f32.mrf.mxu0
      %v4316 = vadd.f32 0.0, %v4315
      %4317 = vmatmul.bf16.gmra.mxu0 %v4229
      %v4318 = vpop.f32.mrf.mxu0
      %v4319 = vadd.f32 0.0, %v4318
      %v4320 = vpop.f32.mrf.mxu0
      %v4321 = vadd.f32 0.0, %v4320
      %4322 = vmatmul.bf16.gmra.mxu0 %v4230
      %v4323 = vpop.f32.mrf.mxu0
      %v4324 = vadd.f32 0.0, %v4323
      %v4325 = vpop.f32.mrf.mxu0
      %v4326 = vadd.f32 0.0, %v4325
      %4327 = vmatmul.bf16.gmra.mxu0 %v4231
      %v4328 = vpop.f32.mrf.mxu0
      %v4329 = vadd.f32 0.0, %v4328
      %v4330 = vpop.f32.mrf.mxu0
      %v4331 = vadd.f32 0.0, %v4330
      %4332 = vmatmul.bf16.gmra.mxu0 %v4232
      %v4333 = vpop.f32.mrf.mxu0
      %v4334 = vadd.f32 0.0, %v4333
      %v4335 = vpop.f32.mrf.mxu0
      %v4336 = vadd.f32 0.0, %v4335
      %4337 = vmatmul.bf16.gmra.mxu0 %v4233
      %v4338 = vpop.f32.mrf.mxu0
      %v4339 = vadd.f32 0.0, %v4338
      %v4340 = vpop.f32.mrf.mxu0
      %4341 = vdwg.mxu0
      %v4342 = vld [vmem:[#allocation4] sm:$0xff]
      %v4343 = vld [vmem:[#allocation4 + $0x8] sm:$0xff]
      %v4344 = vld [vmem:[#allocation4 + $0x10] sm:$0xff]
      %v4345 = vld [vmem:[#allocation4 + $0x18] sm:$0xff]
      %v4346 = vld [vmem:[#allocation4 + $0x20] sm:$0xff]
      %v4347 = vld [vmem:[#allocation4 + $0x28] sm:$0xff]
      %v4348 = vld [vmem:[#allocation4 + $0x30] sm:$0xff]
      %v4349 = vld [vmem:[#allocation4 + $0x38] sm:$0xff]
      %v4350 = vld [vmem:[#allocation4 + $0x40] sm:$0xff]
      %v4351 = vld [vmem:[#allocation4 + $0x48] sm:$0xff]
      %v4352 = vld [vmem:[#allocation4 + $0x50] sm:$0xff]
      %v4353 = vld [vmem:[#allocation4 + $0x58] sm:$0xff]
      %v4354 = vld [vmem:[#allocation4 + $0x60] sm:$0xff]
      %v4355 = vadd.f32 %v4342, %v4309
      %v4356 = vadd.f32 %v4343, %v4311
      %v4357 = vadd.f32 %v4344, %v4314
      %v4358 = vadd.f32 %v4345, %v4316
      %v4359 = vadd.f32 %v4346, %v4319
      %v4360 = vadd.f32 %v4347, %v4321
      %v4361 = vadd.f32 %v4348, %v4324
      %v4362 = vadd.f32 %v4349, %v4326
      %v4363 = vadd.f32 %v4350, %v4329
      %v4364 = vadd.f32 %v4351, %v4331
      %v4365 = vadd.f32 %v4352, %v4334
      %v4366 = vadd.f32 %v4353, %v4336
      %v4367 = vadd.f32 %v4354, %v4339
      %4368 = vst [vmem:[#allocation4] sm:$0xff] %v4355
      %4369 = vst [vmem:[#allocation4 + $0x8] sm:$0xff] %v4356
      %4370 = vst [vmem:[#allocation4 + $0x10] sm:$0xff] %v4357
      %4371 = vst [vmem:[#allocation4 + $0x18] sm:$0xff] %v4358
      %4372 = vst [vmem:[#allocation4 + $0x20] sm:$0xff] %v4359
      %4373 = vst [vmem:[#allocation4 + $0x28] sm:$0xff] %v4360
      %4374 = vst [vmem:[#allocation4 + $0x30] sm:$0xff] %v4361
      %4375 = vst [vmem:[#allocation4 + $0x38] sm:$0xff] %v4362
      %4376 = vst [vmem:[#allocation4 + $0x40] sm:$0xff] %v4363
      %4377 = vst [vmem:[#allocation4 + $0x48] sm:$0xff] %v4364
      %4378 = vst [vmem:[#allocation4 + $0x50] sm:$0xff] %v4365
      %4379 = vst [vmem:[#allocation4 + $0x58] sm:$0xff] %v4366
      %4380 = vst [vmem:[#allocation4 + $0x60] sm:$0xff] %v4367
      %v4381 = vld [vmem:[#allocation3 + $0xb] sm:$0xff]
      %v4382 = vld [vmem:[#allocation3 + $0x13] sm:$0xff]
      %v4383 = vld [vmem:[#allocation3 + $0x1b] sm:$0xff]
      %v4384 = vld [vmem:[#allocation3 + $0x23] sm:$0xff]
      %v4385 = vld [vmem:[#allocation3 + $0x2b] sm:$0xff]
      %v4386 = vld [vmem:[#allocation3 + $0x33] sm:$0xff]
      %v4387 = vld [vmem:[#allocation3 + $0x3b] sm:$0xff]
      %v4388 = vld [vmem:[#allocation3 + $0x43] sm:$0xff]
      %v4389 = vld [vmem:[#allocation3 + $0x4b] sm:$0xff]
      %v4390 = vld [vmem:[#allocation3 + $0x53] sm:$0xff]
      %v4391 = vld [vmem:[#allocation3 + $0x5b] sm:$0xff]
      %v4392 = vld [vmem:[#allocation3 + $0x63] sm:$0xff]
      %v4393 = vld [vmem:[#allocation3 + $0x6b] sm:$0xff]
      %v4394 = vpack.c.bf16 %v4382, %v4381
      %v4395 = vpack.c.bf16 %v4384, %v4383
      %v4396 = vpack.c.bf16 %v4386, %v4385
      %v4397 = vpack.c.bf16 %v4388, %v4387
      %v4398 = vpack.c.bf16 %v4390, %v4389
      %v4399 = vpack.c.bf16 %v4392, %v4391
      %v4400 = vpack.c.bf16 %v4393, %v4393
      %s4401 = scalar_lea.vmem %s3, 256
      %v4402 = vld [vmem:[%s4401] sm:$0xf]
      %v4403 = vld [vmem:[%s4401 + $0x4] sm:$0xf]
      %v4404 = vld [vmem:[%s4401 + $0x8] sm:$0xf]
      %v4405 = vld [vmem:[%s4401 + $0xc] sm:$0xf]
      %v4406 = vld [vmem:[%s4401 + $0x10] sm:$0xf]
      %v4407 = vld [vmem:[%s4401 + $0x14] sm:$0xf]
      %v4408 = vld [vmem:[%s4401 + $0x18] sm:$0xf]
      %v4409 = vld [vmem:[%s4401 + $0x1c] sm:$0xf]
      %v4410 = vld [vmem:[%s4401 + $0x20] sm:$0xf]
      %v4411 = vld [vmem:[%s4401 + $0x24] sm:$0xf]
      %v4412 = vld [vmem:[%s4401 + $0x28] sm:$0xf]
      %v4413 = vld [vmem:[%s4401 + $0x2c] sm:$0xf]
      %v4414 = vld [vmem:[%s4401 + $0x30] sm:$0xf]
      %v4415 = vld [vmem:[%s4401 + $0x34] sm:$0xf]
      %v4416 = vld [vmem:[%s4401 + $0x38] sm:$0xf]
      %v4417 = vld [vmem:[%s4401 + $0x3c] sm:$0xf]
      %v4434 = vunpack.c.l.b16 %v4402
      %v4435 = vunpack.c.l.b16 %v4403
      %v4436 = vunpack.c.l.b16 %v4404
      %v4437 = vunpack.c.l.b16 %v4405
      %v4438 = vunpack.c.l.b16 %v4406
      %v4439 = vunpack.c.l.b16 %v4407
      %v4440 = vunpack.c.l.b16 %v4408
      %v4441 = vunpack.c.l.b16 %v4409
      %v4442 = vunpack.c.l.b16 %v4410
      %v4443 = vunpack.c.l.b16 %v4411
      %v4444 = vunpack.c.l.b16 %v4412
      %v4445 = vunpack.c.l.b16 %v4413
      %v4446 = vunpack.c.l.b16 %v4414
      %v4447 = vunpack.c.l.b16 %v4415
      %v4448 = vunpack.c.l.b16 %v4416
      %v4449 = vunpack.c.l.b16 %v4417
      %v4450 = vpack.c.b16 %v4435, %v4434
      %v4451 = vpack.c.b16 %v4437, %v4436
      %v4452 = vpack.c.b16 %v4439, %v4438
      %v4453 = vpack.c.b16 %v4441, %v4440
      %v4454 = vpack.c.b16 %v4443, %v4442
      %v4455 = vpack.c.b16 %v4445, %v4444
      %v4456 = vpack.c.b16 %v4447, %v4446
      %v4457 = vpack.c.b16 %v4449, %v4448
      %4466 = vmatpush.bf16.msra.mxu0 %v4457
      %4467 = vmatpush.bf16.msra.mxu0 %v4456
      %4468 = vmatpush.bf16.msra.mxu0 %v4455
      %4469 = vmatpush.bf16.msra.mxu0 %v4454
      %4470 = vmatpush.bf16.msra.mxu0 %v4453
      %4471 = vmatpush.bf16.msra.mxu0 %v4452
      %4472 = vmatpush.bf16.msra.mxu0 %v4451
      %4473 = vmatpush.bf16.msra.mxu0 %v4450
      %4474 = vmatmul.bf16.gmra.mxu0 %v4394
      %v4475 = vpop.f32.mrf.mxu0
      %v4476 = vadd.f32 0.0, %v4475
      %v4477 = vpop.f32.mrf.mxu0
      %v4478 = vadd.f32 0.0, %v4477
      %4479 = vmatmul.bf16.gmra.mxu0 %v4395
      %v4480 = vpop.f32.mrf.mxu0
      %v4481 = vadd.f32 0.0, %v4480
      %v4482 = vpop.f32.mrf.mxu0
      %v4483 = vadd.f32 0.0, %v4482
      %4484 = vmatmul.bf16.gmra.mxu0 %v4396
      %v4485 = vpop.f32.mrf.mxu0
      %v4486 = vadd.f32 0.0, %v4485
      %v4487 = vpop.f32.mrf.mxu0
      %v4488 = vadd.f32 0.0, %v4487
      %4489 = vmatmul.bf16.gmra.mxu0 %v4397
      %v4490 = vpop.f32.mrf.mxu0
      %v4491 = vadd.f32 0.0, %v4490
      %v4492 = vpop.f32.mrf.mxu0
      %v4493 = vadd.f32 0.0, %v4492
      %4494 = vmatmul.bf16.gmra.mxu0 %v4398
      %v4495 = vpop.f32.mrf.mxu0
      %v4496 = vadd.f32 0.0, %v4495
      %v4497 = vpop.f32.mrf.mxu0
      %v4498 = vadd.f32 0.0, %v4497
      %4499 = vmatmul.bf16.gmra.mxu0 %v4399
      %v4500 = vpop.f32.mrf.mxu0
      %v4501 = vadd.f32 0.0, %v4500
      %v4502 = vpop.f32.mrf.mxu0
      %v4503 = vadd.f32 0.0, %v4502
      %4504 = vmatmul.bf16.gmra.mxu0 %v4400
      %v4505 = vpop.f32.mrf.mxu0
      %v4506 = vadd.f32 0.0, %v4505
      %v4507 = vpop.f32.mrf.mxu0
      %4508 = vdwg.mxu0
      %v4509 = vld [vmem:[#allocation4] sm:$0xff]
      %v4510 = vld [vmem:[#allocation4 + $0x8] sm:$0xff]
      %v4511 = vld [vmem:[#allocation4 + $0x10] sm:$0xff]
      %v4512 = vld [vmem:[#allocation4 + $0x18] sm:$0xff]
      %v4513 = vld [vmem:[#allocation4 + $0x20] sm:$0xff]
      %v4514 = vld [vmem:[#allocation4 + $0x28] sm:$0xff]
      %v4515 = vld [vmem:[#allocation4 + $0x30] sm:$0xff]
      %v4516 = vld [vmem:[#allocation4 + $0x38] sm:$0xff]
      %v4517 = vld [vmem:[#allocation4 + $0x40] sm:$0xff]
      %v4518 = vld [vmem:[#allocation4 + $0x48] sm:$0xff]
      %v4519 = vld [vmem:[#allocation4 + $0x50] sm:$0xff]
      %v4520 = vld [vmem:[#allocation4 + $0x58] sm:$0xff]
      %v4521 = vld [vmem:[#allocation4 + $0x60] sm:$0xff]
      %v4522 = vadd.f32 %v4509, %v4476
      %v4523 = vadd.f32 %v4510, %v4478
      %v4524 = vadd.f32 %v4511, %v4481
      %v4525 = vadd.f32 %v4512, %v4483
      %v4526 = vadd.f32 %v4513, %v4486
      %v4527 = vadd.f32 %v4514, %v4488
      %v4528 = vadd.f32 %v4515, %v4491
      %v4529 = vadd.f32 %v4516, %v4493
      %v4530 = vadd.f32 %v4517, %v4496
      %v4531 = vadd.f32 %v4518, %v4498
      %v4532 = vadd.f32 %v4519, %v4501
      %v4533 = vadd.f32 %v4520, %v4503
      %v4534 = vadd.f32 %v4521, %v4506
      %4535 = vst [vmem:[#allocation4] sm:$0xff] %v4522
      %4536 = vst [vmem:[#allocation4 + $0x8] sm:$0xff] %v4523
      %4537 = vst [vmem:[#allocation4 + $0x10] sm:$0xff] %v4524
      %4538 = vst [vmem:[#allocation4 + $0x18] sm:$0xff] %v4525
      %4539 = vst [vmem:[#allocation4 + $0x20] sm:$0xff] %v4526
      %4540 = vst [vmem:[#allocation4 + $0x28] sm:$0xff] %v4527
      %4541 = vst [vmem:[#allocation4 + $0x30] sm:$0xff] %v4528
      %4542 = vst [vmem:[#allocation4 + $0x38] sm:$0xff] %v4529
      %4543 = vst [vmem:[#allocation4 + $0x40] sm:$0xff] %v4530
      %4544 = vst [vmem:[#allocation4 + $0x48] sm:$0xff] %v4531
      %4545 = vst [vmem:[#allocation4 + $0x50] sm:$0xff] %v4532
      %4546 = vst [vmem:[#allocation4 + $0x58] sm:$0xff] %v4533
      %4547 = vst [vmem:[#allocation4 + $0x60] sm:$0xff] %v4534
      %v4548 = vld [vmem:[#allocation3 + $0xc] sm:$0xff]
      %v4549 = vld [vmem:[#allocation3 + $0x14] sm:$0xff]
      %v4550 = vld [vmem:[#allocation3 + $0x1c] sm:$0xff]
      %v4551 = vld [vmem:[#allocation3 + $0x24] sm:$0xff]
      %v4552 = vld [vmem:[#allocation3 + $0x2c] sm:$0xff]
      %v4553 = vld [vmem:[#allocation3 + $0x34] sm:$0xff]
      %v4554 = vld [vmem:[#allocation3 + $0x3c] sm:$0xff]
      %v4555 = vld [vmem:[#allocation3 + $0x44] sm:$0xff]
      %v4556 = vld [vmem:[#allocation3 + $0x4c] sm:$0xff]
      %v4557 = vld [vmem:[#allocation3 + $0x54] sm:$0xff]
      %v4558 = vld [vmem:[#allocation3 + $0x5c] sm:$0xff]
      %v4559 = vld [vmem:[#allocation3 + $0x64] sm:$0xff]
      %v4560 = vld [vmem:[#allocation3 + $0x6c] sm:$0xff]
      %v4561 = vpack.c.bf16 %v4549, %v4548
      %v4562 = vpack.c.bf16 %v4551, %v4550
      %v4563 = vpack.c.bf16 %v4553, %v4552
      %v4564 = vpack.c.bf16 %v4555, %v4554
      %v4565 = vpack.c.bf16 %v4557, %v4556
      %v4566 = vpack.c.bf16 %v4559, %v4558
      %v4567 = vpack.c.bf16 %v4560, %v4560
      %s4568 = scalar_lea.vmem %s3, 320
      %v4569 = vld [vmem:[%s4568] sm:$0xf]
      %v4570 = vld [vmem:[%s4568 + $0x4] sm:$0xf]
      %v4571 = vld [vmem:[%s4568 + $0x8] sm:$0xf]
      %v4572 = vld [vmem:[%s4568 + $0xc] sm:$0xf]
      %v4573 = vld [vmem:[%s4568 + $0x10] sm:$0xf]
      %v4574 = vld [vmem:[%s4568 + $0x14] sm:$0xf]
      %v4575 = vld [vmem:[%s4568 + $0x18] sm:$0xf]
      %v4576 = vld [vmem:[%s4568 + $0x1c] sm:$0xf]
      %v4577 = vld [vmem:[%s4568 + $0x20] sm:$0xf]
      %v4578 = vld [vmem:[%s4568 + $0x24] sm:$0xf]
      %v4579 = vld [vmem:[%s4568 + $0x28] sm:$0xf]
      %v4580 = vld [vmem:[%s4568 + $0x2c] sm:$0xf]
      %v4581 = vld [vmem:[%s4568 + $0x30] sm:$0xf]
      %v4582 = vld [vmem:[%s4568 + $0x34] sm:$0xf]
      %v4583 = vld [vmem:[%s4568 + $0x38] sm:$0xf]
      %v4584 = vld [vmem:[%s4568 + $0x3c] sm:$0xf]
      %v4601 = vunpack.c.l.b16 %v4569
      %v4602 = vunpack.c.l.b16 %v4570
      %v4603 = vunpack.c.l.b16 %v4571
      %v4604 = vunpack.c.l.b16 %v4572
      %v4605 = vunpack.c.l.b16 %v4573
      %v4606 = vunpack.c.l.b16 %v4574
      %v4607 = vunpack.c.l.b16 %v4575
      %v4608 = vunpack.c.l.b16 %v4576
      %v4609 = vunpack.c.l.b16 %v4577
      %v4610 = vunpack.c.l.b16 %v4578
      %v4611 = vunpack.c.l.b16 %v4579
      %v4612 = vunpack.c.l.b16 %v4580
      %v4613 = vunpack.c.l.b16 %v4581
      %v4614 = vunpack.c.l.b16 %v4582
      %v4615 = vunpack.c.l.b16 %v4583
      %v4616 = vunpack.c.l.b16 %v4584
      %v4617 = vpack.c.b16 %v4602, %v4601
      %v4618 = vpack.c.b16 %v4604, %v4603
      %v4619 = vpack.c.b16 %v4606, %v4605
      %v4620 = vpack.c.b16 %v4608, %v4607
      %v4621 = vpack.c.b16 %v4610, %v4609
      %v4622 = vpack.c.b16 %v4612, %v4611
      %v4623 = vpack.c.b16 %v4614, %v4613
      %v4624 = vpack.c.b16 %v4616, %v4615
      %4633 = vmatpush.bf16.msra.mxu0 %v4624
      %4634 = vmatpush.bf16.msra.mxu0 %v4623
      %4635 = vmatpush.bf16.msra.mxu0 %v4622
      %4636 = vmatpush.bf16.msra.mxu0 %v4621
      %4637 = vmatpush.bf16.msra.mxu0 %v4620
      %4638 = vmatpush.bf16.msra.mxu0 %v4619
      %4639 = vmatpush.bf16.msra.mxu0 %v4618
      %4640 = vmatpush.bf16.msra.mxu0 %v4617
      %4641 = vmatmul.bf16.gmra.mxu0 %v4561
      %v4642 = vpop.f32.mrf.mxu0
      %v4643 = vadd.f32 0.0, %v4642
      %v4644 = vpop.f32.mrf.mxu0
      %v4645 = vadd.f32 0.0, %v4644
      %4646 = vmatmul.bf16.gmra.mxu0 %v4562
      %v4647 = vpop.f32.mrf.mxu0
      %v4648 = vadd.f32 0.0, %v4647
      %v4649 = vpop.f32.mrf.mxu0
      %v4650 = vadd.f32 0.0, %v4649
      %4651 = vmatmul.bf16.gmra.mxu0 %v4563
      %v4652 = vpop.f32.mrf.mxu0
      %v4653 = vadd.f32 0.0, %v4652
      %v4654 = vpop.f32.mrf.mxu0
      %v4655 = vadd.f32 0.0, %v4654
      %4656 = vmatmul.bf16.gmra.mxu0 %v4564
      %v4657 = vpop.f32.mrf.mxu0
      %v4658 = vadd.f32 0.0, %v4657
      %v4659 = vpop.f32.mrf.mxu0
      %v4660 = vadd.f32 0.0, %v4659
      %4661 = vmatmul.bf16.gmra.mxu0 %v4565
      %v4662 = vpop.f32.mrf.mxu0
      %v4663 = vadd.f32 0.0, %v4662
      %v4664 = vpop.f32.mrf.mxu0
      %v4665 = vadd.f32 0.0, %v4664
      %4666 = vmatmul.bf16.gmra.mxu0 %v4566
      %v4667 = vpop.f32.mrf.mxu0
      %v4668 = vadd.f32 0.0, %v4667
      %v4669 = vpop.f32.mrf.mxu0
      %v4670 = vadd.f32 0.0, %v4669
      %4671 = vmatmul.bf16.gmra.mxu0 %v4567
      %v4672 = vpop.f32.mrf.mxu0
      %v4673 = vadd.f32 0.0, %v4672
      %v4674 = vpop.f32.mrf.mxu0
      %4675 = vdwg.mxu0
      %v4676 = vld [vmem:[#allocation4] sm:$0xff]
      %v4677 = vld [vmem:[#allocation4 + $0x8] sm:$0xff]
      %v4678 = vld [vmem:[#allocation4 + $0x10] sm:$0xff]
      %v4679 = vld [vmem:[#allocation4 + $0x18] sm:$0xff]
      %v4680 = vld [vmem:[#allocation4 + $0x20] sm:$0xff]
      %v4681 = vld [vmem:[#allocation4 + $0x28] sm:$0xff]
      %v4682 = vld [vmem:[#allocation4 + $0x30] sm:$0xff]
      %v4683 = vld [vmem:[#allocation4 + $0x38] sm:$0xff]
      %v4684 = vld [vmem:[#allocation4 + $0x40] sm:$0xff]
      %v4685 = vld [vmem:[#allocation4 + $0x48] sm:$0xff]
      %v4686 = vld [vmem:[#allocation4 + $0x50] sm:$0xff]
      %v4687 = vld [vmem:[#allocation4 + $0x58] sm:$0xff]
      %v4688 = vld [vmem:[#allocation4 + $0x60] sm:$0xff]
      %v4689 = vadd.f32 %v4676, %v4643
      %v4690 = vadd.f32 %v4677, %v4645
      %v4691 = vadd.f32 %v4678, %v4648
      %v4692 = vadd.f32 %v4679, %v4650
      %v4693 = vadd.f32 %v4680, %v4653
      %v4694 = vadd.f32 %v4681, %v4655
      %v4695 = vadd.f32 %v4682, %v4658
      %v4696 = vadd.f32 %v4683, %v4660
      %v4697 = vadd.f32 %v4684, %v4663
      %v4698 = vadd.f32 %v4685, %v4665
      %v4699 = vadd.f32 %v4686, %v4668
      %v4700 = vadd.f32 %v4687, %v4670
      %v4701 = vadd.f32 %v4688, %v4673
      %4702 = vst [vmem:[#allocation4] sm:$0xff] %v4689
      %4703 = vst [vmem:[#allocation4 + $0x8] sm:$0xff] %v4690
      %4704 = vst [vmem:[#allocation4 + $0x10] sm:$0xff] %v4691
      %4705 = vst [vmem:[#allocation4 + $0x18] sm:$0xff] %v4692
      %4706 = vst [vmem:[#allocation4 + $0x20] sm:$0xff] %v4693
      %4707 = vst [vmem:[#allocation4 + $0x28] sm:$0xff] %v4694
      %4708 = vst [vmem:[#allocation4 + $0x30] sm:$0xff] %v4695
      %4709 = vst [vmem:[#allocation4 + $0x38] sm:$0xff] %v4696
      %4710 = vst [vmem:[#allocation4 + $0x40] sm:$0xff] %v4697
      %4711 = vst [vmem:[#allocation4 + $0x48] sm:$0xff] %v4698
      %4712 = vst [vmem:[#allocation4 + $0x50] sm:$0xff] %v4699
      %4713 = vst [vmem:[#allocation4 + $0x58] sm:$0xff] %v4700
      %4714 = vst [vmem:[#allocation4 + $0x60] sm:$0xff] %v4701
      %v4715 = vld [vmem:[#allocation3 + $0x14] sm:$0xff]
      %v4716 = vld [vmem:[#allocation3 + $0x1c] sm:$0xff]
      %v4717 = vld [vmem:[#allocation3 + $0x24] sm:$0xff]
      %v4718 = vld [vmem:[#allocation3 + $0x2c] sm:$0xff]
      %v4719 = vld [vmem:[#allocation3 + $0x34] sm:$0xff]
      %v4720 = vld [vmem:[#allocation3 + $0x3c] sm:$0xff]
      %v4721 = vld [vmem:[#allocation3 + $0x44] sm:$0xff]
      %v4722 = vld [vmem:[#allocation3 + $0x4c] sm:$0xff]
      %v4723 = vld [vmem:[#allocation3 + $0x54] sm:$0xff]
      %v4724 = vld [vmem:[#allocation3 + $0x5c] sm:$0xff]
      %v4725 = vld [vmem:[#allocation3 + $0x64] sm:$0xff]
      %v4726 = vld [vmem:[#allocation3 + $0x6c] sm:$0xff]
      %v4727 = vld [vmem:[#allocation3 + $0x74] sm:$0xff]
      %v4728 = vpack.c.bf16 %v4716, %v4715
      %v4729 = vpack.c.bf16 %v4718, %v4717
      %v4730 = vpack.c.bf16 %v4720, %v4719
      %v4731 = vpack.c.bf16 %v4722, %v4721
      %v4732 = vpack.c.bf16 %v4724, %v4723
      %v4733 = vpack.c.bf16 %v4726, %v4725
      %v4734 = vpack.c.bf16 %v4727, %v4727
      %s4735 = scalar_lea.vmem %s3, 384
      %v4736 = vld [vmem:[%s4735] sm:$0xf]
      %v4737 = vld [vmem:[%s4735 + $0x4] sm:$0xf]
      %v4738 = vld [vmem:[%s4735 + $0x8] sm:$0xf]
      %v4739 = vld [vmem:[%s4735 + $0xc] sm:$0xf]
      %v4740 = vld [vmem:[%s4735 + $0x10] sm:$0xf]
      %v4741 = vld [vmem:[%s4735 + $0x14] sm:$0xf]
      %v4742 = vld [vmem:[%s4735 + $0x18] sm:$0xf]
      %v4743 = vld [vmem:[%s4735 + $0x1c] sm:$0xf]
      %v4744 = vld [vmem:[%s4735 + $0x20] sm:$0xf]
      %v4745 = vld [vmem:[%s4735 + $0x24] sm:$0xf]
      %v4746 = vld [vmem:[%s4735 + $0x28] sm:$0xf]
      %v4747 = vld [vmem:[%s4735 + $0x2c] sm:$0xf]
      %v4748 = vld [vmem:[%s4735 + $0x30] sm:$0xf]
      %v4749 = vld [vmem:[%s4735 + $0x34] sm:$0xf]
      %v4750 = vld [vmem:[%s4735 + $0x38] sm:$0xf]
      %v4751 = vld [vmem:[%s4735 + $0x3c] sm:$0xf]
      %v4768 = vunpack.c.l.b16 %v4736
      %v4769 = vunpack.c.l.b16 %v4737
      %v4770 = vunpack.c.l.b16 %v4738
      %v4771 = vunpack.c.l.b16 %v4739
      %v4772 = vunpack.c.l.b16 %v4740
      %v4773 = vunpack.c.l.b16 %v4741
      %v4774 = vunpack.c.l.b16 %v4742
      %v4775 = vunpack.c.l.b16 %v4743
      %v4776 = vunpack.c.l.b16 %v4744
      %v4777 = vunpack.c.l.b16 %v4745
      %v4778 = vunpack.c.l.b16 %v4746
      %v4779 = vunpack.c.l.b16 %v4747
      %v4780 = vunpack.c.l.b16 %v4748
      %v4781 = vunpack.c.l.b16 %v4749
      %v4782 = vunpack.c.l.b16 %v4750
      %v4783 = vunpack.c.l.b16 %v4751
      %v4784 = vpack.c.b16 %v4769, %v4768
      %v4785 = vpack.c.b16 %v4771, %v4770
      %v4786 = vpack.c.b16 %v4773, %v4772
      %v4787 = vpack.c.b16 %v4775, %v4774
      %v4788 = vpack.c.b16 %v4777, %v4776
      %v4789 = vpack.c.b16 %v4779, %v4778
      %v4790 = vpack.c.b16 %v4781, %v4780
      %v4791 = vpack.c.b16 %v4783, %v4782
      %4800 = vmatpush.bf16.msra.mxu0 %v4791
      %4801 = vmatpush.bf16.msra.mxu0 %v4790
      %4802 = vmatpush.bf16.msra.mxu0 %v4789
      %4803 = vmatpush.bf16.msra.mxu0 %v4788
      %4804 = vmatpush.bf16.msra.mxu0 %v4787
      %4805 = vmatpush.bf16.msra.mxu0 %v4786
      %4806 = vmatpush.bf16.msra.mxu0 %v4785
      %4807 = vmatpush.bf16.msra.mxu0 %v4784
      %4808 = vmatmul.bf16.gmra.mxu0 %v4728
      %v4809 = vpop.f32.mrf.mxu0
      %v4810 = vadd.f32 0.0, %v4809
      %v4811 = vpop.f32.mrf.mxu0
      %v4812 = vadd.f32 0.0, %v4811
      %4813 = vmatmul.bf16.gmra.mxu0 %v4729
      %v4814 = vpop.f32.mrf.mxu0
      %v4815 = vadd.f32 0.0, %v4814
      %v4816 = vpop.f32.mrf.mxu0
      %v4817 = vadd.f32 0.0, %v4816
      %4818 = vmatmul.bf16.gmra.mxu0 %v4730
      %v4819 = vpop.f32.mrf.mxu0
      %v4820 = vadd.f32 0.0, %v4819
      %v4821 = vpop.f32.mrf.mxu0
      %v4822 = vadd.f32 0.0, %v4821
      %4823 = vmatmul.bf16.gmra.mxu0 %v4731
      %v4824 = vpop.f32.mrf.mxu0
      %v4825 = vadd.f32 0.0, %v4824
      %v4826 = vpop.f32.mrf.mxu0
      %v4827 = vadd.f32 0.0, %v4826
      %4828 = vmatmul.bf16.gmra.mxu0 %v4732
      %v4829 = vpop.f32.mrf.mxu0
      %v4830 = vadd.f32 0.0, %v4829
      %v4831 = vpop.f32.mrf.mxu0
      %v4832 = vadd.f32 0.0, %v4831
      %4833 = vmatmul.bf16.gmra.mxu0 %v4733
      %v4834 = vpop.f32.mrf.mxu0
      %v4835 = vadd.f32 0.0, %v4834
      %v4836 = vpop.f32.mrf.mxu0
      %v4837 = vadd.f32 0.0, %v4836
      %4838 = vmatmul.bf16.gmra.mxu0 %v4734
      %v4839 = vpop.f32.mrf.mxu0
      %v4840 = vadd.f32 0.0, %v4839
      %v4841 = vpop.f32.mrf.mxu0
      %4842 = vdwg.mxu0
      %v4843 = vld [vmem:[#allocation4] sm:$0xff]
      %v4844 = vld [vmem:[#allocation4 + $0x8] sm:$0xff]
      %v4845 = vld [vmem:[#allocation4 + $0x10] sm:$0xff]
      %v4846 = vld [vmem:[#allocation4 + $0x18] sm:$0xff]
      %v4847 = vld [vmem:[#allocation4 + $0x20] sm:$0xff]
      %v4848 = vld [vmem:[#allocation4 + $0x28] sm:$0xff]
      %v4849 = vld [vmem:[#allocation4 + $0x30] sm:$0xff]
      %v4850 = vld [vmem:[#allocation4 + $0x38] sm:$0xff]
      %v4851 = vld [vmem:[#allocation4 + $0x40] sm:$0xff]
      %v4852 = vld [vmem:[#allocation4 + $0x48] sm:$0xff]
      %v4853 = vld [vmem:[#allocation4 + $0x50] sm:$0xff]
      %v4854 = vld [vmem:[#allocation4 + $0x58] sm:$0xff]
      %v4855 = vld [vmem:[#allocation4 + $0x60] sm:$0xff]
      %v4856 = vadd.f32 %v4843, %v4810
      %v4857 = vadd.f32 %v4844, %v4812
      %v4858 = vadd.f32 %v4845, %v4815
      %v4859 = vadd.f32 %v4846, %v4817
      %v4860 = vadd.f32 %v4847, %v4820
      %v4861 = vadd.f32 %v4848, %v4822
      %v4862 = vadd.f32 %v4849, %v4825
      %v4863 = vadd.f32 %v4850, %v4827
      %v4864 = vadd.f32 %v4851, %v4830
      %v4865 = vadd.f32 %v4852, %v4832
      %v4866 = vadd.f32 %v4853, %v4835
      %v4867 = vadd.f32 %v4854, %v4837
      %v4868 = vadd.f32 %v4855, %v4840
      %4869 = vst [vmem:[#allocation4] sm:$0xff] %v4856
      %4870 = vst [vmem:[#allocation4 + $0x8] sm:$0xff] %v4857
      %4871 = vst [vmem:[#allocation4 + $0x10] sm:$0xff] %v4858
      %4872 = vst [vmem:[#allocation4 + $0x18] sm:$0xff] %v4859
      %4873 = vst [vmem:[#allocation4 + $0x20] sm:$0xff] %v4860
      %4874 = vst [vmem:[#allocation4 + $0x28] sm:$0xff] %v4861
      %4875 = vst [vmem:[#allocation4 + $0x30] sm:$0xff] %v4862
      %4876 = vst [vmem:[#allocation4 + $0x38] sm:$0xff] %v4863
      %4877 = vst [vmem:[#allocation4 + $0x40] sm:$0xff] %v4864
      %4878 = vst [vmem:[#allocation4 + $0x48] sm:$0xff] %v4865
      %4879 = vst [vmem:[#allocation4 + $0x50] sm:$0xff] %v4866
      %4880 = vst [vmem:[#allocation4 + $0x58] sm:$0xff] %v4867
      %4881 = vst [vmem:[#allocation4 + $0x60] sm:$0xff] %v4868
      %v4882 = vld [vmem:[#allocation3 + $0x15] sm:$0xff]
      %v4883 = vld [vmem:[#allocation3 + $0x1d] sm:$0xff]
      %v4884 = vld [vmem:[#allocation3 + $0x25] sm:$0xff]
      %v4885 = vld [vmem:[#allocation3 + $0x2d] sm:$0xff]
      %v4886 = vld [vmem:[#allocation3 + $0x35] sm:$0xff]
      %v4887 = vld [vmem:[#allocation3 + $0x3d] sm:$0xff]
      %v4888 = vld [vmem:[#allocation3 + $0x45] sm:$0xff]
      %v4889 = vld [vmem:[#allocation3 + $0x4d] sm:$0xff]
      %v4890 = vld [vmem:[#allocation3 + $0x55] sm:$0xff]
      %v4891 = vld [vmem:[#allocation3 + $0x5d] sm:$0xff]
      %v4892 = vld [vmem:[#allocation3 + $0x65] sm:$0xff]
      %v4893 = vld [vmem:[#allocation3 + $0x6d] sm:$0xff]
      %v4894 = vld [vmem:[#allocation3 + $0x75] sm:$0xff]
      %v4895 = vpack.c.bf16 %v4883, %v4882
      %v4896 = vpack.c.bf16 %v4885, %v4884
      %v4897 = vpack.c.bf16 %v4887, %v4886
      %v4898 = vpack.c.bf16 %v4889, %v4888
      %v4899 = vpack.c.bf16 %v4891, %v4890
      %v4900 = vpack.c.bf16 %v4893, %v4892
      %v4901 = vpack.c.bf16 %v4894, %v4894
      %s4902 = scalar_lea.vmem %s3, 448
      %v4903 = vld [vmem:[%s4902] sm:$0xf]
      %v4904 = vld [vmem:[%s4902 + $0x4] sm:$0xf]
      %v4905 = vld [vmem:[%s4902 + $0x8] sm:$0xf]
      %v4906 = vld [vmem:[%s4902 + $0xc] sm:$0xf]
      %v4907 = vld [vmem:[%s4902 + $0x10] sm:$0xf]
      %v4908 = vld [vmem:[%s4902 + $0x14] sm:$0xf]
      %v4909 = vld [vmem:[%s4902 + $0x18] sm:$0xf]
      %v4910 = vld [vmem:[%s4902 + $0x1c] sm:$0xf]
      %v4911 = vld [vmem:[%s4902 + $0x20] sm:$0xf]
      %v4912 = vld [vmem:[%s4902 + $0x24] sm:$0xf]
      %v4913 = vld [vmem:[%s4902 + $0x28] sm:$0xf]
      %v4914 = vld [vmem:[%s4902 + $0x2c] sm:$0xf]
      %v4915 = vld [vmem:[%s4902 + $0x30] sm:$0xf]
      %v4916 = vld [vmem:[%s4902 + $0x34] sm:$0xf]
      %v4917 = vld [vmem:[%s4902 + $0x38] sm:$0xf]
      %v4918 = vld [vmem:[%s4902 + $0x3c] sm:$0xf]
      %v4935 = vunpack.c.l.b16 %v4903
      %v4936 = vunpack.c.l.b16 %v4904
      %v4937 = vunpack.c.l.b16 %v4905
      %v4938 = vunpack.c.l.b16 %v4906
      %v4939 = vunpack.c.l.b16 %v4907
      %v4940 = vunpack.c.l.b16 %v4908
      %v4941 = vunpack.c.l.b16 %v4909
      %v4942 = vunpack.c.l.b16 %v4910
      %v4943 = vunpack.c.l.b16 %v4911
      %v4944 = vunpack.c.l.b16 %v4912
      %v4945 = vunpack.c.l.b16 %v4913
      %v4946 = vunpack.c.l.b16 %v4914
      %v4947 = vunpack.c.l.b16 %v4915
      %v4948 = vunpack.c.l.b16 %v4916
      %v4949 = vunpack.c.l.b16 %v4917
      %v4950 = vunpack.c.l.b16 %v4918
      %v4951 = vpack.c.b16 %v4936, %v4935
      %v4952 = vpack.c.b16 %v4938, %v4937
      %v4953 = vpack.c.b16 %v4940, %v4939
      %v4954 = vpack.c.b16 %v4942, %v4941
      %v4955 = vpack.c.b16 %v4944, %v4943
      %v4956 = vpack.c.b16 %v4946, %v4945
      %v4957 = vpack.c.b16 %v4948, %v4947
      %v4958 = vpack.c.b16 %v4950, %v4949
      %4967 = vmatpush.bf16.msra.mxu0 %v4958
      %4968 = vmatpush.bf16.msra.mxu0 %v4957
      %4969 = vmatpush.bf16.msra.mxu0 %v4956
      %4970 = vmatpush.bf16.msra.mxu0 %v4955
      %4971 = vmatpush.bf16.msra.mxu0 %v4954
      %4972 = vmatpush.bf16.msra.mxu0 %v4953
      %4973 = vmatpush.bf16.msra.mxu0 %v4952
      %4974 = vmatpush.bf16.msra.mxu0 %v4951
      %4975 = vmatmul.bf16.gmra.mxu0 %v4895
      %v4976 = vpop.f32.mrf.mxu0
      %v4977 = vadd.f32 0.0, %v4976
      %v4978 = vpop.f32.mrf.mxu0
      %v4979 = vadd.f32 0.0, %v4978
      %4980 = vmatmul.bf16.gmra.mxu0 %v4896
      %v4981 = vpop.f32.mrf.mxu0
      %v4982 = vadd.f32 0.0, %v4981
      %v4983 = vpop.f32.mrf.mxu0
      %v4984 = vadd.f32 0.0, %v4983
      %4985 = vmatmul.bf16.gmra.mxu0 %v4897
      %v4986 = vpop.f32.mrf.mxu0
      %v4987 = vadd.f32 0.0, %v4986
      %v4988 = vpop.f32.mrf.mxu0
      %v4989 = vadd.f32 0.0, %v4988
      %4990 = vmatmul.bf16.gmra.mxu0 %v4898
      %v4991 = vpop.f32.mrf.mxu0
      %v4992 = vadd.f32 0.0, %v4991
      %v4993 = vpop.f32.mrf.mxu0
      %v4994 = vadd.f32 0.0, %v4993
      %4995 = vmatmul.bf16.gmra.mxu0 %v4899
      %v4996 = vpop.f32.mrf.mxu0
      %v4997 = vadd.f32 0.0, %v4996
      %v4998 = vpop.f32.mrf.mxu0
      %v4999 = vadd.f32 0.0, %v4998
      %5000 = vmatmul.bf16.gmra.mxu0 %v4900
      %v5001 = vpop.f32.mrf.mxu0
      %v5002 = vadd.f32 0.0, %v5001
      %v5003 = vpop.f32.mrf.mxu0
      %v5004 = vadd.f32 0.0, %v5003
      %5005 = vmatmul.bf16.gmra.mxu0 %v4901
      %v5006 = vpop.f32.mrf.mxu0
      %v5007 = vadd.f32 0.0, %v5006
      %v5008 = vpop.f32.mrf.mxu0
      %5009 = vdwg.mxu0
      %v5010 = vld [vmem:[#allocation4] sm:$0xff]
      %v5011 = vld [vmem:[#allocation4 + $0x8] sm:$0xff]
      %v5012 = vld [vmem:[#allocation4 + $0x10] sm:$0xff]
      %v5013 = vld [vmem:[#allocation4 + $0x18] sm:$0xff]
      %v5014 = vld [vmem:[#allocation4 + $0x20] sm:$0xff]
      %v5015 = vld [vmem:[#allocation4 + $0x28] sm:$0xff]
      %v5016 = vld [vmem:[#allocation4 + $0x30] sm:$0xff]
      %v5017 = vld [vmem:[#allocation4 + $0x38] sm:$0xff]
      %v5018 = vld [vmem:[#allocation4 + $0x40] sm:$0xff]
      %v5019 = vld [vmem:[#allocation4 + $0x48] sm:$0xff]
      %v5020 = vld [vmem:[#allocation4 + $0x50] sm:$0xff]
      %v5021 = vld [vmem:[#allocation4 + $0x58] sm:$0xff]
      %v5022 = vld [vmem:[#allocation4 + $0x60] sm:$0xff]
      %v5023 = vadd.f32 %v5010, %v4977
      %v5024 = vadd.f32 %v5011, %v4979
      %v5025 = vadd.f32 %v5012, %v4982
      %v5026 = vadd.f32 %v5013, %v4984
      %v5027 = vadd.f32 %v5014, %v4987
      %v5028 = vadd.f32 %v5015, %v4989
      %v5029 = vadd.f32 %v5016, %v4992
      %v5030 = vadd.f32 %v5017, %v4994
      %v5031 = vadd.f32 %v5018, %v4997
      %v5032 = vadd.f32 %v5019, %v4999
      %v5033 = vadd.f32 %v5020, %v5002
      %v5034 = vadd.f32 %v5021, %v5004
      %v5035 = vadd.f32 %v5022, %v5007
      %5036 = vst [vmem:[#allocation4] sm:$0xff] %v5023
      %5037 = vst [vmem:[#allocation4 + $0x8] sm:$0xff] %v5024
      %5038 = vst [vmem:[#allocation4 + $0x10] sm:$0xff] %v5025
      %5039 = vst [vmem:[#allocation4 + $0x18] sm:$0xff] %v5026
      %5040 = vst [vmem:[#allocation4 + $0x20] sm:$0xff] %v5027
      %5041 = vst [vmem:[#allocation4 + $0x28] sm:$0xff] %v5028
      %5042 = vst [vmem:[#allocation4 + $0x30] sm:$0xff] %v5029
      %5043 = vst [vmem:[#allocation4 + $0x38] sm:$0xff] %v5030
      %5044 = vst [vmem:[#allocation4 + $0x40] sm:$0xff] %v5031
      %5045 = vst [vmem:[#allocation4 + $0x48] sm:$0xff] %v5032
      %5046 = vst [vmem:[#allocation4 + $0x50] sm:$0xff] %v5033
      %5047 = vst [vmem:[#allocation4 + $0x58] sm:$0xff] %v5034
      %5048 = vst [vmem:[#allocation4 + $0x60] sm:$0xff] %v5035
      %v5049 = vld [vmem:[#allocation3 + $0x16] sm:$0xff]
      %v5050 = vld [vmem:[#allocation3 + $0x1e] sm:$0xff]
      %v5051 = vld [vmem:[#allocation3 + $0x26] sm:$0xff]
      %v5052 = vld [vmem:[#allocation3 + $0x2e] sm:$0xff]
      %v5053 = vld [vmem:[#allocation3 + $0x36] sm:$0xff]
      %v5054 = vld [vmem:[#allocation3 + $0x3e] sm:$0xff]
      %v5055 = vld [vmem:[#allocation3 + $0x46] sm:$0xff]
      %v5056 = vld [vmem:[#allocation3 + $0x4e] sm:$0xff]
      %v5057 = vld [vmem:[#allocation3 + $0x56] sm:$0xff]
      %v5058 = vld [vmem:[#allocation3 + $0x5e] sm:$0xff]
      %v5059 = vld [vmem:[#allocation3 + $0x66] sm:$0xff]
      %v5060 = vld [vmem:[#allocation3 + $0x6e] sm:$0xff]
      %v5061 = vld [vmem:[#allocation3 + $0x76] sm:$0xff]
      %v5062 = vpack.c.bf16 %v5050, %v5049
      %v5063 = vpack.c.bf16 %v5052, %v5051
      %v5064 = vpack.c.bf16 %v5054, %v5053
      %v5065 = vpack.c.bf16 %v5056, %v5055
      %v5066 = vpack.c.bf16 %v5058, %v5057
      %v5067 = vpack.c.bf16 %v5060, %v5059
      %v5068 = vpack.c.bf16 %v5061, %v5061
      %s5069 = scalar_lea.vmem %s3, 512
      %v5070 = vld [vmem:[%s5069] sm:$0xf]
      %v5071 = vld [vmem:[%s5069 + $0x4] sm:$0xf]
      %v5072 = vld [vmem:[%s5069 + $0x8] sm:$0xf]
      %v5073 = vld [vmem:[%s5069 + $0xc] sm:$0xf]
      %v5074 = vld [vmem:[%s5069 + $0x10] sm:$0xf]
      %v5075 = vld [vmem:[%s5069 + $0x14] sm:$0xf]
      %v5076 = vld [vmem:[%s5069 + $0x18] sm:$0xf]
      %v5077 = vld [vmem:[%s5069 + $0x1c] sm:$0xf]
      %v5078 = vld [vmem:[%s5069 + $0x20] sm:$0xf]
      %v5079 = vld [vmem:[%s5069 + $0x24] sm:$0xf]
      %v5080 = vld [vmem:[%s5069 + $0x28] sm:$0xf]
      %v5081 = vld [vmem:[%s5069 + $0x2c] sm:$0xf]
      %v5082 = vld [vmem:[%s5069 + $0x30] sm:$0xf]
      %v5083 = vld [vmem:[%s5069 + $0x34] sm:$0xf]
      %v5084 = vld [vmem:[%s5069 + $0x38] sm:$0xf]
      %v5085 = vld [vmem:[%s5069 + $0x3c] sm:$0xf]
      %v5102 = vunpack.c.l.b16 %v5070
      %v5103 = vunpack.c.l.b16 %v5071
      %v5104 = vunpack.c.l.b16 %v5072
      %v5105 = vunpack.c.l.b16 %v5073
      %v5106 = vunpack.c.l.b16 %v5074
      %v5107 = vunpack.c.l.b16 %v5075
      %v5108 = vunpack.c.l.b16 %v5076
      %v5109 = vunpack.c.l.b16 %v5077
      %v5110 = vunpack.c.l.b16 %v5078
      %v5111 = vunpack.c.l.b16 %v5079
      %v5112 = vunpack.c.l.b16 %v5080
      %v5113 = vunpack.c.l.b16 %v5081
      %v5114 = vunpack.c.l.b16 %v5082
      %v5115 = vunpack.c.l.b16 %v5083
      %v5116 = vunpack.c.l.b16 %v5084
      %v5117 = vunpack.c.l.b16 %v5085
      %v5118 = vpack.c.b16 %v5103, %v5102
      %v5119 = vpack.c.b16 %v5105, %v5104
      %v5120 = vpack.c.b16 %v5107, %v5106
      %v5121 = vpack.c.b16 %v5109, %v5108
      %v5122 = vpack.c.b16 %v5111, %v5110
      %v5123 = vpack.c.b16 %v5113, %v5112
      %v5124 = vpack.c.b16 %v5115, %v5114
      %v5125 = vpack.c.b16 %v5117, %v5116
      %5134 = vmatpush.bf16.msra.mxu0 %v5125
      %5135 = vmatpush.bf16.msra.mxu0 %v5124
      %5136 = vmatpush.bf16.msra.mxu0 %v5123
      %5137 = vmatpush.bf16.msra.mxu0 %v5122
      %5138 = vmatpush.bf16.msra.mxu0 %v5121
      %5139 = vmatpush.bf16.msra.mxu0 %v5120
      %5140 = vmatpush.bf16.msra.mxu0 %v5119
      %5141 = vmatpush.bf16.msra.mxu0 %v5118
      %5142 = vmatmul.bf16.gmra.mxu0 %v5062
      %v5143 = vpop.f32.mrf.mxu0
      %v5144 = vadd.f32 0.0, %v5143
      %v5145 = vpop.f32.mrf.mxu0
      %v5146 = vadd.f32 0.0, %v5145
      %5147 = vmatmul.bf16.gmra.mxu0 %v5063
      %v5148 = vpop.f32.mrf.mxu0
      %v5149 = vadd.f32 0.0, %v5148
      %v5150 = vpop.f32.mrf.mxu0
      %v5151 = vadd.f32 0.0, %v5150
      %5152 = vmatmul.bf16.gmra.mxu0 %v5064
      %v5153 = vpop.f32.mrf.mxu0
      %v5154 = vadd.f32 0.0, %v5153
      %v5155 = vpop.f32.mrf.mxu0
      %v5156 = vadd.f32 0.0, %v5155
      %5157 = vmatmul.bf16.gmra.mxu0 %v5065
      %v5158 = vpop.f32.mrf.mxu0
      %v5159 = vadd.f32 0.0, %v5158
      %v5160 = vpop.f32.mrf.mxu0
      %v5161 = vadd.f32 0.0, %v5160
      %5162 = vmatmul.bf16.gmra.mxu0 %v5066
      %v5163 = vpop.f32.mrf.mxu0
      %v5164 = vadd.f32 0.0, %v5163
      %v5165 = vpop.f32.mrf.mxu0
      %v5166 = vadd.f32 0.0, %v5165
      %5167 = vmatmul.bf16.gmra.mxu0 %v5067
      %v5168 = vpop.f32.mrf.mxu0
      %v5169 = vadd.f32 0.0, %v5168
      %v5170 = vpop.f32.mrf.mxu0
      %v5171 = vadd.f32 0.0, %v5170
      %5172 = vmatmul.bf16.gmra.mxu0 %v5068
      %v5173 = vpop.f32.mrf.mxu0
      %v5174 = vadd.f32 0.0, %v5173
      %v5175 = vpop.f32.mrf.mxu0
      %5176 = vdwg.mxu0
      %v5177 = vld [vmem:[#allocation4] sm:$0xff]
      %v5178 = vld [vmem:[#allocation4 + $0x8] sm:$0xff]
      %v5179 = vld [vmem:[#allocation4 + $0x10] sm:$0xff]
      %v5180 = vld [vmem:[#allocation4 + $0x18] sm:$0xff]
      %v5181 = vld [vmem:[#allocation4 + $0x20] sm:$0xff]
      %v5182 = vld [vmem:[#allocation4 + $0x28] sm:$0xff]
      %v5183 = vld [vmem:[#allocation4 + $0x30] sm:$0xff]
      %v5184 = vld [vmem:[#allocation4 + $0x38] sm:$0xff]
      %v5185 = vld [vmem:[#allocation4 + $0x40] sm:$0xff]
      %v5186 = vld [vmem:[#allocation4 + $0x48] sm:$0xff]
      %v5187 = vld [vmem:[#allocation4 + $0x50] sm:$0xff]
      %v5188 = vld [vmem:[#allocation4 + $0x58] sm:$0xff]
      %v5189 = vld [vmem:[#allocation4 + $0x60] sm:$0xff]
      %v5190 = vadd.f32 %v5177, %v5144
      %v5191 = vadd.f32 %v5178, %v5146
      %v5192 = vadd.f32 %v5179, %v5149
      %v5193 = vadd.f32 %v5180, %v5151
      %v5194 = vadd.f32 %v5181, %v5154
      %v5195 = vadd.f32 %v5182, %v5156
      %v5196 = vadd.f32 %v5183, %v5159
      %v5197 = vadd.f32 %v5184, %v5161
      %v5198 = vadd.f32 %v5185, %v5164
      %v5199 = vadd.f32 %v5186, %v5166
      %v5200 = vadd.f32 %v5187, %v5169
      %v5201 = vadd.f32 %v5188, %v5171
      %v5202 = vadd.f32 %v5189, %v5174
      %5203 = vst [vmem:[#allocation4] sm:$0xff] %v5190
      %5204 = vst [vmem:[#allocation4 + $0x8] sm:$0xff] %v5191
      %5205 = vst [vmem:[#allocation4 + $0x10] sm:$0xff] %v5192
      %5206 = vst [vmem:[#allocation4 + $0x18] sm:$0xff] %v5193
      %5207 = vst [vmem:[#allocation4 + $0x20] sm:$0xff] %v5194
      %5208 = vst [vmem:[#allocation4 + $0x28] sm:$0xff] %v5195
      %5209 = vst [vmem:[#allocation4 + $0x30] sm:$0xff] %v5196
      %5210 = vst [vmem:[#allocation4 + $0x38] sm:$0xff] %v5197
      %5211 = vst [vmem:[#allocation4 + $0x40] sm:$0xff] %v5198
      %5212 = vst [vmem:[#allocation4 + $0x48] sm:$0xff] %v5199
      %5213 = vst [vmem:[#allocation4 + $0x50] sm:$0xff] %v5200
      %5214 = vst [vmem:[#allocation4 + $0x58] sm:$0xff] %v5201
      %5215 = vst [vmem:[#allocation4 + $0x60] sm:$0xff] %v5202
      %v5216 = vld [vmem:[#allocation4] sm:$0xff]
      %v5217 = vld [vmem:[#allocation4 + $0x8] sm:$0xff]
      %v5218 = vld [vmem:[#allocation4 + $0x10] sm:$0xff]
      %v5219 = vld [vmem:[#allocation4 + $0x18] sm:$0xff]
      %v5220 = vld [vmem:[#allocation4 + $0x20] sm:$0xff]
      %v5221 = vld [vmem:[#allocation4 + $0x28] sm:$0xff]
      %v5222 = vld [vmem:[#allocation4 + $0x30] sm:$0xff]
      %v5223 = vld [vmem:[#allocation4 + $0x38] sm:$0xff]
      %v5224 = vld [vmem:[#allocation4 + $0x40] sm:$0xff]
      %v5225 = vld [vmem:[#allocation4 + $0x48] sm:$0xff]
      %v5226 = vld [vmem:[#allocation4 + $0x50] sm:$0xff]
      %v5227 = vld [vmem:[#allocation4 + $0x58] sm:$0xff]
      %v5228 = vld [vmem:[#allocation4 + $0x60] sm:$0xff]
      %v5229 = vld [vmem:[%s4] sm:$0x1]
      %v5231 = vperm.slane %v5229, 0
      %v5233 = vadd.f32 %v5216, %v5231
      %v5234 = vadd.f32 %v5217, %v5231
      %v5235 = vadd.f32 %v5218, %v5231
      %v5236 = vadd.f32 %v5219, %v5231
      %v5237 = vadd.f32 %v5220, %v5231
      %v5238 = vadd.f32 %v5221, %v5231
      %v5239 = vadd.f32 %v5222, %v5231
      %v5240 = vadd.f32 %v5223, %v5231
      %v5241 = vadd.f32 %v5224, %v5231
      %v5242 = vadd.f32 %v5225, %v5231
      %v5243 = vadd.f32 %v5226, %v5231
      %v5244 = vadd.f32 %v5227, %v5231
      %v5245 = vadd.f32 %v5228, %v5231
      %v5246 = vmax.f32 %v5233, 0.0
      %v5247 = vmax.f32 %v5234, 0.0
      %v5248 = vmax.f32 %v5235, 0.0
      %v5249 = vmax.f32 %v5236, 0.0
      %v5250 = vmax.f32 %v5237, 0.0
      %v5251 = vmax.f32 %v5238, 0.0
      %v5252 = vmax.f32 %v5239, 0.0
      %v5253 = vmax.f32 %v5240, 0.0
      %v5254 = vmax.f32 %v5241, 0.0
      %v5255 = vmax.f32 %v5242, 0.0
      %v5256 = vmax.f32 %v5243, 0.0
      %v5257 = vmax.f32 %v5244, 0.0
      %v5258 = vmax.f32 %v5245, 0.0
      %5259 = vst [vmem:[#allocation4] sm:$0xff] %v5246
      %5260 = vst [vmem:[#allocation4 + $0x8] sm:$0xff] %v5247
      %5261 = vst [vmem:[#allocation4 + $0x10] sm:$0xff] %v5248
      %5262 = vst [vmem:[#allocation4 + $0x18] sm:$0xff] %v5249
      %5263 = vst [vmem:[#allocation4 + $0x20] sm:$0xff] %v5250
      %5264 = vst [vmem:[#allocation4 + $0x28] sm:$0xff] %v5251
      %5265 = vst [vmem:[#allocation4 + $0x30] sm:$0xff] %v5252
      %5266 = vst [vmem:[#allocation4 + $0x38] sm:$0xff] %v5253
      %5267 = vst [vmem:[#allocation4 + $0x40] sm:$0xff] %v5254
      %5268 = vst [vmem:[#allocation4 + $0x48] sm:$0xff] %v5255
      %5269 = vst [vmem:[#allocation4 + $0x50] sm:$0xff] %v5256
      %5270 = vst [vmem:[#allocation4 + $0x58] sm:$0xff] %v5257
      %5271 = vst [vmem:[#allocation4 + $0x60] sm:$0xff] %v5258
      %v5272 = vld [vmem:[#allocation4] sm:$0x1]
      %v5273 = vld [vmem:[#allocation4 + $0x1] sm:$0x1]
      %v5274 = vmax.f32 %v5272, %v5273
      %v5275 = vld [vmem:[#allocation4 + $0xa] sm:$0x1]
      %v5276 = vld [vmem:[#allocation4 + $0xb] sm:$0x1]
      %v5277 = vmax.f32 %v5275, %v5276
      %v5278 = vmax.f32 %v5274, %v5277
      %v5279 = vlaneseq
      %vm5280 = vcmp.ge.s32.totalorder %v5279, 0
      %vm5281 = vcmp.lt.s32.totalorder %v5279, 128
      %vm5282 = vmand %vm5280, %vm5281
      %5283 = vst.msk [vmem:[#allocation5] sm:$0x1] %vm5282, %v5278
      %v5284 = vld [vmem:[#allocation4 + $0x2] sm:$0x1]
      %v5285 = vld [vmem:[#allocation4 + $0x3] sm:$0x1]
      %v5286 = vmax.f32 %v5284, %v5285
      %v5287 = vld [vmem:[#allocation4 + $0xc] sm:$0x1]
      %v5288 = vld [vmem:[#allocation4 + $0xd] sm:$0x1]
      %v5289 = vmax.f32 %v5287, %v5288
      %v5290 = vmax.f32 %v5286, %v5289
      %5291 = vst.msk [vmem:[#allocation5 + $0x1] sm:$0x1] %vm5282, %v5290
      %v5292 = vld [vmem:[#allocation4 + $0x4] sm:$0x1]
      %v5293 = vld [vmem:[#allocation4 + $0x5] sm:$0x1]
      %v5294 = vmax.f32 %v5292, %v5293
      %v5295 = vld [vmem:[#allocation4 + $0xe] sm:$0x1]
      %v5296 = vld [vmem:[#allocation4 + $0xf] sm:$0x1]
      %v5297 = vmax.f32 %v5295, %v5296
      %v5298 = vmax.f32 %v5294, %v5297
      %5299 = vst.msk [vmem:[#allocation5 + $0x2] sm:$0x1] %vm5282, %v5298
      %v5300 = vld [vmem:[#allocation4 + $0x6] sm:$0x1]
      %v5301 = vld [vmem:[#allocation4 + $0x7] sm:$0x1]
      %v5302 = vmax.f32 %v5300, %v5301
      %v5303 = vld [vmem:[#allocation4 + $0x10] sm:$0x1]
      %v5304 = vld [vmem:[#allocation4 + $0x11] sm:$0x1]
      %v5305 = vmax.f32 %v5303, %v5304
      %v5306 = vmax.f32 %v5302, %v5305
      %5307 = vst.msk [vmem:[#allocation5 + $0x3] sm:$0x1] %vm5282, %v5306
      %v5308 = vld [vmem:[#allocation4 + $0x14] sm:$0x1]
      %v5309 = vld [vmem:[#allocation4 + $0x15] sm:$0x1]
      %v5310 = vmax.f32 %v5308, %v5309
      %v5311 = vld [vmem:[#allocation4 + $0x1e] sm:$0x1]
      %v5312 = vld [vmem:[#allocation4 + $0x1f] sm:$0x1]
      %v5313 = vmax.f32 %v5311, %v5312
      %v5314 = vmax.f32 %v5310, %v5313
      %5315 = vst.msk [vmem:[#allocation5 + $0x4] sm:$0x1] %vm5282, %v5314
      %v5316 = vld [vmem:[#allocation4 + $0x16] sm:$0x1]
      %v5317 = vld [vmem:[#allocation4 + $0x17] sm:$0x1]
      %v5318 = vmax.f32 %v5316, %v5317
      %v5319 = vld [vmem:[#allocation4 + $0x20] sm:$0x1]
      %v5320 = vld [vmem:[#allocation4 + $0x21] sm:$0x1]
      %v5321 = vmax.f32 %v5319, %v5320
      %v5322 = vmax.f32 %v5318, %v5321
      %5323 = vst.msk [vmem:[#allocation5 + $0x5] sm:$0x1] %vm5282, %v5322
      %v5324 = vld [vmem:[#allocation4 + $0x18] sm:$0x1]
      %v5325 = vld [vmem:[#allocation4 + $0x19] sm:$0x1]
      %v5326 = vmax.f32 %v5324, %v5325
      %v5327 = vld [vmem:[#allocation4 + $0x22] sm:$0x1]
      %v5328 = vld [vmem:[#allocation4 + $0x23] sm:$0x1]
      %v5329 = vmax.f32 %v5327, %v5328
      %v5330 = vmax.f32 %v5326, %v5329
      %5331 = vst.msk [vmem:[#allocation5 + $0x6] sm:$0x1] %vm5282, %v5330
      %v5332 = vld [vmem:[#allocation4 + $0x1a] sm:$0x1]
      %v5333 = vld [vmem:[#allocation4 + $0x1b] sm:$0x1]
      %v5334 = vmax.f32 %v5332, %v5333
      %v5335 = vld [vmem:[#allocation4 + $0x24] sm:$0x1]
      %v5336 = vld [vmem:[#allocation4 + $0x25] sm:$0x1]
      %v5337 = vmax.f32 %v5335, %v5336
      %v5338 = vmax.f32 %v5334, %v5337
      %5339 = vst.msk [vmem:[#allocation5 + $0x7] sm:$0x1] %vm5282, %v5338
      %v5340 = vld [vmem:[#allocation4 + $0x28] sm:$0x1]
      %v5341 = vld [vmem:[#allocation4 + $0x29] sm:$0x1]
      %v5342 = vmax.f32 %v5340, %v5341
      %v5343 = vld [vmem:[#allocation4 + $0x32] sm:$0x1]
      %v5344 = vld [vmem:[#allocation4 + $0x33] sm:$0x1]
      %v5345 = vmax.f32 %v5343, %v5344
      %v5346 = vmax.f32 %v5342, %v5345
      %5347 = vst.msk [vmem:[#allocation5 + $0x8] sm:$0x1] %vm5282, %v5346
      %v5348 = vld [vmem:[#allocation4 + $0x2a] sm:$0x1]
      %v5349 = vld [vmem:[#allocation4 + $0x2b] sm:$0x1]
      %v5350 = vmax.f32 %v5348, %v5349
      %v5351 = vld [vmem:[#allocation4 + $0x34] sm:$0x1]
      %v5352 = vld [vmem:[#allocation4 + $0x35] sm:$0x1]
      %v5353 = vmax.f32 %v5351, %v5352
      %v5354 = vmax.f32 %v5350, %v5353
      %5355 = vst.msk [vmem:[#allocation5 + $0x9] sm:$0x1] %vm5282, %v5354
      %v5356 = vld [vmem:[#allocation4 + $0x2c] sm:$0x1]
      %v5357 = vld [vmem:[#allocation4 + $0x2d] sm:$0x1]
      %v5358 = vmax.f32 %v5356, %v5357
      %v5359 = vld [vmem:[#allocation4 + $0x36] sm:$0x1]
      %v5360 = vld [vmem:[#allocation4 + $0x37] sm:$0x1]
      %v5361 = vmax.f32 %v5359, %v5360
      %v5362 = vmax.f32 %v5358, %v5361
      %5363 = vst.msk [vmem:[#allocation5 + $0xa] sm:$0x1] %vm5282, %v5362
      %v5364 = vld [vmem:[#allocation4 + $0x2e] sm:$0x1]
      %v5365 = vld [vmem:[#allocation4 + $0x2f] sm:$0x1]
      %v5366 = vmax.f32 %v5364, %v5365
      %v5367 = vld [vmem:[#allocation4 + $0x38] sm:$0x1]
      %v5368 = vld [vmem:[#allocation4 + $0x39] sm:$0x1]
      %v5369 = vmax.f32 %v5367, %v5368
      %v5370 = vmax.f32 %v5366, %v5369
      %5371 = vst.msk [vmem:[#allocation5 + $0xb] sm:$0x1] %vm5282, %v5370
      %v5372 = vld [vmem:[#allocation4 + $0x3c] sm:$0x1]
      %v5373 = vld [vmem:[#allocation4 + $0x3d] sm:$0x1]
      %v5374 = vmax.f32 %v5372, %v5373
      %v5375 = vld [vmem:[#allocation4 + $0x46] sm:$0x1]
      %v5376 = vld [vmem:[#allocation4 + $0x47] sm:$0x1]
      %v5377 = vmax.f32 %v5375, %v5376
      %v5378 = vmax.f32 %v5374, %v5377
      %5379 = vst.msk [vmem:[#allocation5 + $0xc] sm:$0x1] %vm5282, %v5378
      %v5380 = vld [vmem:[#allocation4 + $0x3e] sm:$0x1]
      %v5381 = vld [vmem:[#allocation4 + $0x3f] sm:$0x1]
      %v5382 = vmax.f32 %v5380, %v5381
      %v5383 = vld [vmem:[#allocation4 + $0x48] sm:$0x1]
      %v5384 = vld [vmem:[#allocation4 + $0x49] sm:$0x1]
      %v5385 = vmax.f32 %v5383, %v5384
      %v5386 = vmax.f32 %v5382, %v5385
      %5387 = vst.msk [vmem:[#allocation5 + $0xd] sm:$0x1] %vm5282, %v5386
      %v5388 = vld [vmem:[#allocation4 + $0x40] sm:$0x1]
      %v5389 = vld [vmem:[#allocation4 + $0x41] sm:$0x1]
      %v5390 = vmax.f32 %v5388, %v5389
      %v5391 = vld [vmem:[#allocation4 + $0x4a] sm:$0x1]
      %v5392 = vld [vmem:[#allocation4 + $0x4b] sm:$0x1]
      %v5393 = vmax.f32 %v5391, %v5392
      %v5394 = vmax.f32 %v5390, %v5393
      %5395 = vst.msk [vmem:[#allocation5 + $0xe] sm:$0x1] %vm5282, %v5394
      %v5396 = vld [vmem:[#allocation4 + $0x42] sm:$0x1]
      %v5397 = vld [vmem:[#allocation4 + $0x43] sm:$0x1]
      %v5398 = vmax.f32 %v5396, %v5397
      %v5399 = vld [vmem:[#allocation4 + $0x4c] sm:$0x1]
      %v5400 = vld [vmem:[#allocation4 + $0x4d] sm:$0x1]
      %v5401 = vmax.f32 %v5399, %v5400
      %v5402 = vmax.f32 %v5398, %v5401
      %5403 = vst.msk [vmem:[#allocation5 + $0xf] sm:$0x1] %vm5282, %v5402
      %v5404 = vld [vmem:[#allocation5] sm:$0xff]
      %v5405 = vld [vmem:[#allocation5 + $0x8] sm:$0xff]
      %v5408 = vperm.slane %v5404, 0
      %v5409 = vperm.slane %v5404, 1
      %v5410 = vperm.slane %v5404, 2
      %v5411 = vperm.slane %v5404, 3
      %v5412 = vperm.slane %v5404, 4
      %v5413 = vperm.slane %v5404, 5
      %v5414 = vperm.slane %v5404, 6
      %v5415 = vperm.slane %v5404, 7
      %v5416 = vperm.slane %v5405, 0
      %v5417 = vperm.slane %v5405, 1
      %v5418 = vperm.slane %v5405, 2
      %v5419 = vperm.slane %v5405, 3
      %v5420 = vperm.slane %v5405, 4
      %v5421 = vperm.slane %v5405, 5
      %v5422 = vperm.slane %v5405, 6
      %v5423 = vperm.slane %v5405, 7
      %v5440 = vpack.c.bf16 %v5408, %v5408
      %v5441 = vpack.c.bf16 %v5409, %v5409
      %v5442 = vpack.c.bf16 %v5410, %v5410
      %v5443 = vpack.c.bf16 %v5411, %v5411
      %v5444 = vpack.c.bf16 %v5412, %v5412
      %v5445 = vpack.c.bf16 %v5413, %v5413
      %v5446 = vpack.c.bf16 %v5414, %v5414
      %v5447 = vpack.c.bf16 %v5415, %v5415
      %v5448 = vpack.c.bf16 %v5416, %v5416
      %v5449 = vpack.c.bf16 %v5417, %v5417
      %v5450 = vpack.c.bf16 %v5418, %v5418
      %v5451 = vpack.c.bf16 %v5419, %v5419
      %v5452 = vpack.c.bf16 %v5420, %v5420
      %v5453 = vpack.c.bf16 %v5421, %v5421
      %v5454 = vpack.c.bf16 %v5422, %v5422
      %v5455 = vpack.c.bf16 %v5423, %v5423
      %v5456 = vld [vmem:[%s5] sm:$0xf]
      %v5457 = vld [vmem:[%s5 + $0x4] sm:$0xf]
      %v5458 = vld [vmem:[%s5 + $0x8] sm:$0xf]
      %v5459 = vld [vmem:[%s5 + $0xc] sm:$0xf]
      %v5460 = vld [vmem:[%s5 + $0x10] sm:$0xf]
      %v5461 = vld [vmem:[%s5 + $0x14] sm:$0xf]
      %v5462 = vld [vmem:[%s5 + $0x18] sm:$0xf]
      %v5463 = vld [vmem:[%s5 + $0x1c] sm:$0xf]
      %v5464 = vld [vmem:[%s5 + $0x20] sm:$0xf]
      %v5465 = vld [vmem:[%s5 + $0x24] sm:$0xf]
      %v5466 = vld [vmem:[%s5 + $0x28] sm:$0xf]
      %v5467 = vld [vmem:[%s5 + $0x2c] sm:$0xf]
      %v5468 = vld [vmem:[%s5 + $0x30] sm:$0xf]
      %v5469 = vld [vmem:[%s5 + $0x34] sm:$0xf]
      %v5470 = vld [vmem:[%s5 + $0x38] sm:$0xf]
      %v5471 = vld [vmem:[%s5 + $0x3c] sm:$0xf]
      %v5472 = vld [vmem:[%s5 + $0x40] sm:$0xf]
      %v5473 = vld [vmem:[%s5 + $0x44] sm:$0xf]
      %v5474 = vld [vmem:[%s5 + $0x48] sm:$0xf]
      %v5475 = vld [vmem:[%s5 + $0x4c] sm:$0xf]
      %v5476 = vld [vmem:[%s5 + $0x50] sm:$0xf]
      %v5477 = vld [vmem:[%s5 + $0x54] sm:$0xf]
      %v5478 = vld [vmem:[%s5 + $0x58] sm:$0xf]
      %v5479 = vld [vmem:[%s5 + $0x5c] sm:$0xf]
      %v5480 = vld [vmem:[%s5 + $0x60] sm:$0xf]
      %v5481 = vld [vmem:[%s5 + $0x64] sm:$0xf]
      %v5482 = vld [vmem:[%s5 + $0x68] sm:$0xf]
      %v5483 = vld [vmem:[%s5 + $0x6c] sm:$0xf]
      %v5484 = vld [vmem:[%s5 + $0x70] sm:$0xf]
      %v5485 = vld [vmem:[%s5 + $0x74] sm:$0xf]
      %v5486 = vld [vmem:[%s5 + $0x78] sm:$0xf]
      %v5487 = vld [vmem:[%s5 + $0x7c] sm:$0xf]
      %v5488 = vld [vmem:[%s5 + $0x80] sm:$0xf]
      %v5489 = vld [vmem:[%s5 + $0x84] sm:$0xf]
      %v5490 = vld [vmem:[%s5 + $0x88] sm:$0xf]
      %v5491 = vld [vmem:[%s5 + $0x8c] sm:$0xf]
      %v5492 = vld [vmem:[%s5 + $0x90] sm:$0xf]
      %v5493 = vld [vmem:[%s5 + $0x94] sm:$0xf]
      %v5494 = vld [vmem:[%s5 + $0x98] sm:$0xf]
      %v5495 = vld [vmem:[%s5 + $0x9c] sm:$0xf]
      %v5496 = vld [vmem:[%s5 + $0xa0] sm:$0xf]
      %v5497 = vld [vmem:[%s5 + $0xa4] sm:$0xf]
      %v5498 = vld [vmem:[%s5 + $0xa8] sm:$0xf]
      %v5499 = vld [vmem:[%s5 + $0xac] sm:$0xf]
      %v5500 = vld [vmem:[%s5 + $0xb0] sm:$0xf]
      %v5501 = vld [vmem:[%s5 + $0xb4] sm:$0xf]
      %v5502 = vld [vmem:[%s5 + $0xb8] sm:$0xf]
      %v5503 = vld [vmem:[%s5 + $0xbc] sm:$0xf]
      %v5504 = vld [vmem:[%s5 + $0xc0] sm:$0xf]
      %v5505 = vld [vmem:[%s5 + $0xc4] sm:$0xf]
      %v5506 = vld [vmem:[%s5 + $0xc8] sm:$0xf]
      %v5507 = vld [vmem:[%s5 + $0xcc] sm:$0xf]
      %v5508 = vld [vmem:[%s5 + $0xd0] sm:$0xf]
      %v5509 = vld [vmem:[%s5 + $0xd4] sm:$0xf]
      %v5510 = vld [vmem:[%s5 + $0xd8] sm:$0xf]
      %v5511 = vld [vmem:[%s5 + $0xdc] sm:$0xf]
      %v5512 = vld [vmem:[%s5 + $0xe0] sm:$0xf]
      %v5513 = vld [vmem:[%s5 + $0xe4] sm:$0xf]
      %v5514 = vld [vmem:[%s5 + $0xe8] sm:$0xf]
      %v5515 = vld [vmem:[%s5 + $0xec] sm:$0xf]
      %v5516 = vld [vmem:[%s5 + $0xf0] sm:$0xf]
      %v5517 = vld [vmem:[%s5 + $0xf4] sm:$0xf]
      %v5518 = vld [vmem:[%s5 + $0xf8] sm:$0xf]
      %v5519 = vld [vmem:[%s5 + $0xfc] sm:$0xf]
      %v5520 = vld [vmem:[%s5 + $0x100] sm:$0xf]
      %v5521 = vld [vmem:[%s5 + $0x104] sm:$0xf]
      %v5522 = vld [vmem:[%s5 + $0x108] sm:$0xf]
      %v5523 = vld [vmem:[%s5 + $0x10c] sm:$0xf]
      %v5524 = vld [vmem:[%s5 + $0x110] sm:$0xf]
      %v5525 = vld [vmem:[%s5 + $0x114] sm:$0xf]
      %v5526 = vld [vmem:[%s5 + $0x118] sm:$0xf]
      %v5527 = vld [vmem:[%s5 + $0x11c] sm:$0xf]
      %v5528 = vld [vmem:[%s5 + $0x120] sm:$0xf]
      %v5529 = vld [vmem:[%s5 + $0x124] sm:$0xf]
      %v5530 = vld [vmem:[%s5 + $0x128] sm:$0xf]
      %v5531 = vld [vmem:[%s5 + $0x12c] sm:$0xf]
      %v5532 = vld [vmem:[%s5 + $0x130] sm:$0xf]
      %v5533 = vld [vmem:[%s5 + $0x134] sm:$0xf]
      %v5534 = vld [vmem:[%s5 + $0x138] sm:$0xf]
      %v5535 = vld [vmem:[%s5 + $0x13c] sm:$0xf]
      %v5536 = vld [vmem:[%s5 + $0x140] sm:$0xf]
      %v5537 = vld [vmem:[%s5 + $0x144] sm:$0xf]
      %v5538 = vld [vmem:[%s5 + $0x148] sm:$0xf]
      %v5539 = vld [vmem:[%s5 + $0x14c] sm:$0xf]
      %v5540 = vld [vmem:[%s5 + $0x150] sm:$0xf]
      %v5541 = vld [vmem:[%s5 + $0x154] sm:$0xf]
      %v5542 = vld [vmem:[%s5 + $0x158] sm:$0xf]
      %v5543 = vld [vmem:[%s5 + $0x15c] sm:$0xf]
      %v5544 = vld [vmem:[%s5 + $0x160] sm:$0xf]
      %v5545 = vld [vmem:[%s5 + $0x164] sm:$0xf]
      %v5546 = vld [vmem:[%s5 + $0x168] sm:$0xf]
      %v5547 = vld [vmem:[%s5 + $0x16c] sm:$0xf]
      %v5548 = vld [vmem:[%s5 + $0x170] sm:$0xf]
      %v5549 = vld [vmem:[%s5 + $0x174] sm:$0xf]
      %v5550 = vld [vmem:[%s5 + $0x178] sm:$0xf]
      %v5551 = vld [vmem:[%s5 + $0x17c] sm:$0xf]
      %v5552 = vld [vmem:[%s5 + $0x180] sm:$0xf]
      %v5553 = vld [vmem:[%s5 + $0x184] sm:$0xf]
      %v5554 = vld [vmem:[%s5 + $0x188] sm:$0xf]
      %v5555 = vld [vmem:[%s5 + $0x18c] sm:$0xf]
      %v5556 = vld [vmem:[%s5 + $0x190] sm:$0xf]
      %v5557 = vld [vmem:[%s5 + $0x194] sm:$0xf]
      %v5558 = vld [vmem:[%s5 + $0x198] sm:$0xf]
      %v5559 = vld [vmem:[%s5 + $0x19c] sm:$0xf]
      %v5560 = vld [vmem:[%s5 + $0x1a0] sm:$0xf]
      %v5561 = vld [vmem:[%s5 + $0x1a4] sm:$0xf]
      %v5562 = vld [vmem:[%s5 + $0x1a8] sm:$0xf]
      %v5563 = vld [vmem:[%s5 + $0x1ac] sm:$0xf]
      %v5564 = vld [vmem:[%s5 + $0x1b0] sm:$0xf]
      %v5565 = vld [vmem:[%s5 + $0x1b4] sm:$0xf]
      %v5566 = vld [vmem:[%s5 + $0x1b8] sm:$0xf]
      %v5567 = vld [vmem:[%s5 + $0x1bc] sm:$0xf]
      %v5568 = vld [vmem:[%s5 + $0x1c0] sm:$0xf]
      %v5569 = vld [vmem:[%s5 + $0x1c4] sm:$0xf]
      %v5570 = vld [vmem:[%s5 + $0x1c8] sm:$0xf]
      %v5571 = vld [vmem:[%s5 + $0x1cc] sm:$0xf]
      %v5572 = vld [vmem:[%s5 + $0x1d0] sm:$0xf]
      %v5573 = vld [vmem:[%s5 + $0x1d4] sm:$0xf]
      %v5574 = vld [vmem:[%s5 + $0x1d8] sm:$0xf]
      %v5575 = vld [vmem:[%s5 + $0x1dc] sm:$0xf]
      %v5576 = vld [vmem:[%s5 + $0x1e0] sm:$0xf]
      %v5577 = vld [vmem:[%s5 + $0x1e4] sm:$0xf]
      %v5578 = vld [vmem:[%s5 + $0x1e8] sm:$0xf]
      %v5579 = vld [vmem:[%s5 + $0x1ec] sm:$0xf]
      %v5580 = vld [vmem:[%s5 + $0x1f0] sm:$0xf]
      %v5581 = vld [vmem:[%s5 + $0x1f4] sm:$0xf]
      %v5582 = vld [vmem:[%s5 + $0x1f8] sm:$0xf]
      %v5583 = vld [vmem:[%s5 + $0x1fc] sm:$0xf]
      %v5584 = vld [vmem:[%s5 + $0x200] sm:$0xf]
      %v5585 = vld [vmem:[%s5 + $0x204] sm:$0xf]
      %v5586 = vld [vmem:[%s5 + $0x208] sm:$0xf]
      %v5587 = vld [vmem:[%s5 + $0x20c] sm:$0xf]
      %v5588 = vld [vmem:[%s5 + $0x210] sm:$0xf]
      %v5589 = vld [vmem:[%s5 + $0x214] sm:$0xf]
      %v5590 = vld [vmem:[%s5 + $0x218] sm:$0xf]
      %v5591 = vld [vmem:[%s5 + $0x21c] sm:$0xf]
      %v5592 = vld [vmem:[%s5 + $0x220] sm:$0xf]
      %v5593 = vld [vmem:[%s5 + $0x224] sm:$0xf]
      %v5594 = vld [vmem:[%s5 + $0x228] sm:$0xf]
      %v5595 = vld [vmem:[%s5 + $0x22c] sm:$0xf]
      %v5596 = vld [vmem:[%s5 + $0x230] sm:$0xf]
      %v5597 = vld [vmem:[%s5 + $0x234] sm:$0xf]
      %v5598 = vld [vmem:[%s5 + $0x238] sm:$0xf]
      %v5599 = vld [vmem:[%s5 + $0x23c] sm:$0xf]
      %v5600 = vld [vmem:[%s5 + $0x240] sm:$0xf]
      %v5601 = vld [vmem:[%s5 + $0x244] sm:$0xf]
      %v5602 = vld [vmem:[%s5 + $0x248] sm:$0xf]
      %v5603 = vld [vmem:[%s5 + $0x24c] sm:$0xf]
      %v5604 = vld [vmem:[%s5 + $0x250] sm:$0xf]
      %v5605 = vld [vmem:[%s5 + $0x254] sm:$0xf]
      %v5606 = vld [vmem:[%s5 + $0x258] sm:$0xf]
      %v5607 = vld [vmem:[%s5 + $0x25c] sm:$0xf]
      %v5608 = vld [vmem:[%s5 + $0x260] sm:$0xf]
      %v5609 = vld [vmem:[%s5 + $0x264] sm:$0xf]
      %v5610 = vld [vmem:[%s5 + $0x268] sm:$0xf]
      %v5611 = vld [vmem:[%s5 + $0x26c] sm:$0xf]
      %v5612 = vld [vmem:[%s5 + $0x270] sm:$0xf]
      %v5613 = vld [vmem:[%s5 + $0x274] sm:$0xf]
      %v5614 = vld [vmem:[%s5 + $0x278] sm:$0xf]
      %v5615 = vld [vmem:[%s5 + $0x27c] sm:$0xf]
      %v5616 = vld [vmem:[%s5 + $0x280] sm:$0xf]
      %v5617 = vld [vmem:[%s5 + $0x284] sm:$0xf]
      %v5618 = vld [vmem:[%s5 + $0x288] sm:$0xf]
      %v5619 = vld [vmem:[%s5 + $0x28c] sm:$0xf]
      %v5620 = vld [vmem:[%s5 + $0x290] sm:$0xf]
      %v5621 = vld [vmem:[%s5 + $0x294] sm:$0xf]
      %v5622 = vld [vmem:[%s5 + $0x298] sm:$0xf]
      %v5623 = vld [vmem:[%s5 + $0x29c] sm:$0xf]
      %v5624 = vld [vmem:[%s5 + $0x2a0] sm:$0xf]
      %v5625 = vld [vmem:[%s5 + $0x2a4] sm:$0xf]
      %v5626 = vld [vmem:[%s5 + $0x2a8] sm:$0xf]
      %v5627 = vld [vmem:[%s5 + $0x2ac] sm:$0xf]
      %v5628 = vld [vmem:[%s5 + $0x2b0] sm:$0xf]
      %v5629 = vld [vmem:[%s5 + $0x2b4] sm:$0xf]
      %v5630 = vld [vmem:[%s5 + $0x2b8] sm:$0xf]
      %v5631 = vld [vmem:[%s5 + $0x2bc] sm:$0xf]
      %v5632 = vld [vmem:[%s5 + $0x2c0] sm:$0xf]
      %v5633 = vld [vmem:[%s5 + $0x2c4] sm:$0xf]
      %v5634 = vld [vmem:[%s5 + $0x2c8] sm:$0xf]
      %v5635 = vld [vmem:[%s5 + $0x2cc] sm:$0xf]
      %v5636 = vld [vmem:[%s5 + $0x2d0] sm:$0xf]
      %v5637 = vld [vmem:[%s5 + $0x2d4] sm:$0xf]
      %v5638 = vld [vmem:[%s5 + $0x2d8] sm:$0xf]
      %v5639 = vld [vmem:[%s5 + $0x2dc] sm:$0xf]
      %v5640 = vld [vmem:[%s5 + $0x2e0] sm:$0xf]
      %v5641 = vld [vmem:[%s5 + $0x2e4] sm:$0xf]
      %v5642 = vld [vmem:[%s5 + $0x2e8] sm:$0xf]
      %v5643 = vld [vmem:[%s5 + $0x2ec] sm:$0xf]
      %v5644 = vld [vmem:[%s5 + $0x2f0] sm:$0xf]
      %v5645 = vld [vmem:[%s5 + $0x2f4] sm:$0xf]
      %v5646 = vld [vmem:[%s5 + $0x2f8] sm:$0xf]
      %v5647 = vld [vmem:[%s5 + $0x2fc] sm:$0xf]
      %v5648 = vld [vmem:[%s5 + $0x300] sm:$0xf]
      %v5649 = vld [vmem:[%s5 + $0x304] sm:$0xf]
      %v5650 = vld [vmem:[%s5 + $0x308] sm:$0xf]
      %v5651 = vld [vmem:[%s5 + $0x30c] sm:$0xf]
      %v5652 = vld [vmem:[%s5 + $0x310] sm:$0xf]
      %v5653 = vld [vmem:[%s5 + $0x314] sm:$0xf]
      %v5654 = vld [vmem:[%s5 + $0x318] sm:$0xf]
      %v5655 = vld [vmem:[%s5 + $0x31c] sm:$0xf]
      %v5656 = vld [vmem:[%s5 + $0x320] sm:$0xf]
      %v5657 = vld [vmem:[%s5 + $0x324] sm:$0xf]
      %v5658 = vld [vmem:[%s5 + $0x328] sm:$0xf]
      %v5659 = vld [vmem:[%s5 + $0x32c] sm:$0xf]
      %v5660 = vld [vmem:[%s5 + $0x330] sm:$0xf]
      %v5661 = vld [vmem:[%s5 + $0x334] sm:$0xf]
      %v5662 = vld [vmem:[%s5 + $0x338] sm:$0xf]
      %v5663 = vld [vmem:[%s5 + $0x33c] sm:$0xf]
      %v5664 = vld [vmem:[%s5 + $0x340] sm:$0xf]
      %v5665 = vld [vmem:[%s5 + $0x344] sm:$0xf]
      %v5666 = vld [vmem:[%s5 + $0x348] sm:$0xf]
      %v5667 = vld [vmem:[%s5 + $0x34c] sm:$0xf]
      %v5668 = vld [vmem:[%s5 + $0x350] sm:$0xf]
      %v5669 = vld [vmem:[%s5 + $0x354] sm:$0xf]
      %v5670 = vld [vmem:[%s5 + $0x358] sm:$0xf]
      %v5671 = vld [vmem:[%s5 + $0x35c] sm:$0xf]
      %v5672 = vld [vmem:[%s5 + $0x360] sm:$0xf]
      %v5673 = vld [vmem:[%s5 + $0x364] sm:$0xf]
      %v5674 = vld [vmem:[%s5 + $0x368] sm:$0xf]
      %v5675 = vld [vmem:[%s5 + $0x36c] sm:$0xf]
      %v5676 = vld [vmem:[%s5 + $0x370] sm:$0xf]
      %v5677 = vld [vmem:[%s5 + $0x374] sm:$0xf]
      %v5678 = vld [vmem:[%s5 + $0x378] sm:$0xf]
      %v5679 = vld [vmem:[%s5 + $0x37c] sm:$0xf]
      %v5680 = vld [vmem:[%s5 + $0x380] sm:$0xf]
      %v5681 = vld [vmem:[%s5 + $0x384] sm:$0xf]
      %v5682 = vld [vmem:[%s5 + $0x388] sm:$0xf]
      %v5683 = vld [vmem:[%s5 + $0x38c] sm:$0xf]
      %v5684 = vld [vmem:[%s5 + $0x390] sm:$0xf]
      %v5685 = vld [vmem:[%s5 + $0x394] sm:$0xf]
      %v5686 = vld [vmem:[%s5 + $0x398] sm:$0xf]
      %v5687 = vld [vmem:[%s5 + $0x39c] sm:$0xf]
      %v5688 = vld [vmem:[%s5 + $0x3a0] sm:$0xf]
      %v5689 = vld [vmem:[%s5 + $0x3a4] sm:$0xf]
      %v5690 = vld [vmem:[%s5 + $0x3a8] sm:$0xf]
      %v5691 = vld [vmem:[%s5 + $0x3ac] sm:$0xf]
      %v5692 = vld [vmem:[%s5 + $0x3b0] sm:$0xf]
      %v5693 = vld [vmem:[%s5 + $0x3b4] sm:$0xf]
      %v5694 = vld [vmem:[%s5 + $0x3b8] sm:$0xf]
      %v5695 = vld [vmem:[%s5 + $0x3bc] sm:$0xf]
      %v5696 = vld [vmem:[%s5 + $0x3c0] sm:$0xf]
      %v5697 = vld [vmem:[%s5 + $0x3c4] sm:$0xf]
      %v5698 = vld [vmem:[%s5 + $0x3c8] sm:$0xf]
      %v5699 = vld [vmem:[%s5 + $0x3cc] sm:$0xf]
      %v5700 = vld [vmem:[%s5 + $0x3d0] sm:$0xf]
      %v5701 = vld [vmem:[%s5 + $0x3d4] sm:$0xf]
      %v5702 = vld [vmem:[%s5 + $0x3d8] sm:$0xf]
      %v5703 = vld [vmem:[%s5 + $0x3dc] sm:$0xf]
      %v5704 = vld [vmem:[%s5 + $0x3e0] sm:$0xf]
      %v5705 = vld [vmem:[%s5 + $0x3e4] sm:$0xf]
      %v5706 = vld [vmem:[%s5 + $0x3e8] sm:$0xf]
      %v5707 = vld [vmem:[%s5 + $0x3ec] sm:$0xf]
      %v5708 = vld [vmem:[%s5 + $0x3f0] sm:$0xf]
      %v5709 = vld [vmem:[%s5 + $0x3f4] sm:$0xf]
      %v5710 = vld [vmem:[%s5 + $0x3f8] sm:$0xf]
      %v5711 = vld [vmem:[%s5 + $0x3fc] sm:$0xf]
      %v5712 = vld [vmem:[%s6] sm:$0x1]
      %v5969 = vunpack.c.l.b16 %v5456
      %v5970 = vunpack.c.l.b16 %v5457
      %v5971 = vunpack.c.l.b16 %v5458
      %v5972 = vunpack.c.l.b16 %v5459
      %v5973 = vunpack.c.l.b16 %v5460
      %v5974 = vunpack.c.l.b16 %v5461
      %v5975 = vunpack.c.l.b16 %v5462
      %v5976 = vunpack.c.l.b16 %v5463
      %v5977 = vunpack.c.l.b16 %v5464
      %v5978 = vunpack.c.l.b16 %v5465
      %v5979 = vunpack.c.l.b16 %v5466
      %v5980 = vunpack.c.l.b16 %v5467
      %v5981 = vunpack.c.l.b16 %v5468
      %v5982 = vunpack.c.l.b16 %v5469
      %v5983 = vunpack.c.l.b16 %v5470
      %v5984 = vunpack.c.l.b16 %v5471
      %v5985 = vunpack.c.l.b16 %v5472
      %v5986 = vunpack.c.l.b16 %v5473
      %v5987 = vunpack.c.l.b16 %v5474
      %v5988 = vunpack.c.l.b16 %v5475
      %v5989 = vunpack.c.l.b16 %v5476
      %v5990 = vunpack.c.l.b16 %v5477
      %v5991 = vunpack.c.l.b16 %v5478
      %v5992 = vunpack.c.l.b16 %v5479
      %v5993 = vunpack.c.l.b16 %v5480
      %v5994 = vunpack.c.l.b16 %v5481
      %v5995 = vunpack.c.l.b16 %v5482
      %v5996 = vunpack.c.l.b16 %v5483
      %v5997 = vunpack.c.l.b16 %v5484
      %v5998 = vunpack.c.l.b16 %v5485
      %v5999 = vunpack.c.l.b16 %v5486
      %v6000 = vunpack.c.l.b16 %v5487
      %v6001 = vunpack.c.l.b16 %v5488
      %v6002 = vunpack.c.l.b16 %v5489
      %v6003 = vunpack.c.l.b16 %v5490
      %v6004 = vunpack.c.l.b16 %v5491
      %v6005 = vunpack.c.l.b16 %v5492
      %v6006 = vunpack.c.l.b16 %v5493
      %v6007 = vunpack.c.l.b16 %v5494
      %v6008 = vunpack.c.l.b16 %v5495
      %v6009 = vunpack.c.l.b16 %v5496
      %v6010 = vunpack.c.l.b16 %v5497
      %v6011 = vunpack.c.l.b16 %v5498
      %v6012 = vunpack.c.l.b16 %v5499
      %v6013 = vunpack.c.l.b16 %v5500
      %v6014 = vunpack.c.l.b16 %v5501
      %v6015 = vunpack.c.l.b16 %v5502
      %v6016 = vunpack.c.l.b16 %v5503
      %v6017 = vunpack.c.l.b16 %v5504
      %v6018 = vunpack.c.l.b16 %v5505
      %v6019 = vunpack.c.l.b16 %v5506
      %v6020 = vunpack.c.l.b16 %v5507
      %v6021 = vunpack.c.l.b16 %v5508
      %v6022 = vunpack.c.l.b16 %v5509
      %v6023 = vunpack.c.l.b16 %v5510
      %v6024 = vunpack.c.l.b16 %v5511
      %v6025 = vunpack.c.l.b16 %v5512
      %v6026 = vunpack.c.l.b16 %v5513
      %v6027 = vunpack.c.l.b16 %v5514
      %v6028 = vunpack.c.l.b16 %v5515
      %v6029 = vunpack.c.l.b16 %v5516
      %v6030 = vunpack.c.l.b16 %v5517
      %v6031 = vunpack.c.l.b16 %v5518
      %v6032 = vunpack.c.l.b16 %v5519
      %v6033 = vunpack.c.l.b16 %v5520
      %v6034 = vunpack.c.l.b16 %v5521
      %v6035 = vunpack.c.l.b16 %v5522
      %v6036 = vunpack.c.l.b16 %v5523
      %v6037 = vunpack.c.l.b16 %v5524
      %v6038 = vunpack.c.l.b16 %v5525
      %v6039 = vunpack.c.l.b16 %v5526
      %v6040 = vunpack.c.l.b16 %v5527
      %v6041 = vunpack.c.l.b16 %v5528
      %v6042 = vunpack.c.l.b16 %v5529
      %v6043 = vunpack.c.l.b16 %v5530
      %v6044 = vunpack.c.l.b16 %v5531
      %v6045 = vunpack.c.l.b16 %v5532
      %v6046 = vunpack.c.l.b16 %v5533
      %v6047 = vunpack.c.l.b16 %v5534
      %v6048 = vunpack.c.l.b16 %v5535
      %v6049 = vunpack.c.l.b16 %v5536
      %v6050 = vunpack.c.l.b16 %v5537
      %v6051 = vunpack.c.l.b16 %v5538
      %v6052 = vunpack.c.l.b16 %v5539
      %v6053 = vunpack.c.l.b16 %v5540
      %v6054 = vunpack.c.l.b16 %v5541
      %v6055 = vunpack.c.l.b16 %v5542
      %v6056 = vunpack.c.l.b16 %v5543
      %v6057 = vunpack.c.l.b16 %v5544
      %v6058 = vunpack.c.l.b16 %v5545
      %v6059 = vunpack.c.l.b16 %v5546
      %v6060 = vunpack.c.l.b16 %v5547
      %v6061 = vunpack.c.l.b16 %v5548
      %v6062 = vunpack.c.l.b16 %v5549
      %v6063 = vunpack.c.l.b16 %v5550
      %v6064 = vunpack.c.l.b16 %v5551
      %v6065 = vunpack.c.l.b16 %v5552
      %v6066 = vunpack.c.l.b16 %v5553
      %v6067 = vunpack.c.l.b16 %v5554
      %v6068 = vunpack.c.l.b16 %v5555
      %v6069 = vunpack.c.l.b16 %v5556
      %v6070 = vunpack.c.l.b16 %v5557
      %v6071 = vunpack.c.l.b16 %v5558
      %v6072 = vunpack.c.l.b16 %v5559
      %v6073 = vunpack.c.l.b16 %v5560
      %v6074 = vunpack.c.l.b16 %v5561
      %v6075 = vunpack.c.l.b16 %v5562
      %v6076 = vunpack.c.l.b16 %v5563
      %v6077 = vunpack.c.l.b16 %v5564
      %v6078 = vunpack.c.l.b16 %v5565
      %v6079 = vunpack.c.l.b16 %v5566
      %v6080 = vunpack.c.l.b16 %v5567
      %v6081 = vunpack.c.l.b16 %v5568
      %v6082 = vunpack.c.l.b16 %v5569
      %v6083 = vunpack.c.l.b16 %v5570
      %v6084 = vunpack.c.l.b16 %v5571
      %v6085 = vunpack.c.l.b16 %v5572
      %v6086 = vunpack.c.l.b16 %v5573
      %v6087 = vunpack.c.l.b16 %v5574
      %v6088 = vunpack.c.l.b16 %v5575
      %v6089 = vunpack.c.l.b16 %v5576
      %v6090 = vunpack.c.l.b16 %v5577
      %v6091 = vunpack.c.l.b16 %v5578
      %v6092 = vunpack.c.l.b16 %v5579
      %v6093 = vunpack.c.l.b16 %v5580
      %v6094 = vunpack.c.l.b16 %v5581
      %v6095 = vunpack.c.l.b16 %v5582
      %v6096 = vunpack.c.l.b16 %v5583
      %v6097 = vunpack.c.l.b16 %v5584
      %v6098 = vunpack.c.l.b16 %v5585
      %v6099 = vunpack.c.l.b16 %v5586
      %v6100 = vunpack.c.l.b16 %v5587
      %v6101 = vunpack.c.l.b16 %v5588
      %v6102 = vunpack.c.l.b16 %v5589
      %v6103 = vunpack.c.l.b16 %v5590
      %v6104 = vunpack.c.l.b16 %v5591
      %v6105 = vunpack.c.l.b16 %v5592
      %v6106 = vunpack.c.l.b16 %v5593
      %v6107 = vunpack.c.l.b16 %v5594
      %v6108 = vunpack.c.l.b16 %v5595
      %v6109 = vunpack.c.l.b16 %v5596
      %v6110 = vunpack.c.l.b16 %v5597
      %v6111 = vunpack.c.l.b16 %v5598
      %v6112 = vunpack.c.l.b16 %v5599
      %v6113 = vunpack.c.l.b16 %v5600
      %v6114 = vunpack.c.l.b16 %v5601
      %v6115 = vunpack.c.l.b16 %v5602
      %v6116 = vunpack.c.l.b16 %v5603
      %v6117 = vunpack.c.l.b16 %v5604
      %v6118 = vunpack.c.l.b16 %v5605
      %v6119 = vunpack.c.l.b16 %v5606
      %v6120 = vunpack.c.l.b16 %v5607
      %v6121 = vunpack.c.l.b16 %v5608
      %v6122 = vunpack.c.l.b16 %v5609
      %v6123 = vunpack.c.l.b16 %v5610
      %v6124 = vunpack.c.l.b16 %v5611
      %v6125 = vunpack.c.l.b16 %v5612
      %v6126 = vunpack.c.l.b16 %v5613
      %v6127 = vunpack.c.l.b16 %v5614
      %v6128 = vunpack.c.l.b16 %v5615
      %v6129 = vunpack.c.l.b16 %v5616
      %v6130 = vunpack.c.l.b16 %v5617
      %v6131 = vunpack.c.l.b16 %v5618
      %v6132 = vunpack.c.l.b16 %v5619
      %v6133 = vunpack.c.l.b16 %v5620
      %v6134 = vunpack.c.l.b16 %v5621
      %v6135 = vunpack.c.l.b16 %v5622
      %v6136 = vunpack.c.l.b16 %v5623
      %v6137 = vunpack.c.l.b16 %v5624
      %v6138 = vunpack.c.l.b16 %v5625
      %v6139 = vunpack.c.l.b16 %v5626
      %v6140 = vunpack.c.l.b16 %v5627
      %v6141 = vunpack.c.l.b16 %v5628
      %v6142 = vunpack.c.l.b16 %v5629
      %v6143 = vunpack.c.l.b16 %v5630
      %v6144 = vunpack.c.l.b16 %v5631
      %v6145 = vunpack.c.l.b16 %v5632
      %v6146 = vunpack.c.l.b16 %v5633
      %v6147 = vunpack.c.l.b16 %v5634
      %v6148 = vunpack.c.l.b16 %v5635
      %v6149 = vunpack.c.l.b16 %v5636
      %v6150 = vunpack.c.l.b16 %v5637
      %v6151 = vunpack.c.l.b16 %v5638
      %v6152 = vunpack.c.l.b16 %v5639
      %v6153 = vunpack.c.l.b16 %v5640
      %v6154 = vunpack.c.l.b16 %v5641
      %v6155 = vunpack.c.l.b16 %v5642
      %v6156 = vunpack.c.l.b16 %v5643
      %v6157 = vunpack.c.l.b16 %v5644
      %v6158 = vunpack.c.l.b16 %v5645
      %v6159 = vunpack.c.l.b16 %v5646
      %v6160 = vunpack.c.l.b16 %v5647
      %v6161 = vunpack.c.l.b16 %v5648
      %v6162 = vunpack.c.l.b16 %v5649
      %v6163 = vunpack.c.l.b16 %v5650
      %v6164 = vunpack.c.l.b16 %v5651
      %v6165 = vunpack.c.l.b16 %v5652
      %v6166 = vunpack.c.l.b16 %v5653
      %v6167 = vunpack.c.l.b16 %v5654
      %v6168 = vunpack.c.l.b16 %v5655
      %v6169 = vunpack.c.l.b16 %v5656
      %v6170 = vunpack.c.l.b16 %v5657
      %v6171 = vunpack.c.l.b16 %v5658
      %v6172 = vunpack.c.l.b16 %v5659
      %v6173 = vunpack.c.l.b16 %v5660
      %v6174 = vunpack.c.l.b16 %v5661
      %v6175 = vunpack.c.l.b16 %v5662
      %v6176 = vunpack.c.l.b16 %v5663
      %v6177 = vunpack.c.l.b16 %v5664
      %v6178 = vunpack.c.l.b16 %v5665
      %v6179 = vunpack.c.l.b16 %v5666
      %v6180 = vunpack.c.l.b16 %v5667
      %v6181 = vunpack.c.l.b16 %v5668
      %v6182 = vunpack.c.l.b16 %v5669
      %v6183 = vunpack.c.l.b16 %v5670
      %v6184 = vunpack.c.l.b16 %v5671
      %v6185 = vunpack.c.l.b16 %v5672
      %v6186 = vunpack.c.l.b16 %v5673
      %v6187 = vunpack.c.l.b16 %v5674
      %v6188 = vunpack.c.l.b16 %v5675
      %v6189 = vunpack.c.l.b16 %v5676
      %v6190 = vunpack.c.l.b16 %v5677
      %v6191 = vunpack.c.l.b16 %v5678
      %v6192 = vunpack.c.l.b16 %v5679
      %v6193 = vunpack.c.l.b16 %v5680
      %v6194 = vunpack.c.l.b16 %v5681
      %v6195 = vunpack.c.l.b16 %v5682
      %v6196 = vunpack.c.l.b16 %v5683
      %v6197 = vunpack.c.l.b16 %v5684
      %v6198 = vunpack.c.l.b16 %v5685
      %v6199 = vunpack.c.l.b16 %v5686
      %v6200 = vunpack.c.l.b16 %v5687
      %v6201 = vunpack.c.l.b16 %v5688
      %v6202 = vunpack.c.l.b16 %v5689
      %v6203 = vunpack.c.l.b16 %v5690
      %v6204 = vunpack.c.l.b16 %v5691
      %v6205 = vunpack.c.l.b16 %v5692
      %v6206 = vunpack.c.l.b16 %v5693
      %v6207 = vunpack.c.l.b16 %v5694
      %v6208 = vunpack.c.l.b16 %v5695
      %v6209 = vunpack.c.l.b16 %v5696
      %v6210 = vunpack.c.l.b16 %v5697
      %v6211 = vunpack.c.l.b16 %v5698
      %v6212 = vunpack.c.l.b16 %v5699
      %v6213 = vunpack.c.l.b16 %v5700
      %v6214 = vunpack.c.l.b16 %v5701
      %v6215 = vunpack.c.l.b16 %v5702
      %v6216 = vunpack.c.l.b16 %v5703
      %v6217 = vunpack.c.l.b16 %v5704
      %v6218 = vunpack.c.l.b16 %v5705
      %v6219 = vunpack.c.l.b16 %v5706
      %v6220 = vunpack.c.l.b16 %v5707
      %v6221 = vunpack.c.l.b16 %v5708
      %v6222 = vunpack.c.l.b16 %v5709
      %v6223 = vunpack.c.l.b16 %v5710
      %v6224 = vunpack.c.l.b16 %v5711
      %v6225 = vpack.c.b16 %v5970, %v5969
      %v6226 = vpack.c.b16 %v5972, %v5971
      %v6227 = vpack.c.b16 %v5974, %v5973
      %v6228 = vpack.c.b16 %v5976, %v5975
      %v6229 = vpack.c.b16 %v5978, %v5977
      %v6230 = vpack.c.b16 %v5980, %v5979
      %v6231 = vpack.c.b16 %v5982, %v5981
      %v6232 = vpack.c.b16 %v5984, %v5983
      %v6233 = vpack.c.b16 %v5986, %v5985
      %v6234 = vpack.c.b16 %v5988, %v5987
      %v6235 = vpack.c.b16 %v5990, %v5989
      %v6236 = vpack.c.b16 %v5992, %v5991
      %v6237 = vpack.c.b16 %v5994, %v5993
      %v6238 = vpack.c.b16 %v5996, %v5995
      %v6239 = vpack.c.b16 %v5998, %v5997
      %v6240 = vpack.c.b16 %v6000, %v5999
      %v6241 = vpack.c.b16 %v6002, %v6001
      %v6242 = vpack.c.b16 %v6004, %v6003
      %v6243 = vpack.c.b16 %v6006, %v6005
      %v6244 = vpack.c.b16 %v6008, %v6007
      %v6245 = vpack.c.b16 %v6010, %v6009
      %v6246 = vpack.c.b16 %v6012, %v6011
      %v6247 = vpack.c.b16 %v6014, %v6013
      %v6248 = vpack.c.b16 %v6016, %v6015
      %v6249 = vpack.c.b16 %v6018, %v6017
      %v6250 = vpack.c.b16 %v6020, %v6019
      %v6251 = vpack.c.b16 %v6022, %v6021
      %v6252 = vpack.c.b16 %v6024, %v6023
      %v6253 = vpack.c.b16 %v6026, %v6025
      %v6254 = vpack.c.b16 %v6028, %v6027
      %v6255 = vpack.c.b16 %v6030, %v6029
      %v6256 = vpack.c.b16 %v6032, %v6031
      %v6257 = vpack.c.b16 %v6034, %v6033
      %v6258 = vpack.c.b16 %v6036, %v6035
      %v6259 = vpack.c.b16 %v6038, %v6037
      %v6260 = vpack.c.b16 %v6040, %v6039
      %v6261 = vpack.c.b16 %v6042, %v6041
      %v6262 = vpack.c.b16 %v6044, %v6043
      %v6263 = vpack.c.b16 %v6046, %v6045
      %v6264 = vpack.c.b16 %v6048, %v6047
      %v6265 = vpack.c.b16 %v6050, %v6049
      %v6266 = vpack.c.b16 %v6052, %v6051
      %v6267 = vpack.c.b16 %v6054, %v6053
      %v6268 = vpack.c.b16 %v6056, %v6055
      %v6269 = vpack.c.b16 %v6058, %v6057
      %v6270 = vpack.c.b16 %v6060, %v6059
      %v6271 = vpack.c.b16 %v6062, %v6061
      %v6272 = vpack.c.b16 %v6064, %v6063
      %v6273 = vpack.c.b16 %v6066, %v6065
      %v6274 = vpack.c.b16 %v6068, %v6067
      %v6275 = vpack.c.b16 %v6070, %v6069
      %v6276 = vpack.c.b16 %v6072, %v6071
      %v6277 = vpack.c.b16 %v6074, %v6073
      %v6278 = vpack.c.b16 %v6076, %v6075
      %v6279 = vpack.c.b16 %v6078, %v6077
      %v6280 = vpack.c.b16 %v6080, %v6079
      %v6281 = vpack.c.b16 %v6082, %v6081
      %v6282 = vpack.c.b16 %v6084, %v6083
      %v6283 = vpack.c.b16 %v6086, %v6085
      %v6284 = vpack.c.b16 %v6088, %v6087
      %v6285 = vpack.c.b16 %v6090, %v6089
      %v6286 = vpack.c.b16 %v6092, %v6091
      %v6287 = vpack.c.b16 %v6094, %v6093
      %v6288 = vpack.c.b16 %v6096, %v6095
      %v6289 = vpack.c.b16 %v6098, %v6097
      %v6290 = vpack.c.b16 %v6100, %v6099
      %v6291 = vpack.c.b16 %v6102, %v6101
      %v6292 = vpack.c.b16 %v6104, %v6103
      %v6293 = vpack.c.b16 %v6106, %v6105
      %v6294 = vpack.c.b16 %v6108, %v6107
      %v6295 = vpack.c.b16 %v6110, %v6109
      %v6296 = vpack.c.b16 %v6112, %v6111
      %v6297 = vpack.c.b16 %v6114, %v6113
      %v6298 = vpack.c.b16 %v6116, %v6115
      %v6299 = vpack.c.b16 %v6118, %v6117
      %v6300 = vpack.c.b16 %v6120, %v6119
      %v6301 = vpack.c.b16 %v6122, %v6121
      %v6302 = vpack.c.b16 %v6124, %v6123
      %v6303 = vpack.c.b16 %v6126, %v6125
      %v6304 = vpack.c.b16 %v6128, %v6127
      %v6305 = vpack.c.b16 %v6130, %v6129
      %v6306 = vpack.c.b16 %v6132, %v6131
      %v6307 = vpack.c.b16 %v6134, %v6133
      %v6308 = vpack.c.b16 %v6136, %v6135
      %v6309 = vpack.c.b16 %v6138, %v6137
      %v6310 = vpack.c.b16 %v6140, %v6139
      %v6311 = vpack.c.b16 %v6142, %v6141
      %v6312 = vpack.c.b16 %v6144, %v6143
      %v6313 = vpack.c.b16 %v6146, %v6145
      %v6314 = vpack.c.b16 %v6148, %v6147
      %v6315 = vpack.c.b16 %v6150, %v6149
      %v6316 = vpack.c.b16 %v6152, %v6151
      %v6317 = vpack.c.b16 %v6154, %v6153
      %v6318 = vpack.c.b16 %v6156, %v6155
      %v6319 = vpack.c.b16 %v6158, %v6157
      %v6320 = vpack.c.b16 %v6160, %v6159
      %v6321 = vpack.c.b16 %v6162, %v6161
      %v6322 = vpack.c.b16 %v6164, %v6163
      %v6323 = vpack.c.b16 %v6166, %v6165
      %v6324 = vpack.c.b16 %v6168, %v6167
      %v6325 = vpack.c.b16 %v6170, %v6169
      %v6326 = vpack.c.b16 %v6172, %v6171
      %v6327 = vpack.c.b16 %v6174, %v6173
      %v6328 = vpack.c.b16 %v6176, %v6175
      %v6329 = vpack.c.b16 %v6178, %v6177
      %v6330 = vpack.c.b16 %v6180, %v6179
      %v6331 = vpack.c.b16 %v6182, %v6181
      %v6332 = vpack.c.b16 %v6184, %v6183
      %v6333 = vpack.c.b16 %v6186, %v6185
      %v6334 = vpack.c.b16 %v6188, %v6187
      %v6335 = vpack.c.b16 %v6190, %v6189
      %v6336 = vpack.c.b16 %v6192, %v6191
      %v6337 = vpack.c.b16 %v6194, %v6193
      %v6338 = vpack.c.b16 %v6196, %v6195
      %v6339 = vpack.c.b16 %v6198, %v6197
      %v6340 = vpack.c.b16 %v6200, %v6199
      %v6341 = vpack.c.b16 %v6202, %v6201
      %v6342 = vpack.c.b16 %v6204, %v6203
      %v6343 = vpack.c.b16 %v6206, %v6205
      %v6344 = vpack.c.b16 %v6208, %v6207
      %v6345 = vpack.c.b16 %v6210, %v6209
      %v6346 = vpack.c.b16 %v6212, %v6211
      %v6347 = vpack.c.b16 %v6214, %v6213
      %v6348 = vpack.c.b16 %v6216, %v6215
      %v6349 = vpack.c.b16 %v6218, %v6217
      %v6350 = vpack.c.b16 %v6220, %v6219
      %v6351 = vpack.c.b16 %v6222, %v6221
      %v6352 = vpack.c.b16 %v6224, %v6223
      %6481 = vmatpush.bf16.msra.mxu0 %v6232
      %6482 = vmatpush.bf16.msra.mxu0 %v6231
      %6483 = vmatpush.bf16.msra.mxu0 %v6230
      %6484 = vmatpush.bf16.msra.mxu0 %v6229
      %6485 = vmatpush.bf16.msra.mxu0 %v6228
      %6486 = vmatpush.bf16.msra.mxu0 %v6227
      %6487 = vmatpush.bf16.msra.mxu0 %v6226
      %6488 = vmatpush.bf16.msra.mxu0 %v6225
      %6489 = vmatmul.bf16.gmra.mxu0 %v5440
      %v6490 = vpop.f32.mrf.mxu0
      %v6491 = vadd.f32 %v5712, %v6490
      %v6492 = vpop.f32.mrf.mxu0
      %6493 = vdwg.mxu0
      %6494 = vmatpush.bf16.msra.mxu0 %v6240
      %6495 = vmatpush.bf16.msra.mxu0 %v6239
      %6496 = vmatpush.bf16.msra.mxu0 %v6238
      %6497 = vmatpush.bf16.msra.mxu0 %v6237
      %6498 = vmatpush.bf16.msra.mxu0 %v6236
      %6499 = vmatpush.bf16.msra.mxu0 %v6235
      %6500 = vmatpush.bf16.msra.mxu0 %v6234
      %6501 = vmatpush.bf16.msra.mxu0 %v6233
      %6502 = vmatmul.bf16.gmra.mxu0 %v5441
      %v6503 = vpop.f32.mrf.mxu0
      %v6504 = vadd.f32 %v6491, %v6503
      %v6505 = vpop.f32.mrf.mxu0
      %6506 = vdwg.mxu0
      %6507 = vmatpush.bf16.msra.mxu0 %v6248
      %6508 = vmatpush.bf16.msra.mxu0 %v6247
      %6509 = vmatpush.bf16.msra.mxu0 %v6246
      %6510 = vmatpush.bf16.msra.mxu0 %v6245
      %6511 = vmatpush.bf16.msra.mxu0 %v6244
      %6512 = vmatpush.bf16.msra.mxu0 %v6243
      %6513 = vmatpush.bf16.msra.mxu0 %v6242
      %6514 = vmatpush.bf16.msra.mxu0 %v6241
      %6515 = vmatmul.bf16.gmra.mxu0 %v5442
      %v6516 = vpop.f32.mrf.mxu0
      %v6517 = vadd.f32 %v6504, %v6516
      %v6518 = vpop.f32.mrf.mxu0
      %6519 = vdwg.mxu0
      %6520 = vmatpush.bf16.msra.mxu0 %v6256
      %6521 = vmatpush.bf16.msra.mxu0 %v6255
      %6522 = vmatpush.bf16.msra.mxu0 %v6254
      %6523 = vmatpush.bf16.msra.mxu0 %v6253
      %6524 = vmatpush.bf16.msra.mxu0 %v6252
      %6525 = vmatpush.bf16.msra.mxu0 %v6251
      %6526 = vmatpush.bf16.msra.mxu0 %v6250
      %6527 = vmatpush.bf16.msra.mxu0 %v6249
      %6528 = vmatmul.bf16.gmra.mxu0 %v5443
      %v6529 = vpop.f32.mrf.mxu0
      %v6530 = vadd.f32 %v6517, %v6529
      %v6531 = vpop.f32.mrf.mxu0
      %6532 = vdwg.mxu0
      %6533 = vmatpush.bf16.msra.mxu0 %v6264
      %6534 = vmatpush.bf16.msra.mxu0 %v6263
      %6535 = vmatpush.bf16.msra.mxu0 %v6262
      %6536 = vmatpush.bf16.msra.mxu0 %v6261
      %6537 = vmatpush.bf16.msra.mxu0 %v6260
      %6538 = vmatpush.bf16.msra.mxu0 %v6259
      %6539 = vmatpush.bf16.msra.mxu0 %v6258
      %6540 = vmatpush.bf16.msra.mxu0 %v6257
      %6541 = vmatmul.bf16.gmra.mxu0 %v5444
      %v6542 = vpop.f32.mrf.mxu0
      %v6543 = vadd.f32 %v6530, %v6542
      %v6544 = vpop.f32.mrf.mxu0
      %6545 = vdwg.mxu0
      %6546 = vmatpush.bf16.msra.mxu0 %v6272
      %6547 = vmatpush.bf16.msra.mxu0 %v6271
      %6548 = vmatpush.bf16.msra.mxu0 %v6270
      %6549 = vmatpush.bf16.msra.mxu0 %v6269
      %6550 = vmatpush.bf16.msra.mxu0 %v6268
      %6551 = vmatpush.bf16.msra.mxu0 %v6267
      %6552 = vmatpush.bf16.msra.mxu0 %v6266
      %6553 = vmatpush.bf16.msra.mxu0 %v6265
      %6554 = vmatmul.bf16.gmra.mxu0 %v5445
      %v6555 = vpop.f32.mrf.mxu0
      %v6556 = vadd.f32 %v6543, %v6555
      %v6557 = vpop.f32.mrf.mxu0
      %6558 = vdwg.mxu0
      %6559 = vmatpush.bf16.msra.mxu0 %v6280
      %6560 = vmatpush.bf16.msra.mxu0 %v6279
      %6561 = vmatpush.bf16.msra.mxu0 %v6278
      %6562 = vmatpush.bf16.msra.mxu0 %v6277
      %6563 = vmatpush.bf16.msra.mxu0 %v6276
      %6564 = vmatpush.bf16.msra.mxu0 %v6275
      %6565 = vmatpush.bf16.msra.mxu0 %v6274
      %6566 = vmatpush.bf16.msra.mxu0 %v6273
      %6567 = vmatmul.bf16.gmra.mxu0 %v5446
      %v6568 = vpop.f32.mrf.mxu0
      %v6569 = vadd.f32 %v6556, %v6568
      %v6570 = vpop.f32.mrf.mxu0
      %6571 = vdwg.mxu0
      %6572 = vmatpush.bf16.msra.mxu0 %v6288
      %6573 = vmatpush.bf16.msra.mxu0 %v6287
      %6574 = vmatpush.bf16.msra.mxu0 %v6286
      %6575 = vmatpush.bf16.msra.mxu0 %v6285
      %6576 = vmatpush.bf16.msra.mxu0 %v6284
      %6577 = vmatpush.bf16.msra.mxu0 %v6283
      %6578 = vmatpush.bf16.msra.mxu0 %v6282
      %6579 = vmatpush.bf16.msra.mxu0 %v6281
      %6580 = vmatmul.bf16.gmra.mxu0 %v5447
      %v6581 = vpop.f32.mrf.mxu0
      %v6582 = vadd.f32 %v6569, %v6581
      %v6583 = vpop.f32.mrf.mxu0
      %6584 = vdwg.mxu0
      %6585 = vmatpush.bf16.msra.mxu0 %v6296
      %6586 = vmatpush.bf16.msra.mxu0 %v6295
      %6587 = vmatpush.bf16.msra.mxu0 %v6294
      %6588 = vmatpush.bf16.msra.mxu0 %v6293
      %6589 = vmatpush.bf16.msra.mxu0 %v6292
      %6590 = vmatpush.bf16.msra.mxu0 %v6291
      %6591 = vmatpush.bf16.msra.mxu0 %v6290
      %6592 = vmatpush.bf16.msra.mxu0 %v6289
      %6593 = vmatmul.bf16.gmra.mxu0 %v5448
      %v6594 = vpop.f32.mrf.mxu0
      %v6595 = vadd.f32 %v6582, %v6594
      %v6596 = vpop.f32.mrf.mxu0
      %6597 = vdwg.mxu0
      %6598 = vmatpush.bf16.msra.mxu0 %v6304
      %6599 = vmatpush.bf16.msra.mxu0 %v6303
      %6600 = vmatpush.bf16.msra.mxu0 %v6302
      %6601 = vmatpush.bf16.msra.mxu0 %v6301
      %6602 = vmatpush.bf16.msra.mxu0 %v6300
      %6603 = vmatpush.bf16.msra.mxu0 %v6299
      %6604 = vmatpush.bf16.msra.mxu0 %v6298
      %6605 = vmatpush.bf16.msra.mxu0 %v6297
      %6606 = vmatmul.bf16.gmra.mxu0 %v5449
      %v6607 = vpop.f32.mrf.mxu0
      %v6608 = vadd.f32 %v6595, %v6607
      %v6609 = vpop.f32.mrf.mxu0
      %6610 = vdwg.mxu0
      %6611 = vmatpush.bf16.msra.mxu0 %v6312
      %6612 = vmatpush.bf16.msra.mxu0 %v6311
      %6613 = vmatpush.bf16.msra.mxu0 %v6310
      %6614 = vmatpush.bf16.msra.mxu0 %v6309
      %6615 = vmatpush.bf16.msra.mxu0 %v6308
      %6616 = vmatpush.bf16.msra.mxu0 %v6307
      %6617 = vmatpush.bf16.msra.mxu0 %v6306
      %6618 = vmatpush.bf16.msra.mxu0 %v6305
      %6619 = vmatmul.bf16.gmra.mxu0 %v5450
      %v6620 = vpop.f32.mrf.mxu0
      %v6621 = vadd.f32 %v6608, %v6620
      %v6622 = vpop.f32.mrf.mxu0
      %6623 = vdwg.mxu0
      %6624 = vmatpush.bf16.msra.mxu0 %v6320
      %6625 = vmatpush.bf16.msra.mxu0 %v6319
      %6626 = vmatpush.bf16.msra.mxu0 %v6318
      %6627 = vmatpush.bf16.msra.mxu0 %v6317
      %6628 = vmatpush.bf16.msra.mxu0 %v6316
      %6629 = vmatpush.bf16.msra.mxu0 %v6315
      %6630 = vmatpush.bf16.msra.mxu0 %v6314
      %6631 = vmatpush.bf16.msra.mxu0 %v6313
      %6632 = vmatmul.bf16.gmra.mxu0 %v5451
      %v6633 = vpop.f32.mrf.mxu0
      %v6634 = vadd.f32 %v6621, %v6633
      %v6635 = vpop.f32.mrf.mxu0
      %6636 = vdwg.mxu0
      %6637 = vmatpush.bf16.msra.mxu0 %v6328
      %6638 = vmatpush.bf16.msra.mxu0 %v6327
      %6639 = vmatpush.bf16.msra.mxu0 %v6326
      %6640 = vmatpush.bf16.msra.mxu0 %v6325
      %6641 = vmatpush.bf16.msra.mxu0 %v6324
      %6642 = vmatpush.bf16.msra.mxu0 %v6323
      %6643 = vmatpush.bf16.msra.mxu0 %v6322
      %6644 = vmatpush.bf16.msra.mxu0 %v6321
      %6645 = vmatmul.bf16.gmra.mxu0 %v5452
      %v6646 = vpop.f32.mrf.mxu0
      %v6647 = vadd.f32 %v6634, %v6646
      %v6648 = vpop.f32.mrf.mxu0
      %6649 = vdwg.mxu0
      %6650 = vmatpush.bf16.msra.mxu0 %v6336
      %6651 = vmatpush.bf16.msra.mxu0 %v6335
      %6652 = vmatpush.bf16.msra.mxu0 %v6334
      %6653 = vmatpush.bf16.msra.mxu0 %v6333
      %6654 = vmatpush.bf16.msra.mxu0 %v6332
      %6655 = vmatpush.bf16.msra.mxu0 %v6331
      %6656 = vmatpush.bf16.msra.mxu0 %v6330
      %6657 = vmatpush.bf16.msra.mxu0 %v6329
      %6658 = vmatmul.bf16.gmra.mxu0 %v5453
      %v6659 = vpop.f32.mrf.mxu0
      %v6660 = vadd.f32 %v6647, %v6659
      %v6661 = vpop.f32.mrf.mxu0
      %6662 = vdwg.mxu0
      %6663 = vmatpush.bf16.msra.mxu0 %v6344
      %6664 = vmatpush.bf16.msra.mxu0 %v6343
      %6665 = vmatpush.bf16.msra.mxu0 %v6342
      %6666 = vmatpush.bf16.msra.mxu0 %v6341
      %6667 = vmatpush.bf16.msra.mxu0 %v6340
      %6668 = vmatpush.bf16.msra.mxu0 %v6339
      %6669 = vmatpush.bf16.msra.mxu0 %v6338
      %6670 = vmatpush.bf16.msra.mxu0 %v6337
      %6671 = vmatmul.bf16.gmra.mxu0 %v5454
      %v6672 = vpop.f32.mrf.mxu0
      %v6673 = vadd.f32 %v6660, %v6672
      %v6674 = vpop.f32.mrf.mxu0
      %6675 = vdwg.mxu0
      %6676 = vmatpush.bf16.msra.mxu0 %v6352
      %6677 = vmatpush.bf16.msra.mxu0 %v6351
      %6678 = vmatpush.bf16.msra.mxu0 %v6350
      %6679 = vmatpush.bf16.msra.mxu0 %v6349
      %6680 = vmatpush.bf16.msra.mxu0 %v6348
      %6681 = vmatpush.bf16.msra.mxu0 %v6347
      %6682 = vmatpush.bf16.msra.mxu0 %v6346
      %6683 = vmatpush.bf16.msra.mxu0 %v6345
      %6684 = vmatmul.bf16.gmra.mxu0 %v5455
      %v6685 = vpop.f32.mrf.mxu0
      %v6686 = vadd.f32 %v6673, %v6685
      %v6687 = vpop.f32.mrf.mxu0
      %6688 = vdwg.mxu0
      %v6689 = vperm.slane %v6686, 0
      %6690 = vst [vmem:[%s276] sm:$0xff] %v6689
      %p6691 = scmp.lt.s32.totalorder %s18, 1
      %s6692 = scalar_select %p6691, %s18, 1
      %s6693 = smul.addr %s6692, 8
      %s6694 = scalar_lea.vmem %s7, %s6693
      // Predicated region
      $region49: #{cifar_forward.1} parent=47 // pred_check
        %p6695 = pneg %p188
      $region50: #{cifar_forward.1} parent=47 // pred_check_branch
        %6697 = sbr.rel (%p6695) target = $region52
      $region51: #{cifar_forward.1} parent=47 // pred_region
        _
      $region52: #{cifar_forward.1} parent=47 // pred_fallthru
        _
    $region48: #{cifar_forward.1} parent=5 // pred_fallthru
      _
    %p6698 = scmp.le.s32.totalorder 2, %s13
    // Predicated region
    $region53: #{cifar_forward.1} parent=5 // pred_check
      %p6699 = pneg %p6698
    $region54: #{cifar_forward.1} parent=5 // pred_check_branch
      %6701 = sbr.rel (%p6699) target = $region56
    $region55: #{cifar_forward.1} parent=5 // pred_region
      %s6702 = ssub.s32 %s13, 2
      // Predicated region
      $region57: #{cifar_forward.1} parent=55 // pred_check
        %p6703 = pneg %p194
      $region58: #{cifar_forward.1} parent=55 // pred_check_branch
        %6705 = sbr.rel (%p6703) target = $region60
      $region59: #{cifar_forward.1} parent=55 // pred_region
        %p6706 = scmp.lt.s32.totalorder %s19, 1
        %s6707 = scalar_select %p6706, %s19, 1
        %s6708 = smul.addr %s6707, 8
        %s6709 = scalar_lea.vmem %s7, %s6708
      $region60: #{cifar_forward.1} parent=55 // pred_fallthru
        _
    $region56: #{cifar_forward.1} parent=5 // pred_fallthru
      _
  $region6: #{cifar_forward.1} parent=0 // loop_footer
    %s17 = sadd.s32 1, %s13
  $region7: #{cifar_forward.1} parent=0 // loop_footer_branch
    %12 = sbr.rel target = $region3
  $region8: #{cifar_forward.1} parent=0 // loop_exit
    _

</llo_original>
